<compile_context>
chip_gen: v7x
topology: tpu7x:2x2x1
jax: 0.10.0
libtpu: 0.0.40
codegen_flags: <defaults>
</compile_context>

<pallas_src>
import functools

import jax
import jax.numpy as jnp
from jax import lax
from jax.experimental import pallas as pl
from jax.experimental.pallas import tpu as pltpu

LRELU_SLOPE = 0.2
BN_EPS = 1e-5


def _round_up(x, m):
    return (x + m - 1) // m * m


# ---------------------------------------------------------------------------
# Pallas kernel: fused im2col-GEMM conv + bias/BatchNorm affine + LeakyReLU.
# ---------------------------------------------------------------------------
def _conv_gemm_kernel(p_ref, w_ref, scale_ref, shift_ref, o_ref, *, apply_act):
    # p_ref:     (TM, K)   im2col patches for TM output pixels
    # w_ref:     (K, Np)   flattened conv weight, out-channels lane-padded to 128x
    # scale_ref: (1, Np)   per-channel scale  (BN gamma / sqrt(var+eps), or 1)
    # shift_ref: (1, Np)   per-channel shift  (conv bias + BN beta/mean folded)
    # o_ref:     (TM, Np)
    acc = jnp.dot(p_ref[...], w_ref[...],
                  preferred_element_type=jnp.float32,
                  precision=lax.Precision.HIGHEST)
    y = acc * scale_ref[...] + shift_ref[...]
    if apply_act:
        y = jnp.where(y >= 0, y, LRELU_SLOPE * y)
    o_ref[...] = y.astype(o_ref.dtype)


def _im2col(x_nhwc, k, stride, pad):
    """(B,H,W,C) -> (B*Hout*Wout, k*k*C) patches, feature order (kh, kw, c)."""
    B, H, W, C = x_nhwc.shape
    Hout = (H + 2 * pad - k) // stride + 1
    Wout = (W + 2 * pad - k) // stride + 1
    xp = jnp.pad(x_nhwc, ((0, 0), (pad, pad), (pad, pad), (0, 0)))
    cols = []
    for kh in range(k):
        for kw in range(k):
            cols.append(xp[:, kh:kh + stride * Hout:stride,
                           kw:kw + stride * Wout:stride, :])
    patches = jnp.stack(cols, axis=3)                 # (B, Hout, Wout, k*k, C)
    return patches.reshape(B * Hout * Wout, k * k * C), Hout, Wout


def conv4x4_block(x_nhwc, weight, bias, bn=None, act=True, stride=1,
                  tile_m=256):
    """One D_NLayersMulti layer: Conv2d(k=4, p=1) [+ BatchNorm] [+ LeakyReLU].

    x_nhwc: (B, H, W, Cin) float32
    weight: (Cout, Cin, 4, 4)  PyTorch OIHW layout
    bias:   (Cout,)
    bn:     None, or dict(gamma, beta, mean, var) for eval-mode BatchNorm
    """
    B, H, W, Cin = x_nhwc.shape
    Cout = weight.shape[0]
    k, pad = 4, 1

    patches, Hout, Wout = _im2col(x_nhwc, k, stride, pad)
    M, K = patches.shape

    # Flatten weight to (K, Cout), matching the patch feature order (kh, kw, c).
    wmat = jnp.transpose(weight, (2, 3, 1, 0)).reshape(K, Cout)

    # Fold conv bias and (eval-mode) BatchNorm into per-channel scale/shift.
    if bn is None:
        scale = jnp.ones((Cout,), jnp.float32)
        shift = bias.astype(jnp.float32)
    else:
        s = bn["gamma"] / jnp.sqrt(bn["var"] + BN_EPS)
        scale = s
        shift = (bias - bn["mean"]) * s + bn["beta"]

    # Lane-dense out-channel padding (multiple of 128) and sublane-aligned /
    # tiled pixel axis (multiple of 8, up to tile_m rows per grid step).
    Np = _round_up(Cout, 128)
    tm = min(tile_m, _round_up(M, 8))
    Mp = _round_up(M, tm)

    patches = jnp.pad(patches, ((0, Mp - M), (0, 0)))
    wmat = jnp.pad(wmat, ((0, 0), (0, Np - Cout)))
    scale = jnp.pad(scale, (0, Np - Cout), constant_values=1.0).reshape(1, Np)
    shift = jnp.pad(shift, (0, Np - Cout)).reshape(1, Np)

    out = pl.pallas_call(
        functools.partial(_conv_gemm_kernel, apply_act=act),
        out_shape=jax.ShapeDtypeStruct((Mp, Np), x_nhwc.dtype),
        grid_spec=pltpu.PrefetchScalarGridSpec(
            num_scalar_prefetch=0,
            grid=(Mp // tm,),
            in_specs=[
                pl.BlockSpec((tm, K), lambda i: (i, 0)),
                pl.BlockSpec((K, Np), lambda i: (0, 0)),
                pl.BlockSpec((1, Np), lambda i: (0, 0)),
                pl.BlockSpec((1, Np), lambda i: (0, 0)),
            ],
            out_specs=pl.BlockSpec((tm, Np), lambda i: (i, 0)),
        ),
        compiler_params=pltpu.CompilerParams(
            dimension_semantics=("parallel",)),
    )(patches, wmat, scale, shift)

    return out[:M, :Cout].reshape(B, Hout, Wout, Cout)


# ---------------------------------------------------------------------------
# D_NLayersMulti (num_D = 1) parameters + forward.
# ---------------------------------------------------------------------------
def init_d_nlayers_params(key, input_nc, ndf=64, n_layers=3):
    """Layer configs/params mirroring D_NLayersMulti.get_layers (num_D=1)."""
    cfgs = [(input_nc, ndf, 2, False, True)]          # (cin, cout, stride, bn, act)
    nf_mult = 1
    for n in range(1, n_layers):
        nf_prev, nf_mult = nf_mult, min(2 ** n, 8)
        cfgs.append((ndf * nf_prev, ndf * nf_mult, 2, True, True))
    nf_prev, nf_mult = nf_mult, min(2 ** n_layers, 8)
    cfgs.append((ndf * nf_prev, ndf * nf_mult, 1, True, True))
    cfgs.append((ndf * nf_mult, 1, 1, False, False))

    params = []
    for (cin, cout, stride, use_bn, use_act) in cfgs:
        key, kw_, kb_, kg, kbt, km, kv = jax.random.split(key, 7)
        layer = {
            "weight": 0.1 * jax.random.normal(kw_, (cout, cin, 4, 4), jnp.float32),
            "bias": 0.1 * jax.random.normal(kb_, (cout,), jnp.float32),
            "stride": stride,
            "act": use_act,
            "bn": None,
        }
        if use_bn:
            layer["bn"] = {
                "gamma": 1.0 + 0.1 * jax.random.normal(kg, (cout,), jnp.float32),
                "beta": 0.1 * jax.random.normal(kbt, (cout,), jnp.float32),
                "mean": 0.1 * jax.random.normal(km, (cout,), jnp.float32),
                "var": 1.0 + 0.1 * jnp.abs(
                    jax.random.normal(kv, (cout,), jnp.float32)),
            }
        params.append(layer)
    return params


def d_nlayers_multi_forward(x_nchw, params):
    """Forward of D_NLayersMulti with num_D=1 (single PatchGAN branch)."""
    # TODO(synk): num_D > 1 branch (AvgPool2d(3, s=2, p=1,
    # count_include_pad=False) image pyramid) not implemented; the module's
    # default construction uses num_D = 1.
    # TODO(synk): BatchNorm is applied in eval mode (running stats), not
    # training-mode batch statistics.
    x = jnp.transpose(x_nchw, (0, 2, 3, 1))       # NCHW -> NHWC (channels on lanes)
    for layer in params:
        x = conv4x4_block(x, layer["weight"], layer["bias"], bn=layer["bn"],
                          act=layer["act"], stride=layer["stride"])
    return jnp.transpose(x, (0, 3, 1, 2))         # back to NCHW


# ---------------------------------------------------------------------------
# Pure-JAX reference for verification (not part of the kernel path).
# ---------------------------------------------------------------------------
def _reference_forward(x_nchw, params):
    y = x_nchw
    for layer in params:
        w, b, s = layer["weight"], layer["bias"], layer["stride"]
        y = lax.conv_general_dilated(
            y, w, window_strides=(s, s), padding=((1, 1), (1, 1)),
            dimension_numbers=("NCHW", "OIHW", "NCHW"),
            precision=lax.Precision.HIGHEST)
        y = y + b.reshape(1, -1, 1, 1)
        if layer["bn"] is not None:
            bn = layer["bn"]
            inv = (bn["gamma"] / jnp.sqrt(bn["var"] + BN_EPS)).reshape(1, -1, 1, 1)
            y = (y - bn["mean"].reshape(1, -1, 1, 1)) * inv \
                + bn["beta"].reshape(1, -1, 1, 1)
        if layer["act"]:
            y = jnp.where(y >= 0, y, LRELU_SLOPE * y)
    return y


if __name__ == "__main__":
    # Small config consistent with the module (n_layers=3 needs >=32 spatial).
    B, input_nc, H, W = 2, 3, 32, 32
    ndf, n_layers = 8, 3

    key = jax.random.PRNGKey(0)
    kx, kp = jax.random.split(key)
    x = jax.random.normal(kx, (B, input_nc, H, W), dtype=jnp.float32)
    params = init_d_nlayers_params(kp, input_nc, ndf=ndf, n_layers=n_layers)

    fwd = jax.jit(lambda inp: d_nlayers_multi_forward(inp, params))
    y = jax.block_until_ready(fwd(x))

    ref = _reference_forward(x, params)
    assert y.shape == ref.shape == (B, 1, 2, 2), (y.shape, ref.shape)
    max_err = float(jnp.max(jnp.abs(y - ref)))
    assert jnp.allclose(y, ref, atol=2e-2, rtol=2e-2), max_err

    print("KERNEL_OK")
</pallas_src>

<mosaic_0001>
module attributes {stable_mosaic.version = 11 : i64} {
  func.func @_conv_gemm_kernel(%arg0: i32, %arg1: memref<256x48xf32, #tpu.memory_space<vmem>>, %arg2: memref<48x128xf32, #tpu.memory_space<vmem>>, %arg3: memref<1x128xf32, #tpu.memory_space<vmem>>, %arg4: memref<1x128xf32, #tpu.memory_space<vmem>>, %arg5: memref<256x128xf32, #tpu.memory_space<vmem>>) attributes {dimension_semantics = [#tpu.dimension_semantics<parallel>], iteration_bounds = array<i64: 2>, scalar_prefetch = 0 : i64, scratch_operands = 0 : i64, tpu.core_type = #tpu.core_type<tc>, window_params = [{transform_indices = @transform_0, window_bounds = array<i64: 256, 48>}, {pipeline_mode = #tpu.pipeline_mode<synchronous>, transform_indices = @transform_1, window_bounds = array<i64: 48, 128>}, {pipeline_mode = #tpu.pipeline_mode<synchronous>, transform_indices = @transform_2, window_bounds = array<i64: 1, 128>}, {pipeline_mode = #tpu.pipeline_mode<synchronous>, transform_indices = @transform_3, window_bounds = array<i64: 1, 128>}, {transform_indices = @transform_4, window_bounds = array<i64: 256, 128>}]} {
    %c0 = arith.constant 0 : index
    %c0_0 = arith.constant 0 : index
    %0 = vector.load %arg1[%c0, %c0_0] : memref<256x48xf32, #tpu.memory_space<vmem>>, vector<256x48xf32>
    %c0_1 = arith.constant 0 : index
    %c0_2 = arith.constant 0 : index
    %1 = vector.load %arg2[%c0_1, %c0_2] : memref<48x128xf32, #tpu.memory_space<vmem>>, vector<48x128xf32>
    %cst = arith.constant dense<0.000000e+00> : vector<256x128xf32>
    %2 = tpu.matmul %0, %1, %cst {dimension_numbers = #tpu.dot_dimension_numbers<[1], [0], [0], [1], [0, 0, 1, 1], [], []>, precision = #tpu.contract_precision<fp32>} : vector<256x48xf32>, vector<48x128xf32>, vector<256x128xf32> -> vector<256x128xf32>
    %c0_3 = arith.constant 0 : index
    %c0_4 = arith.constant 0 : index
    %3 = vector.load %arg3[%c0_3, %c0_4] : memref<1x128xf32, #tpu.memory_space<vmem>>, vector<1x128xf32>
    %4 = vector.broadcast %3 : vector<1x128xf32> to vector<256x128xf32>
    %5 = arith.mulf %2, %4 : vector<256x128xf32>
    %c0_5 = arith.constant 0 : index
    %c0_6 = arith.constant 0 : index
    %6 = vector.load %arg4[%c0_5, %c0_6] : memref<1x128xf32, #tpu.memory_space<vmem>>, vector<1x128xf32>
    %7 = vector.broadcast %6 : vector<1x128xf32> to vector<256x128xf32>
    %8 = arith.addf %5, %7 : vector<256x128xf32>
    %cst_7 = arith.constant 0.000000e+00 : f32
    %9 = vector.broadcast %cst_7 : f32 to vector<256x128xf32>
    %10 = arith.cmpf oge, %8, %9 : vector<256x128xf32>
    %cst_8 = arith.constant 2.000000e-01 : f32
    %11 = vector.broadcast %cst_8 : f32 to vector<256x128xf32>
    %12 = arith.mulf %11, %8 : vector<256x128xf32>
    %13 = arith.select %10, %8, %12 : vector<256x128xi1>, vector<256x128xf32>
    %c0_9 = arith.constant 0 : index
    %c0_10 = arith.constant 0 : index
    %14 = vector.load %arg5[%c0_9, %c0_10] : memref<256x128xf32, #tpu.memory_space<vmem>>, vector<256x128xf32>
    tpu.vector_store %arg5[%c0_9, %c0_10], %13 {strides = array<i32>} : memref<256x128xf32, #tpu.memory_space<vmem>>, vector<256x128xf32>,
    return
  }
  func.func @transform_0(%arg0: i32) -> (i32, i32) {
    %c0_i32 = arith.constant 0 : i32
    %c0_i32_0 = arith.constant 0 : i32
    return %arg0, %c0_i32 : i32, i32
  }
  func.func @transform_1(%arg0: i32) -> (i32, i32) {
    %c0_i32 = arith.constant 0 : i32
    %c0_i32_0 = arith.constant 0 : i32
    %c0_i32_1 = arith.constant 0 : i32
    return %c0_i32, %c0_i32_0 : i32, i32
  }
  func.func @transform_2(%arg0: i32) -> (i32, i32) {
    %c0_i32 = arith.constant 0 : i32
    %c0_i32_0 = arith.constant 0 : i32
    %c0_i32_1 = arith.constant 0 : i32
    return %c0_i32, %c0_i32_0 : i32, i32
  }
  func.func @transform_3(%arg0: i32) -> (i32, i32) {
    %c0_i32 = arith.constant 0 : i32
    %c0_i32_0 = arith.constant 0 : i32
    %c0_i32_1 = arith.constant 0 : i32
    return %c0_i32, %c0_i32_0 : i32, i32
  }
  func.func @transform_4(%arg0: i32) -> (i32, i32) {
    %c0_i32 = arith.constant 0 : i32
    %c0_i32_0 = arith.constant 0 : i32
    return %arg0, %c0_i32 : i32, i32
  }
}

module attributes {stable_mosaic.version = 11 : i64} {
  func.func @_conv_gemm_kernel(%arg0: i32, %arg1: memref<128x128xf32, #tpu.memory_space<vmem>>, %arg2: memref<128x128xf32, #tpu.memory_space<vmem>>, %arg3: memref<1x128xf32, #tpu.memory_space<vmem>>, %arg4: memref<1x128xf32, #tpu.memory_space<vmem>>, %arg5: memref<128x128xf32, #tpu.memory_space<vmem>>) attributes {dimension_semantics = [#tpu.dimension_semantics<parallel>], iteration_bounds = array<i64: 1>, scalar_prefetch = 0 : i64, scratch_operands = 0 : i64, tpu.core_type = #tpu.core_type<tc>, window_params = [{transform_indices = @transform_0, window_bounds = array<i64: 128, 128>}, {pipeline_mode = #tpu.pipeline_mode<synchronous>, transform_indices = @transform_1, window_bounds = array<i64: 128, 128>}, {pipeline_mode = #tpu.pipeline_mode<synchronous>, transform_indices = @transform_2, window_bounds = array<i64: 1, 128>}, {pipeline_mode = #tpu.pipeline_mode<synchronous>, transform_indices = @transform_3, window_bounds = array<i64: 1, 128>}, {transform_indices = @transform_4, window_bounds = array<i64: 128, 128>}]} {
    %c0 = arith.constant 0 : index
    %c0_0 = arith.constant 0 : index
    %0 = vector.load %arg1[%c0, %c0_0] : memref<128x128xf32, #tpu.memory_space<vmem>>, vector<128x128xf32>
    %c0_1 = arith.constant 0 : index
    %c0_2 = arith.constant 0 : index
    %1 = vector.load %arg2[%c0_1, %c0_2] : memref<128x128xf32, #tpu.memory_space<vmem>>, vector<128x128xf32>
    %cst = arith.constant dense<0.000000e+00> : vector<128x128xf32>
    %2 = tpu.matmul %0, %1, %cst {dimension_numbers = #tpu.dot_dimension_numbers<[1], [0], [0], [1], [0, 0, 1, 1], [], []>, precision = #tpu.contract_precision<fp32>} : vector<128x128xf32>, vector<128x128xf32>, vector<128x128xf32> -> vector<128x128xf32>
    %c0_3 = arith.constant 0 : index
    %c0_4 = arith.constant 0 : index
    %3 = vector.load %arg3[%c0_3, %c0_4] : memref<1x128xf32, #tpu.memory_space<vmem>>, vector<1x128xf32>
    %4 = vector.broadcast %3 : vector<1x128xf32> to vector<128x128xf32>
    %5 = arith.mulf %2, %4 : vector<128x128xf32>
    %c0_5 = arith.constant 0 : index
    %c0_6 = arith.constant 0 : index
    %6 = vector.load %arg4[%c0_5, %c0_6] : memref<1x128xf32, #tpu.memory_space<vmem>>, vector<1x128xf32>
    %7 = vector.broadcast %6 : vector<1x128xf32> to vector<128x128xf32>
    %8 = arith.addf %5, %7 : vector<128x128xf32>
    %cst_7 = arith.constant 0.000000e+00 : f32
    %9 = vector.broadcast %cst_7 : f32 to vector<128x128xf32>
    %10 = arith.cmpf oge, %8, %9 : vector<128x128xf32>
    %cst_8 = arith.constant 2.000000e-01 : f32
    %11 = vector.broadcast %cst_8 : f32 to vector<128x128xf32>
    %12 = arith.mulf %11, %8 : vector<128x128xf32>
    %13 = arith.select %10, %8, %12 : vector<128x128xi1>, vector<128x128xf32>
    %c0_9 = arith.constant 0 : index
    %c0_10 = arith.constant 0 : index
    %14 = vector.load %arg5[%c0_9, %c0_10] : memref<128x128xf32, #tpu.memory_space<vmem>>, vector<128x128xf32>
    tpu.vector_store %arg5[%c0_9, %c0_10], %13 {strides = array<i32>} : memref<128x128xf32, #tpu.memory_space<vmem>>, vector<128x128xf32>,
    return
  }
  func.func @transform_0(%arg0: i32) -> (i32, i32) {
    %c0_i32 = arith.constant 0 : i32
    %c0_i32_0 = arith.constant 0 : i32
    return %arg0, %c0_i32 : i32, i32
  }
  func.func @transform_1(%arg0: i32) -> (i32, i32) {
    %c0_i32 = arith.constant 0 : i32
    %c0_i32_0 = arith.constant 0 : i32
    %c0_i32_1 = arith.constant 0 : i32
    return %c0_i32, %c0_i32_0 : i32, i32
  }
  func.func @transform_2(%arg0: i32) -> (i32, i32) {
    %c0_i32 = arith.constant 0 : i32
    %c0_i32_0 = arith.constant 0 : i32
    %c0_i32_1 = arith.constant 0 : i32
    return %c0_i32, %c0_i32_0 : i32, i32
  }
  func.func @transform_3(%arg0: i32) -> (i32, i32) {
    %c0_i32 = arith.constant 0 : i32
    %c0_i32_0 = arith.constant 0 : i32
    %c0_i32_1 = arith.constant 0 : i32
    return %c0_i32, %c0_i32_0 : i32, i32
  }
  func.func @transform_4(%arg0: i32) -> (i32, i32) {
    %c0_i32 = arith.constant 0 : i32
    %c0_i32_0 = arith.constant 0 : i32
    return %arg0, %c0_i32 : i32, i32
  }
}

module attributes {stable_mosaic.version = 11 : i64} {
  func.func @_conv_gemm_kernel(%arg0: i32, %arg1: memref<32x256xf32, #tpu.memory_space<vmem>>, %arg2: memref<256x128xf32, #tpu.memory_space<vmem>>, %arg3: memref<1x128xf32, #tpu.memory_space<vmem>>, %arg4: memref<1x128xf32, #tpu.memory_space<vmem>>, %arg5: memref<32x128xf32, #tpu.memory_space<vmem>>) attributes {dimension_semantics = [#tpu.dimension_semantics<parallel>], iteration_bounds = array<i64: 1>, scalar_prefetch = 0 : i64, scratch_operands = 0 : i64, tpu.core_type = #tpu.core_type<tc>, window_params = [{transform_indices = @transform_0, window_bounds = array<i64: 32, 256>}, {pipeline_mode = #tpu.pipeline_mode<synchronous>, transform_indices = @transform_1, window_bounds = array<i64: 256, 128>}, {pipeline_mode = #tpu.pipeline_mode<synchronous>, transform_indices = @transform_2, window_bounds = array<i64: 1, 128>}, {pipeline_mode = #tpu.pipeline_mode<synchronous>, transform_indices = @transform_3, window_bounds = array<i64: 1, 128>}, {transform_indices = @transform_4, window_bounds = array<i64: 32, 128>}]} {
    %c0 = arith.constant 0 : index
    %c0_0 = arith.constant 0 : index
    %0 = vector.load %arg1[%c0, %c0_0] : memref<32x256xf32, #tpu.memory_space<vmem>>, vector<32x256xf32>
    %c0_1 = arith.constant 0 : index
    %c0_2 = arith.constant 0 : index
    %1 = vector.load %arg2[%c0_1, %c0_2] : memref<256x128xf32, #tpu.memory_space<vmem>>, vector<256x128xf32>
    %cst = arith.constant dense<0.000000e+00> : vector<32x128xf32>
    %2 = tpu.matmul %0, %1, %cst {dimension_numbers = #tpu.dot_dimension_numbers<[1], [0], [0], [1], [0, 0, 1, 1], [], []>, precision = #tpu.contract_precision<fp32>} : vector<32x256xf32>, vector<256x128xf32>, vector<32x128xf32> -> vector<32x128xf32>
    %c0_3 = arith.constant 0 : index
    %c0_4 = arith.constant 0 : index
    %3 = vector.load %arg3[%c0_3, %c0_4] : memref<1x128xf32, #tpu.memory_space<vmem>>, vector<1x128xf32>
    %4 = vector.broadcast %3 : vector<1x128xf32> to vector<32x128xf32>
    %5 = arith.mulf %2, %4 : vector<32x128xf32>
    %c0_5 = arith.constant 0 : index
    %c0_6 = arith.constant 0 : index
    %6 = vector.load %arg4[%c0_5, %c0_6] : memref<1x128xf32, #tpu.memory_space<vmem>>, vector<1x128xf32>
    %7 = vector.broadcast %6 : vector<1x128xf32> to vector<32x128xf32>
    %8 = arith.addf %5, %7 : vector<32x128xf32>
    %cst_7 = arith.constant 0.000000e+00 : f32
    %9 = vector.broadcast %cst_7 : f32 to vector<32x128xf32>
    %10 = arith.cmpf oge, %8, %9 : vector<32x128xf32>
    %cst_8 = arith.constant 2.000000e-01 : f32
    %11 = vector.broadcast %cst_8 : f32 to vector<32x128xf32>
    %12 = arith.mulf %11, %8 : vector<32x128xf32>
    %13 = arith.select %10, %8, %12 : vector<32x128xi1>, vector<32x128xf32>
    %c0_9 = arith.constant 0 : index
    %c0_10 = arith.constant 0 : index
    %14 = vector.load %arg5[%c0_9, %c0_10] : memref<32x128xf32, #tpu.memory_space<vmem>>, vector<32x128xf32>
    tpu.vector_store %arg5[%c0_9, %c0_10], %13 {strides = array<i32>} : memref<32x128xf32, #tpu.memory_space<vmem>>, vector<32x128xf32>,
    return
  }
  func.func @transform_0(%arg0: i32) -> (i32, i32) {
    %c0_i32 = arith.constant 0 : i32
    %c0_i32_0 = arith.constant 0 : i32
    return %arg0, %c0_i32 : i32, i32
  }
  func.func @transform_1(%arg0: i32) -> (i32, i32) {
    %c0_i32 = arith.constant 0 : i32
    %c0_i32_0 = arith.constant 0 : i32
    %c0_i32_1 = arith.constant 0 : i32
    return %c0_i32, %c0_i32_0 : i32, i32
  }
  func.func @transform_2(%arg0: i32) -> (i32, i32) {
    %c0_i32 = arith.constant 0 : i32
    %c0_i32_0 = arith.constant 0 : i32
    %c0_i32_1 = arith.constant 0 : i32
    return %c0_i32, %c0_i32_0 : i32, i32
  }
  func.func @transform_3(%arg0: i32) -> (i32, i32) {
    %c0_i32 = arith.constant 0 : i32
    %c0_i32_0 = arith.constant 0 : i32
    %c0_i32_1 = arith.constant 0 : i32
    return %c0_i32, %c0_i32_0 : i32, i32
  }
  func.func @transform_4(%arg0: i32) -> (i32, i32) {
    %c0_i32 = arith.constant 0 : i32
    %c0_i32_0 = arith.constant 0 : i32
    return %arg0, %c0_i32 : i32, i32
  }
}

module attributes {stable_mosaic.version = 11 : i64} {
  func.func @_conv_gemm_kernel(%arg0: i32, %arg1: memref<24x512xf32, #tpu.memory_space<vmem>>, %arg2: memref<512x128xf32, #tpu.memory_space<vmem>>, %arg3: memref<1x128xf32, #tpu.memory_space<vmem>>, %arg4: memref<1x128xf32, #tpu.memory_space<vmem>>, %arg5: memref<24x128xf32, #tpu.memory_space<vmem>>) attributes {dimension_semantics = [#tpu.dimension_semantics<parallel>], iteration_bounds = array<i64: 1>, scalar_prefetch = 0 : i64, scratch_operands = 0 : i64, tpu.core_type = #tpu.core_type<tc>, window_params = [{transform_indices = @transform_0, window_bounds = array<i64: 24, 512>}, {pipeline_mode = #tpu.pipeline_mode<synchronous>, transform_indices = @transform_1, window_bounds = array<i64: 512, 128>}, {pipeline_mode = #tpu.pipeline_mode<synchronous>, transform_indices = @transform_2, window_bounds = array<i64: 1, 128>}, {pipeline_mode = #tpu.pipeline_mode<synchronous>, transform_indices = @transform_3, window_bounds = array<i64: 1, 128>}, {transform_indices = @transform_4, window_bounds = array<i64: 24, 128>}]} {
    %c0 = arith.constant 0 : index
    %c0_0 = arith.constant 0 : index
    %0 = vector.load %arg1[%c0, %c0_0] : memref<24x512xf32, #tpu.memory_space<vmem>>, vector<24x512xf32>
    %c0_1 = arith.constant 0 : index
    %c0_2 = arith.constant 0 : index
    %1 = vector.load %arg2[%c0_1, %c0_2] : memref<512x128xf32, #tpu.memory_space<vmem>>, vector<512x128xf32>
    %cst = arith.constant dense<0.000000e+00> : vector<24x128xf32>
    %2 = tpu.matmul %0, %1, %cst {dimension_numbers = #tpu.dot_dimension_numbers<[1], [0], [0], [1], [0, 0, 1, 1], [], []>, precision = #tpu.contract_precision<fp32>} : vector<24x512xf32>, vector<512x128xf32>, vector<24x128xf32> -> vector<24x128xf32>
    %c0_3 = arith.constant 0 : index
    %c0_4 = arith.constant 0 : index
    %3 = vector.load %arg3[%c0_3, %c0_4] : memref<1x128xf32, #tpu.memory_space<vmem>>, vector<1x128xf32>
    %4 = vector.broadcast %3 : vector<1x128xf32> to vector<24x128xf32>
    %5 = arith.mulf %2, %4 : vector<24x128xf32>
    %c0_5 = arith.constant 0 : index
    %c0_6 = arith.constant 0 : index
    %6 = vector.load %arg4[%c0_5, %c0_6] : memref<1x128xf32, #tpu.memory_space<vmem>>, vector<1x128xf32>
    %7 = vector.broadcast %6 : vector<1x128xf32> to vector<24x128xf32>
    %8 = arith.addf %5, %7 : vector<24x128xf32>
    %cst_7 = arith.constant 0.000000e+00 : f32
    %9 = vector.broadcast %cst_7 : f32 to vector<24x128xf32>
    %10 = arith.cmpf oge, %8, %9 : vector<24x128xf32>
    %cst_8 = arith.constant 2.000000e-01 : f32
    %11 = vector.broadcast %cst_8 : f32 to vector<24x128xf32>
    %12 = arith.mulf %11, %8 : vector<24x128xf32>
    %13 = arith.select %10, %8, %12 : vector<24x128xi1>, vector<24x128xf32>
    %c0_9 = arith.constant 0 : index
    %c0_10 = arith.constant 0 : index
    %14 = vector.load %arg5[%c0_9, %c0_10] : memref<24x128xf32, #tpu.memory_space<vmem>>, vector<24x128xf32>
    tpu.vector_store %arg5[%c0_9, %c0_10], %13 {strides = array<i32>} : memref<24x128xf32, #tpu.memory_space<vmem>>, vector<24x128xf32>,
    return
  }
  func.func @transform_0(%arg0: i32) -> (i32, i32) {
    %c0_i32 = arith.constant 0 : i32
    %c0_i32_0 = arith.constant 0 : i32
    return %arg0, %c0_i32 : i32, i32
  }
  func.func @transform_1(%arg0: i32) -> (i32, i32) {
    %c0_i32 = arith.constant 0 : i32
    %c0_i32_0 = arith.constant 0 : i32
    %c0_i32_1 = arith.constant 0 : i32
    return %c0_i32, %c0_i32_0 : i32, i32
  }
  func.func @transform_2(%arg0: i32) -> (i32, i32) {
    %c0_i32 = arith.constant 0 : i32
    %c0_i32_0 = arith.constant 0 : i32
    %c0_i32_1 = arith.constant 0 : i32
    return %c0_i32, %c0_i32_0 : i32, i32
  }
  func.func @transform_3(%arg0: i32) -> (i32, i32) {
    %c0_i32 = arith.constant 0 : i32
    %c0_i32_0 = arith.constant 0 : i32
    %c0_i32_1 = arith.constant 0 : i32
    return %c0_i32, %c0_i32_0 : i32, i32
  }
  func.func @transform_4(%arg0: i32) -> (i32, i32) {
    %c0_i32 = arith.constant 0 : i32
    %c0_i32_0 = arith.constant 0 : i32
    return %arg0, %c0_i32 : i32, i32
  }
}

module attributes {stable_mosaic.version = 11 : i64} {
  func.func @_conv_gemm_kernel(%arg0: i32, %arg1: memref<8x1024xf32, #tpu.memory_space<vmem>>, %arg2: memref<1024x128xf32, #tpu.memory_space<vmem>>, %arg3: memref<1x128xf32, #tpu.memory_space<vmem>>, %arg4: memref<1x128xf32, #tpu.memory_space<vmem>>, %arg5: memref<8x128xf32, #tpu.memory_space<vmem>>) attributes {dimension_semantics = [#tpu.dimension_semantics<parallel>], iteration_bounds = array<i64: 1>, scalar_prefetch = 0 : i64, scratch_operands = 0 : i64, tpu.core_type = #tpu.core_type<tc>, window_params = [{transform_indices = @transform_0, window_bounds = array<i64: 8, 1024>}, {pipeline_mode = #tpu.pipeline_mode<synchronous>, transform_indices = @transform_1, window_bounds = array<i64: 1024, 128>}, {pipeline_mode = #tpu.pipeline_mode<synchronous>, transform_indices = @transform_2, window_bounds = array<i64: 1, 128>}, {pipeline_mode = #tpu.pipeline_mode<synchronous>, transform_indices = @transform_3, window_bounds = array<i64: 1, 128>}, {transform_indices = @transform_4, window_bounds = array<i64: 8, 128>}]} {
    %c0 = arith.constant 0 : index
    %c0_0 = arith.constant 0 : index
    %0 = vector.load %arg1[%c0, %c0_0] : memref<8x1024xf32, #tpu.memory_space<vmem>>, vector<8x1024xf32>
    %c0_1 = arith.constant 0 : index
    %c0_2 = arith.constant 0 : index
    %1 = vector.load %arg2[%c0_1, %c0_2] : memref<1024x128xf32, #tpu.memory_space<vmem>>, vector<1024x128xf32>
    %cst = arith.constant dense<0.000000e+00> : vector<8x128xf32>
    %2 = tpu.matmul %0, %1, %cst {dimension_numbers = #tpu.dot_dimension_numbers<[1], [0], [0], [1], [0, 0, 1, 1], [], []>, precision = #tpu.contract_precision<fp32>} : vector<8x1024xf32>, vector<1024x128xf32>, vector<8x128xf32> -> vector<8x128xf32>
    %c0_3 = arith.constant 0 : index
    %c0_4 = arith.constant 0 : index
    %3 = vector.load %arg3[%c0_3, %c0_4] : memref<1x128xf32, #tpu.memory_space<vmem>>, vector<1x128xf32>
    %4 = vector.broadcast %3 : vector<1x128xf32> to vector<8x128xf32>
    %5 = arith.mulf %2, %4 : vector<8x128xf32>
    %c0_5 = arith.constant 0 : index
    %c0_6 = arith.constant 0 : index
    %6 = vector.load %arg4[%c0_5, %c0_6] : memref<1x128xf32, #tpu.memory_space<vmem>>, vector<1x128xf32>
    %7 = vector.broadcast %6 : vector<1x128xf32> to vector<8x128xf32>
    %8 = arith.addf %5, %7 : vector<8x128xf32>
    %c0_7 = arith.constant 0 : index
    %c0_8 = arith.constant 0 : index
    %9 = vector.load %arg5[%c0_7, %c0_8] : memref<8x128xf32, #tpu.memory_space<vmem>>, vector<8x128xf32>
    tpu.vector_store %arg5[%c0_7, %c0_8], %8 {strides = array<i32>} : memref<8x128xf32, #tpu.memory_space<vmem>>, vector<8x128xf32>,
    return
  }
  func.func @transform_0(%arg0: i32) -> (i32, i32) {
    %c0_i32 = arith.constant 0 : i32
    %c0_i32_0 = arith.constant 0 : i32
    return %arg0, %c0_i32 : i32, i32
  }
  func.func @transform_1(%arg0: i32) -> (i32, i32) {
    %c0_i32 = arith.constant 0 : i32
    %c0_i32_0 = arith.constant 0 : i32
    %c0_i32_1 = arith.constant 0 : i32
    return %c0_i32, %c0_i32_0 : i32, i32
  }
  func.func @transform_2(%arg0: i32) -> (i32, i32) {
    %c0_i32 = arith.constant 0 : i32
    %c0_i32_0 = arith.constant 0 : i32
    %c0_i32_1 = arith.constant 0 : i32
    return %c0_i32, %c0_i32_0 : i32, i32
  }
  func.func @transform_3(%arg0: i32) -> (i32, i32) {
    %c0_i32 = arith.constant 0 : i32
    %c0_i32_0 = arith.constant 0 : i32
    %c0_i32_1 = arith.constant 0 : i32
    return %c0_i32, %c0_i32_0 : i32, i32
  }
  func.func @transform_4(%arg0: i32) -> (i32, i32) {
    %c0_i32 = arith.constant 0 : i32
    %c0_i32_0 = arith.constant 0 : i32
    return %arg0, %c0_i32 : i32, i32
  }
}

</mosaic_0001>

<llo_original>
// kernel: _lambda_.5
$region0: #{_lambda_.5}
  #allocation0 [shape = 'u32[]', space=smem, size = 0x4, offset = 0x4, fixed_abs, tag = 'smem constant byte address 0x4 - core index']
  #allocation1 [shape = 'u32[144,128]{1,0:T(1,128)}', space=vmem, size = 0x12000, scoped, tag = 'internal scratch']
  %s0 = inlined_call_operand.vmem [shape: f32[512,48], index: 0, kind: input, shape index: {}]
  %s1 = inlined_call_operand.vmem [shape: f32[48,128], index: 1, kind: input, shape index: {}]
  %s2 = inlined_call_operand.vmem [shape: f32[1,128], index: 2, kind: input, shape index: {}]
  %s3 = inlined_call_operand.vmem [shape: f32[1,128], index: 3, kind: input, shape index: {}]
  %s4 = inlined_call_operand.vmem [shape: f32[512,128], index: 4, kind: output, shape index: {}]
  %s5 = sld [smem:[#allocation0]]
  $region49: #{_lambda_.5} parent=0
    _
  %s7 = ssub.s32 1, %s5
  %s8 = scalar_select 0, %s7, %s5
  loop: start=0, step=1, limit=4
  $region2: #{_lambda_.5} parent=0 // loop_pre_header
    _
  $region3: #{_lambda_.5} parent=0 // loop_header
    %s10 = sphi 0, %s14
    %p11 = scmp.ge.s32.totalorder %s10, 4
    %s20 = sphi 0, %s22
    %s23 = sphi 0, %s20
    %s24 = sphi 0, %s23
    %s40 = sphi 0, %s24
    %s44 = sphi 0, %s44
    %s46 = sphi 0, %s44
    %s47 = sphi 0, %s46
    %s61 = sphi 0, %s47
    %s65 = sphi 0, %s65
    %s67 = sphi 0, %s65
    %s68 = sphi 0, %s67
    %s82 = sphi 0, %s68
    %s86 = sphi 0, %s86
    %s88 = sphi 0, %s86
    %s89 = sphi 0, %s88
    %s103 = sphi 0, %s89
    %s109 = sphi 0, %s111
    %s112 = sphi 0, %s109
    %s113 = sphi 0, %s112
    %s129 = sphi 0, %s113
  $region4: #{_lambda_.5} parent=0 // loop_header_branch
    %13 = sbr.rel (%p11) target = $region8
  $region5: #{_lambda_.5} parent=0 // loop_body
    %s15 = ssub.s32 %s10, 1
    %s16 = ssub.s32 %s10, 2
    %s17 = sadd.s32 %s10, 1
    %s18 = ssub.s32 %s10, %s17
    %p19 = scmp.eq.s32.totalorder %s18, 0
    %s21 = sadd.s32 %s20, 1
    %s22 = scalar_select %p19, %s20, %s21
    %p25 = pneg %p19
    %p26 = scmp.eq.s32.totalorder %s10, 1
    %p27 = por %p25, %p26
    %p28 = scmp.ne.s32.totalorder %s20, %s23
    %p29 = scmp.eq.s32.totalorder %s10, 0
    %p30 = por %p28, %p29
    %p31 = scmp.ne.s32.totalorder %s20, %s23
    %p32 = scmp.eq.s32.totalorder %s15, 1
    %p33 = por %p31, %p32
    %p34 = scmp.ne.s32.totalorder %s23, %s24
    %p35 = scmp.eq.s32.totalorder %s15, 0
    %p36 = por %p34, %p35
    %p37 = scmp.ne.s32.totalorder %s23, %s24
    %p38 = scmp.eq.s32.totalorder %s16, 1
    %p39 = por %p37, %p38
    %p41 = scmp.ne.s32.totalorder %s24, %s40
    %p42 = scmp.eq.s32.totalorder %s16, 0
    %p43 = por %p41, %p42
    %s45 = sadd.s32 %s44, 1
    %p48 = scmp.eq.s32.totalorder %s10, 1
    %p49 = scmp.ne.s32.totalorder %s44, %s46
    %p50 = scmp.eq.s32.totalorder %s10, 0
    %p51 = por %p49, %p50
    %p52 = scmp.ne.s32.totalorder %s44, %s46
    %p53 = scmp.eq.s32.totalorder %s15, 1
    %p54 = por %p52, %p53
    %p55 = scmp.ne.s32.totalorder %s46, %s47
    %p56 = scmp.eq.s32.totalorder %s15, 0
    %p57 = por %p55, %p56
    %p58 = scmp.ne.s32.totalorder %s46, %s47
    %p59 = scmp.eq.s32.totalorder %s16, 1
    %p60 = por %p58, %p59
    %p62 = scmp.ne.s32.totalorder %s47, %s61
    %p63 = scmp.eq.s32.totalorder %s16, 0
    %p64 = por %p62, %p63
    %s66 = sadd.s32 %s65, 1
    %p69 = scmp.eq.s32.totalorder %s10, 1
    %p70 = scmp.ne.s32.totalorder %s65, %s67
    %p71 = scmp.eq.s32.totalorder %s10, 0
    %p72 = por %p70, %p71
    %p73 = scmp.ne.s32.totalorder %s65, %s67
    %p74 = scmp.eq.s32.totalorder %s15, 1
    %p75 = por %p73, %p74
    %p76 = scmp.ne.s32.totalorder %s67, %s68
    %p77 = scmp.eq.s32.totalorder %s15, 0
    %p78 = por %p76, %p77
    %p79 = scmp.ne.s32.totalorder %s67, %s68
    %p80 = scmp.eq.s32.totalorder %s16, 1
    %p81 = por %p79, %p80
    %p83 = scmp.ne.s32.totalorder %s68, %s82
    %p84 = scmp.eq.s32.totalorder %s16, 0
    %p85 = por %p83, %p84
    %s87 = sadd.s32 %s86, 1
    %p90 = scmp.eq.s32.totalorder %s10, 1
    %p91 = scmp.ne.s32.totalorder %s86, %s88
    %p92 = scmp.eq.s32.totalorder %s10, 0
    %p93 = por %p91, %p92
    %p94 = scmp.ne.s32.totalorder %s86, %s88
    %p95 = scmp.eq.s32.totalorder %s15, 1
    %p96 = por %p94, %p95
    %p97 = scmp.ne.s32.totalorder %s88, %s89
    %p98 = scmp.eq.s32.totalorder %s15, 0
    %p99 = por %p97, %p98
    %p100 = scmp.ne.s32.totalorder %s88, %s89
    %p101 = scmp.eq.s32.totalorder %s16, 1
    %p102 = por %p100, %p101
    %p104 = scmp.ne.s32.totalorder %s89, %s103
    %p105 = scmp.eq.s32.totalorder %s16, 0
    %p106 = por %p104, %p105
    %s107 = ssub.s32 %s10, %s17
    %p108 = scmp.eq.s32.totalorder %s107, 0
    %s110 = sadd.s32 %s109, 1
    %s111 = scalar_select %p108, %s109, %s110
    %p114 = pneg %p108
    %p115 = scmp.eq.s32.totalorder %s10, 1
    %p116 = por %p114, %p115
    %p117 = scmp.ne.s32.totalorder %s109, %s112
    %p118 = scmp.eq.s32.totalorder %s10, 0
    %p119 = por %p117, %p118
    %p120 = scmp.ne.s32.totalorder %s109, %s112
    %p121 = scmp.eq.s32.totalorder %s15, 1
    %p122 = por %p120, %p121
    %p123 = scmp.ne.s32.totalorder %s112, %s113
    %p124 = scmp.eq.s32.totalorder %s15, 0
    %p125 = por %p123, %p124
    %p126 = scmp.ne.s32.totalorder %s112, %s113
    %p127 = scmp.eq.s32.totalorder %s16, 1
    %p128 = por %p126, %p127
    %p130 = scmp.ne.s32.totalorder %s113, %s129
    %p131 = scmp.eq.s32.totalorder %s16, 0
    %p132 = por %p130, %p131
    %p133 = scmp.le.s32.totalorder 1, %s10
    %p134 = scmp.lt.s32.totalorder %s10, 3
    %p135 = pnand %p133, %p134
    %p136 = pneg %p135
    // Predicated region
    $region9: #{_lambda_.5} parent=5 // pred_check
      _
    $region10: #{_lambda_.5} parent=5 // pred_check_branch
      %138 = sbr.rel (%p135) target = $region12
    $region11: #{_lambda_.5} parent=5 // pred_region
      %s139 = ssub.s32 %s10, 1
      // Predicated region
      $region13: #{_lambda_.5} parent=11 // pred_check
        %p140 = pneg %p57
      $region14: #{_lambda_.5} parent=11 // pred_check_branch
        %142 = sbr.rel (%p140) target = $region16
      $region15: #{_lambda_.5} parent=11 // pred_region
        _
      $region16: #{_lambda_.5} parent=11 // pred_fallthru
        _
      // Predicated region
      $region17: #{_lambda_.5} parent=11 // pred_check
        %p143 = pneg %p78
      $region18: #{_lambda_.5} parent=11 // pred_check_branch
        %145 = sbr.rel (%p143) target = $region20
      $region19: #{_lambda_.5} parent=11 // pred_region
        _
      $region20: #{_lambda_.5} parent=11 // pred_fallthru
        _
      // Predicated region
      $region21: #{_lambda_.5} parent=11 // pred_check
        %p146 = pneg %p99
      $region22: #{_lambda_.5} parent=11 // pred_check_branch
        %148 = sbr.rel (%p146) target = $region24
      $region23: #{_lambda_.5} parent=11 // pred_region
        _
      $region24: #{_lambda_.5} parent=11 // pred_fallthru
        _
    $region12: #{_lambda_.5} parent=5 // pred_fallthru
      _
    %p149 = scmp.lt.s32.totalorder %s10, 2
    // Predicated region
    $region25: #{_lambda_.5} parent=5 // pred_check
      %p150 = pneg %p149
    $region26: #{_lambda_.5} parent=5 // pred_check_branch
      %152 = sbr.rel (%p150) target = $region28
    $region27: #{_lambda_.5} parent=5 // pred_region
      // Predicated region
      $region29: #{_lambda_.5} parent=27 // pred_check
        %p153 = pneg %p30
      $region30: #{_lambda_.5} parent=27 // pred_check_branch
        %155 = sbr.rel (%p153) target = $region32
      $region31: #{_lambda_.5} parent=27 // pred_region
        %s156 = smul.u32 32, %s10
        %p157 = scmp.lt.s32.totalorder %s156, 63
        %s158 = scalar_select %p157, %s156, 63
        %s159 = smul.addr %s158, 8
        %s160 = scalar_lea.vmem %s0, %s159
        %s161 = smul.u32 32, %s10
      $region32: #{_lambda_.5} parent=27 // pred_fallthru
        _
    $region28: #{_lambda_.5} parent=5 // pred_fallthru
      _
    %p162 = scmp.le.s32.totalorder 1, %s10
    %p163 = scmp.lt.s32.totalorder %s10, 3
    %p164 = pnand %p162, %p163
    %p165 = pneg %p164
    // Predicated region
    $region33: #{_lambda_.5} parent=5 // pred_check
      _
    $region34: #{_lambda_.5} parent=5 // pred_check_branch
      %167 = sbr.rel (%p164) target = $region36
    $region35: #{_lambda_.5} parent=5 // pred_region
      %s168 = ssub.s32 %s10, 1
      %s169 = smul.u32 32, %s15
      %p170 = scmp.lt.s32.totalorder %s169, 63
      %s171 = scalar_select %p170, %s169, 63
      %s172 = smul.addr %s171, 8
      %s173 = scalar_lea.vmem %s0, %s172
      %p174 = pneg %p36
      %p175 = pneg %p33
      %p176 = pneg %p57
      %p177 = pneg %p54
      %p178 = pneg %p78
      %p179 = pneg %p75
      %p180 = pneg %p99
      %p181 = pneg %p96
      %p182 = pneg %p125
      %p183 = pneg %p122
      %s184 = smul.u32 32, %s15
      %p185 = scmp.lt.s32.totalorder %s184, 63
      %s186 = scalar_select %p185, %s184, 63
      %s187 = smul.addr %s186, 8
      %s188 = scalar_lea.vmem %s4, %s187
      %s189 = smul.u32 32, %s15
      %p190 = scmp.lt.s32.totalorder %s189, 63
      %s191 = scalar_select %p190, %s189, 63
      %s192 = smul.addr %s191, 8
      %s193 = scalar_lea.vmem %s0, %s192
      %s194 = smul.u32 32, %s15
      %s195 = smul.u32 32, %s15
      %p196 = scmp.lt.s32.totalorder %s195, 63
      %s197 = scalar_select %p196, %s195, 63
      %s198 = smul.addr %s197, 8
      %s199 = scalar_lea.vmem %s4, %s198
      %s200 = smul.u32 32, %s15
      %v201 = vld [vmem:[%s193] sm:$0xff]
      %v202 = vld [vmem:[%s193 + $0x8] sm:$0xff]
      %v203 = vld [vmem:[%s193 + $0x10] sm:$0xff]
      %v204 = vld [vmem:[%s193 + $0x18] sm:$0xff]
      %v205 = vld [vmem:[%s193 + $0x20] sm:$0xff]
      %v206 = vld [vmem:[%s193 + $0x28] sm:$0xff]
      %v207 = vld [vmem:[%s193 + $0x30] sm:$0xff]
      %v208 = vld [vmem:[%s193 + $0x38] sm:$0xff]
      %v209 = vld [vmem:[%s193 + $0x40] sm:$0xff]
      %v210 = vld [vmem:[%s193 + $0x48] sm:$0xff]
      %v211 = vld [vmem:[%s193 + $0x50] sm:$0xff]
      %v212 = vld [vmem:[%s193 + $0x58] sm:$0xff]
      %v213 = vld [vmem:[%s193 + $0x60] sm:$0xff]
      %v214 = vld [vmem:[%s193 + $0x68] sm:$0xff]
      %v215 = vld [vmem:[%s193 + $0x70] sm:$0xff]
      %v216 = vld [vmem:[%s193 + $0x78] sm:$0xff]
      %v217 = vld [vmem:[%s193 + $0x80] sm:$0xff]
      %v218 = vld [vmem:[%s193 + $0x88] sm:$0xff]
      %v219 = vld [vmem:[%s193 + $0x90] sm:$0xff]
      %v220 = vld [vmem:[%s193 + $0x98] sm:$0xff]
      %v221 = vld [vmem:[%s193 + $0xa0] sm:$0xff]
      %v222 = vld [vmem:[%s193 + $0xa8] sm:$0xff]
      %v223 = vld [vmem:[%s193 + $0xb0] sm:$0xff]
      %v224 = vld [vmem:[%s193 + $0xb8] sm:$0xff]
      %v225 = vld [vmem:[%s193 + $0xc0] sm:$0xff]
      %v226 = vld [vmem:[%s193 + $0xc8] sm:$0xff]
      %v227 = vld [vmem:[%s193 + $0xd0] sm:$0xff]
      %v228 = vld [vmem:[%s193 + $0xd8] sm:$0xff]
      %v229 = vld [vmem:[%s193 + $0xe0] sm:$0xff]
      %v230 = vld [vmem:[%s193 + $0xe8] sm:$0xff]
      %v231 = vld [vmem:[%s193 + $0xf0] sm:$0xff]
      %v232 = vld [vmem:[%s193 + $0xf8] sm:$0xff]
      %v233 = vld [vmem:[%s1] sm:$0xff]
      %v234 = vld [vmem:[%s1 + $0x8] sm:$0xff]
      %v235 = vld [vmem:[%s1 + $0x10] sm:$0xff]
      %v236 = vld [vmem:[%s1 + $0x18] sm:$0xff]
      %v237 = vld [vmem:[%s1 + $0x20] sm:$0xff]
      %v238 = vld [vmem:[%s1 + $0x28] sm:$0xff]
      %vm239 = vcmask 392192
      %v241 = vsel %vm239, %v201, 0
      %v244 = vsel %vm239, %v202, 0
      %v247 = vsel %vm239, %v203, 0
      %v250 = vsel %vm239, %v204, 0
      %v253 = vsel %vm239, %v205, 0
      %v256 = vsel %vm239, %v206, 0
      %v259 = vsel %vm239, %v207, 0
      %v262 = vsel %vm239, %v208, 0
      %v265 = vsel %vm239, %v209, 0
      %v268 = vsel %vm239, %v210, 0
      %v271 = vsel %vm239, %v211, 0
      %v274 = vsel %vm239, %v212, 0
      %v277 = vsel %vm239, %v213, 0
      %v280 = vsel %vm239, %v214, 0
      %v283 = vsel %vm239, %v215, 0
      %v286 = vsel %vm239, %v216, 0
      %v289 = vsel %vm239, %v217, 0
      %v292 = vsel %vm239, %v218, 0
      %v295 = vsel %vm239, %v219, 0
      %v298 = vsel %vm239, %v220, 0
      %v301 = vsel %vm239, %v221, 0
      %v304 = vsel %vm239, %v222, 0
      %v307 = vsel %vm239, %v223, 0
      %v310 = vsel %vm239, %v224, 0
      %v313 = vsel %vm239, %v225, 0
      %v316 = vsel %vm239, %v226, 0
      %v319 = vsel %vm239, %v227, 0
      %v322 = vsel %vm239, %v228, 0
      %v325 = vsel %vm239, %v229, 0
      %v328 = vsel %vm239, %v230, 0
      %v331 = vsel %vm239, %v231, 0
      %v334 = vsel %vm239, %v232, 0
      %336 = vmatprep.subr.mxu0 0.0
      %v337 = vand.u32 %v233, 4294901760
      %338 = vmatpush1.msra.mxu0 %v337
      %339 = vmatprep.subr.mxu0 0.0
      %v340 = vand.u32 %v234, 4294901760
      %341 = vmatpush1.msra.mxu0 %v340
      %342 = vmatprep.subr.mxu0 0.0
      %v343 = vand.u32 %v235, 4294901760
      %344 = vmatpush1.msra.mxu0 %v343
      %345 = vmatprep.subr.mxu0 0.0
      %v346 = vand.u32 %v236, 4294901760
      %347 = vmatpush1.msra.mxu0 %v346
      %348 = vmatprep.subr.mxu0 0.0
      %v349 = vand.u32 %v237, 4294901760
      %350 = vmatpush1.msra.mxu0 %v349
      %351 = vmatprep.subr.mxu0 0.0
      %v352 = vand.u32 %v238, 4294901760
      %353 = vmatpush1.msra.mxu0 %v352
      %354 = vmatprep.subr.mxu0 0.0
      %355 = vmatpush1.msra.mxu0 0.0
      %356 = vmatprep.subr.mxu0 0.0
      %357 = vmatpush1.msra.mxu0 0.0
      %358 = vmatprep.subr.mxu0 0.0
      %359 = vmatpush1.msra.mxu0 0.0
      %360 = vmatprep.subr.mxu0 0.0
      %361 = vmatpush1.msra.mxu0 0.0
      %362 = vmatprep.subr.mxu0 0.0
      %363 = vmatpush1.msra.mxu0 0.0
      %364 = vmatprep.subr.mxu0 0.0
      %365 = vmatpush1.msra.mxu0 0.0
      %366 = vmatprep.subr.mxu0 0.0
      %367 = vmatpush1.msra.mxu0 0.0
      %368 = vmatprep.subr.mxu0 0.0
      %369 = vmatpush1.msra.mxu0 0.0
      %370 = vmatprep.subr.mxu0 0.0
      %371 = vmatpush1.msra.mxu0 0.0
      %372 = vmatprep.subr.mxu0 0.0
      %373 = vmatpush1.msra.mxu0 0.0
      %374 = vmatprep.subr.mxu0 0.0
      %375 = vmatpush1.msra.mxu0 0.0
      %376 = vmatprep.subr.mxu0 0.0
      %377 = vmatpush1.msra.mxu0 0.0
      %378 = vmatprep.subr.mxu0 0.0
      %379 = vmatpush1.msra.mxu0 0.0
      %380 = vmatprep.subr.mxu0 0.0
      %381 = vmatpush1.msra.mxu0 0.0
      %382 = vmatprep.subr.mxu0 0.0
      %383 = vmatpush1.msra.mxu0 0.0
      %384 = vmatprep.subr.mxu0 0.0
      %385 = vmatpush1.msra.mxu0 0.0
      %386 = vmatprep.subr.mxu0 0.0
      %387 = vmatpush1.msra.mxu0 0.0
      %388 = vmatprep.subr.mxu0 0.0
      %389 = vmatpush1.msra.mxu0 0.0
      %390 = vmatprep.subr.mxu0 0.0
      %391 = vmatpush1.msra.mxu0 0.0
      %392 = vmatprep.subr.mxu0 0.0
      %393 = vmatpush1.msra.mxu0 0.0
      %394 = vmatprep.subr.mxu0 0.0
      %395 = vmatpush1.msra.mxu0 0.0
      %396 = vmatprep.subr.mxu0 0.0
      %397 = vmatpush1.msra.mxu0 0.0
      %398 = vmatprep.subr.mxu0 0.0
      %399 = vmatpush1.msra.mxu0 0.0
      %400 = vmatprep.subr.mxu0 0.0
      %401 = vmatpush1.msra.mxu0 0.0
      %402 = vmatprep.subr.mxu0 0.0
      %403 = vmatpush1.msra.mxu0 0.0
      %404 = vmatprep.subr.mxu0 0.0
      %405 = vmatpush1.msra.mxu0 0.0
      %406 = vmatprep.mubr.f32.mxu0 0.0
      %v407 = vand.u32 %v241, 4294901760
      %v408 = vsub.f32 %v241, %v407
      %v409 = vand.u32 %v408, 4294901760
      %v410 = vsub.f32 %v408, %v409
      %v411 = vand.u32 %v410, 4294901760
      %412 = vmatmul.mubr.f32.gmra.mrb[0].mxu0 %v411
      %v413 = vpop.f32.mrb[0].mxu0
      %v414 = vadd.f32 0.0, %v413
      %v415 = vpop.f32.mrb[0].mxu0
      %416 = vmatprep.mubr.f32.mxu0 0.0
      %v417 = vand.u32 %v244, 4294901760
      %v418 = vsub.f32 %v244, %v417
      %v419 = vand.u32 %v418, 4294901760
      %v420 = vsub.f32 %v418, %v419
      %v421 = vand.u32 %v420, 4294901760
      %422 = vmatmul.mubr.f32.gmra.mrb[0].mxu0 %v421
      %v423 = vpop.f32.mrb[0].mxu0
      %v424 = vadd.f32 0.0, %v423
      %v425 = vpop.f32.mrb[0].mxu0
      %426 = vmatprep.mubr.f32.mxu0 0.0
      %v427 = vand.u32 %v247, 4294901760
      %v428 = vsub.f32 %v247, %v427
      %v429 = vand.u32 %v428, 4294901760
      %v430 = vsub.f32 %v428, %v429
      %v431 = vand.u32 %v430, 4294901760
      %432 = vmatmul.mubr.f32.gmra.mrb[0].mxu0 %v431
      %v433 = vpop.f32.mrb[0].mxu0
      %v434 = vadd.f32 0.0, %v433
      %v435 = vpop.f32.mrb[0].mxu0
      %436 = vmatprep.mubr.f32.mxu0 0.0
      %v437 = vand.u32 %v250, 4294901760
      %v438 = vsub.f32 %v250, %v437
      %v439 = vand.u32 %v438, 4294901760
      %v440 = vsub.f32 %v438, %v439
      %v441 = vand.u32 %v440, 4294901760
      %442 = vmatmul.mubr.f32.gmra.mrb[0].mxu0 %v441
      %v443 = vpop.f32.mrb[0].mxu0
      %v444 = vadd.f32 0.0, %v443
      %v445 = vpop.f32.mrb[0].mxu0
      %446 = vmatprep.mubr.f32.mxu0 0.0
      %v447 = vand.u32 %v253, 4294901760
      %v448 = vsub.f32 %v253, %v447
      %v449 = vand.u32 %v448, 4294901760
      %v450 = vsub.f32 %v448, %v449
      %v451 = vand.u32 %v450, 4294901760
      %452 = vmatmul.mubr.f32.gmra.mrb[0].mxu0 %v451
      %v453 = vpop.f32.mrb[0].mxu0
      %v454 = vadd.f32 0.0, %v453
      %v455 = vpop.f32.mrb[0].mxu0
      %456 = vmatprep.mubr.f32.mxu0 0.0
      %v457 = vand.u32 %v256, 4294901760
      %v458 = vsub.f32 %v256, %v457
      %v459 = vand.u32 %v458, 4294901760
      %v460 = vsub.f32 %v458, %v459
      %v461 = vand.u32 %v460, 4294901760
      %462 = vmatmul.mubr.f32.gmra.mrb[0].mxu0 %v461
      %v463 = vpop.f32.mrb[0].mxu0
      %v464 = vadd.f32 0.0, %v463
      %v465 = vpop.f32.mrb[0].mxu0
      %466 = vmatprep.mubr.f32.mxu0 0.0
      %v467 = vand.u32 %v259, 4294901760
      %v468 = vsub.f32 %v259, %v467
      %v469 = vand.u32 %v468, 4294901760
      %v470 = vsub.f32 %v468, %v469
      %v471 = vand.u32 %v470, 4294901760
      %472 = vmatmul.mubr.f32.gmra.mrb[0].mxu0 %v471
      %v473 = vpop.f32.mrb[0].mxu0
      %v474 = vadd.f32 0.0, %v473
      %v475 = vpop.f32.mrb[0].mxu0
      %476 = vmatprep.mubr.f32.mxu0 0.0
      %v477 = vand.u32 %v262, 4294901760
      %v478 = vsub.f32 %v262, %v477
      %v479 = vand.u32 %v478, 4294901760
      %v480 = vsub.f32 %v478, %v479
      %v481 = vand.u32 %v480, 4294901760
      %482 = vmatmul.mubr.f32.gmra.mrb[0].mxu0 %v481
      %v483 = vpop.f32.mrb[0].mxu0
      %v484 = vadd.f32 0.0, %v483
      %v485 = vpop.f32.mrb[0].mxu0
      %486 = vmatprep.mubr.f32.mxu0 0.0
      %v487 = vand.u32 %v265, 4294901760
      %v488 = vsub.f32 %v265, %v487
      %v489 = vand.u32 %v488, 4294901760
      %v490 = vsub.f32 %v488, %v489
      %v491 = vand.u32 %v490, 4294901760
      %492 = vmatmul.mubr.f32.gmra.mrb[0].mxu0 %v491
      %v493 = vpop.f32.mrb[0].mxu0
      %v494 = vadd.f32 0.0, %v493
      %v495 = vpop.f32.mrb[0].mxu0
      %496 = vmatprep.mubr.f32.mxu0 0.0
      %v497 = vand.u32 %v268, 4294901760
      %v498 = vsub.f32 %v268, %v497
      %v499 = vand.u32 %v498, 4294901760
      %v500 = vsub.f32 %v498, %v499
      %v501 = vand.u32 %v500, 4294901760
      %502 = vmatmul.mubr.f32.gmra.mrb[0].mxu0 %v501
      %v503 = vpop.f32.mrb[0].mxu0
      %v504 = vadd.f32 0.0, %v503
      %v505 = vpop.f32.mrb[0].mxu0
      %506 = vmatprep.mubr.f32.mxu0 0.0
      %v507 = vand.u32 %v271, 4294901760
      %v508 = vsub.f32 %v271, %v507
      %v509 = vand.u32 %v508, 4294901760
      %v510 = vsub.f32 %v508, %v509
      %v511 = vand.u32 %v510, 4294901760
      %512 = vmatmul.mubr.f32.gmra.mrb[0].mxu0 %v511
      %v513 = vpop.f32.mrb[0].mxu0
      %v514 = vadd.f32 0.0, %v513
      %v515 = vpop.f32.mrb[0].mxu0
      %516 = vmatprep.mubr.f32.mxu0 0.0
      %v517 = vand.u32 %v274, 4294901760
      %v518 = vsub.f32 %v274, %v517
      %v519 = vand.u32 %v518, 4294901760
      %v520 = vsub.f32 %v518, %v519
      %v521 = vand.u32 %v520, 4294901760
      %522 = vmatmul.mubr.f32.gmra.mrb[0].mxu0 %v521
      %v523 = vpop.f32.mrb[0].mxu0
      %v524 = vadd.f32 0.0, %v523
      %v525 = vpop.f32.mrb[0].mxu0
      %526 = vmatprep.mubr.f32.mxu0 0.0
      %v527 = vand.u32 %v277, 4294901760
      %v528 = vsub.f32 %v277, %v527
      %v529 = vand.u32 %v528, 4294901760
      %v530 = vsub.f32 %v528, %v529
      %v531 = vand.u32 %v530, 4294901760
      %532 = vmatmul.mubr.f32.gmra.mrb[0].mxu0 %v531
      %v533 = vpop.f32.mrb[0].mxu0
      %v534 = vadd.f32 0.0, %v533
      %v535 = vpop.f32.mrb[0].mxu0
      %536 = vmatprep.mubr.f32.mxu0 0.0
      %v537 = vand.u32 %v280, 4294901760
      %v538 = vsub.f32 %v280, %v537
      %v539 = vand.u32 %v538, 4294901760
      %v540 = vsub.f32 %v538, %v539
      %v541 = vand.u32 %v540, 4294901760
      %542 = vmatmul.mubr.f32.gmra.mrb[0].mxu0 %v541
      %v543 = vpop.f32.mrb[0].mxu0
      %v544 = vadd.f32 0.0, %v543
      %v545 = vpop.f32.mrb[0].mxu0
      %546 = vmatprep.mubr.f32.mxu0 0.0
      %v547 = vand.u32 %v283, 4294901760
      %v548 = vsub.f32 %v283, %v547
      %v549 = vand.u32 %v548, 4294901760
      %v550 = vsub.f32 %v548, %v549
      %v551 = vand.u32 %v550, 4294901760
      %552 = vmatmul.mubr.f32.gmra.mrb[0].mxu0 %v551
      %v553 = vpop.f32.mrb[0].mxu0
      %v554 = vadd.f32 0.0, %v553
      %v555 = vpop.f32.mrb[0].mxu0
      %556 = vmatprep.mubr.f32.mxu0 0.0
      %v557 = vand.u32 %v286, 4294901760
      %v558 = vsub.f32 %v286, %v557
      %v559 = vand.u32 %v558, 4294901760
      %v560 = vsub.f32 %v558, %v559
      %v561 = vand.u32 %v560, 4294901760
      %562 = vmatmul.mubr.f32.gmra.mrb[0].mxu0 %v561
      %v563 = vpop.f32.mrb[0].mxu0
      %v564 = vadd.f32 0.0, %v563
      %v565 = vpop.f32.mrb[0].mxu0
      %566 = vmatprep.mubr.f32.mxu0 0.0
      %v567 = vand.u32 %v289, 4294901760
      %v568 = vsub.f32 %v289, %v567
      %v569 = vand.u32 %v568, 4294901760
      %v570 = vsub.f32 %v568, %v569
      %v571 = vand.u32 %v570, 4294901760
      %572 = vmatmul.mubr.f32.gmra.mrb[0].mxu0 %v571
      %v573 = vpop.f32.mrb[0].mxu0
      %v574 = vadd.f32 0.0, %v573
      %v575 = vpop.f32.mrb[0].mxu0
      %576 = vmatprep.mubr.f32.mxu0 0.0
      %v577 = vand.u32 %v292, 4294901760
      %v578 = vsub.f32 %v292, %v577
      %v579 = vand.u32 %v578, 4294901760
      %v580 = vsub.f32 %v578, %v579
      %v581 = vand.u32 %v580, 4294901760
      %582 = vmatmul.mubr.f32.gmra.mrb[0].mxu0 %v581
      %v583 = vpop.f32.mrb[0].mxu0
      %v584 = vadd.f32 0.0, %v583
      %v585 = vpop.f32.mrb[0].mxu0
      %586 = vmatprep.mubr.f32.mxu0 0.0
      %v587 = vand.u32 %v295, 4294901760
      %v588 = vsub.f32 %v295, %v587
      %v589 = vand.u32 %v588, 4294901760
      %v590 = vsub.f32 %v588, %v589
      %v591 = vand.u32 %v590, 4294901760
      %592 = vmatmul.mubr.f32.gmra.mrb[0].mxu0 %v591
      %v593 = vpop.f32.mrb[0].mxu0
      %v594 = vadd.f32 0.0, %v593
      %v595 = vpop.f32.mrb[0].mxu0
      %596 = vmatprep.mubr.f32.mxu0 0.0
      %v597 = vand.u32 %v298, 4294901760
      %v598 = vsub.f32 %v298, %v597
      %v599 = vand.u32 %v598, 4294901760
      %v600 = vsub.f32 %v598, %v599
      %v601 = vand.u32 %v600, 4294901760
      %602 = vmatmul.mubr.f32.gmra.mrb[0].mxu0 %v601
      %v603 = vpop.f32.mrb[0].mxu0
      %v604 = vadd.f32 0.0, %v603
      %v605 = vpop.f32.mrb[0].mxu0
      %606 = vmatprep.mubr.f32.mxu0 0.0
      %v607 = vand.u32 %v301, 4294901760
      %v608 = vsub.f32 %v301, %v607
      %v609 = vand.u32 %v608, 4294901760
      %v610 = vsub.f32 %v608, %v609
      %v611 = vand.u32 %v610, 4294901760
      %612 = vmatmul.mubr.f32.gmra.mrb[0].mxu0 %v611
      %v613 = vpop.f32.mrb[0].mxu0
      %v614 = vadd.f32 0.0, %v613
      %v615 = vpop.f32.mrb[0].mxu0
      %616 = vmatprep.mubr.f32.mxu0 0.0
      %v617 = vand.u32 %v304, 4294901760
      %v618 = vsub.f32 %v304, %v617
      %v619 = vand.u32 %v618, 4294901760
      %v620 = vsub.f32 %v618, %v619
      %v621 = vand.u32 %v620, 4294901760
      %622 = vmatmul.mubr.f32.gmra.mrb[0].mxu0 %v621
      %v623 = vpop.f32.mrb[0].mxu0
      %v624 = vadd.f32 0.0, %v623
      %v625 = vpop.f32.mrb[0].mxu0
      %626 = vmatprep.mubr.f32.mxu0 0.0
      %v627 = vand.u32 %v307, 4294901760
      %v628 = vsub.f32 %v307, %v627
      %v629 = vand.u32 %v628, 4294901760
      %v630 = vsub.f32 %v628, %v629
      %v631 = vand.u32 %v630, 4294901760
      %632 = vmatmul.mubr.f32.gmra.mrb[0].mxu0 %v631
      %v633 = vpop.f32.mrb[0].mxu0
      %v634 = vadd.f32 0.0, %v633
      %v635 = vpop.f32.mrb[0].mxu0
      %636 = vmatprep.mubr.f32.mxu0 0.0
      %v637 = vand.u32 %v310, 4294901760
      %v638 = vsub.f32 %v310, %v637
      %v639 = vand.u32 %v638, 4294901760
      %v640 = vsub.f32 %v638, %v639
      %v641 = vand.u32 %v640, 4294901760
      %642 = vmatmul.mubr.f32.gmra.mrb[0].mxu0 %v641
      %v643 = vpop.f32.mrb[0].mxu0
      %v644 = vadd.f32 0.0, %v643
      %v645 = vpop.f32.mrb[0].mxu0
      %646 = vmatprep.mubr.f32.mxu0 0.0
      %v647 = vand.u32 %v313, 4294901760
      %v648 = vsub.f32 %v313, %v647
      %v649 = vand.u32 %v648, 4294901760
      %v650 = vsub.f32 %v648, %v649
      %v651 = vand.u32 %v650, 4294901760
      %652 = vmatmul.mubr.f32.gmra.mrb[0].mxu0 %v651
      %v653 = vpop.f32.mrb[0].mxu0
      %v654 = vadd.f32 0.0, %v653
      %v655 = vpop.f32.mrb[0].mxu0
      %656 = vmatprep.mubr.f32.mxu0 0.0
      %v657 = vand.u32 %v316, 4294901760
      %v658 = vsub.f32 %v316, %v657
      %v659 = vand.u32 %v658, 4294901760
      %v660 = vsub.f32 %v658, %v659
      %v661 = vand.u32 %v660, 4294901760
      %662 = vmatmul.mubr.f32.gmra.mrb[0].mxu0 %v661
      %v663 = vpop.f32.mrb[0].mxu0
      %v664 = vadd.f32 0.0, %v663
      %v665 = vpop.f32.mrb[0].mxu0
      %666 = vmatprep.mubr.f32.mxu0 0.0
      %v667 = vand.u32 %v319, 4294901760
      %v668 = vsub.f32 %v319, %v667
      %v669 = vand.u32 %v668, 4294901760
      %v670 = vsub.f32 %v668, %v669
      %v671 = vand.u32 %v670, 4294901760
      %672 = vmatmul.mubr.f32.gmra.mrb[0].mxu0 %v671
      %v673 = vpop.f32.mrb[0].mxu0
      %v674 = vadd.f32 0.0, %v673
      %v675 = vpop.f32.mrb[0].mxu0
      %676 = vmatprep.mubr.f32.mxu0 0.0
      %v677 = vand.u32 %v322, 4294901760
      %v678 = vsub.f32 %v322, %v677
      %v679 = vand.u32 %v678, 4294901760
      %v680 = vsub.f32 %v678, %v679
      %v681 = vand.u32 %v680, 4294901760
      %682 = vmatmul.mubr.f32.gmra.mrb[0].mxu0 %v681
      %v683 = vpop.f32.mrb[0].mxu0
      %v684 = vadd.f32 0.0, %v683
      %v685 = vpop.f32.mrb[0].mxu0
      %686 = vmatprep.mubr.f32.mxu0 0.0
      %v687 = vand.u32 %v325, 4294901760
      %v688 = vsub.f32 %v325, %v687
      %v689 = vand.u32 %v688, 4294901760
      %v690 = vsub.f32 %v688, %v689
      %v691 = vand.u32 %v690, 4294901760
      %692 = vmatmul.mubr.f32.gmra.mrb[0].mxu0 %v691
      %v693 = vpop.f32.mrb[0].mxu0
      %v694 = vadd.f32 0.0, %v693
      %v695 = vpop.f32.mrb[0].mxu0
      %696 = vmatprep.mubr.f32.mxu0 0.0
      %v697 = vand.u32 %v328, 4294901760
      %v698 = vsub.f32 %v328, %v697
      %v699 = vand.u32 %v698, 4294901760
      %v700 = vsub.f32 %v698, %v699
      %v701 = vand.u32 %v700, 4294901760
      %702 = vmatmul.mubr.f32.gmra.mrb[0].mxu0 %v701
      %v703 = vpop.f32.mrb[0].mxu0
      %v704 = vadd.f32 0.0, %v703
      %v705 = vpop.f32.mrb[0].mxu0
      %706 = vmatprep.mubr.f32.mxu0 0.0
      %v707 = vand.u32 %v331, 4294901760
      %v708 = vsub.f32 %v331, %v707
      %v709 = vand.u32 %v708, 4294901760
      %v710 = vsub.f32 %v708, %v709
      %v711 = vand.u32 %v710, 4294901760
      %712 = vmatmul.mubr.f32.gmra.mrb[0].mxu0 %v711
      %v713 = vpop.f32.mrb[0].mxu0
      %v714 = vadd.f32 0.0, %v713
      %v715 = vpop.f32.mrb[0].mxu0
      %716 = vmatprep.mubr.f32.mxu0 0.0
      %v717 = vand.u32 %v334, 4294901760
      %v718 = vsub.f32 %v334, %v717
      %v719 = vand.u32 %v718, 4294901760
      %v720 = vsub.f32 %v718, %v719
      %v721 = vand.u32 %v720, 4294901760
      %722 = vmatmul.mubr.f32.gmra.mrb[0].mxu0 %v721
      %v723 = vpop.f32.mrb[0].mxu0
      %v724 = vadd.f32 0.0, %v723
      %v725 = vpop.f32.mrb[0].mxu0
      %726 = vdwg.mxu0
      %727 = vmatprep.subr.mxu0 0.0
      %v728 = vand.u32 %v233, 4294901760
      %v729 = vsub.f32 %v233, %v728
      %v730 = vand.u32 %v729, 4294901760
      %v731 = vsub.f32 %v729, %v730
      %v732 = vand.u32 %v731, 4294901760
      %733 = vmatpush1.msra.mxu0 %v732
      %734 = vmatprep.subr.mxu0 0.0
      %v735 = vand.u32 %v234, 4294901760
      %v736 = vsub.f32 %v234, %v735
      %v737 = vand.u32 %v736, 4294901760
      %v738 = vsub.f32 %v736, %v737
      %v739 = vand.u32 %v738, 4294901760
      %740 = vmatpush1.msra.mxu0 %v739
      %741 = vmatprep.subr.mxu0 0.0
      %v742 = vand.u32 %v235, 4294901760
      %v743 = vsub.f32 %v235, %v742
      %v744 = vand.u32 %v743, 4294901760
      %v745 = vsub.f32 %v743, %v744
      %v746 = vand.u32 %v745, 4294901760
      %747 = vmatpush1.msra.mxu0 %v746
      %748 = vmatprep.subr.mxu0 0.0
      %v749 = vand.u32 %v236, 4294901760
      %v750 = vsub.f32 %v236, %v749
      %v751 = vand.u32 %v750, 4294901760
      %v752 = vsub.f32 %v750, %v751
      %v753 = vand.u32 %v752, 4294901760
      %754 = vmatpush1.msra.mxu0 %v753
      %755 = vmatprep.subr.mxu0 0.0
      %v756 = vand.u32 %v237, 4294901760
      %v757 = vsub.f32 %v237, %v756
      %v758 = vand.u32 %v757, 4294901760
      %v759 = vsub.f32 %v757, %v758
      %v760 = vand.u32 %v759, 4294901760
      %761 = vmatpush1.msra.mxu0 %v760
      %762 = vmatprep.subr.mxu0 0.0
      %v763 = vand.u32 %v238, 4294901760
      %v764 = vsub.f32 %v238, %v763
      %v765 = vand.u32 %v764, 4294901760
      %v766 = vsub.f32 %v764, %v765
      %v767 = vand.u32 %v766, 4294901760
      %768 = vmatpush1.msra.mxu0 %v767
      %769 = vmatprep.subr.mxu0 0.0
      %770 = vmatpush1.msra.mxu0 0.0
      %771 = vmatprep.subr.mxu0 0.0
      %772 = vmatpush1.msra.mxu0 0.0
      %773 = vmatprep.subr.mxu0 0.0
      %774 = vmatpush1.msra.mxu0 0.0
      %775 = vmatprep.subr.mxu0 0.0
      %776 = vmatpush1.msra.mxu0 0.0
      %777 = vmatprep.subr.mxu0 0.0
      %778 = vmatpush1.msra.mxu0 0.0
      %779 = vmatprep.subr.mxu0 0.0
      %780 = vmatpush1.msra.mxu0 0.0
      %781 = vmatprep.subr.mxu0 0.0
      %782 = vmatpush1.msra.mxu0 0.0
      %783 = vmatprep.subr.mxu0 0.0
      %784 = vmatpush1.msra.mxu0 0.0
      %785 = vmatprep.subr.mxu0 0.0
      %786 = vmatpush1.msra.mxu0 0.0
      %787 = vmatprep.subr.mxu0 0.0
      %788 = vmatpush1.msra.mxu0 0.0
      %789 = vmatprep.subr.mxu0 0.0
      %790 = vmatpush1.msra.mxu0 0.0
      %791 = vmatprep.subr.mxu0 0.0
      %792 = vmatpush1.msra.mxu0 0.0
      %793 = vmatprep.subr.mxu0 0.0
      %794 = vmatpush1.msra.mxu0 0.0
      %795 = vmatprep.subr.mxu0 0.0
      %796 = vmatpush1.msra.mxu0 0.0
      %797 = vmatprep.subr.mxu0 0.0
      %798 = vmatpush1.msra.mxu0 0.0
      %799 = vmatprep.subr.mxu0 0.0
      %800 = vmatpush1.msra.mxu0 0.0
      %801 = vmatprep.subr.mxu0 0.0
      %802 = vmatpush1.msra.mxu0 0.0
      %803 = vmatprep.subr.mxu0 0.0
      %804 = vmatpush1.msra.mxu0 0.0
      %805 = vmatprep.subr.mxu0 0.0
      %806 = vmatpush1.msra.mxu0 0.0
      %807 = vmatprep.subr.mxu0 0.0
      %808 = vmatpush1.msra.mxu0 0.0
      %809 = vmatprep.subr.mxu0 0.0
      %810 = vmatpush1.msra.mxu0 0.0
      %811 = vmatprep.subr.mxu0 0.0
      %812 = vmatpush1.msra.mxu0 0.0
      %813 = vmatprep.subr.mxu0 0.0
      %814 = vmatpush1.msra.mxu0 0.0
      %815 = vmatprep.subr.mxu0 0.0
      %816 = vmatpush1.msra.mxu0 0.0
      %817 = vmatprep.subr.mxu0 0.0
      %818 = vmatpush1.msra.mxu0 0.0
      %819 = vmatprep.subr.mxu0 0.0
      %820 = vmatpush1.msra.mxu0 0.0
      %821 = vmatprep.mubr.f32.mxu0 0.0
      %v822 = vand.u32 %v241, 4294901760
      %823 = vmatmul.mubr.f32.gmra.mrb[0].mxu0 %v822
      %v824 = vpop.f32.mrb[0].mxu0
      %v825 = vadd.f32 %v414, %v824
      %v826 = vpop.f32.mrb[0].mxu0
      %827 = vmatprep.mubr.f32.mxu0 0.0
      %v828 = vand.u32 %v244, 4294901760
      %829 = vmatmul.mubr.f32.gmra.mrb[0].mxu0 %v828
      %v830 = vpop.f32.mrb[0].mxu0
      %v831 = vadd.f32 %v424, %v830
      %v832 = vpop.f32.mrb[0].mxu0
      %833 = vmatprep.mubr.f32.mxu0 0.0
      %v834 = vand.u32 %v247, 4294901760
      %835 = vmatmul.mubr.f32.gmra.mrb[0].mxu0 %v834
      %v836 = vpop.f32.mrb[0].mxu0
      %v837 = vadd.f32 %v434, %v836
      %v838 = vpop.f32.mrb[0].mxu0
      %839 = vmatprep.mubr.f32.mxu0 0.0
      %v840 = vand.u32 %v250, 4294901760
      %841 = vmatmul.mubr.f32.gmra.mrb[0].mxu0 %v840
      %v842 = vpop.f32.mrb[0].mxu0
      %v843 = vadd.f32 %v444, %v842
      %v844 = vpop.f32.mrb[0].mxu0
      %845 = vmatprep.mubr.f32.mxu0 0.0
      %v846 = vand.u32 %v253, 4294901760
      %847 = vmatmul.mubr.f32.gmra.mrb[0].mxu0 %v846
      %v848 = vpop.f32.mrb[0].mxu0
      %v849 = vadd.f32 %v454, %v848
      %v850 = vpop.f32.mrb[0].mxu0
      %851 = vmatprep.mubr.f32.mxu0 0.0
      %v852 = vand.u32 %v256, 4294901760
      %853 = vmatmul.mubr.f32.gmra.mrb[0].mxu0 %v852
      %v854 = vpop.f32.mrb[0].mxu0
      %v855 = vadd.f32 %v464, %v854
      %v856 = vpop.f32.mrb[0].mxu0
      %857 = vmatprep.mubr.f32.mxu0 0.0
      %v858 = vand.u32 %v259, 4294901760
      %859 = vmatmul.mubr.f32.gmra.mrb[0].mxu0 %v858
      %v860 = vpop.f32.mrb[0].mxu0
      %v861 = vadd.f32 %v474, %v860
      %v862 = vpop.f32.mrb[0].mxu0
      %863 = vmatprep.mubr.f32.mxu0 0.0
      %v864 = vand.u32 %v262, 4294901760
      %865 = vmatmul.mubr.f32.gmra.mrb[0].mxu0 %v864
      %v866 = vpop.f32.mrb[0].mxu0
      %v867 = vadd.f32 %v484, %v866
      %v868 = vpop.f32.mrb[0].mxu0
      %869 = vmatprep.mubr.f32.mxu0 0.0
      %v870 = vand.u32 %v265, 4294901760
      %871 = vmatmul.mubr.f32.gmra.mrb[0].mxu0 %v870
      %v872 = vpop.f32.mrb[0].mxu0
      %v873 = vadd.f32 %v494, %v872
      %v874 = vpop.f32.mrb[0].mxu0
      %875 = vmatprep.mubr.f32.mxu0 0.0
      %v876 = vand.u32 %v268, 4294901760
      %877 = vmatmul.mubr.f32.gmra.mrb[0].mxu0 %v876
      %v878 = vpop.f32.mrb[0].mxu0
      %v879 = vadd.f32 %v504, %v878
      %v880 = vpop.f32.mrb[0].mxu0
      %881 = vmatprep.mubr.f32.mxu0 0.0
      %v882 = vand.u32 %v271, 4294901760
      %883 = vmatmul.mubr.f32.gmra.mrb[0].mxu0 %v882
      %v884 = vpop.f32.mrb[0].mxu0
      %v885 = vadd.f32 %v514, %v884
      %v886 = vpop.f32.mrb[0].mxu0
      %887 = vmatprep.mubr.f32.mxu0 0.0
      %v888 = vand.u32 %v274, 4294901760
      %889 = vmatmul.mubr.f32.gmra.mrb[0].mxu0 %v888
      %v890 = vpop.f32.mrb[0].mxu0
      %v891 = vadd.f32 %v524, %v890
      %v892 = vpop.f32.mrb[0].mxu0
      %893 = vmatprep.mubr.f32.mxu0 0.0
      %v894 = vand.u32 %v277, 4294901760
      %895 = vmatmul.mubr.f32.gmra.mrb[0].mxu0 %v894
      %v896 = vpop.f32.mrb[0].mxu0
      %v897 = vadd.f32 %v534, %v896
      %v898 = vpop.f32.mrb[0].mxu0
      %899 = vmatprep.mubr.f32.mxu0 0.0
      %v900 = vand.u32 %v280, 4294901760
      %901 = vmatmul.mubr.f32.gmra.mrb[0].mxu0 %v900
      %v902 = vpop.f32.mrb[0].mxu0
      %v903 = vadd.f32 %v544, %v902
      %v904 = vpop.f32.mrb[0].mxu0
      %905 = vmatprep.mubr.f32.mxu0 0.0
      %v906 = vand.u32 %v283, 4294901760
      %907 = vmatmul.mubr.f32.gmra.mrb[0].mxu0 %v906
      %v908 = vpop.f32.mrb[0].mxu0
      %v909 = vadd.f32 %v554, %v908
      %v910 = vpop.f32.mrb[0].mxu0
      %911 = vmatprep.mubr.f32.mxu0 0.0
      %v912 = vand.u32 %v286, 4294901760
      %913 = vmatmul.mubr.f32.gmra.mrb[0].mxu0 %v912
      %v914 = vpop.f32.mrb[0].mxu0
      %v915 = vadd.f32 %v564, %v914
      %v916 = vpop.f32.mrb[0].mxu0
      %917 = vmatprep.mubr.f32.mxu0 0.0
      %v918 = vand.u32 %v289, 4294901760
      %919 = vmatmul.mubr.f32.gmra.mrb[0].mxu0 %v918
      %v920 = vpop.f32.mrb[0].mxu0
      %v921 = vadd.f32 %v574, %v920
      %v922 = vpop.f32.mrb[0].mxu0
      %923 = vmatprep.mubr.f32.mxu0 0.0
      %v924 = vand.u32 %v292, 4294901760
      %925 = vmatmul.mubr.f32.gmra.mrb[0].mxu0 %v924
      %v926 = vpop.f32.mrb[0].mxu0
      %v927 = vadd.f32 %v584, %v926
      %v928 = vpop.f32.mrb[0].mxu0
      %929 = vmatprep.mubr.f32.mxu0 0.0
      %v930 = vand.u32 %v295, 4294901760
      %931 = vmatmul.mubr.f32.gmra.mrb[0].mxu0 %v930
      %v932 = vpop.f32.mrb[0].mxu0
      %v933 = vadd.f32 %v594, %v932
      %v934 = vpop.f32.mrb[0].mxu0
      %935 = vmatprep.mubr.f32.mxu0 0.0
      %v936 = vand.u32 %v298, 4294901760
      %937 = vmatmul.mubr.f32.gmra.mrb[0].mxu0 %v936
      %v938 = vpop.f32.mrb[0].mxu0
      %v939 = vadd.f32 %v604, %v938
      %v940 = vpop.f32.mrb[0].mxu0
      %941 = vmatprep.mubr.f32.mxu0 0.0
      %v942 = vand.u32 %v301, 4294901760
      %943 = vmatmul.mubr.f32.gmra.mrb[0].mxu0 %v942
      %v944 = vpop.f32.mrb[0].mxu0
      %v945 = vadd.f32 %v614, %v944
      %v946 = vpop.f32.mrb[0].mxu0
      %947 = vmatprep.mubr.f32.mxu0 0.0
      %v948 = vand.u32 %v304, 4294901760
      %949 = vmatmul.mubr.f32.gmra.mrb[0].mxu0 %v948
      %v950 = vpop.f32.mrb[0].mxu0
      %v951 = vadd.f32 %v624, %v950
      %v952 = vpop.f32.mrb[0].mxu0
      %953 = vmatprep.mubr.f32.mxu0 0.0
      %v954 = vand.u32 %v307, 4294901760
      %955 = vmatmul.mubr.f32.gmra.mrb[0].mxu0 %v954
      %v956 = vpop.f32.mrb[0].mxu0
      %v957 = vadd.f32 %v634, %v956
      %v958 = vpop.f32.mrb[0].mxu0
      %959 = vmatprep.mubr.f32.mxu0 0.0
      %v960 = vand.u32 %v310, 4294901760
      %961 = vmatmul.mubr.f32.gmra.mrb[0].mxu0 %v960
      %v962 = vpop.f32.mrb[0].mxu0
      %v963 = vadd.f32 %v644, %v962
      %v964 = vpop.f32.mrb[0].mxu0
      %965 = vmatprep.mubr.f32.mxu0 0.0
      %v966 = vand.u32 %v313, 4294901760
      %967 = vmatmul.mubr.f32.gmra.mrb[0].mxu0 %v966
      %v968 = vpop.f32.mrb[0].mxu0
      %v969 = vadd.f32 %v654, %v968
      %v970 = vpop.f32.mrb[0].mxu0
      %971 = vmatprep.mubr.f32.mxu0 0.0
      %v972 = vand.u32 %v316, 4294901760
      %973 = vmatmul.mubr.f32.gmra.mrb[0].mxu0 %v972
      %v974 = vpop.f32.mrb[0].mxu0
      %v975 = vadd.f32 %v664, %v974
      %v976 = vpop.f32.mrb[0].mxu0
      %977 = vmatprep.mubr.f32.mxu0 0.0
      %v978 = vand.u32 %v319, 4294901760
      %979 = vmatmul.mubr.f32.gmra.mrb[0].mxu0 %v978
      %v980 = vpop.f32.mrb[0].mxu0
      %v981 = vadd.f32 %v674, %v980
      %v982 = vpop.f32.mrb[0].mxu0
      %983 = vmatprep.mubr.f32.mxu0 0.0
      %v984 = vand.u32 %v322, 4294901760
      %985 = vmatmul.mubr.f32.gmra.mrb[0].mxu0 %v984
      %v986 = vpop.f32.mrb[0].mxu0
      %v987 = vadd.f32 %v684, %v986
      %v988 = vpop.f32.mrb[0].mxu0
      %989 = vmatprep.mubr.f32.mxu0 0.0
      %v990 = vand.u32 %v325, 4294901760
      %991 = vmatmul.mubr.f32.gmra.mrb[0].mxu0 %v990
      %v992 = vpop.f32.mrb[0].mxu0
      %v993 = vadd.f32 %v694, %v992
      %v994 = vpop.f32.mrb[0].mxu0
      %995 = vmatprep.mubr.f32.mxu0 0.0
      %v996 = vand.u32 %v328, 4294901760
      %997 = vmatmul.mubr.f32.gmra.mrb[0].mxu0 %v996
      %v998 = vpop.f32.mrb[0].mxu0
      %v999 = vadd.f32 %v704, %v998
      %v1000 = vpop.f32.mrb[0].mxu0
      %1001 = vmatprep.mubr.f32.mxu0 0.0
      %v1002 = vand.u32 %v331, 4294901760
      %1003 = vmatmul.mubr.f32.gmra.mrb[0].mxu0 %v1002
      %v1004 = vpop.f32.mrb[0].mxu0
      %v1005 = vadd.f32 %v714, %v1004
      %v1006 = vpop.f32.mrb[0].mxu0
      %1007 = vmatprep.mubr.f32.mxu0 0.0
      %v1008 = vand.u32 %v334, 4294901760
      %1009 = vmatmul.mubr.f32.gmra.mrb[0].mxu0 %v1008
      %v1010 = vpop.f32.mrb[0].mxu0
      %v1011 = vadd.f32 %v724, %v1010
      %v1012 = vpop.f32.mrb[0].mxu0
      %1013 = vdwg.mxu0
      %1014 = vmatprep.subr.mxu0 0.0
      %v1015 = vand.u32 %v233, 4294901760
      %v1016 = vsub.f32 %v233, %v1015
      %1017 = vmatpush1.msra.mxu0 %v1016
      %1018 = vmatprep.subr.mxu0 0.0
      %v1019 = vand.u32 %v234, 4294901760
      %v1020 = vsub.f32 %v234, %v1019
      %1021 = vmatpush1.msra.mxu0 %v1020
      %1022 = vmatprep.subr.mxu0 0.0
      %v1023 = vand.u32 %v235, 4294901760
      %v1024 = vsub.f32 %v235, %v1023
      %1025 = vmatpush1.msra.mxu0 %v1024
      %1026 = vmatprep.subr.mxu0 0.0
      %v1027 = vand.u32 %v236, 4294901760
      %v1028 = vsub.f32 %v236, %v1027
      %1029 = vmatpush1.msra.mxu0 %v1028
      %1030 = vmatprep.subr.mxu0 0.0
      %v1031 = vand.u32 %v237, 4294901760
      %v1032 = vsub.f32 %v237, %v1031
      %1033 = vmatpush1.msra.mxu0 %v1032
      %1034 = vmatprep.subr.mxu0 0.0
      %v1035 = vand.u32 %v238, 4294901760
      %v1036 = vsub.f32 %v238, %v1035
      %1037 = vmatpush1.msra.mxu0 %v1036
      %1038 = vmatprep.subr.mxu0 0.0
      %1039 = vmatpush1.msra.mxu0 0.0
      %1040 = vmatprep.subr.mxu0 0.0
      %1041 = vmatpush1.msra.mxu0 0.0
      %1042 = vmatprep.subr.mxu0 0.0
      %1043 = vmatpush1.msra.mxu0 0.0
      %1044 = vmatprep.subr.mxu0 0.0
      %1045 = vmatpush1.msra.mxu0 0.0
      %1046 = vmatprep.subr.mxu0 0.0
      %1047 = vmatpush1.msra.mxu0 0.0
      %1048 = vmatprep.subr.mxu0 0.0
      %1049 = vmatpush1.msra.mxu0 0.0
      %1050 = vmatprep.subr.mxu0 0.0
      %1051 = vmatpush1.msra.mxu0 0.0
      %1052 = vmatprep.subr.mxu0 0.0
      %1053 = vmatpush1.msra.mxu0 0.0
      %1054 = vmatprep.subr.mxu0 0.0
      %1055 = vmatpush1.msra.mxu0 0.0
      %1056 = vmatprep.subr.mxu0 0.0
      %1057 = vmatpush1.msra.mxu0 0.0
      %1058 = vmatprep.subr.mxu0 0.0
      %1059 = vmatpush1.msra.mxu0 0.0
      %1060 = vmatprep.subr.mxu0 0.0
      %1061 = vmatpush1.msra.mxu0 0.0
      %1062 = vmatprep.subr.mxu0 0.0
      %1063 = vmatpush1.msra.mxu0 0.0
      %1064 = vmatprep.subr.mxu0 0.0
      %1065 = vmatpush1.msra.mxu0 0.0
      %1066 = vmatprep.subr.mxu0 0.0
      %1067 = vmatpush1.msra.mxu0 0.0
      %1068 = vmatprep.subr.mxu0 0.0
      %1069 = vmatpush1.msra.mxu0 0.0
      %1070 = vmatprep.subr.mxu0 0.0
      %1071 = vmatpush1.msra.mxu0 0.0
      %1072 = vmatprep.subr.mxu0 0.0
      %1073 = vmatpush1.msra.mxu0 0.0
      %1074 = vmatprep.subr.mxu0 0.0
      %1075 = vmatpush1.msra.mxu0 0.0
      %1076 = vmatprep.subr.mxu0 0.0
      %1077 = vmatpush1.msra.mxu0 0.0
      %1078 = vmatprep.subr.mxu0 0.0
      %1079 = vmatpush1.msra.mxu0 0.0
      %1080 = vmatprep.subr.mxu0 0.0
      %1081 = vmatpush1.msra.mxu0 0.0
      %1082 = vmatprep.subr.mxu0 0.0
      %1083 = vmatpush1.msra.mxu0 0.0
      %1084 = vmatprep.subr.mxu0 0.0
      %1085 = vmatpush1.msra.mxu0 0.0
      %1086 = vmatprep.subr.mxu0 0.0
      %1087 = vmatpush1.msra.mxu0 0.0
      %1088 = vmatprep.subr.mxu0 0.0
      %1089 = vmatpush1.msra.mxu0 0.0
      %1090 = vmatprep.mubr.f32.mxu0 0.0
      %v1091 = vand.u32 %v241, 4294901760
      %v1092 = vsub.f32 %v241, %v1091
      %1093 = vmatmul.mubr.f32.gmra.mrb[0].mxu0 %v1092
      %v1094 = vpop.f32.mrb[0].mxu0
      %v1095 = vadd.f32 %v825, %v1094
      %v1096 = vpop.f32.mrb[0].mxu0
      %1097 = vmatprep.mubr.f32.mxu0 0.0
      %v1098 = vand.u32 %v244, 4294901760
      %v1099 = vsub.f32 %v244, %v1098
      %1100 = vmatmul.mubr.f32.gmra.mrb[0].mxu0 %v1099
      %v1101 = vpop.f32.mrb[0].mxu0
      %v1102 = vadd.f32 %v831, %v1101
      %v1103 = vpop.f32.mrb[0].mxu0
      %1104 = vmatprep.mubr.f32.mxu0 0.0
      %v1105 = vand.u32 %v247, 4294901760
      %v1106 = vsub.f32 %v247, %v1105
      %1107 = vmatmul.mubr.f32.gmra.mrb[0].mxu0 %v1106
      %v1108 = vpop.f32.mrb[0].mxu0
      %v1109 = vadd.f32 %v837, %v1108
      %v1110 = vpop.f32.mrb[0].mxu0
      %1111 = vmatprep.mubr.f32.mxu0 0.0
      %v1112 = vand.u32 %v250, 4294901760
      %v1113 = vsub.f32 %v250, %v1112
      %1114 = vmatmul.mubr.f32.gmra.mrb[0].mxu0 %v1113
      %v1115 = vpop.f32.mrb[0].mxu0
      %v1116 = vadd.f32 %v843, %v1115
      %v1117 = vpop.f32.mrb[0].mxu0
      %1118 = vmatprep.mubr.f32.mxu0 0.0
      %v1119 = vand.u32 %v253, 4294901760
      %v1120 = vsub.f32 %v253, %v1119
      %1121 = vmatmul.mubr.f32.gmra.mrb[0].mxu0 %v1120
      %v1122 = vpop.f32.mrb[0].mxu0
      %v1123 = vadd.f32 %v849, %v1122
      %v1124 = vpop.f32.mrb[0].mxu0
      %1125 = vmatprep.mubr.f32.mxu0 0.0
      %v1126 = vand.u32 %v256, 4294901760
      %v1127 = vsub.f32 %v256, %v1126
      %1128 = vmatmul.mubr.f32.gmra.mrb[0].mxu0 %v1127
      %v1129 = vpop.f32.mrb[0].mxu0
      %v1130 = vadd.f32 %v855, %v1129
      %v1131 = vpop.f32.mrb[0].mxu0
      %1132 = vmatprep.mubr.f32.mxu0 0.0
      %v1133 = vand.u32 %v259, 4294901760
      %v1134 = vsub.f32 %v259, %v1133
      %1135 = vmatmul.mubr.f32.gmra.mrb[0].mxu0 %v1134
      %v1136 = vpop.f32.mrb[0].mxu0
      %v1137 = vadd.f32 %v861, %v1136
      %v1138 = vpop.f32.mrb[0].mxu0
      %1139 = vmatprep.mubr.f32.mxu0 0.0
      %v1140 = vand.u32 %v262, 4294901760
      %v1141 = vsub.f32 %v262, %v1140
      %1142 = vmatmul.mubr.f32.gmra.mrb[0].mxu0 %v1141
      %v1143 = vpop.f32.mrb[0].mxu0
      %v1144 = vadd.f32 %v867, %v1143
      %v1145 = vpop.f32.mrb[0].mxu0
      %1146 = vmatprep.mubr.f32.mxu0 0.0
      %v1147 = vand.u32 %v265, 4294901760
      %v1148 = vsub.f32 %v265, %v1147
      %1149 = vmatmul.mubr.f32.gmra.mrb[0].mxu0 %v1148
      %v1150 = vpop.f32.mrb[0].mxu0
      %v1151 = vadd.f32 %v873, %v1150
      %v1152 = vpop.f32.mrb[0].mxu0
      %1153 = vmatprep.mubr.f32.mxu0 0.0
      %v1154 = vand.u32 %v268, 4294901760
      %v1155 = vsub.f32 %v268, %v1154
      %1156 = vmatmul.mubr.f32.gmra.mrb[0].mxu0 %v1155
      %v1157 = vpop.f32.mrb[0].mxu0
      %v1158 = vadd.f32 %v879, %v1157
      %v1159 = vpop.f32.mrb[0].mxu0
      %1160 = vmatprep.mubr.f32.mxu0 0.0
      %v1161 = vand.u32 %v271, 4294901760
      %v1162 = vsub.f32 %v271, %v1161
      %1163 = vmatmul.mubr.f32.gmra.mrb[0].mxu0 %v1162
      %v1164 = vpop.f32.mrb[0].mxu0
      %v1165 = vadd.f32 %v885, %v1164
      %v1166 = vpop.f32.mrb[0].mxu0
      %1167 = vmatprep.mubr.f32.mxu0 0.0
      %v1168 = vand.u32 %v274, 4294901760
      %v1169 = vsub.f32 %v274, %v1168
      %1170 = vmatmul.mubr.f32.gmra.mrb[0].mxu0 %v1169
      %v1171 = vpop.f32.mrb[0].mxu0
      %v1172 = vadd.f32 %v891, %v1171
      %v1173 = vpop.f32.mrb[0].mxu0
      %1174 = vmatprep.mubr.f32.mxu0 0.0
      %v1175 = vand.u32 %v277, 4294901760
      %v1176 = vsub.f32 %v277, %v1175
      %1177 = vmatmul.mubr.f32.gmra.mrb[0].mxu0 %v1176
      %v1178 = vpop.f32.mrb[0].mxu0
      %v1179 = vadd.f32 %v897, %v1178
      %v1180 = vpop.f32.mrb[0].mxu0
      %1181 = vmatprep.mubr.f32.mxu0 0.0
      %v1182 = vand.u32 %v280, 4294901760
      %v1183 = vsub.f32 %v280, %v1182
      %1184 = vmatmul.mubr.f32.gmra.mrb[0].mxu0 %v1183
      %v1185 = vpop.f32.mrb[0].mxu0
      %v1186 = vadd.f32 %v903, %v1185
      %v1187 = vpop.f32.mrb[0].mxu0
      %1188 = vmatprep.mubr.f32.mxu0 0.0
      %v1189 = vand.u32 %v283, 4294901760
      %v1190 = vsub.f32 %v283, %v1189
      %1191 = vmatmul.mubr.f32.gmra.mrb[0].mxu0 %v1190
      %v1192 = vpop.f32.mrb[0].mxu0
      %v1193 = vadd.f32 %v909, %v1192
      %v1194 = vpop.f32.mrb[0].mxu0
      %1195 = vmatprep.mubr.f32.mxu0 0.0
      %v1196 = vand.u32 %v286, 4294901760
      %v1197 = vsub.f32 %v286, %v1196
      %1198 = vmatmul.mubr.f32.gmra.mrb[0].mxu0 %v1197
      %v1199 = vpop.f32.mrb[0].mxu0
      %v1200 = vadd.f32 %v915, %v1199
      %v1201 = vpop.f32.mrb[0].mxu0
      %1202 = vmatprep.mubr.f32.mxu0 0.0
      %v1203 = vand.u32 %v289, 4294901760
      %v1204 = vsub.f32 %v289, %v1203
      %1205 = vmatmul.mubr.f32.gmra.mrb[0].mxu0 %v1204
      %v1206 = vpop.f32.mrb[0].mxu0
      %v1207 = vadd.f32 %v921, %v1206
      %v1208 = vpop.f32.mrb[0].mxu0
      %1209 = vmatprep.mubr.f32.mxu0 0.0
      %v1210 = vand.u32 %v292, 4294901760
      %v1211 = vsub.f32 %v292, %v1210
      %1212 = vmatmul.mubr.f32.gmra.mrb[0].mxu0 %v1211
      %v1213 = vpop.f32.mrb[0].mxu0
      %v1214 = vadd.f32 %v927, %v1213
      %v1215 = vpop.f32.mrb[0].mxu0
      %1216 = vmatprep.mubr.f32.mxu0 0.0
      %v1217 = vand.u32 %v295, 4294901760
      %v1218 = vsub.f32 %v295, %v1217
      %1219 = vmatmul.mubr.f32.gmra.mrb[0].mxu0 %v1218
      %v1220 = vpop.f32.mrb[0].mxu0
      %v1221 = vadd.f32 %v933, %v1220
      %v1222 = vpop.f32.mrb[0].mxu0
      %1223 = vmatprep.mubr.f32.mxu0 0.0
      %v1224 = vand.u32 %v298, 4294901760
      %v1225 = vsub.f32 %v298, %v1224
      %1226 = vmatmul.mubr.f32.gmra.mrb[0].mxu0 %v1225
      %v1227 = vpop.f32.mrb[0].mxu0
      %v1228 = vadd.f32 %v939, %v1227
      %v1229 = vpop.f32.mrb[0].mxu0
      %1230 = vmatprep.mubr.f32.mxu0 0.0
      %v1231 = vand.u32 %v301, 4294901760
      %v1232 = vsub.f32 %v301, %v1231
      %1233 = vmatmul.mubr.f32.gmra.mrb[0].mxu0 %v1232
      %v1234 = vpop.f32.mrb[0].mxu0
      %v1235 = vadd.f32 %v945, %v1234
      %v1236 = vpop.f32.mrb[0].mxu0
      %1237 = vmatprep.mubr.f32.mxu0 0.0
      %v1238 = vand.u32 %v304, 4294901760
      %v1239 = vsub.f32 %v304, %v1238
      %1240 = vmatmul.mubr.f32.gmra.mrb[0].mxu0 %v1239
      %v1241 = vpop.f32.mrb[0].mxu0
      %v1242 = vadd.f32 %v951, %v1241
      %v1243 = vpop.f32.mrb[0].mxu0
      %1244 = vmatprep.mubr.f32.mxu0 0.0
      %v1245 = vand.u32 %v307, 4294901760
      %v1246 = vsub.f32 %v307, %v1245
      %1247 = vmatmul.mubr.f32.gmra.mrb[0].mxu0 %v1246
      %v1248 = vpop.f32.mrb[0].mxu0
      %v1249 = vadd.f32 %v957, %v1248
      %v1250 = vpop.f32.mrb[0].mxu0
      %1251 = vmatprep.mubr.f32.mxu0 0.0
      %v1252 = vand.u32 %v310, 4294901760
      %v1253 = vsub.f32 %v310, %v1252
      %1254 = vmatmul.mubr.f32.gmra.mrb[0].mxu0 %v1253
      %v1255 = vpop.f32.mrb[0].mxu0
      %v1256 = vadd.f32 %v963, %v1255
      %v1257 = vpop.f32.mrb[0].mxu0
      %1258 = vmatprep.mubr.f32.mxu0 0.0
      %v1259 = vand.u32 %v313, 4294901760
      %v1260 = vsub.f32 %v313, %v1259
      %1261 = vmatmul.mubr.f32.gmra.mrb[0].mxu0 %v1260
      %v1262 = vpop.f32.mrb[0].mxu0
      %v1263 = vadd.f32 %v969, %v1262
      %v1264 = vpop.f32.mrb[0].mxu0
      %1265 = vmatprep.mubr.f32.mxu0 0.0
      %v1266 = vand.u32 %v316, 4294901760
      %v1267 = vsub.f32 %v316, %v1266
      %1268 = vmatmul.mubr.f32.gmra.mrb[0].mxu0 %v1267
      %v1269 = vpop.f32.mrb[0].mxu0
      %v1270 = vadd.f32 %v975, %v1269
      %v1271 = vpop.f32.mrb[0].mxu0
      %1272 = vmatprep.mubr.f32.mxu0 0.0
      %v1273 = vand.u32 %v319, 4294901760
      %v1274 = vsub.f32 %v319, %v1273
      %1275 = vmatmul.mubr.f32.gmra.mrb[0].mxu0 %v1274
      %v1276 = vpop.f32.mrb[0].mxu0
      %v1277 = vadd.f32 %v981, %v1276
      %v1278 = vpop.f32.mrb[0].mxu0
      %1279 = vmatprep.mubr.f32.mxu0 0.0
      %v1280 = vand.u32 %v322, 4294901760
      %v1281 = vsub.f32 %v322, %v1280
      %1282 = vmatmul.mubr.f32.gmra.mrb[0].mxu0 %v1281
      %v1283 = vpop.f32.mrb[0].mxu0
      %v1284 = vadd.f32 %v987, %v1283
      %v1285 = vpop.f32.mrb[0].mxu0
      %1286 = vmatprep.mubr.f32.mxu0 0.0
      %v1287 = vand.u32 %v325, 4294901760
      %v1288 = vsub.f32 %v325, %v1287
      %1289 = vmatmul.mubr.f32.gmra.mrb[0].mxu0 %v1288
      %v1290 = vpop.f32.mrb[0].mxu0
      %v1291 = vadd.f32 %v993, %v1290
      %v1292 = vpop.f32.mrb[0].mxu0
      %1293 = vmatprep.mubr.f32.mxu0 0.0
      %v1294 = vand.u32 %v328, 4294901760
      %v1295 = vsub.f32 %v328, %v1294
      %1296 = vmatmul.mubr.f32.gmra.mrb[0].mxu0 %v1295
      %v1297 = vpop.f32.mrb[0].mxu0
      %v1298 = vadd.f32 %v999, %v1297
      %v1299 = vpop.f32.mrb[0].mxu0
      %1300 = vmatprep.mubr.f32.mxu0 0.0
      %v1301 = vand.u32 %v331, 4294901760
      %v1302 = vsub.f32 %v331, %v1301
      %1303 = vmatmul.mubr.f32.gmra.mrb[0].mxu0 %v1302
      %v1304 = vpop.f32.mrb[0].mxu0
      %v1305 = vadd.f32 %v1005, %v1304
      %v1306 = vpop.f32.mrb[0].mxu0
      %1307 = vmatprep.mubr.f32.mxu0 0.0
      %v1308 = vand.u32 %v334, 4294901760
      %v1309 = vsub.f32 %v334, %v1308
      %1310 = vmatmul.mubr.f32.gmra.mrb[0].mxu0 %v1309
      %v1311 = vpop.f32.mrb[0].mxu0
      %v1312 = vadd.f32 %v1011, %v1311
      %v1313 = vpop.f32.mrb[0].mxu0
      %1314 = vdwg.mxu0
      %1315 = vmatprep.subr.mxu0 0.0
      %v1316 = vand.u32 %v233, 4294901760
      %1317 = vmatpush1.msra.mxu0 %v1316
      %1318 = vmatprep.subr.mxu0 0.0
      %v1319 = vand.u32 %v234, 4294901760
      %1320 = vmatpush1.msra.mxu0 %v1319
      %1321 = vmatprep.subr.mxu0 0.0
      %v1322 = vand.u32 %v235, 4294901760
      %1323 = vmatpush1.msra.mxu0 %v1322
      %1324 = vmatprep.subr.mxu0 0.0
      %v1325 = vand.u32 %v236, 4294901760
      %1326 = vmatpush1.msra.mxu0 %v1325
      %1327 = vmatprep.subr.mxu0 0.0
      %v1328 = vand.u32 %v237, 4294901760
      %1329 = vmatpush1.msra.mxu0 %v1328
      %1330 = vmatprep.subr.mxu0 0.0
      %v1331 = vand.u32 %v238, 4294901760
      %1332 = vmatpush1.msra.mxu0 %v1331
      %1333 = vmatprep.subr.mxu0 0.0
      %1334 = vmatpush1.msra.mxu0 0.0
      %1335 = vmatprep.subr.mxu0 0.0
      %1336 = vmatpush1.msra.mxu0 0.0
      %1337 = vmatprep.subr.mxu0 0.0
      %1338 = vmatpush1.msra.mxu0 0.0
      %1339 = vmatprep.subr.mxu0 0.0
      %1340 = vmatpush1.msra.mxu0 0.0
      %1341 = vmatprep.subr.mxu0 0.0
      %1342 = vmatpush1.msra.mxu0 0.0
      %1343 = vmatprep.subr.mxu0 0.0
      %1344 = vmatpush1.msra.mxu0 0.0
      %1345 = vmatprep.subr.mxu0 0.0
      %1346 = vmatpush1.msra.mxu0 0.0
      %1347 = vmatprep.subr.mxu0 0.0
      %1348 = vmatpush1.msra.mxu0 0.0
      %1349 = vmatprep.subr.mxu0 0.0
      %1350 = vmatpush1.msra.mxu0 0.0
      %1351 = vmatprep.subr.mxu0 0.0
      %1352 = vmatpush1.msra.mxu0 0.0
      %1353 = vmatprep.subr.mxu0 0.0
      %1354 = vmatpush1.msra.mxu0 0.0
      %1355 = vmatprep.subr.mxu0 0.0
      %1356 = vmatpush1.msra.mxu0 0.0
      %1357 = vmatprep.subr.mxu0 0.0
      %1358 = vmatpush1.msra.mxu0 0.0
      %1359 = vmatprep.subr.mxu0 0.0
      %1360 = vmatpush1.msra.mxu0 0.0
      %1361 = vmatprep.subr.mxu0 0.0
      %1362 = vmatpush1.msra.mxu0 0.0
      %1363 = vmatprep.subr.mxu0 0.0
      %1364 = vmatpush1.msra.mxu0 0.0
      %1365 = vmatprep.subr.mxu0 0.0
      %1366 = vmatpush1.msra.mxu0 0.0
      %1367 = vmatprep.subr.mxu0 0.0
      %1368 = vmatpush1.msra.mxu0 0.0
      %1369 = vmatprep.subr.mxu0 0.0
      %1370 = vmatpush1.msra.mxu0 0.0
      %1371 = vmatprep.subr.mxu0 0.0
      %1372 = vmatpush1.msra.mxu0 0.0
      %1373 = vmatprep.subr.mxu0 0.0
      %1374 = vmatpush1.msra.mxu0 0.0
      %1375 = vmatprep.subr.mxu0 0.0
      %1376 = vmatpush1.msra.mxu0 0.0
      %1377 = vmatprep.subr.mxu0 0.0
      %1378 = vmatpush1.msra.mxu0 0.0
      %1379 = vmatprep.subr.mxu0 0.0
      %1380 = vmatpush1.msra.mxu0 0.0
      %1381 = vmatprep.subr.mxu0 0.0
      %1382 = vmatpush1.msra.mxu0 0.0
      %1383 = vmatprep.subr.mxu0 0.0
      %1384 = vmatpush1.msra.mxu0 0.0
      %1385 = vmatprep.mubr.f32.mxu0 0.0
      %v1386 = vand.u32 %v241, 4294901760
      %v1387 = vsub.f32 %v241, %v1386
      %v1388 = vand.u32 %v1387, 4294901760
      %1389 = vmatmul.mubr.f32.gmra.mrb[0].mxu0 %v1388
      %v1390 = vpop.f32.mrb[0].mxu0
      %v1391 = vadd.f32 %v1095, %v1390
      %v1392 = vpop.f32.mrb[0].mxu0
      %1393 = vmatprep.mubr.f32.mxu0 0.0
      %v1394 = vand.u32 %v244, 4294901760
      %v1395 = vsub.f32 %v244, %v1394
      %v1396 = vand.u32 %v1395, 4294901760
      %1397 = vmatmul.mubr.f32.gmra.mrb[0].mxu0 %v1396
      %v1398 = vpop.f32.mrb[0].mxu0
      %v1399 = vadd.f32 %v1102, %v1398
      %v1400 = vpop.f32.mrb[0].mxu0
      %1401 = vmatprep.mubr.f32.mxu0 0.0
      %v1402 = vand.u32 %v247, 4294901760
      %v1403 = vsub.f32 %v247, %v1402
      %v1404 = vand.u32 %v1403, 4294901760
      %1405 = vmatmul.mubr.f32.gmra.mrb[0].mxu0 %v1404
      %v1406 = vpop.f32.mrb[0].mxu0
      %v1407 = vadd.f32 %v1109, %v1406
      %v1408 = vpop.f32.mrb[0].mxu0
      %1409 = vmatprep.mubr.f32.mxu0 0.0
      %v1410 = vand.u32 %v250, 4294901760
      %v1411 = vsub.f32 %v250, %v1410
      %v1412 = vand.u32 %v1411, 4294901760
      %1413 = vmatmul.mubr.f32.gmra.mrb[0].mxu0 %v1412
      %v1414 = vpop.f32.mrb[0].mxu0
      %v1415 = vadd.f32 %v1116, %v1414
      %v1416 = vpop.f32.mrb[0].mxu0
      %1417 = vmatprep.mubr.f32.mxu0 0.0
      %v1418 = vand.u32 %v253, 4294901760
      %v1419 = vsub.f32 %v253, %v1418
      %v1420 = vand.u32 %v1419, 4294901760
      %1421 = vmatmul.mubr.f32.gmra.mrb[0].mxu0 %v1420
      %v1422 = vpop.f32.mrb[0].mxu0
      %v1423 = vadd.f32 %v1123, %v1422
      %v1424 = vpop.f32.mrb[0].mxu0
      %1425 = vmatprep.mubr.f32.mxu0 0.0
      %v1426 = vand.u32 %v256, 4294901760
      %v1427 = vsub.f32 %v256, %v1426
      %v1428 = vand.u32 %v1427, 4294901760
      %1429 = vmatmul.mubr.f32.gmra.mrb[0].mxu0 %v1428
      %v1430 = vpop.f32.mrb[0].mxu0
      %v1431 = vadd.f32 %v1130, %v1430
      %v1432 = vpop.f32.mrb[0].mxu0
      %1433 = vmatprep.mubr.f32.mxu0 0.0
      %v1434 = vand.u32 %v259, 4294901760
      %v1435 = vsub.f32 %v259, %v1434
      %v1436 = vand.u32 %v1435, 4294901760
      %1437 = vmatmul.mubr.f32.gmra.mrb[0].mxu0 %v1436
      %v1438 = vpop.f32.mrb[0].mxu0
      %v1439 = vadd.f32 %v1137, %v1438
      %v1440 = vpop.f32.mrb[0].mxu0
      %1441 = vmatprep.mubr.f32.mxu0 0.0
      %v1442 = vand.u32 %v262, 4294901760
      %v1443 = vsub.f32 %v262, %v1442
      %v1444 = vand.u32 %v1443, 4294901760
      %1445 = vmatmul.mubr.f32.gmra.mrb[0].mxu0 %v1444
      %v1446 = vpop.f32.mrb[0].mxu0
      %v1447 = vadd.f32 %v1144, %v1446
      %v1448 = vpop.f32.mrb[0].mxu0
      %1449 = vmatprep.mubr.f32.mxu0 0.0
      %v1450 = vand.u32 %v265, 4294901760
      %v1451 = vsub.f32 %v265, %v1450
      %v1452 = vand.u32 %v1451, 4294901760
      %1453 = vmatmul.mubr.f32.gmra.mrb[0].mxu0 %v1452
      %v1454 = vpop.f32.mrb[0].mxu0
      %v1455 = vadd.f32 %v1151, %v1454
      %v1456 = vpop.f32.mrb[0].mxu0
      %1457 = vmatprep.mubr.f32.mxu0 0.0
      %v1458 = vand.u32 %v268, 4294901760
      %v1459 = vsub.f32 %v268, %v1458
      %v1460 = vand.u32 %v1459, 4294901760
      %1461 = vmatmul.mubr.f32.gmra.mrb[0].mxu0 %v1460
      %v1462 = vpop.f32.mrb[0].mxu0
      %v1463 = vadd.f32 %v1158, %v1462
      %v1464 = vpop.f32.mrb[0].mxu0
      %1465 = vmatprep.mubr.f32.mxu0 0.0
      %v1466 = vand.u32 %v271, 4294901760
      %v1467 = vsub.f32 %v271, %v1466
      %v1468 = vand.u32 %v1467, 4294901760
      %1469 = vmatmul.mubr.f32.gmra.mrb[0].mxu0 %v1468
      %v1470 = vpop.f32.mrb[0].mxu0
      %v1471 = vadd.f32 %v1165, %v1470
      %v1472 = vpop.f32.mrb[0].mxu0
      %1473 = vmatprep.mubr.f32.mxu0 0.0
      %v1474 = vand.u32 %v274, 4294901760
      %v1475 = vsub.f32 %v274, %v1474
      %v1476 = vand.u32 %v1475, 4294901760
      %1477 = vmatmul.mubr.f32.gmra.mrb[0].mxu0 %v1476
      %v1478 = vpop.f32.mrb[0].mxu0
      %v1479 = vadd.f32 %v1172, %v1478
      %v1480 = vpop.f32.mrb[0].mxu0
      %1481 = vmatprep.mubr.f32.mxu0 0.0
      %v1482 = vand.u32 %v277, 4294901760
      %v1483 = vsub.f32 %v277, %v1482
      %v1484 = vand.u32 %v1483, 4294901760
      %1485 = vmatmul.mubr.f32.gmra.mrb[0].mxu0 %v1484
      %v1486 = vpop.f32.mrb[0].mxu0
      %v1487 = vadd.f32 %v1179, %v1486
      %v1488 = vpop.f32.mrb[0].mxu0
      %1489 = vmatprep.mubr.f32.mxu0 0.0
      %v1490 = vand.u32 %v280, 4294901760
      %v1491 = vsub.f32 %v280, %v1490
      %v1492 = vand.u32 %v1491, 4294901760
      %1493 = vmatmul.mubr.f32.gmra.mrb[0].mxu0 %v1492
      %v1494 = vpop.f32.mrb[0].mxu0
      %v1495 = vadd.f32 %v1186, %v1494
      %v1496 = vpop.f32.mrb[0].mxu0
      %1497 = vmatprep.mubr.f32.mxu0 0.0
      %v1498 = vand.u32 %v283, 4294901760
      %v1499 = vsub.f32 %v283, %v1498
      %v1500 = vand.u32 %v1499, 4294901760
      %1501 = vmatmul.mubr.f32.gmra.mrb[0].mxu0 %v1500
      %v1502 = vpop.f32.mrb[0].mxu0
      %v1503 = vadd.f32 %v1193, %v1502
      %v1504 = vpop.f32.mrb[0].mxu0
      %1505 = vmatprep.mubr.f32.mxu0 0.0
      %v1506 = vand.u32 %v286, 4294901760
      %v1507 = vsub.f32 %v286, %v1506
      %v1508 = vand.u32 %v1507, 4294901760
      %1509 = vmatmul.mubr.f32.gmra.mrb[0].mxu0 %v1508
      %v1510 = vpop.f32.mrb[0].mxu0
      %v1511 = vadd.f32 %v1200, %v1510
      %v1512 = vpop.f32.mrb[0].mxu0
      %1513 = vmatprep.mubr.f32.mxu0 0.0
      %v1514 = vand.u32 %v289, 4294901760
      %v1515 = vsub.f32 %v289, %v1514
      %v1516 = vand.u32 %v1515, 4294901760
      %1517 = vmatmul.mubr.f32.gmra.mrb[0].mxu0 %v1516
      %v1518 = vpop.f32.mrb[0].mxu0
      %v1519 = vadd.f32 %v1207, %v1518
      %v1520 = vpop.f32.mrb[0].mxu0
      %1521 = vmatprep.mubr.f32.mxu0 0.0
      %v1522 = vand.u32 %v292, 4294901760
      %v1523 = vsub.f32 %v292, %v1522
      %v1524 = vand.u32 %v1523, 4294901760
      %1525 = vmatmul.mubr.f32.gmra.mrb[0].mxu0 %v1524
      %v1526 = vpop.f32.mrb[0].mxu0
      %v1527 = vadd.f32 %v1214, %v1526
      %v1528 = vpop.f32.mrb[0].mxu0
      %1529 = vmatprep.mubr.f32.mxu0 0.0
      %v1530 = vand.u32 %v295, 4294901760
      %v1531 = vsub.f32 %v295, %v1530
      %v1532 = vand.u32 %v1531, 4294901760
      %1533 = vmatmul.mubr.f32.gmra.mrb[0].mxu0 %v1532
      %v1534 = vpop.f32.mrb[0].mxu0
      %v1535 = vadd.f32 %v1221, %v1534
      %v1536 = vpop.f32.mrb[0].mxu0
      %1537 = vmatprep.mubr.f32.mxu0 0.0
      %v1538 = vand.u32 %v298, 4294901760
      %v1539 = vsub.f32 %v298, %v1538
      %v1540 = vand.u32 %v1539, 4294901760
      %1541 = vmatmul.mubr.f32.gmra.mrb[0].mxu0 %v1540
      %v1542 = vpop.f32.mrb[0].mxu0
      %v1543 = vadd.f32 %v1228, %v1542
      %v1544 = vpop.f32.mrb[0].mxu0
      %1545 = vmatprep.mubr.f32.mxu0 0.0
      %v1546 = vand.u32 %v301, 4294901760
      %v1547 = vsub.f32 %v301, %v1546
      %v1548 = vand.u32 %v1547, 4294901760
      %1549 = vmatmul.mubr.f32.gmra.mrb[0].mxu0 %v1548
      %v1550 = vpop.f32.mrb[0].mxu0
      %v1551 = vadd.f32 %v1235, %v1550
      %v1552 = vpop.f32.mrb[0].mxu0
      %1553 = vmatprep.mubr.f32.mxu0 0.0
      %v1554 = vand.u32 %v304, 4294901760
      %v1555 = vsub.f32 %v304, %v1554
      %v1556 = vand.u32 %v1555, 4294901760
      %1557 = vmatmul.mubr.f32.gmra.mrb[0].mxu0 %v1556
      %v1558 = vpop.f32.mrb[0].mxu0
      %v1559 = vadd.f32 %v1242, %v1558
      %v1560 = vpop.f32.mrb[0].mxu0
      %1561 = vmatprep.mubr.f32.mxu0 0.0
      %v1562 = vand.u32 %v307, 4294901760
      %v1563 = vsub.f32 %v307, %v1562
      %v1564 = vand.u32 %v1563, 4294901760
      %1565 = vmatmul.mubr.f32.gmra.mrb[0].mxu0 %v1564
      %v1566 = vpop.f32.mrb[0].mxu0
      %v1567 = vadd.f32 %v1249, %v1566
      %v1568 = vpop.f32.mrb[0].mxu0
      %1569 = vmatprep.mubr.f32.mxu0 0.0
      %v1570 = vand.u32 %v310, 4294901760
      %v1571 = vsub.f32 %v310, %v1570
      %v1572 = vand.u32 %v1571, 4294901760
      %1573 = vmatmul.mubr.f32.gmra.mrb[0].mxu0 %v1572
      %v1574 = vpop.f32.mrb[0].mxu0
      %v1575 = vadd.f32 %v1256, %v1574
      %v1576 = vpop.f32.mrb[0].mxu0
      %1577 = vmatprep.mubr.f32.mxu0 0.0
      %v1578 = vand.u32 %v313, 4294901760
      %v1579 = vsub.f32 %v313, %v1578
      %v1580 = vand.u32 %v1579, 4294901760
      %1581 = vmatmul.mubr.f32.gmra.mrb[0].mxu0 %v1580
      %v1582 = vpop.f32.mrb[0].mxu0
      %v1583 = vadd.f32 %v1263, %v1582
      %v1584 = vpop.f32.mrb[0].mxu0
      %1585 = vmatprep.mubr.f32.mxu0 0.0
      %v1586 = vand.u32 %v316, 4294901760
      %v1587 = vsub.f32 %v316, %v1586
      %v1588 = vand.u32 %v1587, 4294901760
      %1589 = vmatmul.mubr.f32.gmra.mrb[0].mxu0 %v1588
      %v1590 = vpop.f32.mrb[0].mxu0
      %v1591 = vadd.f32 %v1270, %v1590
      %v1592 = vpop.f32.mrb[0].mxu0
      %1593 = vmatprep.mubr.f32.mxu0 0.0
      %v1594 = vand.u32 %v319, 4294901760
      %v1595 = vsub.f32 %v319, %v1594
      %v1596 = vand.u32 %v1595, 4294901760
      %1597 = vmatmul.mubr.f32.gmra.mrb[0].mxu0 %v1596
      %v1598 = vpop.f32.mrb[0].mxu0
      %v1599 = vadd.f32 %v1277, %v1598
      %v1600 = vpop.f32.mrb[0].mxu0
      %1601 = vmatprep.mubr.f32.mxu0 0.0
      %v1602 = vand.u32 %v322, 4294901760
      %v1603 = vsub.f32 %v322, %v1602
      %v1604 = vand.u32 %v1603, 4294901760
      %1605 = vmatmul.mubr.f32.gmra.mrb[0].mxu0 %v1604
      %v1606 = vpop.f32.mrb[0].mxu0
      %v1607 = vadd.f32 %v1284, %v1606
      %v1608 = vpop.f32.mrb[0].mxu0
      %1609 = vmatprep.mubr.f32.mxu0 0.0
      %v1610 = vand.u32 %v325, 4294901760
      %v1611 = vsub.f32 %v325, %v1610
      %v1612 = vand.u32 %v1611, 4294901760
      %1613 = vmatmul.mubr.f32.gmra.mrb[0].mxu0 %v1612
      %v1614 = vpop.f32.mrb[0].mxu0
      %v1615 = vadd.f32 %v1291, %v1614
      %v1616 = vpop.f32.mrb[0].mxu0
      %1617 = vmatprep.mubr.f32.mxu0 0.0
      %v1618 = vand.u32 %v328, 4294901760
      %v1619 = vsub.f32 %v328, %v1618
      %v1620 = vand.u32 %v1619, 4294901760
      %1621 = vmatmul.mubr.f32.gmra.mrb[0].mxu0 %v1620
      %v1622 = vpop.f32.mrb[0].mxu0
      %v1623 = vadd.f32 %v1298, %v1622
      %v1624 = vpop.f32.mrb[0].mxu0
      %1625 = vmatprep.mubr.f32.mxu0 0.0
      %v1626 = vand.u32 %v331, 4294901760
      %v1627 = vsub.f32 %v331, %v1626
      %v1628 = vand.u32 %v1627, 4294901760
      %1629 = vmatmul.mubr.f32.gmra.mrb[0].mxu0 %v1628
      %v1630 = vpop.f32.mrb[0].mxu0
      %v1631 = vadd.f32 %v1305, %v1630
      %v1632 = vpop.f32.mrb[0].mxu0
      %1633 = vmatprep.mubr.f32.mxu0 0.0
      %v1634 = vand.u32 %v334, 4294901760
      %v1635 = vsub.f32 %v334, %v1634
      %v1636 = vand.u32 %v1635, 4294901760
      %1637 = vmatmul.mubr.f32.gmra.mrb[0].mxu0 %v1636
      %v1638 = vpop.f32.mrb[0].mxu0
      %v1639 = vadd.f32 %v1312, %v1638
      %v1640 = vpop.f32.mrb[0].mxu0
      %1641 = vdwg.mxu0
      %1642 = vmatprep.subr.mxu0 0.0
      %v1643 = vand.u32 %v233, 4294901760
      %v1644 = vsub.f32 %v233, %v1643
      %v1645 = vand.u32 %v1644, 4294901760
      %1646 = vmatpush1.msra.mxu0 %v1645
      %1647 = vmatprep.subr.mxu0 0.0
      %v1648 = vand.u32 %v234, 4294901760
      %v1649 = vsub.f32 %v234, %v1648
      %v1650 = vand.u32 %v1649, 4294901760
      %1651 = vmatpush1.msra.mxu0 %v1650
      %1652 = vmatprep.subr.mxu0 0.0
      %v1653 = vand.u32 %v235, 4294901760
      %v1654 = vsub.f32 %v235, %v1653
      %v1655 = vand.u32 %v1654, 4294901760
      %1656 = vmatpush1.msra.mxu0 %v1655
      %1657 = vmatprep.subr.mxu0 0.0
      %v1658 = vand.u32 %v236, 4294901760
      %v1659 = vsub.f32 %v236, %v1658
      %v1660 = vand.u32 %v1659, 4294901760
      %1661 = vmatpush1.msra.mxu0 %v1660
      %1662 = vmatprep.subr.mxu0 0.0
      %v1663 = vand.u32 %v237, 4294901760
      %v1664 = vsub.f32 %v237, %v1663
      %v1665 = vand.u32 %v1664, 4294901760
      %1666 = vmatpush1.msra.mxu0 %v1665
      %1667 = vmatprep.subr.mxu0 0.0
      %v1668 = vand.u32 %v238, 4294901760
      %v1669 = vsub.f32 %v238, %v1668
      %v1670 = vand.u32 %v1669, 4294901760
      %1671 = vmatpush1.msra.mxu0 %v1670
      %1672 = vmatprep.subr.mxu0 0.0
      %1673 = vmatpush1.msra.mxu0 0.0
      %1674 = vmatprep.subr.mxu0 0.0
      %1675 = vmatpush1.msra.mxu0 0.0
      %1676 = vmatprep.subr.mxu0 0.0
      %1677 = vmatpush1.msra.mxu0 0.0
      %1678 = vmatprep.subr.mxu0 0.0
      %1679 = vmatpush1.msra.mxu0 0.0
      %1680 = vmatprep.subr.mxu0 0.0
      %1681 = vmatpush1.msra.mxu0 0.0
      %1682 = vmatprep.subr.mxu0 0.0
      %1683 = vmatpush1.msra.mxu0 0.0
      %1684 = vmatprep.subr.mxu0 0.0
      %1685 = vmatpush1.msra.mxu0 0.0
      %1686 = vmatprep.subr.mxu0 0.0
      %1687 = vmatpush1.msra.mxu0 0.0
      %1688 = vmatprep.subr.mxu0 0.0
      %1689 = vmatpush1.msra.mxu0 0.0
      %1690 = vmatprep.subr.mxu0 0.0
      %1691 = vmatpush1.msra.mxu0 0.0
      %1692 = vmatprep.subr.mxu0 0.0
      %1693 = vmatpush1.msra.mxu0 0.0
      %1694 = vmatprep.subr.mxu0 0.0
      %1695 = vmatpush1.msra.mxu0 0.0
      %1696 = vmatprep.subr.mxu0 0.0
      %1697 = vmatpush1.msra.mxu0 0.0
      %1698 = vmatprep.subr.mxu0 0.0
      %1699 = vmatpush1.msra.mxu0 0.0
      %1700 = vmatprep.subr.mxu0 0.0
      %1701 = vmatpush1.msra.mxu0 0.0
      %1702 = vmatprep.subr.mxu0 0.0
      %1703 = vmatpush1.msra.mxu0 0.0
      %1704 = vmatprep.subr.mxu0 0.0
      %1705 = vmatpush1.msra.mxu0 0.0
      %1706 = vmatprep.subr.mxu0 0.0
      %1707 = vmatpush1.msra.mxu0 0.0
      %1708 = vmatprep.subr.mxu0 0.0
      %1709 = vmatpush1.msra.mxu0 0.0
      %1710 = vmatprep.subr.mxu0 0.0
      %1711 = vmatpush1.msra.mxu0 0.0
      %1712 = vmatprep.subr.mxu0 0.0
      %1713 = vmatpush1.msra.mxu0 0.0
      %1714 = vmatprep.subr.mxu0 0.0
      %1715 = vmatpush1.msra.mxu0 0.0
      %1716 = vmatprep.subr.mxu0 0.0
      %1717 = vmatpush1.msra.mxu0 0.0
      %1718 = vmatprep.subr.mxu0 0.0
      %1719 = vmatpush1.msra.mxu0 0.0
      %1720 = vmatprep.subr.mxu0 0.0
      %1721 = vmatpush1.msra.mxu0 0.0
      %1722 = vmatprep.subr.mxu0 0.0
      %1723 = vmatpush1.msra.mxu0 0.0
      %1724 = vmatprep.mubr.f32.mxu0 0.0
      %v1725 = vand.u32 %v241, 4294901760
      %1726 = vmatmul.mubr.f32.gmra.mrb[0].mxu0 %v1725
      %v1727 = vpop.f32.mrb[0].mxu0
      %v1728 = vadd.f32 %v1391, %v1727
      %v1729 = vpop.f32.mrb[0].mxu0
      %1730 = vmatprep.mubr.f32.mxu0 0.0
      %v1731 = vand.u32 %v244, 4294901760
      %1732 = vmatmul.mubr.f32.gmra.mrb[0].mxu0 %v1731
      %v1733 = vpop.f32.mrb[0].mxu0
      %v1734 = vadd.f32 %v1399, %v1733
      %v1735 = vpop.f32.mrb[0].mxu0
      %1736 = vmatprep.mubr.f32.mxu0 0.0
      %v1737 = vand.u32 %v247, 4294901760
      %1738 = vmatmul.mubr.f32.gmra.mrb[0].mxu0 %v1737
      %v1739 = vpop.f32.mrb[0].mxu0
      %v1740 = vadd.f32 %v1407, %v1739
      %v1741 = vpop.f32.mrb[0].mxu0
      %1742 = vmatprep.mubr.f32.mxu0 0.0
      %v1743 = vand.u32 %v250, 4294901760
      %1744 = vmatmul.mubr.f32.gmra.mrb[0].mxu0 %v1743
      %v1745 = vpop.f32.mrb[0].mxu0
      %v1746 = vadd.f32 %v1415, %v1745
      %v1747 = vpop.f32.mrb[0].mxu0
      %1748 = vmatprep.mubr.f32.mxu0 0.0
      %v1749 = vand.u32 %v253, 4294901760
      %1750 = vmatmul.mubr.f32.gmra.mrb[0].mxu0 %v1749
      %v1751 = vpop.f32.mrb[0].mxu0
      %v1752 = vadd.f32 %v1423, %v1751
      %v1753 = vpop.f32.mrb[0].mxu0
      %1754 = vmatprep.mubr.f32.mxu0 0.0
      %v1755 = vand.u32 %v256, 4294901760
      %1756 = vmatmul.mubr.f32.gmra.mrb[0].mxu0 %v1755
      %v1757 = vpop.f32.mrb[0].mxu0
      %v1758 = vadd.f32 %v1431, %v1757
      %v1759 = vpop.f32.mrb[0].mxu0
      %1760 = vmatprep.mubr.f32.mxu0 0.0
      %v1761 = vand.u32 %v259, 4294901760
      %1762 = vmatmul.mubr.f32.gmra.mrb[0].mxu0 %v1761
      %v1763 = vpop.f32.mrb[0].mxu0
      %v1764 = vadd.f32 %v1439, %v1763
      %v1765 = vpop.f32.mrb[0].mxu0
      %1766 = vmatprep.mubr.f32.mxu0 0.0
      %v1767 = vand.u32 %v262, 4294901760
      %1768 = vmatmul.mubr.f32.gmra.mrb[0].mxu0 %v1767
      %v1769 = vpop.f32.mrb[0].mxu0
      %v1770 = vadd.f32 %v1447, %v1769
      %v1771 = vpop.f32.mrb[0].mxu0
      %1772 = vmatprep.mubr.f32.mxu0 0.0
      %v1773 = vand.u32 %v265, 4294901760
      %1774 = vmatmul.mubr.f32.gmra.mrb[0].mxu0 %v1773
      %v1775 = vpop.f32.mrb[0].mxu0
      %v1776 = vadd.f32 %v1455, %v1775
      %v1777 = vpop.f32.mrb[0].mxu0
      %1778 = vmatprep.mubr.f32.mxu0 0.0
      %v1779 = vand.u32 %v268, 4294901760
      %1780 = vmatmul.mubr.f32.gmra.mrb[0].mxu0 %v1779
      %v1781 = vpop.f32.mrb[0].mxu0
      %v1782 = vadd.f32 %v1463, %v1781
      %v1783 = vpop.f32.mrb[0].mxu0
      %1784 = vmatprep.mubr.f32.mxu0 0.0
      %v1785 = vand.u32 %v271, 4294901760
      %1786 = vmatmul.mubr.f32.gmra.mrb[0].mxu0 %v1785
      %v1787 = vpop.f32.mrb[0].mxu0
      %v1788 = vadd.f32 %v1471, %v1787
      %v1789 = vpop.f32.mrb[0].mxu0
      %1790 = vmatprep.mubr.f32.mxu0 0.0
      %v1791 = vand.u32 %v274, 4294901760
      %1792 = vmatmul.mubr.f32.gmra.mrb[0].mxu0 %v1791
      %v1793 = vpop.f32.mrb[0].mxu0
      %v1794 = vadd.f32 %v1479, %v1793
      %v1795 = vpop.f32.mrb[0].mxu0
      %1796 = vmatprep.mubr.f32.mxu0 0.0
      %v1797 = vand.u32 %v277, 4294901760
      %1798 = vmatmul.mubr.f32.gmra.mrb[0].mxu0 %v1797
      %v1799 = vpop.f32.mrb[0].mxu0
      %v1800 = vadd.f32 %v1487, %v1799
      %v1801 = vpop.f32.mrb[0].mxu0
      %1802 = vmatprep.mubr.f32.mxu0 0.0
      %v1803 = vand.u32 %v280, 4294901760
      %1804 = vmatmul.mubr.f32.gmra.mrb[0].mxu0 %v1803
      %v1805 = vpop.f32.mrb[0].mxu0
      %v1806 = vadd.f32 %v1495, %v1805
      %v1807 = vpop.f32.mrb[0].mxu0
      %1808 = vmatprep.mubr.f32.mxu0 0.0
      %v1809 = vand.u32 %v283, 4294901760
      %1810 = vmatmul.mubr.f32.gmra.mrb[0].mxu0 %v1809
      %v1811 = vpop.f32.mrb[0].mxu0
      %v1812 = vadd.f32 %v1503, %v1811
      %v1813 = vpop.f32.mrb[0].mxu0
      %1814 = vmatprep.mubr.f32.mxu0 0.0
      %v1815 = vand.u32 %v286, 4294901760
      %1816 = vmatmul.mubr.f32.gmra.mrb[0].mxu0 %v1815
      %v1817 = vpop.f32.mrb[0].mxu0
      %v1818 = vadd.f32 %v1511, %v1817
      %v1819 = vpop.f32.mrb[0].mxu0
      %1820 = vmatprep.mubr.f32.mxu0 0.0
      %v1821 = vand.u32 %v289, 4294901760
      %1822 = vmatmul.mubr.f32.gmra.mrb[0].mxu0 %v1821
      %v1823 = vpop.f32.mrb[0].mxu0
      %v1824 = vadd.f32 %v1519, %v1823
      %v1825 = vpop.f32.mrb[0].mxu0
      %1826 = vmatprep.mubr.f32.mxu0 0.0
      %v1827 = vand.u32 %v292, 4294901760
      %1828 = vmatmul.mubr.f32.gmra.mrb[0].mxu0 %v1827
      %v1829 = vpop.f32.mrb[0].mxu0
      %v1830 = vadd.f32 %v1527, %v1829
      %v1831 = vpop.f32.mrb[0].mxu0
      %1832 = vmatprep.mubr.f32.mxu0 0.0
      %v1833 = vand.u32 %v295, 4294901760
      %1834 = vmatmul.mubr.f32.gmra.mrb[0].mxu0 %v1833
      %v1835 = vpop.f32.mrb[0].mxu0
      %v1836 = vadd.f32 %v1535, %v1835
      %v1837 = vpop.f32.mrb[0].mxu0
      %1838 = vmatprep.mubr.f32.mxu0 0.0
      %v1839 = vand.u32 %v298, 4294901760
      %1840 = vmatmul.mubr.f32.gmra.mrb[0].mxu0 %v1839
      %v1841 = vpop.f32.mrb[0].mxu0
      %v1842 = vadd.f32 %v1543, %v1841
      %v1843 = vpop.f32.mrb[0].mxu0
      %1844 = vmatprep.mubr.f32.mxu0 0.0
      %v1845 = vand.u32 %v301, 4294901760
      %1846 = vmatmul.mubr.f32.gmra.mrb[0].mxu0 %v1845
      %v1847 = vpop.f32.mrb[0].mxu0
      %v1848 = vadd.f32 %v1551, %v1847
      %v1849 = vpop.f32.mrb[0].mxu0
      %1850 = vmatprep.mubr.f32.mxu0 0.0
      %v1851 = vand.u32 %v304, 4294901760
      %1852 = vmatmul.mubr.f32.gmra.mrb[0].mxu0 %v1851
      %v1853 = vpop.f32.mrb[0].mxu0
      %v1854 = vadd.f32 %v1559, %v1853
      %v1855 = vpop.f32.mrb[0].mxu0
      %1856 = vmatprep.mubr.f32.mxu0 0.0
      %v1857 = vand.u32 %v307, 4294901760
      %1858 = vmatmul.mubr.f32.gmra.mrb[0].mxu0 %v1857
      %v1859 = vpop.f32.mrb[0].mxu0
      %v1860 = vadd.f32 %v1567, %v1859
      %v1861 = vpop.f32.mrb[0].mxu0
      %1862 = vmatprep.mubr.f32.mxu0 0.0
      %v1863 = vand.u32 %v310, 4294901760
      %1864 = vmatmul.mubr.f32.gmra.mrb[0].mxu0 %v1863
      %v1865 = vpop.f32.mrb[0].mxu0
      %v1866 = vadd.f32 %v1575, %v1865
      %v1867 = vpop.f32.mrb[0].mxu0
      %1868 = vmatprep.mubr.f32.mxu0 0.0
      %v1869 = vand.u32 %v313, 4294901760
      %1870 = vmatmul.mubr.f32.gmra.mrb[0].mxu0 %v1869
      %v1871 = vpop.f32.mrb[0].mxu0
      %v1872 = vadd.f32 %v1583, %v1871
      %v1873 = vpop.f32.mrb[0].mxu0
      %1874 = vmatprep.mubr.f32.mxu0 0.0
      %v1875 = vand.u32 %v316, 4294901760
      %1876 = vmatmul.mubr.f32.gmra.mrb[0].mxu0 %v1875
      %v1877 = vpop.f32.mrb[0].mxu0
      %v1878 = vadd.f32 %v1591, %v1877
      %v1879 = vpop.f32.mrb[0].mxu0
      %1880 = vmatprep.mubr.f32.mxu0 0.0
      %v1881 = vand.u32 %v319, 4294901760
      %1882 = vmatmul.mubr.f32.gmra.mrb[0].mxu0 %v1881
      %v1883 = vpop.f32.mrb[0].mxu0
      %v1884 = vadd.f32 %v1599, %v1883
      %v1885 = vpop.f32.mrb[0].mxu0
      %1886 = vmatprep.mubr.f32.mxu0 0.0
      %v1887 = vand.u32 %v322, 4294901760
      %1888 = vmatmul.mubr.f32.gmra.mrb[0].mxu0 %v1887
      %v1889 = vpop.f32.mrb[0].mxu0
      %v1890 = vadd.f32 %v1607, %v1889
      %v1891 = vpop.f32.mrb[0].mxu0
      %1892 = vmatprep.mubr.f32.mxu0 0.0
      %v1893 = vand.u32 %v325, 4294901760
      %1894 = vmatmul.mubr.f32.gmra.mrb[0].mxu0 %v1893
      %v1895 = vpop.f32.mrb[0].mxu0
      %v1896 = vadd.f32 %v1615, %v1895
      %v1897 = vpop.f32.mrb[0].mxu0
      %1898 = vmatprep.mubr.f32.mxu0 0.0
      %v1899 = vand.u32 %v328, 4294901760
      %1900 = vmatmul.mubr.f32.gmra.mrb[0].mxu0 %v1899
      %v1901 = vpop.f32.mrb[0].mxu0
      %v1902 = vadd.f32 %v1623, %v1901
      %v1903 = vpop.f32.mrb[0].mxu0
      %1904 = vmatprep.mubr.f32.mxu0 0.0
      %v1905 = vand.u32 %v331, 4294901760
      %1906 = vmatmul.mubr.f32.gmra.mrb[0].mxu0 %v1905
      %v1907 = vpop.f32.mrb[0].mxu0
      %v1908 = vadd.f32 %v1631, %v1907
      %v1909 = vpop.f32.mrb[0].mxu0
      %1910 = vmatprep.mubr.f32.mxu0 0.0
      %v1911 = vand.u32 %v334, 4294901760
      %1912 = vmatmul.mubr.f32.gmra.mrb[0].mxu0 %v1911
      %v1913 = vpop.f32.mrb[0].mxu0
      %v1914 = vadd.f32 %v1639, %v1913
      %v1915 = vpop.f32.mrb[0].mxu0
      %1916 = vdwg.mxu0
      %1917 = vmatprep.subr.mxu0 0.0
      %v1918 = vand.u32 %v233, 4294901760
      %1919 = vmatpush1.msra.mxu0 %v1918
      %1920 = vmatprep.subr.mxu0 0.0
      %v1921 = vand.u32 %v234, 4294901760
      %1922 = vmatpush1.msra.mxu0 %v1921
      %1923 = vmatprep.subr.mxu0 0.0
      %v1924 = vand.u32 %v235, 4294901760
      %1925 = vmatpush1.msra.mxu0 %v1924
      %1926 = vmatprep.subr.mxu0 0.0
      %v1927 = vand.u32 %v236, 4294901760
      %1928 = vmatpush1.msra.mxu0 %v1927
      %1929 = vmatprep.subr.mxu0 0.0
      %v1930 = vand.u32 %v237, 4294901760
      %1931 = vmatpush1.msra.mxu0 %v1930
      %1932 = vmatprep.subr.mxu0 0.0
      %v1933 = vand.u32 %v238, 4294901760
      %1934 = vmatpush1.msra.mxu0 %v1933
      %1935 = vmatprep.subr.mxu0 0.0
      %1936 = vmatpush1.msra.mxu0 0.0
      %1937 = vmatprep.subr.mxu0 0.0
      %1938 = vmatpush1.msra.mxu0 0.0
      %1939 = vmatprep.subr.mxu0 0.0
      %1940 = vmatpush1.msra.mxu0 0.0
      %1941 = vmatprep.subr.mxu0 0.0
      %1942 = vmatpush1.msra.mxu0 0.0
      %1943 = vmatprep.subr.mxu0 0.0
      %1944 = vmatpush1.msra.mxu0 0.0
      %1945 = vmatprep.subr.mxu0 0.0
      %1946 = vmatpush1.msra.mxu0 0.0
      %1947 = vmatprep.subr.mxu0 0.0
      %1948 = vmatpush1.msra.mxu0 0.0
      %1949 = vmatprep.subr.mxu0 0.0
      %1950 = vmatpush1.msra.mxu0 0.0
      %1951 = vmatprep.subr.mxu0 0.0
      %1952 = vmatpush1.msra.mxu0 0.0
      %1953 = vmatprep.subr.mxu0 0.0
      %1954 = vmatpush1.msra.mxu0 0.0
      %1955 = vmatprep.subr.mxu0 0.0
      %1956 = vmatpush1.msra.mxu0 0.0
      %1957 = vmatprep.subr.mxu0 0.0
      %1958 = vmatpush1.msra.mxu0 0.0
      %1959 = vmatprep.subr.mxu0 0.0
      %1960 = vmatpush1.msra.mxu0 0.0
      %1961 = vmatprep.subr.mxu0 0.0
      %1962 = vmatpush1.msra.mxu0 0.0
      %1963 = vmatprep.subr.mxu0 0.0
      %1964 = vmatpush1.msra.mxu0 0.0
      %1965 = vmatprep.subr.mxu0 0.0
      %1966 = vmatpush1.msra.mxu0 0.0
      %1967 = vmatprep.subr.mxu0 0.0
      %1968 = vmatpush1.msra.mxu0 0.0
      %1969 = vmatprep.subr.mxu0 0.0
      %1970 = vmatpush1.msra.mxu0 0.0
      %1971 = vmatprep.subr.mxu0 0.0
      %1972 = vmatpush1.msra.mxu0 0.0
      %1973 = vmatprep.subr.mxu0 0.0
      %1974 = vmatpush1.msra.mxu0 0.0
      %1975 = vmatprep.subr.mxu0 0.0
      %1976 = vmatpush1.msra.mxu0 0.0
      %1977 = vmatprep.subr.mxu0 0.0
      %1978 = vmatpush1.msra.mxu0 0.0
      %1979 = vmatprep.subr.mxu0 0.0
      %1980 = vmatpush1.msra.mxu0 0.0
      %1981 = vmatprep.subr.mxu0 0.0
      %1982 = vmatpush1.msra.mxu0 0.0
      %1983 = vmatprep.subr.mxu0 0.0
      %1984 = vmatpush1.msra.mxu0 0.0
      %1985 = vmatprep.subr.mxu0 0.0
      %1986 = vmatpush1.msra.mxu0 0.0
      %1987 = vmatprep.mubr.f32.mxu0 0.0
      %v1988 = vand.u32 %v241, 4294901760
      %1989 = vmatmul.mubr.f32.gmra.mrb[0].mxu0 %v1988
      %v1990 = vpop.f32.mrb[0].mxu0
      %v1991 = vadd.f32 %v1728, %v1990
      %v1992 = vpop.f32.mrb[0].mxu0
      %1993 = vmatprep.mubr.f32.mxu0 0.0
      %v1994 = vand.u32 %v244, 4294901760
      %1995 = vmatmul.mubr.f32.gmra.mrb[0].mxu0 %v1994
      %v1996 = vpop.f32.mrb[0].mxu0
      %v1997 = vadd.f32 %v1734, %v1996
      %v1998 = vpop.f32.mrb[0].mxu0
      %1999 = vmatprep.mubr.f32.mxu0 0.0
      %v2000 = vand.u32 %v247, 4294901760
      %2001 = vmatmul.mubr.f32.gmra.mrb[0].mxu0 %v2000
      %v2002 = vpop.f32.mrb[0].mxu0
      %v2003 = vadd.f32 %v1740, %v2002
      %v2004 = vpop.f32.mrb[0].mxu0
      %2005 = vmatprep.mubr.f32.mxu0 0.0
      %v2006 = vand.u32 %v250, 4294901760
      %2007 = vmatmul.mubr.f32.gmra.mrb[0].mxu0 %v2006
      %v2008 = vpop.f32.mrb[0].mxu0
      %v2009 = vadd.f32 %v1746, %v2008
      %v2010 = vpop.f32.mrb[0].mxu0
      %2011 = vmatprep.mubr.f32.mxu0 0.0
      %v2012 = vand.u32 %v253, 4294901760
      %2013 = vmatmul.mubr.f32.gmra.mrb[0].mxu0 %v2012
      %v2014 = vpop.f32.mrb[0].mxu0
      %v2015 = vadd.f32 %v1752, %v2014
      %v2016 = vpop.f32.mrb[0].mxu0
      %2017 = vmatprep.mubr.f32.mxu0 0.0
      %v2018 = vand.u32 %v256, 4294901760
      %2019 = vmatmul.mubr.f32.gmra.mrb[0].mxu0 %v2018
      %v2020 = vpop.f32.mrb[0].mxu0
      %v2021 = vadd.f32 %v1758, %v2020
      %v2022 = vpop.f32.mrb[0].mxu0
      %2023 = vmatprep.mubr.f32.mxu0 0.0
      %v2024 = vand.u32 %v259, 4294901760
      %2025 = vmatmul.mubr.f32.gmra.mrb[0].mxu0 %v2024
      %v2026 = vpop.f32.mrb[0].mxu0
      %v2027 = vadd.f32 %v1764, %v2026
      %v2028 = vpop.f32.mrb[0].mxu0
      %2029 = vmatprep.mubr.f32.mxu0 0.0
      %v2030 = vand.u32 %v262, 4294901760
      %2031 = vmatmul.mubr.f32.gmra.mrb[0].mxu0 %v2030
      %v2032 = vpop.f32.mrb[0].mxu0
      %v2033 = vadd.f32 %v1770, %v2032
      %v2034 = vpop.f32.mrb[0].mxu0
      %2035 = vmatprep.mubr.f32.mxu0 0.0
      %v2036 = vand.u32 %v265, 4294901760
      %2037 = vmatmul.mubr.f32.gmra.mrb[0].mxu0 %v2036
      %v2038 = vpop.f32.mrb[0].mxu0
      %v2039 = vadd.f32 %v1776, %v2038
      %v2040 = vpop.f32.mrb[0].mxu0
      %2041 = vmatprep.mubr.f32.mxu0 0.0
      %v2042 = vand.u32 %v268, 4294901760
      %2043 = vmatmul.mubr.f32.gmra.mrb[0].mxu0 %v2042
      %v2044 = vpop.f32.mrb[0].mxu0
      %v2045 = vadd.f32 %v1782, %v2044
      %v2046 = vpop.f32.mrb[0].mxu0
      %2047 = vmatprep.mubr.f32.mxu0 0.0
      %v2048 = vand.u32 %v271, 4294901760
      %2049 = vmatmul.mubr.f32.gmra.mrb[0].mxu0 %v2048
      %v2050 = vpop.f32.mrb[0].mxu0
      %v2051 = vadd.f32 %v1788, %v2050
      %v2052 = vpop.f32.mrb[0].mxu0
      %2053 = vmatprep.mubr.f32.mxu0 0.0
      %v2054 = vand.u32 %v274, 4294901760
      %2055 = vmatmul.mubr.f32.gmra.mrb[0].mxu0 %v2054
      %v2056 = vpop.f32.mrb[0].mxu0
      %v2057 = vadd.f32 %v1794, %v2056
      %v2058 = vpop.f32.mrb[0].mxu0
      %2059 = vmatprep.mubr.f32.mxu0 0.0
      %v2060 = vand.u32 %v277, 4294901760
      %2061 = vmatmul.mubr.f32.gmra.mrb[0].mxu0 %v2060
      %v2062 = vpop.f32.mrb[0].mxu0
      %v2063 = vadd.f32 %v1800, %v2062
      %v2064 = vpop.f32.mrb[0].mxu0
      %2065 = vmatprep.mubr.f32.mxu0 0.0
      %v2066 = vand.u32 %v280, 4294901760
      %2067 = vmatmul.mubr.f32.gmra.mrb[0].mxu0 %v2066
      %v2068 = vpop.f32.mrb[0].mxu0
      %v2069 = vadd.f32 %v1806, %v2068
      %v2070 = vpop.f32.mrb[0].mxu0
      %2071 = vmatprep.mubr.f32.mxu0 0.0
      %v2072 = vand.u32 %v283, 4294901760
      %2073 = vmatmul.mubr.f32.gmra.mrb[0].mxu0 %v2072
      %v2074 = vpop.f32.mrb[0].mxu0
      %v2075 = vadd.f32 %v1812, %v2074
      %v2076 = vpop.f32.mrb[0].mxu0
      %2077 = vmatprep.mubr.f32.mxu0 0.0
      %v2078 = vand.u32 %v286, 4294901760
      %2079 = vmatmul.mubr.f32.gmra.mrb[0].mxu0 %v2078
      %v2080 = vpop.f32.mrb[0].mxu0
      %v2081 = vadd.f32 %v1818, %v2080
      %v2082 = vpop.f32.mrb[0].mxu0
      %2083 = vmatprep.mubr.f32.mxu0 0.0
      %v2084 = vand.u32 %v289, 4294901760
      %2085 = vmatmul.mubr.f32.gmra.mrb[0].mxu0 %v2084
      %v2086 = vpop.f32.mrb[0].mxu0
      %v2087 = vadd.f32 %v1824, %v2086
      %v2088 = vpop.f32.mrb[0].mxu0
      %2089 = vmatprep.mubr.f32.mxu0 0.0
      %v2090 = vand.u32 %v292, 4294901760
      %2091 = vmatmul.mubr.f32.gmra.mrb[0].mxu0 %v2090
      %v2092 = vpop.f32.mrb[0].mxu0
      %v2093 = vadd.f32 %v1830, %v2092
      %v2094 = vpop.f32.mrb[0].mxu0
      %2095 = vmatprep.mubr.f32.mxu0 0.0
      %v2096 = vand.u32 %v295, 4294901760
      %2097 = vmatmul.mubr.f32.gmra.mrb[0].mxu0 %v2096
      %v2098 = vpop.f32.mrb[0].mxu0
      %v2099 = vadd.f32 %v1836, %v2098
      %v2100 = vpop.f32.mrb[0].mxu0
      %2101 = vmatprep.mubr.f32.mxu0 0.0
      %v2102 = vand.u32 %v298, 4294901760
      %2103 = vmatmul.mubr.f32.gmra.mrb[0].mxu0 %v2102
      %v2104 = vpop.f32.mrb[0].mxu0
      %v2105 = vadd.f32 %v1842, %v2104
      %v2106 = vpop.f32.mrb[0].mxu0
      %2107 = vmatprep.mubr.f32.mxu0 0.0
      %v2108 = vand.u32 %v301, 4294901760
      %2109 = vmatmul.mubr.f32.gmra.mrb[0].mxu0 %v2108
      %v2110 = vpop.f32.mrb[0].mxu0
      %v2111 = vadd.f32 %v1848, %v2110
      %v2112 = vpop.f32.mrb[0].mxu0
      %2113 = vmatprep.mubr.f32.mxu0 0.0
      %v2114 = vand.u32 %v304, 4294901760
      %2115 = vmatmul.mubr.f32.gmra.mrb[0].mxu0 %v2114
      %v2116 = vpop.f32.mrb[0].mxu0
      %v2117 = vadd.f32 %v1854, %v2116
      %v2118 = vpop.f32.mrb[0].mxu0
      %2119 = vmatprep.mubr.f32.mxu0 0.0
      %v2120 = vand.u32 %v307, 4294901760
      %2121 = vmatmul.mubr.f32.gmra.mrb[0].mxu0 %v2120
      %v2122 = vpop.f32.mrb[0].mxu0
      %v2123 = vadd.f32 %v1860, %v2122
      %v2124 = vpop.f32.mrb[0].mxu0
      %2125 = vmatprep.mubr.f32.mxu0 0.0
      %v2126 = vand.u32 %v310, 4294901760
      %2127 = vmatmul.mubr.f32.gmra.mrb[0].mxu0 %v2126
      %v2128 = vpop.f32.mrb[0].mxu0
      %v2129 = vadd.f32 %v1866, %v2128
      %v2130 = vpop.f32.mrb[0].mxu0
      %2131 = vmatprep.mubr.f32.mxu0 0.0
      %v2132 = vand.u32 %v313, 4294901760
      %2133 = vmatmul.mubr.f32.gmra.mrb[0].mxu0 %v2132
      %v2134 = vpop.f32.mrb[0].mxu0
      %v2135 = vadd.f32 %v1872, %v2134
      %v2136 = vpop.f32.mrb[0].mxu0
      %2137 = vmatprep.mubr.f32.mxu0 0.0
      %v2138 = vand.u32 %v316, 4294901760
      %2139 = vmatmul.mubr.f32.gmra.mrb[0].mxu0 %v2138
      %v2140 = vpop.f32.mrb[0].mxu0
      %v2141 = vadd.f32 %v1878, %v2140
      %v2142 = vpop.f32.mrb[0].mxu0
      %2143 = vmatprep.mubr.f32.mxu0 0.0
      %v2144 = vand.u32 %v319, 4294901760
      %2145 = vmatmul.mubr.f32.gmra.mrb[0].mxu0 %v2144
      %v2146 = vpop.f32.mrb[0].mxu0
      %v2147 = vadd.f32 %v1884, %v2146
      %v2148 = vpop.f32.mrb[0].mxu0
      %2149 = vmatprep.mubr.f32.mxu0 0.0
      %v2150 = vand.u32 %v322, 4294901760
      %2151 = vmatmul.mubr.f32.gmra.mrb[0].mxu0 %v2150
      %v2152 = vpop.f32.mrb[0].mxu0
      %v2153 = vadd.f32 %v1890, %v2152
      %v2154 = vpop.f32.mrb[0].mxu0
      %2155 = vmatprep.mubr.f32.mxu0 0.0
      %v2156 = vand.u32 %v325, 4294901760
      %2157 = vmatmul.mubr.f32.gmra.mrb[0].mxu0 %v2156
      %v2158 = vpop.f32.mrb[0].mxu0
      %v2159 = vadd.f32 %v1896, %v2158
      %v2160 = vpop.f32.mrb[0].mxu0
      %2161 = vmatprep.mubr.f32.mxu0 0.0
      %v2162 = vand.u32 %v328, 4294901760
      %2163 = vmatmul.mubr.f32.gmra.mrb[0].mxu0 %v2162
      %v2164 = vpop.f32.mrb[0].mxu0
      %v2165 = vadd.f32 %v1902, %v2164
      %v2166 = vpop.f32.mrb[0].mxu0
      %2167 = vmatprep.mubr.f32.mxu0 0.0
      %v2168 = vand.u32 %v331, 4294901760
      %2169 = vmatmul.mubr.f32.gmra.mrb[0].mxu0 %v2168
      %v2170 = vpop.f32.mrb[0].mxu0
      %v2171 = vadd.f32 %v1908, %v2170
      %v2172 = vpop.f32.mrb[0].mxu0
      %2173 = vmatprep.mubr.f32.mxu0 0.0
      %v2174 = vand.u32 %v334, 4294901760
      %2175 = vmatmul.mubr.f32.gmra.mrb[0].mxu0 %v2174
      %v2176 = vpop.f32.mrb[0].mxu0
      %v2177 = vadd.f32 %v1914, %v2176
      %v2178 = vpop.f32.mrb[0].mxu0
      %2179 = vdwg.mxu0
      %v2180 = vld [vmem:[%s2] sm:$0x1]
      %v2182 = vlaneseq
      %v2183 = vshrl.u32 %v2182, 7
      %v2184 = vsub.s32 0, %v2183
      %v2185 = vrot.slane %v2180, %v2184
      %v2187 = vmul.f32 %v1991, %v2185
      %v2188 = vmul.f32 %v1997, %v2185
      %v2189 = vmul.f32 %v2003, %v2185
      %v2190 = vmul.f32 %v2009, %v2185
      %v2191 = vmul.f32 %v2015, %v2185
      %v2192 = vmul.f32 %v2021, %v2185
      %v2193 = vmul.f32 %v2027, %v2185
      %v2194 = vmul.f32 %v2033, %v2185
      %v2195 = vmul.f32 %v2039, %v2185
      %v2196 = vmul.f32 %v2045, %v2185
      %v2197 = vmul.f32 %v2051, %v2185
      %v2198 = vmul.f32 %v2057, %v2185
      %v2199 = vmul.f32 %v2063, %v2185
      %v2200 = vmul.f32 %v2069, %v2185
      %v2201 = vmul.f32 %v2075, %v2185
      %v2202 = vmul.f32 %v2081, %v2185
      %v2203 = vmul.f32 %v2087, %v2185
      %v2204 = vmul.f32 %v2093, %v2185
      %v2205 = vmul.f32 %v2099, %v2185
      %v2206 = vmul.f32 %v2105, %v2185
      %v2207 = vmul.f32 %v2111, %v2185
      %v2208 = vmul.f32 %v2117, %v2185
      %v2209 = vmul.f32 %v2123, %v2185
      %v2210 = vmul.f32 %v2129, %v2185
      %v2211 = vmul.f32 %v2135, %v2185
      %v2212 = vmul.f32 %v2141, %v2185
      %v2213 = vmul.f32 %v2147, %v2185
      %v2214 = vmul.f32 %v2153, %v2185
      %v2215 = vmul.f32 %v2159, %v2185
      %v2216 = vmul.f32 %v2165, %v2185
      %v2217 = vmul.f32 %v2171, %v2185
      %v2218 = vmul.f32 %v2177, %v2185
      %v2219 = vld [vmem:[%s3] sm:$0x1]
      %v2221 = vlaneseq
      %v2222 = vshrl.u32 %v2221, 7
      %v2223 = vsub.s32 0, %v2222
      %v2224 = vrot.slane %v2219, %v2223
      %v2226 = vadd.f32 %v2187, %v2224
      %v2227 = vadd.f32 %v2188, %v2224
      %v2228 = vadd.f32 %v2189, %v2224
      %v2229 = vadd.f32 %v2190, %v2224
      %v2230 = vadd.f32 %v2191, %v2224
      %v2231 = vadd.f32 %v2192, %v2224
      %v2232 = vadd.f32 %v2193, %v2224
      %v2233 = vadd.f32 %v2194, %v2224
      %v2234 = vadd.f32 %v2195, %v2224
      %v2235 = vadd.f32 %v2196, %v2224
      %v2236 = vadd.f32 %v2197, %v2224
      %v2237 = vadd.f32 %v2198, %v2224
      %v2238 = vadd.f32 %v2199, %v2224
      %v2239 = vadd.f32 %v2200, %v2224
      %v2240 = vadd.f32 %v2201, %v2224
      %v2241 = vadd.f32 %v2202, %v2224
      %v2242 = vadd.f32 %v2203, %v2224
      %v2243 = vadd.f32 %v2204, %v2224
      %v2244 = vadd.f32 %v2205, %v2224
      %v2245 = vadd.f32 %v2206, %v2224
      %v2246 = vadd.f32 %v2207, %v2224
      %v2247 = vadd.f32 %v2208, %v2224
      %v2248 = vadd.f32 %v2209, %v2224
      %v2249 = vadd.f32 %v2210, %v2224
      %v2250 = vadd.f32 %v2211, %v2224
      %v2251 = vadd.f32 %v2212, %v2224
      %v2252 = vadd.f32 %v2213, %v2224
      %v2253 = vadd.f32 %v2214, %v2224
      %v2254 = vadd.f32 %v2215, %v2224
      %v2255 = vadd.f32 %v2216, %v2224
      %v2256 = vadd.f32 %v2217, %v2224
      %v2257 = vadd.f32 %v2218, %v2224
      %vm2258 = vcmp.ge.f32.partialorder %v2226, 0.0
      %vm2259 = vcmp.ge.f32.partialorder %v2227, 0.0
      %vm2260 = vcmp.ge.f32.partialorder %v2228, 0.0
      %vm2261 = vcmp.ge.f32.partialorder %v2229, 0.0
      %vm2262 = vcmp.ge.f32.partialorder %v2230, 0.0
      %vm2263 = vcmp.ge.f32.partialorder %v2231, 0.0
      %vm2264 = vcmp.ge.f32.partialorder %v2232, 0.0
      %vm2265 = vcmp.ge.f32.partialorder %v2233, 0.0
      %vm2266 = vcmp.ge.f32.partialorder %v2234, 0.0
      %vm2267 = vcmp.ge.f32.partialorder %v2235, 0.0
      %vm2268 = vcmp.ge.f32.partialorder %v2236, 0.0
      %vm2269 = vcmp.ge.f32.partialorder %v2237, 0.0
      %vm2270 = vcmp.ge.f32.partialorder %v2238, 0.0
      %vm2271 = vcmp.ge.f32.partialorder %v2239, 0.0
      %vm2272 = vcmp.ge.f32.partialorder %v2240, 0.0
      %vm2273 = vcmp.ge.f32.partialorder %v2241, 0.0
      %vm2274 = vcmp.ge.f32.partialorder %v2242, 0.0
      %vm2275 = vcmp.ge.f32.partialorder %v2243, 0.0
      %vm2276 = vcmp.ge.f32.partialorder %v2244, 0.0
      %vm2277 = vcmp.ge.f32.partialorder %v2245, 0.0
      %vm2278 = vcmp.ge.f32.partialorder %v2246, 0.0
      %vm2279 = vcmp.ge.f32.partialorder %v2247, 0.0
      %vm2280 = vcmp.ge.f32.partialorder %v2248, 0.0
      %vm2281 = vcmp.ge.f32.partialorder %v2249, 0.0
      %vm2282 = vcmp.ge.f32.partialorder %v2250, 0.0
      %vm2283 = vcmp.ge.f32.partialorder %v2251, 0.0
      %vm2284 = vcmp.ge.f32.partialorder %v2252, 0.0
      %vm2285 = vcmp.ge.f32.partialorder %v2253, 0.0
      %vm2286 = vcmp.ge.f32.partialorder %v2254, 0.0
      %vm2287 = vcmp.ge.f32.partialorder %v2255, 0.0
      %vm2288 = vcmp.ge.f32.partialorder %v2256, 0.0
      %vm2289 = vcmp.ge.f32.partialorder %v2257, 0.0
      %v2290 = vmul.f32 %v2226, 0.2
      %v2291 = vmul.f32 %v2227, 0.2
      %v2292 = vmul.f32 %v2228, 0.2
      %v2293 = vmul.f32 %v2229, 0.2
      %v2294 = vmul.f32 %v2230, 0.2
      %v2295 = vmul.f32 %v2231, 0.2
      %v2296 = vmul.f32 %v2232, 0.2
      %v2297 = vmul.f32 %v2233, 0.2
      %v2298 = vmul.f32 %v2234, 0.2
      %v2299 = vmul.f32 %v2235, 0.2
      %v2300 = vmul.f32 %v2236, 0.2
      %v2301 = vmul.f32 %v2237, 0.2
      %v2302 = vmul.f32 %v2238, 0.2
      %v2303 = vmul.f32 %v2239, 0.2
      %v2304 = vmul.f32 %v2240, 0.2
      %v2305 = vmul.f32 %v2241, 0.2
      %v2306 = vmul.f32 %v2242, 0.2
      %v2307 = vmul.f32 %v2243, 0.2
      %v2308 = vmul.f32 %v2244, 0.2
      %v2309 = vmul.f32 %v2245, 0.2
      %v2310 = vmul.f32 %v2246, 0.2
      %v2311 = vmul.f32 %v2247, 0.2
      %v2312 = vmul.f32 %v2248, 0.2
      %v2313 = vmul.f32 %v2249, 0.2
      %v2314 = vmul.f32 %v2250, 0.2
      %v2315 = vmul.f32 %v2251, 0.2
      %v2316 = vmul.f32 %v2252, 0.2
      %v2317 = vmul.f32 %v2253, 0.2
      %v2318 = vmul.f32 %v2254, 0.2
      %v2319 = vmul.f32 %v2255, 0.2
      %v2320 = vmul.f32 %v2256, 0.2
      %v2321 = vmul.f32 %v2257, 0.2
      %v2322 = vsel %vm2258, %v2226, %v2290
      %v2323 = vsel %vm2259, %v2227, %v2291
      %v2324 = vsel %vm2260, %v2228, %v2292
      %v2325 = vsel %vm2261, %v2229, %v2293
      %v2326 = vsel %vm2262, %v2230, %v2294
      %v2327 = vsel %vm2263, %v2231, %v2295
      %v2328 = vsel %vm2264, %v2232, %v2296
      %v2329 = vsel %vm2265, %v2233, %v2297
      %v2330 = vsel %vm2266, %v2234, %v2298
      %v2331 = vsel %vm2267, %v2235, %v2299
      %v2332 = vsel %vm2268, %v2236, %v2300
      %v2333 = vsel %vm2269, %v2237, %v2301
      %v2334 = vsel %vm2270, %v2238, %v2302
      %v2335 = vsel %vm2271, %v2239, %v2303
      %v2336 = vsel %vm2272, %v2240, %v2304
      %v2337 = vsel %vm2273, %v2241, %v2305
      %v2338 = vsel %vm2274, %v2242, %v2306
      %v2339 = vsel %vm2275, %v2243, %v2307
      %v2340 = vsel %vm2276, %v2244, %v2308
      %v2341 = vsel %vm2277, %v2245, %v2309
      %v2342 = vsel %vm2278, %v2246, %v2310
      %v2343 = vsel %vm2279, %v2247, %v2311
      %v2344 = vsel %vm2280, %v2248, %v2312
      %v2345 = vsel %vm2281, %v2249, %v2313
      %v2346 = vsel %vm2282, %v2250, %v2314
      %v2347 = vsel %vm2283, %v2251, %v2315
      %v2348 = vsel %vm2284, %v2252, %v2316
      %v2349 = vsel %vm2285, %v2253, %v2317
      %v2350 = vsel %vm2286, %v2254, %v2318
      %v2351 = vsel %vm2287, %v2255, %v2319
      %v2352 = vsel %vm2288, %v2256, %v2320
      %v2353 = vsel %vm2289, %v2257, %v2321
      %2354 = vst [vmem:[%s199] sm:$0xff] %v2322
      %2355 = vst [vmem:[%s199 + $0x8] sm:$0xff] %v2323
      %2356 = vst [vmem:[%s199 + $0x10] sm:$0xff] %v2324
      %2357 = vst [vmem:[%s199 + $0x18] sm:$0xff] %v2325
      %2358 = vst [vmem:[%s199 + $0x20] sm:$0xff] %v2326
      %2359 = vst [vmem:[%s199 + $0x28] sm:$0xff] %v2327
      %2360 = vst [vmem:[%s199 + $0x30] sm:$0xff] %v2328
      %2361 = vst [vmem:[%s199 + $0x38] sm:$0xff] %v2329
      %2362 = vst [vmem:[%s199 + $0x40] sm:$0xff] %v2330
      %2363 = vst [vmem:[%s199 + $0x48] sm:$0xff] %v2331
      %2364 = vst [vmem:[%s199 + $0x50] sm:$0xff] %v2332
      %2365 = vst [vmem:[%s199 + $0x58] sm:$0xff] %v2333
      %2366 = vst [vmem:[%s199 + $0x60] sm:$0xff] %v2334
      %2367 = vst [vmem:[%s199 + $0x68] sm:$0xff] %v2335
      %2368 = vst [vmem:[%s199 + $0x70] sm:$0xff] %v2336
      %2369 = vst [vmem:[%s199 + $0x78] sm:$0xff] %v2337
      %2370 = vst [vmem:[%s199 + $0x80] sm:$0xff] %v2338
      %2371 = vst [vmem:[%s199 + $0x88] sm:$0xff] %v2339
      %2372 = vst [vmem:[%s199 + $0x90] sm:$0xff] %v2340
      %2373 = vst [vmem:[%s199 + $0x98] sm:$0xff] %v2341
      %2374 = vst [vmem:[%s199 + $0xa0] sm:$0xff] %v2342
      %2375 = vst [vmem:[%s199 + $0xa8] sm:$0xff] %v2343
      %2376 = vst [vmem:[%s199 + $0xb0] sm:$0xff] %v2344
      %2377 = vst [vmem:[%s199 + $0xb8] sm:$0xff] %v2345
      %2378 = vst [vmem:[%s199 + $0xc0] sm:$0xff] %v2346
      %2379 = vst [vmem:[%s199 + $0xc8] sm:$0xff] %v2347
      %2380 = vst [vmem:[%s199 + $0xd0] sm:$0xff] %v2348
      %2381 = vst [vmem:[%s199 + $0xd8] sm:$0xff] %v2349
      %2382 = vst [vmem:[%s199 + $0xe0] sm:$0xff] %v2350
      %2383 = vst [vmem:[%s199 + $0xe8] sm:$0xff] %v2351
      %2384 = vst [vmem:[%s199 + $0xf0] sm:$0xff] %v2352
      %2385 = vst [vmem:[%s199 + $0xf8] sm:$0xff] %v2353
      %s2386 = smul.u32 32, %s15
      %p2387 = scmp.lt.s32.totalorder %s2386, 63
      %s2388 = scalar_select %p2387, %s2386, 63
      %s2389 = smul.addr %s2388, 8
      %s2390 = scalar_lea.vmem %s4, %s2389
      // Predicated region
      $region37: #{_lambda_.5} parent=35 // pred_check
        %p2391 = pneg %p122
      $region38: #{_lambda_.5} parent=35 // pred_check_branch
        %2393 = sbr.rel (%p2391) target = $region40
      $region39: #{_lambda_.5} parent=35 // pred_region
        %s2394 = smul.u32 32, %s15
      $region40: #{_lambda_.5} parent=35 // pred_fallthru
        _
    $region36: #{_lambda_.5} parent=5 // pred_fallthru
      _
    %p2395 = scmp.le.s32.totalorder 2, %s10
    // Predicated region
    $region41: #{_lambda_.5} parent=5 // pred_check
      %p2396 = pneg %p2395
    $region42: #{_lambda_.5} parent=5 // pred_check_branch
      %2398 = sbr.rel (%p2396) target = $region44
    $region43: #{_lambda_.5} parent=5 // pred_region
      %s2399 = ssub.s32 %s10, 2
      // Predicated region
      $region45: #{_lambda_.5} parent=43 // pred_check
        %p2400 = pneg %p128
      $region46: #{_lambda_.5} parent=43 // pred_check_branch
        %2402 = sbr.rel (%p2400) target = $region48
      $region47: #{_lambda_.5} parent=43 // pred_region
        %s2403 = smul.u32 32, %s16
        %p2404 = scmp.lt.s32.totalorder %s2403, 63
        %s2405 = scalar_select %p2404, %s2403, 63
        %s2406 = smul.addr %s2405, 8
        %s2407 = scalar_lea.vmem %s4, %s2406
      $region48: #{_lambda_.5} parent=43 // pred_fallthru
        _
    $region44: #{_lambda_.5} parent=5 // pred_fallthru
      _
  $region6: #{_lambda_.5} parent=0 // loop_footer
    %s14 = sadd.s32 1, %s10
  $region7: #{_lambda_.5} parent=0 // loop_footer_branch
    %9 = sbr.rel target = $region3
  $region8: #{_lambda_.5} parent=0 // loop_exit
    _

// kernel: _lambda_.6
$region0: #{_lambda_.6}
  #allocation0 [shape = 'u32[]', space=smem, size = 0x4, offset = 0x4, fixed_abs, tag = 'smem constant byte address 0x4 - core index']
  #allocation1 [shape = 'u32[144,128]{1,0:T(1,128)}', space=vmem, size = 0x12000, scoped, tag = 'internal scratch']
  %s0 = inlined_call_operand.vmem [shape: f32[128,128], index: 0, kind: input, shape index: {}]
  %s1 = inlined_call_operand.vmem [shape: f32[128,128], index: 1, kind: input, shape index: {}]
  %s2 = inlined_call_operand.vmem [shape: f32[1,128], index: 2, kind: input, shape index: {}]
  %s3 = inlined_call_operand.vmem [shape: f32[1,128], index: 3, kind: input, shape index: {}]
  %s4 = inlined_call_operand.vmem [shape: f32[128,128], index: 4, kind: output, shape index: {}]
  %s5 = sld [smem:[#allocation0]]
  $region26: #{_lambda_.6} parent=0
    _
  %s7 = ssub.s32 1, %s5
  %s8 = scalar_select 0, %s7, %s5
  // Predicated region
  $region2: #{_lambda_.6} parent=0 // pred_check
    _
  $region3: #{_lambda_.6} parent=0 // pred_check_branch
    %10 = sbr.rel (0) target = $region5
  $region4: #{_lambda_.6} parent=0 // pred_region
    _
  $region5: #{_lambda_.6} parent=0 // pred_fallthru
    _
  // Predicated region
  $region6: #{_lambda_.6} parent=0 // pred_check
    _
  $region7: #{_lambda_.6} parent=0 // pred_check_branch
    %12 = sbr.rel (0) target = $region9
  $region8: #{_lambda_.6} parent=0 // pred_region
    _
  $region9: #{_lambda_.6} parent=0 // pred_fallthru
    _
  // Predicated region
  $region10: #{_lambda_.6} parent=0 // pred_check
    _
  $region11: #{_lambda_.6} parent=0 // pred_check_branch
    %14 = sbr.rel (0) target = $region13
  $region12: #{_lambda_.6} parent=0 // pred_region
    _
  $region13: #{_lambda_.6} parent=0 // pred_fallthru
    _
  // Predicated region
  $region14: #{_lambda_.6} parent=0 // pred_check
    _
  $region15: #{_lambda_.6} parent=0 // pred_check_branch
    %16 = sbr.rel (0) target = $region17
  $region16: #{_lambda_.6} parent=0 // pred_region
    _
  $region17: #{_lambda_.6} parent=0 // pred_fallthru
    _
  %v17 = vld [vmem:[%s0] sm:$0xff]
  %v18 = vld [vmem:[%s0 + $0x8] sm:$0xff]
  %v19 = vld [vmem:[%s0 + $0x10] sm:$0xff]
  %v20 = vld [vmem:[%s0 + $0x18] sm:$0xff]
  %v21 = vld [vmem:[%s0 + $0x20] sm:$0xff]
  %v22 = vld [vmem:[%s0 + $0x28] sm:$0xff]
  %v23 = vld [vmem:[%s0 + $0x30] sm:$0xff]
  %v24 = vld [vmem:[%s0 + $0x38] sm:$0xff]
  %v25 = vld [vmem:[%s0 + $0x40] sm:$0xff]
  %v26 = vld [vmem:[%s0 + $0x48] sm:$0xff]
  %v27 = vld [vmem:[%s0 + $0x50] sm:$0xff]
  %v28 = vld [vmem:[%s0 + $0x58] sm:$0xff]
  %v29 = vld [vmem:[%s0 + $0x60] sm:$0xff]
  %v30 = vld [vmem:[%s0 + $0x68] sm:$0xff]
  %v31 = vld [vmem:[%s0 + $0x70] sm:$0xff]
  %v32 = vld [vmem:[%s0 + $0x78] sm:$0xff]
  %v33 = vld [vmem:[%s1] sm:$0xff]
  %v34 = vld [vmem:[%s1 + $0x8] sm:$0xff]
  %v35 = vld [vmem:[%s1 + $0x10] sm:$0xff]
  %v36 = vld [vmem:[%s1 + $0x18] sm:$0xff]
  %v37 = vld [vmem:[%s1 + $0x20] sm:$0xff]
  %v38 = vld [vmem:[%s1 + $0x28] sm:$0xff]
  %v39 = vld [vmem:[%s1 + $0x30] sm:$0xff]
  %v40 = vld [vmem:[%s1 + $0x38] sm:$0xff]
  %v41 = vld [vmem:[%s1 + $0x40] sm:$0xff]
  %v42 = vld [vmem:[%s1 + $0x48] sm:$0xff]
  %v43 = vld [vmem:[%s1 + $0x50] sm:$0xff]
  %v44 = vld [vmem:[%s1 + $0x58] sm:$0xff]
  %v45 = vld [vmem:[%s1 + $0x60] sm:$0xff]
  %v46 = vld [vmem:[%s1 + $0x68] sm:$0xff]
  %v47 = vld [vmem:[%s1 + $0x70] sm:$0xff]
  %v48 = vld [vmem:[%s1 + $0x78] sm:$0xff]
  %49 = vmatprep.subr.mxu0 0.0
  %v50 = vand.u32 %v33, 4294901760
  %51 = vmatpush1.msra.mxu0 %v50
  %52 = vmatprep.subr.mxu0 0.0
  %v53 = vand.u32 %v34, 4294901760
  %54 = vmatpush1.msra.mxu0 %v53
  %55 = vmatprep.subr.mxu0 0.0
  %v56 = vand.u32 %v35, 4294901760
  %57 = vmatpush1.msra.mxu0 %v56
  %58 = vmatprep.subr.mxu0 0.0
  %v59 = vand.u32 %v36, 4294901760
  %60 = vmatpush1.msra.mxu0 %v59
  %61 = vmatprep.subr.mxu0 0.0
  %v62 = vand.u32 %v37, 4294901760
  %63 = vmatpush1.msra.mxu0 %v62
  %64 = vmatprep.subr.mxu0 0.0
  %v65 = vand.u32 %v38, 4294901760
  %66 = vmatpush1.msra.mxu0 %v65
  %67 = vmatprep.subr.mxu0 0.0
  %v68 = vand.u32 %v39, 4294901760
  %69 = vmatpush1.msra.mxu0 %v68
  %70 = vmatprep.subr.mxu0 0.0
  %v71 = vand.u32 %v40, 4294901760
  %72 = vmatpush1.msra.mxu0 %v71
  %73 = vmatprep.subr.mxu0 0.0
  %v74 = vand.u32 %v41, 4294901760
  %75 = vmatpush1.msra.mxu0 %v74
  %76 = vmatprep.subr.mxu0 0.0
  %v77 = vand.u32 %v42, 4294901760
  %78 = vmatpush1.msra.mxu0 %v77
  %79 = vmatprep.subr.mxu0 0.0
  %v80 = vand.u32 %v43, 4294901760
  %81 = vmatpush1.msra.mxu0 %v80
  %82 = vmatprep.subr.mxu0 0.0
  %v83 = vand.u32 %v44, 4294901760
  %84 = vmatpush1.msra.mxu0 %v83
  %85 = vmatprep.subr.mxu0 0.0
  %v86 = vand.u32 %v45, 4294901760
  %87 = vmatpush1.msra.mxu0 %v86
  %88 = vmatprep.subr.mxu0 0.0
  %v89 = vand.u32 %v46, 4294901760
  %90 = vmatpush1.msra.mxu0 %v89
  %91 = vmatprep.subr.mxu0 0.0
  %v92 = vand.u32 %v47, 4294901760
  %93 = vmatpush1.msra.mxu0 %v92
  %94 = vmatprep.subr.mxu0 0.0
  %v95 = vand.u32 %v48, 4294901760
  %96 = vmatpush1.msra.mxu0 %v95
  %97 = vmatprep.subr.mxu0 0.0
  %98 = vmatpush1.msra.mxu0 0.0
  %99 = vmatprep.subr.mxu0 0.0
  %100 = vmatpush1.msra.mxu0 0.0
  %101 = vmatprep.subr.mxu0 0.0
  %102 = vmatpush1.msra.mxu0 0.0
  %103 = vmatprep.subr.mxu0 0.0
  %104 = vmatpush1.msra.mxu0 0.0
  %105 = vmatprep.subr.mxu0 0.0
  %106 = vmatpush1.msra.mxu0 0.0
  %107 = vmatprep.subr.mxu0 0.0
  %108 = vmatpush1.msra.mxu0 0.0
  %109 = vmatprep.subr.mxu0 0.0
  %110 = vmatpush1.msra.mxu0 0.0
  %111 = vmatprep.subr.mxu0 0.0
  %112 = vmatpush1.msra.mxu0 0.0
  %113 = vmatprep.subr.mxu0 0.0
  %114 = vmatpush1.msra.mxu0 0.0
  %115 = vmatprep.subr.mxu0 0.0
  %116 = vmatpush1.msra.mxu0 0.0
  %117 = vmatprep.subr.mxu0 0.0
  %118 = vmatpush1.msra.mxu0 0.0
  %119 = vmatprep.subr.mxu0 0.0
  %120 = vmatpush1.msra.mxu0 0.0
  %121 = vmatprep.subr.mxu0 0.0
  %122 = vmatpush1.msra.mxu0 0.0
  %123 = vmatprep.subr.mxu0 0.0
  %124 = vmatpush1.msra.mxu0 0.0
  %125 = vmatprep.subr.mxu0 0.0
  %126 = vmatpush1.msra.mxu0 0.0
  %127 = vmatprep.subr.mxu0 0.0
  %128 = vmatpush1.msra.mxu0 0.0
  %129 = vmatprep.mubr.f32.mxu0 0.0
  %v130 = vand.u32 %v17, 4294901760
  %v131 = vsub.f32 %v17, %v130
  %v132 = vand.u32 %v131, 4294901760
  %v133 = vsub.f32 %v131, %v132
  %v134 = vand.u32 %v133, 4294901760
  %135 = vmatmul.mubr.f32.gmra.mrb[0].mxu0 %v134
  %v136 = vpop.f32.mrb[0].mxu0
  %v137 = vadd.f32 0.0, %v136
  %v138 = vpop.f32.mrb[0].mxu0
  %139 = vmatprep.mubr.f32.mxu0 0.0
  %v140 = vand.u32 %v18, 4294901760
  %v141 = vsub.f32 %v18, %v140
  %v142 = vand.u32 %v141, 4294901760
  %v143 = vsub.f32 %v141, %v142
  %v144 = vand.u32 %v143, 4294901760
  %145 = vmatmul.mubr.f32.gmra.mrb[0].mxu0 %v144
  %v146 = vpop.f32.mrb[0].mxu0
  %v147 = vadd.f32 0.0, %v146
  %v148 = vpop.f32.mrb[0].mxu0
  %149 = vmatprep.mubr.f32.mxu0 0.0
  %v150 = vand.u32 %v19, 4294901760
  %v151 = vsub.f32 %v19, %v150
  %v152 = vand.u32 %v151, 4294901760
  %v153 = vsub.f32 %v151, %v152
  %v154 = vand.u32 %v153, 4294901760
  %155 = vmatmul.mubr.f32.gmra.mrb[0].mxu0 %v154
  %v156 = vpop.f32.mrb[0].mxu0
  %v157 = vadd.f32 0.0, %v156
  %v158 = vpop.f32.mrb[0].mxu0
  %159 = vmatprep.mubr.f32.mxu0 0.0
  %v160 = vand.u32 %v20, 4294901760
  %v161 = vsub.f32 %v20, %v160
  %v162 = vand.u32 %v161, 4294901760
  %v163 = vsub.f32 %v161, %v162
  %v164 = vand.u32 %v163, 4294901760
  %165 = vmatmul.mubr.f32.gmra.mrb[0].mxu0 %v164
  %v166 = vpop.f32.mrb[0].mxu0
  %v167 = vadd.f32 0.0, %v166
  %v168 = vpop.f32.mrb[0].mxu0
  %169 = vmatprep.mubr.f32.mxu0 0.0
  %v170 = vand.u32 %v21, 4294901760
  %v171 = vsub.f32 %v21, %v170
  %v172 = vand.u32 %v171, 4294901760
  %v173 = vsub.f32 %v171, %v172
  %v174 = vand.u32 %v173, 4294901760
  %175 = vmatmul.mubr.f32.gmra.mrb[0].mxu0 %v174
  %v176 = vpop.f32.mrb[0].mxu0
  %v177 = vadd.f32 0.0, %v176
  %v178 = vpop.f32.mrb[0].mxu0
  %179 = vmatprep.mubr.f32.mxu0 0.0
  %v180 = vand.u32 %v22, 4294901760
  %v181 = vsub.f32 %v22, %v180
  %v182 = vand.u32 %v181, 4294901760
  %v183 = vsub.f32 %v181, %v182
  %v184 = vand.u32 %v183, 4294901760
  %185 = vmatmul.mubr.f32.gmra.mrb[0].mxu0 %v184
  %v186 = vpop.f32.mrb[0].mxu0
  %v187 = vadd.f32 0.0, %v186
  %v188 = vpop.f32.mrb[0].mxu0
  %189 = vmatprep.mubr.f32.mxu0 0.0
  %v190 = vand.u32 %v23, 4294901760
  %v191 = vsub.f32 %v23, %v190
  %v192 = vand.u32 %v191, 4294901760
  %v193 = vsub.f32 %v191, %v192
  %v194 = vand.u32 %v193, 4294901760
  %195 = vmatmul.mubr.f32.gmra.mrb[0].mxu0 %v194
  %v196 = vpop.f32.mrb[0].mxu0
  %v197 = vadd.f32 0.0, %v196
  %v198 = vpop.f32.mrb[0].mxu0
  %199 = vmatprep.mubr.f32.mxu0 0.0
  %v200 = vand.u32 %v24, 4294901760
  %v201 = vsub.f32 %v24, %v200
  %v202 = vand.u32 %v201, 4294901760
  %v203 = vsub.f32 %v201, %v202
  %v204 = vand.u32 %v203, 4294901760
  %205 = vmatmul.mubr.f32.gmra.mrb[0].mxu0 %v204
  %v206 = vpop.f32.mrb[0].mxu0
  %v207 = vadd.f32 0.0, %v206
  %v208 = vpop.f32.mrb[0].mxu0
  %209 = vmatprep.mubr.f32.mxu0 0.0
  %v210 = vand.u32 %v25, 4294901760
  %v211 = vsub.f32 %v25, %v210
  %v212 = vand.u32 %v211, 4294901760
  %v213 = vsub.f32 %v211, %v212
  %v214 = vand.u32 %v213, 4294901760
  %215 = vmatmul.mubr.f32.gmra.mrb[0].mxu0 %v214
  %v216 = vpop.f32.mrb[0].mxu0
  %v217 = vadd.f32 0.0, %v216
  %v218 = vpop.f32.mrb[0].mxu0
  %219 = vmatprep.mubr.f32.mxu0 0.0
  %v220 = vand.u32 %v26, 4294901760
  %v221 = vsub.f32 %v26, %v220
  %v222 = vand.u32 %v221, 4294901760
  %v223 = vsub.f32 %v221, %v222
  %v224 = vand.u32 %v223, 4294901760
  %225 = vmatmul.mubr.f32.gmra.mrb[0].mxu0 %v224
  %v226 = vpop.f32.mrb[0].mxu0
  %v227 = vadd.f32 0.0, %v226
  %v228 = vpop.f32.mrb[0].mxu0
  %229 = vmatprep.mubr.f32.mxu0 0.0
  %v230 = vand.u32 %v27, 4294901760
  %v231 = vsub.f32 %v27, %v230
  %v232 = vand.u32 %v231, 4294901760
  %v233 = vsub.f32 %v231, %v232
  %v234 = vand.u32 %v233, 4294901760
  %235 = vmatmul.mubr.f32.gmra.mrb[0].mxu0 %v234
  %v236 = vpop.f32.mrb[0].mxu0
  %v237 = vadd.f32 0.0, %v236
  %v238 = vpop.f32.mrb[0].mxu0
  %239 = vmatprep.mubr.f32.mxu0 0.0
  %v240 = vand.u32 %v28, 4294901760
  %v241 = vsub.f32 %v28, %v240
  %v242 = vand.u32 %v241, 4294901760
  %v243 = vsub.f32 %v241, %v242
  %v244 = vand.u32 %v243, 4294901760
  %245 = vmatmul.mubr.f32.gmra.mrb[0].mxu0 %v244
  %v246 = vpop.f32.mrb[0].mxu0
  %v247 = vadd.f32 0.0, %v246
  %v248 = vpop.f32.mrb[0].mxu0
  %249 = vmatprep.mubr.f32.mxu0 0.0
  %v250 = vand.u32 %v29, 4294901760
  %v251 = vsub.f32 %v29, %v250
  %v252 = vand.u32 %v251, 4294901760
  %v253 = vsub.f32 %v251, %v252
  %v254 = vand.u32 %v253, 4294901760
  %255 = vmatmul.mubr.f32.gmra.mrb[0].mxu0 %v254
  %v256 = vpop.f32.mrb[0].mxu0
  %v257 = vadd.f32 0.0, %v256
  %v258 = vpop.f32.mrb[0].mxu0
  %259 = vmatprep.mubr.f32.mxu0 0.0
  %v260 = vand.u32 %v30, 4294901760
  %v261 = vsub.f32 %v30, %v260
  %v262 = vand.u32 %v261, 4294901760
  %v263 = vsub.f32 %v261, %v262
  %v264 = vand.u32 %v263, 4294901760
  %265 = vmatmul.mubr.f32.gmra.mrb[0].mxu0 %v264
  %v266 = vpop.f32.mrb[0].mxu0
  %v267 = vadd.f32 0.0, %v266
  %v268 = vpop.f32.mrb[0].mxu0
  %269 = vmatprep.mubr.f32.mxu0 0.0
  %v270 = vand.u32 %v31, 4294901760
  %v271 = vsub.f32 %v31, %v270
  %v272 = vand.u32 %v271, 4294901760
  %v273 = vsub.f32 %v271, %v272
  %v274 = vand.u32 %v273, 4294901760
  %275 = vmatmul.mubr.f32.gmra.mrb[0].mxu0 %v274
  %v276 = vpop.f32.mrb[0].mxu0
  %v277 = vadd.f32 0.0, %v276
  %v278 = vpop.f32.mrb[0].mxu0
  %279 = vmatprep.mubr.f32.mxu0 0.0
  %v280 = vand.u32 %v32, 4294901760
  %v281 = vsub.f32 %v32, %v280
  %v282 = vand.u32 %v281, 4294901760
  %v283 = vsub.f32 %v281, %v282
  %v284 = vand.u32 %v283, 4294901760
  %285 = vmatmul.mubr.f32.gmra.mrb[0].mxu0 %v284
  %v286 = vpop.f32.mrb[0].mxu0
  %v287 = vadd.f32 0.0, %v286
  %v288 = vpop.f32.mrb[0].mxu0
  %289 = vdwg.mxu0
  %290 = vmatprep.subr.mxu0 0.0
  %v291 = vand.u32 %v33, 4294901760
  %v292 = vsub.f32 %v33, %v291
  %v293 = vand.u32 %v292, 4294901760
  %v294 = vsub.f32 %v292, %v293
  %v295 = vand.u32 %v294, 4294901760
  %296 = vmatpush1.msra.mxu0 %v295
  %297 = vmatprep.subr.mxu0 0.0
  %v298 = vand.u32 %v34, 4294901760
  %v299 = vsub.f32 %v34, %v298
  %v300 = vand.u32 %v299, 4294901760
  %v301 = vsub.f32 %v299, %v300
  %v302 = vand.u32 %v301, 4294901760
  %303 = vmatpush1.msra.mxu0 %v302
  %304 = vmatprep.subr.mxu0 0.0
  %v305 = vand.u32 %v35, 4294901760
  %v306 = vsub.f32 %v35, %v305
  %v307 = vand.u32 %v306, 4294901760
  %v308 = vsub.f32 %v306, %v307
  %v309 = vand.u32 %v308, 4294901760
  %310 = vmatpush1.msra.mxu0 %v309
  %311 = vmatprep.subr.mxu0 0.0
  %v312 = vand.u32 %v36, 4294901760
  %v313 = vsub.f32 %v36, %v312
  %v314 = vand.u32 %v313, 4294901760
  %v315 = vsub.f32 %v313, %v314
  %v316 = vand.u32 %v315, 4294901760
  %317 = vmatpush1.msra.mxu0 %v316
  %318 = vmatprep.subr.mxu0 0.0
  %v319 = vand.u32 %v37, 4294901760
  %v320 = vsub.f32 %v37, %v319
  %v321 = vand.u32 %v320, 4294901760
  %v322 = vsub.f32 %v320, %v321
  %v323 = vand.u32 %v322, 4294901760
  %324 = vmatpush1.msra.mxu0 %v323
  %325 = vmatprep.subr.mxu0 0.0
  %v326 = vand.u32 %v38, 4294901760
  %v327 = vsub.f32 %v38, %v326
  %v328 = vand.u32 %v327, 4294901760
  %v329 = vsub.f32 %v327, %v328
  %v330 = vand.u32 %v329, 4294901760
  %331 = vmatpush1.msra.mxu0 %v330
  %332 = vmatprep.subr.mxu0 0.0
  %v333 = vand.u32 %v39, 4294901760
  %v334 = vsub.f32 %v39, %v333
  %v335 = vand.u32 %v334, 4294901760
  %v336 = vsub.f32 %v334, %v335
  %v337 = vand.u32 %v336, 4294901760
  %338 = vmatpush1.msra.mxu0 %v337
  %339 = vmatprep.subr.mxu0 0.0
  %v340 = vand.u32 %v40, 4294901760
  %v341 = vsub.f32 %v40, %v340
  %v342 = vand.u32 %v341, 4294901760
  %v343 = vsub.f32 %v341, %v342
  %v344 = vand.u32 %v343, 4294901760
  %345 = vmatpush1.msra.mxu0 %v344
  %346 = vmatprep.subr.mxu0 0.0
  %v347 = vand.u32 %v41, 4294901760
  %v348 = vsub.f32 %v41, %v347
  %v349 = vand.u32 %v348, 4294901760
  %v350 = vsub.f32 %v348, %v349
  %v351 = vand.u32 %v350, 4294901760
  %352 = vmatpush1.msra.mxu0 %v351
  %353 = vmatprep.subr.mxu0 0.0
  %v354 = vand.u32 %v42, 4294901760
  %v355 = vsub.f32 %v42, %v354
  %v356 = vand.u32 %v355, 4294901760
  %v357 = vsub.f32 %v355, %v356
  %v358 = vand.u32 %v357, 4294901760
  %359 = vmatpush1.msra.mxu0 %v358
  %360 = vmatprep.subr.mxu0 0.0
  %v361 = vand.u32 %v43, 4294901760
  %v362 = vsub.f32 %v43, %v361
  %v363 = vand.u32 %v362, 4294901760
  %v364 = vsub.f32 %v362, %v363
  %v365 = vand.u32 %v364, 4294901760
  %366 = vmatpush1.msra.mxu0 %v365
  %367 = vmatprep.subr.mxu0 0.0
  %v368 = vand.u32 %v44, 4294901760
  %v369 = vsub.f32 %v44, %v368
  %v370 = vand.u32 %v369, 4294901760
  %v371 = vsub.f32 %v369, %v370
  %v372 = vand.u32 %v371, 4294901760
  %373 = vmatpush1.msra.mxu0 %v372
  %374 = vmatprep.subr.mxu0 0.0
  %v375 = vand.u32 %v45, 4294901760
  %v376 = vsub.f32 %v45, %v375
  %v377 = vand.u32 %v376, 4294901760
  %v378 = vsub.f32 %v376, %v377
  %v379 = vand.u32 %v378, 4294901760
  %380 = vmatpush1.msra.mxu0 %v379
  %381 = vmatprep.subr.mxu0 0.0
  %v382 = vand.u32 %v46, 4294901760
  %v383 = vsub.f32 %v46, %v382
  %v384 = vand.u32 %v383, 4294901760
  %v385 = vsub.f32 %v383, %v384
  %v386 = vand.u32 %v385, 4294901760
  %387 = vmatpush1.msra.mxu0 %v386
  %388 = vmatprep.subr.mxu0 0.0
  %v389 = vand.u32 %v47, 4294901760
  %v390 = vsub.f32 %v47, %v389
  %v391 = vand.u32 %v390, 4294901760
  %v392 = vsub.f32 %v390, %v391
  %v393 = vand.u32 %v392, 4294901760
  %394 = vmatpush1.msra.mxu0 %v393
  %395 = vmatprep.subr.mxu0 0.0
  %v396 = vand.u32 %v48, 4294901760
  %v397 = vsub.f32 %v48, %v396
  %v398 = vand.u32 %v397, 4294901760
  %v399 = vsub.f32 %v397, %v398
  %v400 = vand.u32 %v399, 4294901760
  %401 = vmatpush1.msra.mxu0 %v400
  %402 = vmatprep.subr.mxu0 0.0
  %403 = vmatpush1.msra.mxu0 0.0
  %404 = vmatprep.subr.mxu0 0.0
  %405 = vmatpush1.msra.mxu0 0.0
  %406 = vmatprep.subr.mxu0 0.0
  %407 = vmatpush1.msra.mxu0 0.0
  %408 = vmatprep.subr.mxu0 0.0
  %409 = vmatpush1.msra.mxu0 0.0
  %410 = vmatprep.subr.mxu0 0.0
  %411 = vmatpush1.msra.mxu0 0.0
  %412 = vmatprep.subr.mxu0 0.0
  %413 = vmatpush1.msra.mxu0 0.0
  %414 = vmatprep.subr.mxu0 0.0
  %415 = vmatpush1.msra.mxu0 0.0
  %416 = vmatprep.subr.mxu0 0.0
  %417 = vmatpush1.msra.mxu0 0.0
  %418 = vmatprep.subr.mxu0 0.0
  %419 = vmatpush1.msra.mxu0 0.0
  %420 = vmatprep.subr.mxu0 0.0
  %421 = vmatpush1.msra.mxu0 0.0
  %422 = vmatprep.subr.mxu0 0.0
  %423 = vmatpush1.msra.mxu0 0.0
  %424 = vmatprep.subr.mxu0 0.0
  %425 = vmatpush1.msra.mxu0 0.0
  %426 = vmatprep.subr.mxu0 0.0
  %427 = vmatpush1.msra.mxu0 0.0
  %428 = vmatprep.subr.mxu0 0.0
  %429 = vmatpush1.msra.mxu0 0.0
  %430 = vmatprep.subr.mxu0 0.0
  %431 = vmatpush1.msra.mxu0 0.0
  %432 = vmatprep.subr.mxu0 0.0
  %433 = vmatpush1.msra.mxu0 0.0
  %434 = vmatprep.mubr.f32.mxu0 0.0
  %v435 = vand.u32 %v17, 4294901760
  %436 = vmatmul.mubr.f32.gmra.mrb[0].mxu0 %v435
  %v437 = vpop.f32.mrb[0].mxu0
  %v438 = vadd.f32 %v137, %v437
  %v439 = vpop.f32.mrb[0].mxu0
  %440 = vmatprep.mubr.f32.mxu0 0.0
  %v441 = vand.u32 %v18, 4294901760
  %442 = vmatmul.mubr.f32.gmra.mrb[0].mxu0 %v441
  %v443 = vpop.f32.mrb[0].mxu0
  %v444 = vadd.f32 %v147, %v443
  %v445 = vpop.f32.mrb[0].mxu0
  %446 = vmatprep.mubr.f32.mxu0 0.0
  %v447 = vand.u32 %v19, 4294901760
  %448 = vmatmul.mubr.f32.gmra.mrb[0].mxu0 %v447
  %v449 = vpop.f32.mrb[0].mxu0
  %v450 = vadd.f32 %v157, %v449
  %v451 = vpop.f32.mrb[0].mxu0
  %452 = vmatprep.mubr.f32.mxu0 0.0
  %v453 = vand.u32 %v20, 4294901760
  %454 = vmatmul.mubr.f32.gmra.mrb[0].mxu0 %v453
  %v455 = vpop.f32.mrb[0].mxu0
  %v456 = vadd.f32 %v167, %v455
  %v457 = vpop.f32.mrb[0].mxu0
  %458 = vmatprep.mubr.f32.mxu0 0.0
  %v459 = vand.u32 %v21, 4294901760
  %460 = vmatmul.mubr.f32.gmra.mrb[0].mxu0 %v459
  %v461 = vpop.f32.mrb[0].mxu0
  %v462 = vadd.f32 %v177, %v461
  %v463 = vpop.f32.mrb[0].mxu0
  %464 = vmatprep.mubr.f32.mxu0 0.0
  %v465 = vand.u32 %v22, 4294901760
  %466 = vmatmul.mubr.f32.gmra.mrb[0].mxu0 %v465
  %v467 = vpop.f32.mrb[0].mxu0
  %v468 = vadd.f32 %v187, %v467
  %v469 = vpop.f32.mrb[0].mxu0
  %470 = vmatprep.mubr.f32.mxu0 0.0
  %v471 = vand.u32 %v23, 4294901760
  %472 = vmatmul.mubr.f32.gmra.mrb[0].mxu0 %v471
  %v473 = vpop.f32.mrb[0].mxu0
  %v474 = vadd.f32 %v197, %v473
  %v475 = vpop.f32.mrb[0].mxu0
  %476 = vmatprep.mubr.f32.mxu0 0.0
  %v477 = vand.u32 %v24, 4294901760
  %478 = vmatmul.mubr.f32.gmra.mrb[0].mxu0 %v477
  %v479 = vpop.f32.mrb[0].mxu0
  %v480 = vadd.f32 %v207, %v479
  %v481 = vpop.f32.mrb[0].mxu0
  %482 = vmatprep.mubr.f32.mxu0 0.0
  %v483 = vand.u32 %v25, 4294901760
  %484 = vmatmul.mubr.f32.gmra.mrb[0].mxu0 %v483
  %v485 = vpop.f32.mrb[0].mxu0
  %v486 = vadd.f32 %v217, %v485
  %v487 = vpop.f32.mrb[0].mxu0
  %488 = vmatprep.mubr.f32.mxu0 0.0
  %v489 = vand.u32 %v26, 4294901760
  %490 = vmatmul.mubr.f32.gmra.mrb[0].mxu0 %v489
  %v491 = vpop.f32.mrb[0].mxu0
  %v492 = vadd.f32 %v227, %v491
  %v493 = vpop.f32.mrb[0].mxu0
  %494 = vmatprep.mubr.f32.mxu0 0.0
  %v495 = vand.u32 %v27, 4294901760
  %496 = vmatmul.mubr.f32.gmra.mrb[0].mxu0 %v495
  %v497 = vpop.f32.mrb[0].mxu0
  %v498 = vadd.f32 %v237, %v497
  %v499 = vpop.f32.mrb[0].mxu0
  %500 = vmatprep.mubr.f32.mxu0 0.0
  %v501 = vand.u32 %v28, 4294901760
  %502 = vmatmul.mubr.f32.gmra.mrb[0].mxu0 %v501
  %v503 = vpop.f32.mrb[0].mxu0
  %v504 = vadd.f32 %v247, %v503
  %v505 = vpop.f32.mrb[0].mxu0
  %506 = vmatprep.mubr.f32.mxu0 0.0
  %v507 = vand.u32 %v29, 4294901760
  %508 = vmatmul.mubr.f32.gmra.mrb[0].mxu0 %v507
  %v509 = vpop.f32.mrb[0].mxu0
  %v510 = vadd.f32 %v257, %v509
  %v511 = vpop.f32.mrb[0].mxu0
  %512 = vmatprep.mubr.f32.mxu0 0.0
  %v513 = vand.u32 %v30, 4294901760
  %514 = vmatmul.mubr.f32.gmra.mrb[0].mxu0 %v513
  %v515 = vpop.f32.mrb[0].mxu0
  %v516 = vadd.f32 %v267, %v515
  %v517 = vpop.f32.mrb[0].mxu0
  %518 = vmatprep.mubr.f32.mxu0 0.0
  %v519 = vand.u32 %v31, 4294901760
  %520 = vmatmul.mubr.f32.gmra.mrb[0].mxu0 %v519
  %v521 = vpop.f32.mrb[0].mxu0
  %v522 = vadd.f32 %v277, %v521
  %v523 = vpop.f32.mrb[0].mxu0
  %524 = vmatprep.mubr.f32.mxu0 0.0
  %v525 = vand.u32 %v32, 4294901760
  %526 = vmatmul.mubr.f32.gmra.mrb[0].mxu0 %v525
  %v527 = vpop.f32.mrb[0].mxu0
  %v528 = vadd.f32 %v287, %v527
  %v529 = vpop.f32.mrb[0].mxu0
  %530 = vdwg.mxu0
  %531 = vmatprep.subr.mxu0 0.0
  %v532 = vand.u32 %v33, 4294901760
  %v533 = vsub.f32 %v33, %v532
  %534 = vmatpush1.msra.mxu0 %v533
  %535 = vmatprep.subr.mxu0 0.0
  %v536 = vand.u32 %v34, 4294901760
  %v537 = vsub.f32 %v34, %v536
  %538 = vmatpush1.msra.mxu0 %v537
  %539 = vmatprep.subr.mxu0 0.0
  %v540 = vand.u32 %v35, 4294901760
  %v541 = vsub.f32 %v35, %v540
  %542 = vmatpush1.msra.mxu0 %v541
  %543 = vmatprep.subr.mxu0 0.0
  %v544 = vand.u32 %v36, 4294901760
  %v545 = vsub.f32 %v36, %v544
  %546 = vmatpush1.msra.mxu0 %v545
  %547 = vmatprep.subr.mxu0 0.0
  %v548 = vand.u32 %v37, 4294901760
  %v549 = vsub.f32 %v37, %v548
  %550 = vmatpush1.msra.mxu0 %v549
  %551 = vmatprep.subr.mxu0 0.0
  %v552 = vand.u32 %v38, 4294901760
  %v553 = vsub.f32 %v38, %v552
  %554 = vmatpush1.msra.mxu0 %v553
  %555 = vmatprep.subr.mxu0 0.0
  %v556 = vand.u32 %v39, 4294901760
  %v557 = vsub.f32 %v39, %v556
  %558 = vmatpush1.msra.mxu0 %v557
  %559 = vmatprep.subr.mxu0 0.0
  %v560 = vand.u32 %v40, 4294901760
  %v561 = vsub.f32 %v40, %v560
  %562 = vmatpush1.msra.mxu0 %v561
  %563 = vmatprep.subr.mxu0 0.0
  %v564 = vand.u32 %v41, 4294901760
  %v565 = vsub.f32 %v41, %v564
  %566 = vmatpush1.msra.mxu0 %v565
  %567 = vmatprep.subr.mxu0 0.0
  %v568 = vand.u32 %v42, 4294901760
  %v569 = vsub.f32 %v42, %v568
  %570 = vmatpush1.msra.mxu0 %v569
  %571 = vmatprep.subr.mxu0 0.0
  %v572 = vand.u32 %v43, 4294901760
  %v573 = vsub.f32 %v43, %v572
  %574 = vmatpush1.msra.mxu0 %v573
  %575 = vmatprep.subr.mxu0 0.0
  %v576 = vand.u32 %v44, 4294901760
  %v577 = vsub.f32 %v44, %v576
  %578 = vmatpush1.msra.mxu0 %v577
  %579 = vmatprep.subr.mxu0 0.0
  %v580 = vand.u32 %v45, 4294901760
  %v581 = vsub.f32 %v45, %v580
  %582 = vmatpush1.msra.mxu0 %v581
  %583 = vmatprep.subr.mxu0 0.0
  %v584 = vand.u32 %v46, 4294901760
  %v585 = vsub.f32 %v46, %v584
  %586 = vmatpush1.msra.mxu0 %v585
  %587 = vmatprep.subr.mxu0 0.0
  %v588 = vand.u32 %v47, 4294901760
  %v589 = vsub.f32 %v47, %v588
  %590 = vmatpush1.msra.mxu0 %v589
  %591 = vmatprep.subr.mxu0 0.0
  %v592 = vand.u32 %v48, 4294901760
  %v593 = vsub.f32 %v48, %v592
  %594 = vmatpush1.msra.mxu0 %v593
  %595 = vmatprep.subr.mxu0 0.0
  %596 = vmatpush1.msra.mxu0 0.0
  %597 = vmatprep.subr.mxu0 0.0
  %598 = vmatpush1.msra.mxu0 0.0
  %599 = vmatprep.subr.mxu0 0.0
  %600 = vmatpush1.msra.mxu0 0.0
  %601 = vmatprep.subr.mxu0 0.0
  %602 = vmatpush1.msra.mxu0 0.0
  %603 = vmatprep.subr.mxu0 0.0
  %604 = vmatpush1.msra.mxu0 0.0
  %605 = vmatprep.subr.mxu0 0.0
  %606 = vmatpush1.msra.mxu0 0.0
  %607 = vmatprep.subr.mxu0 0.0
  %608 = vmatpush1.msra.mxu0 0.0
  %609 = vmatprep.subr.mxu0 0.0
  %610 = vmatpush1.msra.mxu0 0.0
  %611 = vmatprep.subr.mxu0 0.0
  %612 = vmatpush1.msra.mxu0 0.0
  %613 = vmatprep.subr.mxu0 0.0
  %614 = vmatpush1.msra.mxu0 0.0
  %615 = vmatprep.subr.mxu0 0.0
  %616 = vmatpush1.msra.mxu0 0.0
  %617 = vmatprep.subr.mxu0 0.0
  %618 = vmatpush1.msra.mxu0 0.0
  %619 = vmatprep.subr.mxu0 0.0
  %620 = vmatpush1.msra.mxu0 0.0
  %621 = vmatprep.subr.mxu0 0.0
  %622 = vmatpush1.msra.mxu0 0.0
  %623 = vmatprep.subr.mxu0 0.0
  %624 = vmatpush1.msra.mxu0 0.0
  %625 = vmatprep.subr.mxu0 0.0
  %626 = vmatpush1.msra.mxu0 0.0
  %627 = vmatprep.mubr.f32.mxu0 0.0
  %v628 = vand.u32 %v17, 4294901760
  %v629 = vsub.f32 %v17, %v628
  %630 = vmatmul.mubr.f32.gmra.mrb[0].mxu0 %v629
  %v631 = vpop.f32.mrb[0].mxu0
  %v632 = vadd.f32 %v438, %v631
  %v633 = vpop.f32.mrb[0].mxu0
  %634 = vmatprep.mubr.f32.mxu0 0.0
  %v635 = vand.u32 %v18, 4294901760
  %v636 = vsub.f32 %v18, %v635
  %637 = vmatmul.mubr.f32.gmra.mrb[0].mxu0 %v636
  %v638 = vpop.f32.mrb[0].mxu0
  %v639 = vadd.f32 %v444, %v638
  %v640 = vpop.f32.mrb[0].mxu0
  %641 = vmatprep.mubr.f32.mxu0 0.0
  %v642 = vand.u32 %v19, 4294901760
  %v643 = vsub.f32 %v19, %v642
  %644 = vmatmul.mubr.f32.gmra.mrb[0].mxu0 %v643
  %v645 = vpop.f32.mrb[0].mxu0
  %v646 = vadd.f32 %v450, %v645
  %v647 = vpop.f32.mrb[0].mxu0
  %648 = vmatprep.mubr.f32.mxu0 0.0
  %v649 = vand.u32 %v20, 4294901760
  %v650 = vsub.f32 %v20, %v649
  %651 = vmatmul.mubr.f32.gmra.mrb[0].mxu0 %v650
  %v652 = vpop.f32.mrb[0].mxu0
  %v653 = vadd.f32 %v456, %v652
  %v654 = vpop.f32.mrb[0].mxu0
  %655 = vmatprep.mubr.f32.mxu0 0.0
  %v656 = vand.u32 %v21, 4294901760
  %v657 = vsub.f32 %v21, %v656
  %658 = vmatmul.mubr.f32.gmra.mrb[0].mxu0 %v657
  %v659 = vpop.f32.mrb[0].mxu0
  %v660 = vadd.f32 %v462, %v659
  %v661 = vpop.f32.mrb[0].mxu0
  %662 = vmatprep.mubr.f32.mxu0 0.0
  %v663 = vand.u32 %v22, 4294901760
  %v664 = vsub.f32 %v22, %v663
  %665 = vmatmul.mubr.f32.gmra.mrb[0].mxu0 %v664
  %v666 = vpop.f32.mrb[0].mxu0
  %v667 = vadd.f32 %v468, %v666
  %v668 = vpop.f32.mrb[0].mxu0
  %669 = vmatprep.mubr.f32.mxu0 0.0
  %v670 = vand.u32 %v23, 4294901760
  %v671 = vsub.f32 %v23, %v670
  %672 = vmatmul.mubr.f32.gmra.mrb[0].mxu0 %v671
  %v673 = vpop.f32.mrb[0].mxu0
  %v674 = vadd.f32 %v474, %v673
  %v675 = vpop.f32.mrb[0].mxu0
  %676 = vmatprep.mubr.f32.mxu0 0.0
  %v677 = vand.u32 %v24, 4294901760
  %v678 = vsub.f32 %v24, %v677
  %679 = vmatmul.mubr.f32.gmra.mrb[0].mxu0 %v678
  %v680 = vpop.f32.mrb[0].mxu0
  %v681 = vadd.f32 %v480, %v680
  %v682 = vpop.f32.mrb[0].mxu0
  %683 = vmatprep.mubr.f32.mxu0 0.0
  %v684 = vand.u32 %v25, 4294901760
  %v685 = vsub.f32 %v25, %v684
  %686 = vmatmul.mubr.f32.gmra.mrb[0].mxu0 %v685
  %v687 = vpop.f32.mrb[0].mxu0
  %v688 = vadd.f32 %v486, %v687
  %v689 = vpop.f32.mrb[0].mxu0
  %690 = vmatprep.mubr.f32.mxu0 0.0
  %v691 = vand.u32 %v26, 4294901760
  %v692 = vsub.f32 %v26, %v691
  %693 = vmatmul.mubr.f32.gmra.mrb[0].mxu0 %v692
  %v694 = vpop.f32.mrb[0].mxu0
  %v695 = vadd.f32 %v492, %v694
  %v696 = vpop.f32.mrb[0].mxu0
  %697 = vmatprep.mubr.f32.mxu0 0.0
  %v698 = vand.u32 %v27, 4294901760
  %v699 = vsub.f32 %v27, %v698
  %700 = vmatmul.mubr.f32.gmra.mrb[0].mxu0 %v699
  %v701 = vpop.f32.mrb[0].mxu0
  %v702 = vadd.f32 %v498, %v701
  %v703 = vpop.f32.mrb[0].mxu0
  %704 = vmatprep.mubr.f32.mxu0 0.0
  %v705 = vand.u32 %v28, 4294901760
  %v706 = vsub.f32 %v28, %v705
  %707 = vmatmul.mubr.f32.gmra.mrb[0].mxu0 %v706
  %v708 = vpop.f32.mrb[0].mxu0
  %v709 = vadd.f32 %v504, %v708
  %v710 = vpop.f32.mrb[0].mxu0
  %711 = vmatprep.mubr.f32.mxu0 0.0
  %v712 = vand.u32 %v29, 4294901760
  %v713 = vsub.f32 %v29, %v712
  %714 = vmatmul.mubr.f32.gmra.mrb[0].mxu0 %v713
  %v715 = vpop.f32.mrb[0].mxu0
  %v716 = vadd.f32 %v510, %v715
  %v717 = vpop.f32.mrb[0].mxu0
  %718 = vmatprep.mubr.f32.mxu0 0.0
  %v719 = vand.u32 %v30, 4294901760
  %v720 = vsub.f32 %v30, %v719
  %721 = vmatmul.mubr.f32.gmra.mrb[0].mxu0 %v720
  %v722 = vpop.f32.mrb[0].mxu0
  %v723 = vadd.f32 %v516, %v722
  %v724 = vpop.f32.mrb[0].mxu0
  %725 = vmatprep.mubr.f32.mxu0 0.0
  %v726 = vand.u32 %v31, 4294901760
  %v727 = vsub.f32 %v31, %v726
  %728 = vmatmul.mubr.f32.gmra.mrb[0].mxu0 %v727
  %v729 = vpop.f32.mrb[0].mxu0
  %v730 = vadd.f32 %v522, %v729
  %v731 = vpop.f32.mrb[0].mxu0
  %732 = vmatprep.mubr.f32.mxu0 0.0
  %v733 = vand.u32 %v32, 4294901760
  %v734 = vsub.f32 %v32, %v733
  %735 = vmatmul.mubr.f32.gmra.mrb[0].mxu0 %v734
  %v736 = vpop.f32.mrb[0].mxu0
  %v737 = vadd.f32 %v528, %v736
  %v738 = vpop.f32.mrb[0].mxu0
  %739 = vdwg.mxu0
  %740 = vmatprep.subr.mxu0 0.0
  %v741 = vand.u32 %v33, 4294901760
  %742 = vmatpush1.msra.mxu0 %v741
  %743 = vmatprep.subr.mxu0 0.0
  %v744 = vand.u32 %v34, 4294901760
  %745 = vmatpush1.msra.mxu0 %v744
  %746 = vmatprep.subr.mxu0 0.0
  %v747 = vand.u32 %v35, 4294901760
  %748 = vmatpush1.msra.mxu0 %v747
  %749 = vmatprep.subr.mxu0 0.0
  %v750 = vand.u32 %v36, 4294901760
  %751 = vmatpush1.msra.mxu0 %v750
  %752 = vmatprep.subr.mxu0 0.0
  %v753 = vand.u32 %v37, 4294901760
  %754 = vmatpush1.msra.mxu0 %v753
  %755 = vmatprep.subr.mxu0 0.0
  %v756 = vand.u32 %v38, 4294901760
  %757 = vmatpush1.msra.mxu0 %v756
  %758 = vmatprep.subr.mxu0 0.0
  %v759 = vand.u32 %v39, 4294901760
  %760 = vmatpush1.msra.mxu0 %v759
  %761 = vmatprep.subr.mxu0 0.0
  %v762 = vand.u32 %v40, 4294901760
  %763 = vmatpush1.msra.mxu0 %v762
  %764 = vmatprep.subr.mxu0 0.0
  %v765 = vand.u32 %v41, 4294901760
  %766 = vmatpush1.msra.mxu0 %v765
  %767 = vmatprep.subr.mxu0 0.0
  %v768 = vand.u32 %v42, 4294901760
  %769 = vmatpush1.msra.mxu0 %v768
  %770 = vmatprep.subr.mxu0 0.0
  %v771 = vand.u32 %v43, 4294901760
  %772 = vmatpush1.msra.mxu0 %v771
  %773 = vmatprep.subr.mxu0 0.0
  %v774 = vand.u32 %v44, 4294901760
  %775 = vmatpush1.msra.mxu0 %v774
  %776 = vmatprep.subr.mxu0 0.0
  %v777 = vand.u32 %v45, 4294901760
  %778 = vmatpush1.msra.mxu0 %v777
  %779 = vmatprep.subr.mxu0 0.0
  %v780 = vand.u32 %v46, 4294901760
  %781 = vmatpush1.msra.mxu0 %v780
  %782 = vmatprep.subr.mxu0 0.0
  %v783 = vand.u32 %v47, 4294901760
  %784 = vmatpush1.msra.mxu0 %v783
  %785 = vmatprep.subr.mxu0 0.0
  %v786 = vand.u32 %v48, 4294901760
  %787 = vmatpush1.msra.mxu0 %v786
  %788 = vmatprep.subr.mxu0 0.0
  %789 = vmatpush1.msra.mxu0 0.0
  %790 = vmatprep.subr.mxu0 0.0
  %791 = vmatpush1.msra.mxu0 0.0
  %792 = vmatprep.subr.mxu0 0.0
  %793 = vmatpush1.msra.mxu0 0.0
  %794 = vmatprep.subr.mxu0 0.0
  %795 = vmatpush1.msra.mxu0 0.0
  %796 = vmatprep.subr.mxu0 0.0
  %797 = vmatpush1.msra.mxu0 0.0
  %798 = vmatprep.subr.mxu0 0.0
  %799 = vmatpush1.msra.mxu0 0.0
  %800 = vmatprep.subr.mxu0 0.0
  %801 = vmatpush1.msra.mxu0 0.0
  %802 = vmatprep.subr.mxu0 0.0
  %803 = vmatpush1.msra.mxu0 0.0
  %804 = vmatprep.subr.mxu0 0.0
  %805 = vmatpush1.msra.mxu0 0.0
  %806 = vmatprep.subr.mxu0 0.0
  %807 = vmatpush1.msra.mxu0 0.0
  %808 = vmatprep.subr.mxu0 0.0
  %809 = vmatpush1.msra.mxu0 0.0
  %810 = vmatprep.subr.mxu0 0.0
  %811 = vmatpush1.msra.mxu0 0.0
  %812 = vmatprep.subr.mxu0 0.0
  %813 = vmatpush1.msra.mxu0 0.0
  %814 = vmatprep.subr.mxu0 0.0
  %815 = vmatpush1.msra.mxu0 0.0
  %816 = vmatprep.subr.mxu0 0.0
  %817 = vmatpush1.msra.mxu0 0.0
  %818 = vmatprep.subr.mxu0 0.0
  %819 = vmatpush1.msra.mxu0 0.0
  %820 = vmatprep.mubr.f32.mxu0 0.0
  %v821 = vand.u32 %v17, 4294901760
  %v822 = vsub.f32 %v17, %v821
  %v823 = vand.u32 %v822, 4294901760
  %824 = vmatmul.mubr.f32.gmra.mrb[0].mxu0 %v823
  %v825 = vpop.f32.mrb[0].mxu0
  %v826 = vadd.f32 %v632, %v825
  %v827 = vpop.f32.mrb[0].mxu0
  %828 = vmatprep.mubr.f32.mxu0 0.0
  %v829 = vand.u32 %v18, 4294901760
  %v830 = vsub.f32 %v18, %v829
  %v831 = vand.u32 %v830, 4294901760
  %832 = vmatmul.mubr.f32.gmra.mrb[0].mxu0 %v831
  %v833 = vpop.f32.mrb[0].mxu0
  %v834 = vadd.f32 %v639, %v833
  %v835 = vpop.f32.mrb[0].mxu0
  %836 = vmatprep.mubr.f32.mxu0 0.0
  %v837 = vand.u32 %v19, 4294901760
  %v838 = vsub.f32 %v19, %v837
  %v839 = vand.u32 %v838, 4294901760
  %840 = vmatmul.mubr.f32.gmra.mrb[0].mxu0 %v839
  %v841 = vpop.f32.mrb[0].mxu0
  %v842 = vadd.f32 %v646, %v841
  %v843 = vpop.f32.mrb[0].mxu0
  %844 = vmatprep.mubr.f32.mxu0 0.0
  %v845 = vand.u32 %v20, 4294901760
  %v846 = vsub.f32 %v20, %v845
  %v847 = vand.u32 %v846, 4294901760
  %848 = vmatmul.mubr.f32.gmra.mrb[0].mxu0 %v847
  %v849 = vpop.f32.mrb[0].mxu0
  %v850 = vadd.f32 %v653, %v849
  %v851 = vpop.f32.mrb[0].mxu0
  %852 = vmatprep.mubr.f32.mxu0 0.0
  %v853 = vand.u32 %v21, 4294901760
  %v854 = vsub.f32 %v21, %v853
  %v855 = vand.u32 %v854, 4294901760
  %856 = vmatmul.mubr.f32.gmra.mrb[0].mxu0 %v855
  %v857 = vpop.f32.mrb[0].mxu0
  %v858 = vadd.f32 %v660, %v857
  %v859 = vpop.f32.mrb[0].mxu0
  %860 = vmatprep.mubr.f32.mxu0 0.0
  %v861 = vand.u32 %v22, 4294901760
  %v862 = vsub.f32 %v22, %v861
  %v863 = vand.u32 %v862, 4294901760
  %864 = vmatmul.mubr.f32.gmra.mrb[0].mxu0 %v863
  %v865 = vpop.f32.mrb[0].mxu0
  %v866 = vadd.f32 %v667, %v865
  %v867 = vpop.f32.mrb[0].mxu0
  %868 = vmatprep.mubr.f32.mxu0 0.0
  %v869 = vand.u32 %v23, 4294901760
  %v870 = vsub.f32 %v23, %v869
  %v871 = vand.u32 %v870, 4294901760
  %872 = vmatmul.mubr.f32.gmra.mrb[0].mxu0 %v871
  %v873 = vpop.f32.mrb[0].mxu0
  %v874 = vadd.f32 %v674, %v873
  %v875 = vpop.f32.mrb[0].mxu0
  %876 = vmatprep.mubr.f32.mxu0 0.0
  %v877 = vand.u32 %v24, 4294901760
  %v878 = vsub.f32 %v24, %v877
  %v879 = vand.u32 %v878, 4294901760
  %880 = vmatmul.mubr.f32.gmra.mrb[0].mxu0 %v879
  %v881 = vpop.f32.mrb[0].mxu0
  %v882 = vadd.f32 %v681, %v881
  %v883 = vpop.f32.mrb[0].mxu0
  %884 = vmatprep.mubr.f32.mxu0 0.0
  %v885 = vand.u32 %v25, 4294901760
  %v886 = vsub.f32 %v25, %v885
  %v887 = vand.u32 %v886, 4294901760
  %888 = vmatmul.mubr.f32.gmra.mrb[0].mxu0 %v887
  %v889 = vpop.f32.mrb[0].mxu0
  %v890 = vadd.f32 %v688, %v889
  %v891 = vpop.f32.mrb[0].mxu0
  %892 = vmatprep.mubr.f32.mxu0 0.0
  %v893 = vand.u32 %v26, 4294901760
  %v894 = vsub.f32 %v26, %v893
  %v895 = vand.u32 %v894, 4294901760
  %896 = vmatmul.mubr.f32.gmra.mrb[0].mxu0 %v895
  %v897 = vpop.f32.mrb[0].mxu0
  %v898 = vadd.f32 %v695, %v897
  %v899 = vpop.f32.mrb[0].mxu0
  %900 = vmatprep.mubr.f32.mxu0 0.0
  %v901 = vand.u32 %v27, 4294901760
  %v902 = vsub.f32 %v27, %v901
  %v903 = vand.u32 %v902, 4294901760
  %904 = vmatmul.mubr.f32.gmra.mrb[0].mxu0 %v903
  %v905 = vpop.f32.mrb[0].mxu0
  %v906 = vadd.f32 %v702, %v905
  %v907 = vpop.f32.mrb[0].mxu0
  %908 = vmatprep.mubr.f32.mxu0 0.0
  %v909 = vand.u32 %v28, 4294901760
  %v910 = vsub.f32 %v28, %v909
  %v911 = vand.u32 %v910, 4294901760
  %912 = vmatmul.mubr.f32.gmra.mrb[0].mxu0 %v911
  %v913 = vpop.f32.mrb[0].mxu0
  %v914 = vadd.f32 %v709, %v913
  %v915 = vpop.f32.mrb[0].mxu0
  %916 = vmatprep.mubr.f32.mxu0 0.0
  %v917 = vand.u32 %v29, 4294901760
  %v918 = vsub.f32 %v29, %v917
  %v919 = vand.u32 %v918, 4294901760
  %920 = vmatmul.mubr.f32.gmra.mrb[0].mxu0 %v919
  %v921 = vpop.f32.mrb[0].mxu0
  %v922 = vadd.f32 %v716, %v921
  %v923 = vpop.f32.mrb[0].mxu0
  %924 = vmatprep.mubr.f32.mxu0 0.0
  %v925 = vand.u32 %v30, 4294901760
  %v926 = vsub.f32 %v30, %v925
  %v927 = vand.u32 %v926, 4294901760
  %928 = vmatmul.mubr.f32.gmra.mrb[0].mxu0 %v927
  %v929 = vpop.f32.mrb[0].mxu0
  %v930 = vadd.f32 %v723, %v929
  %v931 = vpop.f32.mrb[0].mxu0
  %932 = vmatprep.mubr.f32.mxu0 0.0
  %v933 = vand.u32 %v31, 4294901760
  %v934 = vsub.f32 %v31, %v933
  %v935 = vand.u32 %v934, 4294901760
  %936 = vmatmul.mubr.f32.gmra.mrb[0].mxu0 %v935
  %v937 = vpop.f32.mrb[0].mxu0
  %v938 = vadd.f32 %v730, %v937
  %v939 = vpop.f32.mrb[0].mxu0
  %940 = vmatprep.mubr.f32.mxu0 0.0
  %v941 = vand.u32 %v32, 4294901760
  %v942 = vsub.f32 %v32, %v941
  %v943 = vand.u32 %v942, 4294901760
  %944 = vmatmul.mubr.f32.gmra.mrb[0].mxu0 %v943
  %v945 = vpop.f32.mrb[0].mxu0
  %v946 = vadd.f32 %v737, %v945
  %v947 = vpop.f32.mrb[0].mxu0
  %948 = vdwg.mxu0
  %949 = vmatprep.subr.mxu0 0.0
  %v950 = vand.u32 %v33, 4294901760
  %v951 = vsub.f32 %v33, %v950
  %v952 = vand.u32 %v951, 4294901760
  %953 = vmatpush1.msra.mxu0 %v952
  %954 = vmatprep.subr.mxu0 0.0
  %v955 = vand.u32 %v34, 4294901760
  %v956 = vsub.f32 %v34, %v955
  %v957 = vand.u32 %v956, 4294901760
  %958 = vmatpush1.msra.mxu0 %v957
  %959 = vmatprep.subr.mxu0 0.0
  %v960 = vand.u32 %v35, 4294901760
  %v961 = vsub.f32 %v35, %v960
  %v962 = vand.u32 %v961, 4294901760
  %963 = vmatpush1.msra.mxu0 %v962
  %964 = vmatprep.subr.mxu0 0.0
  %v965 = vand.u32 %v36, 4294901760
  %v966 = vsub.f32 %v36, %v965
  %v967 = vand.u32 %v966, 4294901760
  %968 = vmatpush1.msra.mxu0 %v967
  %969 = vmatprep.subr.mxu0 0.0
  %v970 = vand.u32 %v37, 4294901760
  %v971 = vsub.f32 %v37, %v970
  %v972 = vand.u32 %v971, 4294901760
  %973 = vmatpush1.msra.mxu0 %v972
  %974 = vmatprep.subr.mxu0 0.0
  %v975 = vand.u32 %v38, 4294901760
  %v976 = vsub.f32 %v38, %v975
  %v977 = vand.u32 %v976, 4294901760
  %978 = vmatpush1.msra.mxu0 %v977
  %979 = vmatprep.subr.mxu0 0.0
  %v980 = vand.u32 %v39, 4294901760
  %v981 = vsub.f32 %v39, %v980
  %v982 = vand.u32 %v981, 4294901760
  %983 = vmatpush1.msra.mxu0 %v982
  %984 = vmatprep.subr.mxu0 0.0
  %v985 = vand.u32 %v40, 4294901760
  %v986 = vsub.f32 %v40, %v985
  %v987 = vand.u32 %v986, 4294901760
  %988 = vmatpush1.msra.mxu0 %v987
  %989 = vmatprep.subr.mxu0 0.0
  %v990 = vand.u32 %v41, 4294901760
  %v991 = vsub.f32 %v41, %v990
  %v992 = vand.u32 %v991, 4294901760
  %993 = vmatpush1.msra.mxu0 %v992
  %994 = vmatprep.subr.mxu0 0.0
  %v995 = vand.u32 %v42, 4294901760
  %v996 = vsub.f32 %v42, %v995
  %v997 = vand.u32 %v996, 4294901760
  %998 = vmatpush1.msra.mxu0 %v997
  %999 = vmatprep.subr.mxu0 0.0
  %v1000 = vand.u32 %v43, 4294901760
  %v1001 = vsub.f32 %v43, %v1000
  %v1002 = vand.u32 %v1001, 4294901760
  %1003 = vmatpush1.msra.mxu0 %v1002
  %1004 = vmatprep.subr.mxu0 0.0
  %v1005 = vand.u32 %v44, 4294901760
  %v1006 = vsub.f32 %v44, %v1005
  %v1007 = vand.u32 %v1006, 4294901760
  %1008 = vmatpush1.msra.mxu0 %v1007
  %1009 = vmatprep.subr.mxu0 0.0
  %v1010 = vand.u32 %v45, 4294901760
  %v1011 = vsub.f32 %v45, %v1010
  %v1012 = vand.u32 %v1011, 4294901760
  %1013 = vmatpush1.msra.mxu0 %v1012
  %1014 = vmatprep.subr.mxu0 0.0
  %v1015 = vand.u32 %v46, 4294901760
  %v1016 = vsub.f32 %v46, %v1015
  %v1017 = vand.u32 %v1016, 4294901760
  %1018 = vmatpush1.msra.mxu0 %v1017
  %1019 = vmatprep.subr.mxu0 0.0
  %v1020 = vand.u32 %v47, 4294901760
  %v1021 = vsub.f32 %v47, %v1020
  %v1022 = vand.u32 %v1021, 4294901760
  %1023 = vmatpush1.msra.mxu0 %v1022
  %1024 = vmatprep.subr.mxu0 0.0
  %v1025 = vand.u32 %v48, 4294901760
  %v1026 = vsub.f32 %v48, %v1025
  %v1027 = vand.u32 %v1026, 4294901760
  %1028 = vmatpush1.msra.mxu0 %v1027
  %1029 = vmatprep.subr.mxu0 0.0
  %1030 = vmatpush1.msra.mxu0 0.0
  %1031 = vmatprep.subr.mxu0 0.0
  %1032 = vmatpush1.msra.mxu0 0.0
  %1033 = vmatprep.subr.mxu0 0.0
  %1034 = vmatpush1.msra.mxu0 0.0
  %1035 = vmatprep.subr.mxu0 0.0
  %1036 = vmatpush1.msra.mxu0 0.0
  %1037 = vmatprep.subr.mxu0 0.0
  %1038 = vmatpush1.msra.mxu0 0.0
  %1039 = vmatprep.subr.mxu0 0.0
  %1040 = vmatpush1.msra.mxu0 0.0
  %1041 = vmatprep.subr.mxu0 0.0
  %1042 = vmatpush1.msra.mxu0 0.0
  %1043 = vmatprep.subr.mxu0 0.0
  %1044 = vmatpush1.msra.mxu0 0.0
  %1045 = vmatprep.subr.mxu0 0.0
  %1046 = vmatpush1.msra.mxu0 0.0
  %1047 = vmatprep.subr.mxu0 0.0
  %1048 = vmatpush1.msra.mxu0 0.0
  %1049 = vmatprep.subr.mxu0 0.0
  %1050 = vmatpush1.msra.mxu0 0.0
  %1051 = vmatprep.subr.mxu0 0.0
  %1052 = vmatpush1.msra.mxu0 0.0
  %1053 = vmatprep.subr.mxu0 0.0
  %1054 = vmatpush1.msra.mxu0 0.0
  %1055 = vmatprep.subr.mxu0 0.0
  %1056 = vmatpush1.msra.mxu0 0.0
  %1057 = vmatprep.subr.mxu0 0.0
  %1058 = vmatpush1.msra.mxu0 0.0
  %1059 = vmatprep.subr.mxu0 0.0
  %1060 = vmatpush1.msra.mxu0 0.0
  %1061 = vmatprep.mubr.f32.mxu0 0.0
  %v1062 = vand.u32 %v17, 4294901760
  %1063 = vmatmul.mubr.f32.gmra.mrb[0].mxu0 %v1062
  %v1064 = vpop.f32.mrb[0].mxu0
  %v1065 = vadd.f32 %v826, %v1064
  %v1066 = vpop.f32.mrb[0].mxu0
  %1067 = vmatprep.mubr.f32.mxu0 0.0
  %v1068 = vand.u32 %v18, 4294901760
  %1069 = vmatmul.mubr.f32.gmra.mrb[0].mxu0 %v1068
  %v1070 = vpop.f32.mrb[0].mxu0
  %v1071 = vadd.f32 %v834, %v1070
  %v1072 = vpop.f32.mrb[0].mxu0
  %1073 = vmatprep.mubr.f32.mxu0 0.0
  %v1074 = vand.u32 %v19, 4294901760
  %1075 = vmatmul.mubr.f32.gmra.mrb[0].mxu0 %v1074
  %v1076 = vpop.f32.mrb[0].mxu0
  %v1077 = vadd.f32 %v842, %v1076
  %v1078 = vpop.f32.mrb[0].mxu0
  %1079 = vmatprep.mubr.f32.mxu0 0.0
  %v1080 = vand.u32 %v20, 4294901760
  %1081 = vmatmul.mubr.f32.gmra.mrb[0].mxu0 %v1080
  %v1082 = vpop.f32.mrb[0].mxu0
  %v1083 = vadd.f32 %v850, %v1082
  %v1084 = vpop.f32.mrb[0].mxu0
  %1085 = vmatprep.mubr.f32.mxu0 0.0
  %v1086 = vand.u32 %v21, 4294901760
  %1087 = vmatmul.mubr.f32.gmra.mrb[0].mxu0 %v1086
  %v1088 = vpop.f32.mrb[0].mxu0
  %v1089 = vadd.f32 %v858, %v1088
  %v1090 = vpop.f32.mrb[0].mxu0
  %1091 = vmatprep.mubr.f32.mxu0 0.0
  %v1092 = vand.u32 %v22, 4294901760
  %1093 = vmatmul.mubr.f32.gmra.mrb[0].mxu0 %v1092
  %v1094 = vpop.f32.mrb[0].mxu0
  %v1095 = vadd.f32 %v866, %v1094
  %v1096 = vpop.f32.mrb[0].mxu0
  %1097 = vmatprep.mubr.f32.mxu0 0.0
  %v1098 = vand.u32 %v23, 4294901760
  %1099 = vmatmul.mubr.f32.gmra.mrb[0].mxu0 %v1098
  %v1100 = vpop.f32.mrb[0].mxu0
  %v1101 = vadd.f32 %v874, %v1100
  %v1102 = vpop.f32.mrb[0].mxu0
  %1103 = vmatprep.mubr.f32.mxu0 0.0
  %v1104 = vand.u32 %v24, 4294901760
  %1105 = vmatmul.mubr.f32.gmra.mrb[0].mxu0 %v1104
  %v1106 = vpop.f32.mrb[0].mxu0
  %v1107 = vadd.f32 %v882, %v1106
  %v1108 = vpop.f32.mrb[0].mxu0
  %1109 = vmatprep.mubr.f32.mxu0 0.0
  %v1110 = vand.u32 %v25, 4294901760
  %1111 = vmatmul.mubr.f32.gmra.mrb[0].mxu0 %v1110
  %v1112 = vpop.f32.mrb[0].mxu0
  %v1113 = vadd.f32 %v890, %v1112
  %v1114 = vpop.f32.mrb[0].mxu0
  %1115 = vmatprep.mubr.f32.mxu0 0.0
  %v1116 = vand.u32 %v26, 4294901760
  %1117 = vmatmul.mubr.f32.gmra.mrb[0].mxu0 %v1116
  %v1118 = vpop.f32.mrb[0].mxu0
  %v1119 = vadd.f32 %v898, %v1118
  %v1120 = vpop.f32.mrb[0].mxu0
  %1121 = vmatprep.mubr.f32.mxu0 0.0
  %v1122 = vand.u32 %v27, 4294901760
  %1123 = vmatmul.mubr.f32.gmra.mrb[0].mxu0 %v1122
  %v1124 = vpop.f32.mrb[0].mxu0
  %v1125 = vadd.f32 %v906, %v1124
  %v1126 = vpop.f32.mrb[0].mxu0
  %1127 = vmatprep.mubr.f32.mxu0 0.0
  %v1128 = vand.u32 %v28, 4294901760
  %1129 = vmatmul.mubr.f32.gmra.mrb[0].mxu0 %v1128
  %v1130 = vpop.f32.mrb[0].mxu0
  %v1131 = vadd.f32 %v914, %v1130
  %v1132 = vpop.f32.mrb[0].mxu0
  %1133 = vmatprep.mubr.f32.mxu0 0.0
  %v1134 = vand.u32 %v29, 4294901760
  %1135 = vmatmul.mubr.f32.gmra.mrb[0].mxu0 %v1134
  %v1136 = vpop.f32.mrb[0].mxu0
  %v1137 = vadd.f32 %v922, %v1136
  %v1138 = vpop.f32.mrb[0].mxu0
  %1139 = vmatprep.mubr.f32.mxu0 0.0
  %v1140 = vand.u32 %v30, 4294901760
  %1141 = vmatmul.mubr.f32.gmra.mrb[0].mxu0 %v1140
  %v1142 = vpop.f32.mrb[0].mxu0
  %v1143 = vadd.f32 %v930, %v1142
  %v1144 = vpop.f32.mrb[0].mxu0
  %1145 = vmatprep.mubr.f32.mxu0 0.0
  %v1146 = vand.u32 %v31, 4294901760
  %1147 = vmatmul.mubr.f32.gmra.mrb[0].mxu0 %v1146
  %v1148 = vpop.f32.mrb[0].mxu0
  %v1149 = vadd.f32 %v938, %v1148
  %v1150 = vpop.f32.mrb[0].mxu0
  %1151 = vmatprep.mubr.f32.mxu0 0.0
  %v1152 = vand.u32 %v32, 4294901760
  %1153 = vmatmul.mubr.f32.gmra.mrb[0].mxu0 %v1152
  %v1154 = vpop.f32.mrb[0].mxu0
  %v1155 = vadd.f32 %v946, %v1154
  %v1156 = vpop.f32.mrb[0].mxu0
  %1157 = vdwg.mxu0
  %1158 = vmatprep.subr.mxu0 0.0
  %v1159 = vand.u32 %v33, 4294901760
  %1160 = vmatpush1.msra.mxu0 %v1159
  %1161 = vmatprep.subr.mxu0 0.0
  %v1162 = vand.u32 %v34, 4294901760
  %1163 = vmatpush1.msra.mxu0 %v1162
  %1164 = vmatprep.subr.mxu0 0.0
  %v1165 = vand.u32 %v35, 4294901760
  %1166 = vmatpush1.msra.mxu0 %v1165
  %1167 = vmatprep.subr.mxu0 0.0
  %v1168 = vand.u32 %v36, 4294901760
  %1169 = vmatpush1.msra.mxu0 %v1168
  %1170 = vmatprep.subr.mxu0 0.0
  %v1171 = vand.u32 %v37, 4294901760
  %1172 = vmatpush1.msra.mxu0 %v1171
  %1173 = vmatprep.subr.mxu0 0.0
  %v1174 = vand.u32 %v38, 4294901760
  %1175 = vmatpush1.msra.mxu0 %v1174
  %1176 = vmatprep.subr.mxu0 0.0
  %v1177 = vand.u32 %v39, 4294901760
  %1178 = vmatpush1.msra.mxu0 %v1177
  %1179 = vmatprep.subr.mxu0 0.0
  %v1180 = vand.u32 %v40, 4294901760
  %1181 = vmatpush1.msra.mxu0 %v1180
  %1182 = vmatprep.subr.mxu0 0.0
  %v1183 = vand.u32 %v41, 4294901760
  %1184 = vmatpush1.msra.mxu0 %v1183
  %1185 = vmatprep.subr.mxu0 0.0
  %v1186 = vand.u32 %v42, 4294901760
  %1187 = vmatpush1.msra.mxu0 %v1186
  %1188 = vmatprep.subr.mxu0 0.0
  %v1189 = vand.u32 %v43, 4294901760
  %1190 = vmatpush1.msra.mxu0 %v1189
  %1191 = vmatprep.subr.mxu0 0.0
  %v1192 = vand.u32 %v44, 4294901760
  %1193 = vmatpush1.msra.mxu0 %v1192
  %1194 = vmatprep.subr.mxu0 0.0
  %v1195 = vand.u32 %v45, 4294901760
  %1196 = vmatpush1.msra.mxu0 %v1195
  %1197 = vmatprep.subr.mxu0 0.0
  %v1198 = vand.u32 %v46, 4294901760
  %1199 = vmatpush1.msra.mxu0 %v1198
  %1200 = vmatprep.subr.mxu0 0.0
  %v1201 = vand.u32 %v47, 4294901760
  %1202 = vmatpush1.msra.mxu0 %v1201
  %1203 = vmatprep.subr.mxu0 0.0
  %v1204 = vand.u32 %v48, 4294901760
  %1205 = vmatpush1.msra.mxu0 %v1204
  %1206 = vmatprep.subr.mxu0 0.0
  %1207 = vmatpush1.msra.mxu0 0.0
  %1208 = vmatprep.subr.mxu0 0.0
  %1209 = vmatpush1.msra.mxu0 0.0
  %1210 = vmatprep.subr.mxu0 0.0
  %1211 = vmatpush1.msra.mxu0 0.0
  %1212 = vmatprep.subr.mxu0 0.0
  %1213 = vmatpush1.msra.mxu0 0.0
  %1214 = vmatprep.subr.mxu0 0.0
  %1215 = vmatpush1.msra.mxu0 0.0
  %1216 = vmatprep.subr.mxu0 0.0
  %1217 = vmatpush1.msra.mxu0 0.0
  %1218 = vmatprep.subr.mxu0 0.0
  %1219 = vmatpush1.msra.mxu0 0.0
  %1220 = vmatprep.subr.mxu0 0.0
  %1221 = vmatpush1.msra.mxu0 0.0
  %1222 = vmatprep.subr.mxu0 0.0
  %1223 = vmatpush1.msra.mxu0 0.0
  %1224 = vmatprep.subr.mxu0 0.0
  %1225 = vmatpush1.msra.mxu0 0.0
  %1226 = vmatprep.subr.mxu0 0.0
  %1227 = vmatpush1.msra.mxu0 0.0
  %1228 = vmatprep.subr.mxu0 0.0
  %1229 = vmatpush1.msra.mxu0 0.0
  %1230 = vmatprep.subr.mxu0 0.0
  %1231 = vmatpush1.msra.mxu0 0.0
  %1232 = vmatprep.subr.mxu0 0.0
  %1233 = vmatpush1.msra.mxu0 0.0
  %1234 = vmatprep.subr.mxu0 0.0
  %1235 = vmatpush1.msra.mxu0 0.0
  %1236 = vmatprep.subr.mxu0 0.0
  %1237 = vmatpush1.msra.mxu0 0.0
  %1238 = vmatprep.mubr.f32.mxu0 0.0
  %v1239 = vand.u32 %v17, 4294901760
  %1240 = vmatmul.mubr.f32.gmra.mrb[0].mxu0 %v1239
  %v1241 = vpop.f32.mrb[0].mxu0
  %v1242 = vadd.f32 %v1065, %v1241
  %v1243 = vpop.f32.mrb[0].mxu0
  %1244 = vmatprep.mubr.f32.mxu0 0.0
  %v1245 = vand.u32 %v18, 4294901760
  %1246 = vmatmul.mubr.f32.gmra.mrb[0].mxu0 %v1245
  %v1247 = vpop.f32.mrb[0].mxu0
  %v1248 = vadd.f32 %v1071, %v1247
  %v1249 = vpop.f32.mrb[0].mxu0
  %1250 = vmatprep.mubr.f32.mxu0 0.0
  %v1251 = vand.u32 %v19, 4294901760
  %1252 = vmatmul.mubr.f32.gmra.mrb[0].mxu0 %v1251
  %v1253 = vpop.f32.mrb[0].mxu0
  %v1254 = vadd.f32 %v1077, %v1253
  %v1255 = vpop.f32.mrb[0].mxu0
  %1256 = vmatprep.mubr.f32.mxu0 0.0
  %v1257 = vand.u32 %v20, 4294901760
  %1258 = vmatmul.mubr.f32.gmra.mrb[0].mxu0 %v1257
  %v1259 = vpop.f32.mrb[0].mxu0
  %v1260 = vadd.f32 %v1083, %v1259
  %v1261 = vpop.f32.mrb[0].mxu0
  %1262 = vmatprep.mubr.f32.mxu0 0.0
  %v1263 = vand.u32 %v21, 4294901760
  %1264 = vmatmul.mubr.f32.gmra.mrb[0].mxu0 %v1263
  %v1265 = vpop.f32.mrb[0].mxu0
  %v1266 = vadd.f32 %v1089, %v1265
  %v1267 = vpop.f32.mrb[0].mxu0
  %1268 = vmatprep.mubr.f32.mxu0 0.0
  %v1269 = vand.u32 %v22, 4294901760
  %1270 = vmatmul.mubr.f32.gmra.mrb[0].mxu0 %v1269
  %v1271 = vpop.f32.mrb[0].mxu0
  %v1272 = vadd.f32 %v1095, %v1271
  %v1273 = vpop.f32.mrb[0].mxu0
  %1274 = vmatprep.mubr.f32.mxu0 0.0
  %v1275 = vand.u32 %v23, 4294901760
  %1276 = vmatmul.mubr.f32.gmra.mrb[0].mxu0 %v1275
  %v1277 = vpop.f32.mrb[0].mxu0
  %v1278 = vadd.f32 %v1101, %v1277
  %v1279 = vpop.f32.mrb[0].mxu0
  %1280 = vmatprep.mubr.f32.mxu0 0.0
  %v1281 = vand.u32 %v24, 4294901760
  %1282 = vmatmul.mubr.f32.gmra.mrb[0].mxu0 %v1281
  %v1283 = vpop.f32.mrb[0].mxu0
  %v1284 = vadd.f32 %v1107, %v1283
  %v1285 = vpop.f32.mrb[0].mxu0
  %1286 = vmatprep.mubr.f32.mxu0 0.0
  %v1287 = vand.u32 %v25, 4294901760
  %1288 = vmatmul.mubr.f32.gmra.mrb[0].mxu0 %v1287
  %v1289 = vpop.f32.mrb[0].mxu0
  %v1290 = vadd.f32 %v1113, %v1289
  %v1291 = vpop.f32.mrb[0].mxu0
  %1292 = vmatprep.mubr.f32.mxu0 0.0
  %v1293 = vand.u32 %v26, 4294901760
  %1294 = vmatmul.mubr.f32.gmra.mrb[0].mxu0 %v1293
  %v1295 = vpop.f32.mrb[0].mxu0
  %v1296 = vadd.f32 %v1119, %v1295
  %v1297 = vpop.f32.mrb[0].mxu0
  %1298 = vmatprep.mubr.f32.mxu0 0.0
  %v1299 = vand.u32 %v27, 4294901760
  %1300 = vmatmul.mubr.f32.gmra.mrb[0].mxu0 %v1299
  %v1301 = vpop.f32.mrb[0].mxu0
  %v1302 = vadd.f32 %v1125, %v1301
  %v1303 = vpop.f32.mrb[0].mxu0
  %1304 = vmatprep.mubr.f32.mxu0 0.0
  %v1305 = vand.u32 %v28, 4294901760
  %1306 = vmatmul.mubr.f32.gmra.mrb[0].mxu0 %v1305
  %v1307 = vpop.f32.mrb[0].mxu0
  %v1308 = vadd.f32 %v1131, %v1307
  %v1309 = vpop.f32.mrb[0].mxu0
  %1310 = vmatprep.mubr.f32.mxu0 0.0
  %v1311 = vand.u32 %v29, 4294901760
  %1312 = vmatmul.mubr.f32.gmra.mrb[0].mxu0 %v1311
  %v1313 = vpop.f32.mrb[0].mxu0
  %v1314 = vadd.f32 %v1137, %v1313
  %v1315 = vpop.f32.mrb[0].mxu0
  %1316 = vmatprep.mubr.f32.mxu0 0.0
  %v1317 = vand.u32 %v30, 4294901760
  %1318 = vmatmul.mubr.f32.gmra.mrb[0].mxu0 %v1317
  %v1319 = vpop.f32.mrb[0].mxu0
  %v1320 = vadd.f32 %v1143, %v1319
  %v1321 = vpop.f32.mrb[0].mxu0
  %1322 = vmatprep.mubr.f32.mxu0 0.0
  %v1323 = vand.u32 %v31, 4294901760
  %1324 = vmatmul.mubr.f32.gmra.mrb[0].mxu0 %v1323
  %v1325 = vpop.f32.mrb[0].mxu0
  %v1326 = vadd.f32 %v1149, %v1325
  %v1327 = vpop.f32.mrb[0].mxu0
  %1328 = vmatprep.mubr.f32.mxu0 0.0
  %v1329 = vand.u32 %v32, 4294901760
  %1330 = vmatmul.mubr.f32.gmra.mrb[0].mxu0 %v1329
  %v1331 = vpop.f32.mrb[0].mxu0
  %v1332 = vadd.f32 %v1155, %v1331
  %v1333 = vpop.f32.mrb[0].mxu0
  %1334 = vdwg.mxu0
  %v1335 = vld [vmem:[%s2] sm:$0x1]
  %v1337 = vlaneseq
  %v1338 = vshrl.u32 %v1337, 7
  %v1339 = vsub.s32 0, %v1338
  %v1340 = vrot.slane %v1335, %v1339
  %v1342 = vmul.f32 %v1242, %v1340
  %v1343 = vmul.f32 %v1248, %v1340
  %v1344 = vmul.f32 %v1254, %v1340
  %v1345 = vmul.f32 %v1260, %v1340
  %v1346 = vmul.f32 %v1266, %v1340
  %v1347 = vmul.f32 %v1272, %v1340
  %v1348 = vmul.f32 %v1278, %v1340
  %v1349 = vmul.f32 %v1284, %v1340
  %v1350 = vmul.f32 %v1290, %v1340
  %v1351 = vmul.f32 %v1296, %v1340
  %v1352 = vmul.f32 %v1302, %v1340
  %v1353 = vmul.f32 %v1308, %v1340
  %v1354 = vmul.f32 %v1314, %v1340
  %v1355 = vmul.f32 %v1320, %v1340
  %v1356 = vmul.f32 %v1326, %v1340
  %v1357 = vmul.f32 %v1332, %v1340
  %v1358 = vld [vmem:[%s3] sm:$0x1]
  %v1360 = vlaneseq
  %v1361 = vshrl.u32 %v1360, 7
  %v1362 = vsub.s32 0, %v1361
  %v1363 = vrot.slane %v1358, %v1362
  %v1365 = vadd.f32 %v1342, %v1363
  %v1366 = vadd.f32 %v1343, %v1363
  %v1367 = vadd.f32 %v1344, %v1363
  %v1368 = vadd.f32 %v1345, %v1363
  %v1369 = vadd.f32 %v1346, %v1363
  %v1370 = vadd.f32 %v1347, %v1363
  %v1371 = vadd.f32 %v1348, %v1363
  %v1372 = vadd.f32 %v1349, %v1363
  %v1373 = vadd.f32 %v1350, %v1363
  %v1374 = vadd.f32 %v1351, %v1363
  %v1375 = vadd.f32 %v1352, %v1363
  %v1376 = vadd.f32 %v1353, %v1363
  %v1377 = vadd.f32 %v1354, %v1363
  %v1378 = vadd.f32 %v1355, %v1363
  %v1379 = vadd.f32 %v1356, %v1363
  %v1380 = vadd.f32 %v1357, %v1363
  %vm1381 = vcmp.ge.f32.partialorder %v1365, 0.0
  %vm1382 = vcmp.ge.f32.partialorder %v1366, 0.0
  %vm1383 = vcmp.ge.f32.partialorder %v1367, 0.0
  %vm1384 = vcmp.ge.f32.partialorder %v1368, 0.0
  %vm1385 = vcmp.ge.f32.partialorder %v1369, 0.0
  %vm1386 = vcmp.ge.f32.partialorder %v1370, 0.0
  %vm1387 = vcmp.ge.f32.partialorder %v1371, 0.0
  %vm1388 = vcmp.ge.f32.partialorder %v1372, 0.0
  %vm1389 = vcmp.ge.f32.partialorder %v1373, 0.0
  %vm1390 = vcmp.ge.f32.partialorder %v1374, 0.0
  %vm1391 = vcmp.ge.f32.partialorder %v1375, 0.0
  %vm1392 = vcmp.ge.f32.partialorder %v1376, 0.0
  %vm1393 = vcmp.ge.f32.partialorder %v1377, 0.0
  %vm1394 = vcmp.ge.f32.partialorder %v1378, 0.0
  %vm1395 = vcmp.ge.f32.partialorder %v1379, 0.0
  %vm1396 = vcmp.ge.f32.partialorder %v1380, 0.0
  %v1397 = vmul.f32 %v1365, 0.2
  %v1398 = vmul.f32 %v1366, 0.2
  %v1399 = vmul.f32 %v1367, 0.2
  %v1400 = vmul.f32 %v1368, 0.2
  %v1401 = vmul.f32 %v1369, 0.2
  %v1402 = vmul.f32 %v1370, 0.2
  %v1403 = vmul.f32 %v1371, 0.2
  %v1404 = vmul.f32 %v1372, 0.2
  %v1405 = vmul.f32 %v1373, 0.2
  %v1406 = vmul.f32 %v1374, 0.2
  %v1407 = vmul.f32 %v1375, 0.2
  %v1408 = vmul.f32 %v1376, 0.2
  %v1409 = vmul.f32 %v1377, 0.2
  %v1410 = vmul.f32 %v1378, 0.2
  %v1411 = vmul.f32 %v1379, 0.2
  %v1412 = vmul.f32 %v1380, 0.2
  %v1413 = vsel %vm1381, %v1365, %v1397
  %v1414 = vsel %vm1382, %v1366, %v1398
  %v1415 = vsel %vm1383, %v1367, %v1399
  %v1416 = vsel %vm1384, %v1368, %v1400
  %v1417 = vsel %vm1385, %v1369, %v1401
  %v1418 = vsel %vm1386, %v1370, %v1402
  %v1419 = vsel %vm1387, %v1371, %v1403
  %v1420 = vsel %vm1388, %v1372, %v1404
  %v1421 = vsel %vm1389, %v1373, %v1405
  %v1422 = vsel %vm1390, %v1374, %v1406
  %v1423 = vsel %vm1391, %v1375, %v1407
  %v1424 = vsel %vm1392, %v1376, %v1408
  %v1425 = vsel %vm1393, %v1377, %v1409
  %v1426 = vsel %vm1394, %v1378, %v1410
  %v1427 = vsel %vm1395, %v1379, %v1411
  %v1428 = vsel %vm1396, %v1380, %v1412
  %1429 = vst [vmem:[%s4] sm:$0xff] %v1413
  %1430 = vst [vmem:[%s4 + $0x8] sm:$0xff] %v1414
  %1431 = vst [vmem:[%s4 + $0x10] sm:$0xff] %v1415
  %1432 = vst [vmem:[%s4 + $0x18] sm:$0xff] %v1416
  %1433 = vst [vmem:[%s4 + $0x20] sm:$0xff] %v1417
  %1434 = vst [vmem:[%s4 + $0x28] sm:$0xff] %v1418
  %1435 = vst [vmem:[%s4 + $0x30] sm:$0xff] %v1419
  %1436 = vst [vmem:[%s4 + $0x38] sm:$0xff] %v1420
  %1437 = vst [vmem:[%s4 + $0x40] sm:$0xff] %v1421
  %1438 = vst [vmem:[%s4 + $0x48] sm:$0xff] %v1422
  %1439 = vst [vmem:[%s4 + $0x50] sm:$0xff] %v1423
  %1440 = vst [vmem:[%s4 + $0x58] sm:$0xff] %v1424
  %1441 = vst [vmem:[%s4 + $0x60] sm:$0xff] %v1425
  %1442 = vst [vmem:[%s4 + $0x68] sm:$0xff] %v1426
  %1443 = vst [vmem:[%s4 + $0x70] sm:$0xff] %v1427
  %1444 = vst [vmem:[%s4 + $0x78] sm:$0xff] %v1428
  // Predicated region
  $region18: #{_lambda_.6} parent=0 // pred_check
    _
  $region19: #{_lambda_.6} parent=0 // pred_check_branch
    %1446 = sbr.rel (0) target = $region21
  $region20: #{_lambda_.6} parent=0 // pred_region
    _
  $region21: #{_lambda_.6} parent=0 // pred_fallthru
    _
  // Predicated region
  $region22: #{_lambda_.6} parent=0 // pred_check
    _
  $region23: #{_lambda_.6} parent=0 // pred_check_branch
    %1448 = sbr.rel (0) target = $region25
  $region24: #{_lambda_.6} parent=0 // pred_region
    _
  $region25: #{_lambda_.6} parent=0 // pred_fallthru
    _

// kernel: _lambda_.7
$region0: #{_lambda_.7}
  #allocation0 [shape = 'u32[]', space=smem, size = 0x4, offset = 0x4, fixed_abs, tag = 'smem constant byte address 0x4 - core index']
  #allocation1 [shape = 'u32[144,128]{1,0:T(1,128)}', space=vmem, size = 0x12000, scoped, tag = 'internal scratch']
  %s0 = inlined_call_operand.vmem [shape: f32[32,256], index: 0, kind: input, shape index: {}]
  %s1 = inlined_call_operand.vmem [shape: f32[256,128], index: 1, kind: input, shape index: {}]
  %s2 = inlined_call_operand.vmem [shape: f32[1,128], index: 2, kind: input, shape index: {}]
  %s3 = inlined_call_operand.vmem [shape: f32[1,128], index: 3, kind: input, shape index: {}]
  %s4 = inlined_call_operand.vmem [shape: f32[32,128], index: 4, kind: output, shape index: {}]
  %s5 = sld [smem:[#allocation0]]
  $region26: #{_lambda_.7} parent=0
    _
  %s7 = ssub.s32 1, %s5
  %s8 = scalar_select 0, %s7, %s5
  // Predicated region
  $region2: #{_lambda_.7} parent=0 // pred_check
    _
  $region3: #{_lambda_.7} parent=0 // pred_check_branch
    %10 = sbr.rel (0) target = $region5
  $region4: #{_lambda_.7} parent=0 // pred_region
    _
  $region5: #{_lambda_.7} parent=0 // pred_fallthru
    _
  // Predicated region
  $region6: #{_lambda_.7} parent=0 // pred_check
    _
  $region7: #{_lambda_.7} parent=0 // pred_check_branch
    %12 = sbr.rel (0) target = $region9
  $region8: #{_lambda_.7} parent=0 // pred_region
    _
  $region9: #{_lambda_.7} parent=0 // pred_fallthru
    _
  // Predicated region
  $region10: #{_lambda_.7} parent=0 // pred_check
    _
  $region11: #{_lambda_.7} parent=0 // pred_check_branch
    %14 = sbr.rel (0) target = $region13
  $region12: #{_lambda_.7} parent=0 // pred_region
    _
  $region13: #{_lambda_.7} parent=0 // pred_fallthru
    _
  // Predicated region
  $region14: #{_lambda_.7} parent=0 // pred_check
    _
  $region15: #{_lambda_.7} parent=0 // pred_check_branch
    %16 = sbr.rel (0) target = $region17
  $region16: #{_lambda_.7} parent=0 // pred_region
    _
  $region17: #{_lambda_.7} parent=0 // pred_fallthru
    _
  %v17 = vld [vmem:[%s0] sm:$0xff]
  %v18 = vld [vmem:[%s0 + $0x8] sm:$0xff]
  %v19 = vld [vmem:[%s0 + $0x10] sm:$0xff]
  %v20 = vld [vmem:[%s0 + $0x18] sm:$0xff]
  %v21 = vld [vmem:[%s0 + $0x20] sm:$0xff]
  %v22 = vld [vmem:[%s0 + $0x28] sm:$0xff]
  %v23 = vld [vmem:[%s0 + $0x30] sm:$0xff]
  %v24 = vld [vmem:[%s0 + $0x38] sm:$0xff]
  %v25 = vld [vmem:[%s1] sm:$0xff]
  %v26 = vld [vmem:[%s1 + $0x8] sm:$0xff]
  %v27 = vld [vmem:[%s1 + $0x10] sm:$0xff]
  %v28 = vld [vmem:[%s1 + $0x18] sm:$0xff]
  %v29 = vld [vmem:[%s1 + $0x20] sm:$0xff]
  %v30 = vld [vmem:[%s1 + $0x28] sm:$0xff]
  %v31 = vld [vmem:[%s1 + $0x30] sm:$0xff]
  %v32 = vld [vmem:[%s1 + $0x38] sm:$0xff]
  %v33 = vld [vmem:[%s1 + $0x40] sm:$0xff]
  %v34 = vld [vmem:[%s1 + $0x48] sm:$0xff]
  %v35 = vld [vmem:[%s1 + $0x50] sm:$0xff]
  %v36 = vld [vmem:[%s1 + $0x58] sm:$0xff]
  %v37 = vld [vmem:[%s1 + $0x60] sm:$0xff]
  %v38 = vld [vmem:[%s1 + $0x68] sm:$0xff]
  %v39 = vld [vmem:[%s1 + $0x70] sm:$0xff]
  %v40 = vld [vmem:[%s1 + $0x78] sm:$0xff]
  %v41 = vld [vmem:[%s1 + $0x80] sm:$0xff]
  %v42 = vld [vmem:[%s1 + $0x88] sm:$0xff]
  %v43 = vld [vmem:[%s1 + $0x90] sm:$0xff]
  %v44 = vld [vmem:[%s1 + $0x98] sm:$0xff]
  %v45 = vld [vmem:[%s1 + $0xa0] sm:$0xff]
  %v46 = vld [vmem:[%s1 + $0xa8] sm:$0xff]
  %v47 = vld [vmem:[%s1 + $0xb0] sm:$0xff]
  %v48 = vld [vmem:[%s1 + $0xb8] sm:$0xff]
  %v49 = vld [vmem:[%s1 + $0xc0] sm:$0xff]
  %v50 = vld [vmem:[%s1 + $0xc8] sm:$0xff]
  %v51 = vld [vmem:[%s1 + $0xd0] sm:$0xff]
  %v52 = vld [vmem:[%s1 + $0xd8] sm:$0xff]
  %v53 = vld [vmem:[%s1 + $0xe0] sm:$0xff]
  %v54 = vld [vmem:[%s1 + $0xe8] sm:$0xff]
  %v55 = vld [vmem:[%s1 + $0xf0] sm:$0xff]
  %v56 = vld [vmem:[%s1 + $0xf8] sm:$0xff]
  %57 = vmatprep.subr.mxu0 0.0
  %v58 = vand.u32 %v25, 4294901760
  %59 = vmatpush1.msra.mxu0 %v58
  %60 = vmatprep.subr.mxu0 0.0
  %v61 = vand.u32 %v26, 4294901760
  %62 = vmatpush1.msra.mxu0 %v61
  %63 = vmatprep.subr.mxu0 0.0
  %v64 = vand.u32 %v27, 4294901760
  %65 = vmatpush1.msra.mxu0 %v64
  %66 = vmatprep.subr.mxu0 0.0
  %v67 = vand.u32 %v28, 4294901760
  %68 = vmatpush1.msra.mxu0 %v67
  %69 = vmatprep.subr.mxu0 0.0
  %v70 = vand.u32 %v29, 4294901760
  %71 = vmatpush1.msra.mxu0 %v70
  %72 = vmatprep.subr.mxu0 0.0
  %v73 = vand.u32 %v30, 4294901760
  %74 = vmatpush1.msra.mxu0 %v73
  %75 = vmatprep.subr.mxu0 0.0
  %v76 = vand.u32 %v31, 4294901760
  %77 = vmatpush1.msra.mxu0 %v76
  %78 = vmatprep.subr.mxu0 0.0
  %v79 = vand.u32 %v32, 4294901760
  %80 = vmatpush1.msra.mxu0 %v79
  %81 = vmatprep.subr.mxu0 0.0
  %v82 = vand.u32 %v33, 4294901760
  %83 = vmatpush1.msra.mxu0 %v82
  %84 = vmatprep.subr.mxu0 0.0
  %v85 = vand.u32 %v34, 4294901760
  %86 = vmatpush1.msra.mxu0 %v85
  %87 = vmatprep.subr.mxu0 0.0
  %v88 = vand.u32 %v35, 4294901760
  %89 = vmatpush1.msra.mxu0 %v88
  %90 = vmatprep.subr.mxu0 0.0
  %v91 = vand.u32 %v36, 4294901760
  %92 = vmatpush1.msra.mxu0 %v91
  %93 = vmatprep.subr.mxu0 0.0
  %v94 = vand.u32 %v37, 4294901760
  %95 = vmatpush1.msra.mxu0 %v94
  %96 = vmatprep.subr.mxu0 0.0
  %v97 = vand.u32 %v38, 4294901760
  %98 = vmatpush1.msra.mxu0 %v97
  %99 = vmatprep.subr.mxu0 0.0
  %v100 = vand.u32 %v39, 4294901760
  %101 = vmatpush1.msra.mxu0 %v100
  %102 = vmatprep.subr.mxu0 0.0
  %v103 = vand.u32 %v40, 4294901760
  %104 = vmatpush1.msra.mxu0 %v103
  %105 = vmatprep.subr.mxu0 0.0
  %v106 = vand.u32 %v41, 4294901760
  %107 = vmatpush1.msra.mxu0 %v106
  %108 = vmatprep.subr.mxu0 0.0
  %v109 = vand.u32 %v42, 4294901760
  %110 = vmatpush1.msra.mxu0 %v109
  %111 = vmatprep.subr.mxu0 0.0
  %v112 = vand.u32 %v43, 4294901760
  %113 = vmatpush1.msra.mxu0 %v112
  %114 = vmatprep.subr.mxu0 0.0
  %v115 = vand.u32 %v44, 4294901760
  %116 = vmatpush1.msra.mxu0 %v115
  %117 = vmatprep.subr.mxu0 0.0
  %v118 = vand.u32 %v45, 4294901760
  %119 = vmatpush1.msra.mxu0 %v118
  %120 = vmatprep.subr.mxu0 0.0
  %v121 = vand.u32 %v46, 4294901760
  %122 = vmatpush1.msra.mxu0 %v121
  %123 = vmatprep.subr.mxu0 0.0
  %v124 = vand.u32 %v47, 4294901760
  %125 = vmatpush1.msra.mxu0 %v124
  %126 = vmatprep.subr.mxu0 0.0
  %v127 = vand.u32 %v48, 4294901760
  %128 = vmatpush1.msra.mxu0 %v127
  %129 = vmatprep.subr.mxu0 0.0
  %v130 = vand.u32 %v49, 4294901760
  %131 = vmatpush1.msra.mxu0 %v130
  %132 = vmatprep.subr.mxu0 0.0
  %v133 = vand.u32 %v50, 4294901760
  %134 = vmatpush1.msra.mxu0 %v133
  %135 = vmatprep.subr.mxu0 0.0
  %v136 = vand.u32 %v51, 4294901760
  %137 = vmatpush1.msra.mxu0 %v136
  %138 = vmatprep.subr.mxu0 0.0
  %v139 = vand.u32 %v52, 4294901760
  %140 = vmatpush1.msra.mxu0 %v139
  %141 = vmatprep.subr.mxu0 0.0
  %v142 = vand.u32 %v53, 4294901760
  %143 = vmatpush1.msra.mxu0 %v142
  %144 = vmatprep.subr.mxu0 0.0
  %v145 = vand.u32 %v54, 4294901760
  %146 = vmatpush1.msra.mxu0 %v145
  %147 = vmatprep.subr.mxu0 0.0
  %v148 = vand.u32 %v55, 4294901760
  %149 = vmatpush1.msra.mxu0 %v148
  %150 = vmatprep.subr.mxu0 0.0
  %v151 = vand.u32 %v56, 4294901760
  %152 = vmatpush1.msra.mxu0 %v151
  %v153 = vand.u32 %v18, 4294901760
  %v154 = vsub.f32 %v18, %v153
  %v155 = vand.u32 %v154, 4294901760
  %v156 = vsub.f32 %v154, %v155
  %v157 = vand.u32 %v156, 4294901760
  %158 = vmatprep.mubr.f32.mxu0 %v157
  %v159 = vand.u32 %v17, 4294901760
  %v160 = vsub.f32 %v17, %v159
  %v161 = vand.u32 %v160, 4294901760
  %v162 = vsub.f32 %v160, %v161
  %v163 = vand.u32 %v162, 4294901760
  %164 = vmatmul.mubr.f32.gmra.mrb[0].mxu0 %v163
  %v165 = vpop.f32.mrb[0].mxu0
  %v166 = vadd.f32 0.0, %v165
  %v167 = vpop.f32.mrb[0].mxu0
  %v168 = vand.u32 %v20, 4294901760
  %v169 = vsub.f32 %v20, %v168
  %v170 = vand.u32 %v169, 4294901760
  %v171 = vsub.f32 %v169, %v170
  %v172 = vand.u32 %v171, 4294901760
  %173 = vmatprep.mubr.f32.mxu0 %v172
  %v174 = vand.u32 %v19, 4294901760
  %v175 = vsub.f32 %v19, %v174
  %v176 = vand.u32 %v175, 4294901760
  %v177 = vsub.f32 %v175, %v176
  %v178 = vand.u32 %v177, 4294901760
  %179 = vmatmul.mubr.f32.gmra.mrb[0].mxu0 %v178
  %v180 = vpop.f32.mrb[0].mxu0
  %v181 = vadd.f32 0.0, %v180
  %v182 = vpop.f32.mrb[0].mxu0
  %v183 = vand.u32 %v22, 4294901760
  %v184 = vsub.f32 %v22, %v183
  %v185 = vand.u32 %v184, 4294901760
  %v186 = vsub.f32 %v184, %v185
  %v187 = vand.u32 %v186, 4294901760
  %188 = vmatprep.mubr.f32.mxu0 %v187
  %v189 = vand.u32 %v21, 4294901760
  %v190 = vsub.f32 %v21, %v189
  %v191 = vand.u32 %v190, 4294901760
  %v192 = vsub.f32 %v190, %v191
  %v193 = vand.u32 %v192, 4294901760
  %194 = vmatmul.mubr.f32.gmra.mrb[0].mxu0 %v193
  %v195 = vpop.f32.mrb[0].mxu0
  %v196 = vadd.f32 0.0, %v195
  %v197 = vpop.f32.mrb[0].mxu0
  %v198 = vand.u32 %v24, 4294901760
  %v199 = vsub.f32 %v24, %v198
  %v200 = vand.u32 %v199, 4294901760
  %v201 = vsub.f32 %v199, %v200
  %v202 = vand.u32 %v201, 4294901760
  %203 = vmatprep.mubr.f32.mxu0 %v202
  %v204 = vand.u32 %v23, 4294901760
  %v205 = vsub.f32 %v23, %v204
  %v206 = vand.u32 %v205, 4294901760
  %v207 = vsub.f32 %v205, %v206
  %v208 = vand.u32 %v207, 4294901760
  %209 = vmatmul.mubr.f32.gmra.mrb[0].mxu0 %v208
  %v210 = vpop.f32.mrb[0].mxu0
  %v211 = vadd.f32 0.0, %v210
  %v212 = vpop.f32.mrb[0].mxu0
  %213 = vdwg.mxu0
  %214 = vmatprep.subr.mxu0 0.0
  %v215 = vand.u32 %v25, 4294901760
  %v216 = vsub.f32 %v25, %v215
  %v217 = vand.u32 %v216, 4294901760
  %v218 = vsub.f32 %v216, %v217
  %v219 = vand.u32 %v218, 4294901760
  %220 = vmatpush1.msra.mxu0 %v219
  %221 = vmatprep.subr.mxu0 0.0
  %v222 = vand.u32 %v26, 4294901760
  %v223 = vsub.f32 %v26, %v222
  %v224 = vand.u32 %v223, 4294901760
  %v225 = vsub.f32 %v223, %v224
  %v226 = vand.u32 %v225, 4294901760
  %227 = vmatpush1.msra.mxu0 %v226
  %228 = vmatprep.subr.mxu0 0.0
  %v229 = vand.u32 %v27, 4294901760
  %v230 = vsub.f32 %v27, %v229
  %v231 = vand.u32 %v230, 4294901760
  %v232 = vsub.f32 %v230, %v231
  %v233 = vand.u32 %v232, 4294901760
  %234 = vmatpush1.msra.mxu0 %v233
  %235 = vmatprep.subr.mxu0 0.0
  %v236 = vand.u32 %v28, 4294901760
  %v237 = vsub.f32 %v28, %v236
  %v238 = vand.u32 %v237, 4294901760
  %v239 = vsub.f32 %v237, %v238
  %v240 = vand.u32 %v239, 4294901760
  %241 = vmatpush1.msra.mxu0 %v240
  %242 = vmatprep.subr.mxu0 0.0
  %v243 = vand.u32 %v29, 4294901760
  %v244 = vsub.f32 %v29, %v243
  %v245 = vand.u32 %v244, 4294901760
  %v246 = vsub.f32 %v244, %v245
  %v247 = vand.u32 %v246, 4294901760
  %248 = vmatpush1.msra.mxu0 %v247
  %249 = vmatprep.subr.mxu0 0.0
  %v250 = vand.u32 %v30, 4294901760
  %v251 = vsub.f32 %v30, %v250
  %v252 = vand.u32 %v251, 4294901760
  %v253 = vsub.f32 %v251, %v252
  %v254 = vand.u32 %v253, 4294901760
  %255 = vmatpush1.msra.mxu0 %v254
  %256 = vmatprep.subr.mxu0 0.0
  %v257 = vand.u32 %v31, 4294901760
  %v258 = vsub.f32 %v31, %v257
  %v259 = vand.u32 %v258, 4294901760
  %v260 = vsub.f32 %v258, %v259
  %v261 = vand.u32 %v260, 4294901760
  %262 = vmatpush1.msra.mxu0 %v261
  %263 = vmatprep.subr.mxu0 0.0
  %v264 = vand.u32 %v32, 4294901760
  %v265 = vsub.f32 %v32, %v264
  %v266 = vand.u32 %v265, 4294901760
  %v267 = vsub.f32 %v265, %v266
  %v268 = vand.u32 %v267, 4294901760
  %269 = vmatpush1.msra.mxu0 %v268
  %270 = vmatprep.subr.mxu0 0.0
  %v271 = vand.u32 %v33, 4294901760
  %v272 = vsub.f32 %v33, %v271
  %v273 = vand.u32 %v272, 4294901760
  %v274 = vsub.f32 %v272, %v273
  %v275 = vand.u32 %v274, 4294901760
  %276 = vmatpush1.msra.mxu0 %v275
  %277 = vmatprep.subr.mxu0 0.0
  %v278 = vand.u32 %v34, 4294901760
  %v279 = vsub.f32 %v34, %v278
  %v280 = vand.u32 %v279, 4294901760
  %v281 = vsub.f32 %v279, %v280
  %v282 = vand.u32 %v281, 4294901760
  %283 = vmatpush1.msra.mxu0 %v282
  %284 = vmatprep.subr.mxu0 0.0
  %v285 = vand.u32 %v35, 4294901760
  %v286 = vsub.f32 %v35, %v285
  %v287 = vand.u32 %v286, 4294901760
  %v288 = vsub.f32 %v286, %v287
  %v289 = vand.u32 %v288, 4294901760
  %290 = vmatpush1.msra.mxu0 %v289
  %291 = vmatprep.subr.mxu0 0.0
  %v292 = vand.u32 %v36, 4294901760
  %v293 = vsub.f32 %v36, %v292
  %v294 = vand.u32 %v293, 4294901760
  %v295 = vsub.f32 %v293, %v294
  %v296 = vand.u32 %v295, 4294901760
  %297 = vmatpush1.msra.mxu0 %v296
  %298 = vmatprep.subr.mxu0 0.0
  %v299 = vand.u32 %v37, 4294901760
  %v300 = vsub.f32 %v37, %v299
  %v301 = vand.u32 %v300, 4294901760
  %v302 = vsub.f32 %v300, %v301
  %v303 = vand.u32 %v302, 4294901760
  %304 = vmatpush1.msra.mxu0 %v303
  %305 = vmatprep.subr.mxu0 0.0
  %v306 = vand.u32 %v38, 4294901760
  %v307 = vsub.f32 %v38, %v306
  %v308 = vand.u32 %v307, 4294901760
  %v309 = vsub.f32 %v307, %v308
  %v310 = vand.u32 %v309, 4294901760
  %311 = vmatpush1.msra.mxu0 %v310
  %312 = vmatprep.subr.mxu0 0.0
  %v313 = vand.u32 %v39, 4294901760
  %v314 = vsub.f32 %v39, %v313
  %v315 = vand.u32 %v314, 4294901760
  %v316 = vsub.f32 %v314, %v315
  %v317 = vand.u32 %v316, 4294901760
  %318 = vmatpush1.msra.mxu0 %v317
  %319 = vmatprep.subr.mxu0 0.0
  %v320 = vand.u32 %v40, 4294901760
  %v321 = vsub.f32 %v40, %v320
  %v322 = vand.u32 %v321, 4294901760
  %v323 = vsub.f32 %v321, %v322
  %v324 = vand.u32 %v323, 4294901760
  %325 = vmatpush1.msra.mxu0 %v324
  %326 = vmatprep.subr.mxu0 0.0
  %v327 = vand.u32 %v41, 4294901760
  %v328 = vsub.f32 %v41, %v327
  %v329 = vand.u32 %v328, 4294901760
  %v330 = vsub.f32 %v328, %v329
  %v331 = vand.u32 %v330, 4294901760
  %332 = vmatpush1.msra.mxu0 %v331
  %333 = vmatprep.subr.mxu0 0.0
  %v334 = vand.u32 %v42, 4294901760
  %v335 = vsub.f32 %v42, %v334
  %v336 = vand.u32 %v335, 4294901760
  %v337 = vsub.f32 %v335, %v336
  %v338 = vand.u32 %v337, 4294901760
  %339 = vmatpush1.msra.mxu0 %v338
  %340 = vmatprep.subr.mxu0 0.0
  %v341 = vand.u32 %v43, 4294901760
  %v342 = vsub.f32 %v43, %v341
  %v343 = vand.u32 %v342, 4294901760
  %v344 = vsub.f32 %v342, %v343
  %v345 = vand.u32 %v344, 4294901760
  %346 = vmatpush1.msra.mxu0 %v345
  %347 = vmatprep.subr.mxu0 0.0
  %v348 = vand.u32 %v44, 4294901760
  %v349 = vsub.f32 %v44, %v348
  %v350 = vand.u32 %v349, 4294901760
  %v351 = vsub.f32 %v349, %v350
  %v352 = vand.u32 %v351, 4294901760
  %353 = vmatpush1.msra.mxu0 %v352
  %354 = vmatprep.subr.mxu0 0.0
  %v355 = vand.u32 %v45, 4294901760
  %v356 = vsub.f32 %v45, %v355
  %v357 = vand.u32 %v356, 4294901760
  %v358 = vsub.f32 %v356, %v357
  %v359 = vand.u32 %v358, 4294901760
  %360 = vmatpush1.msra.mxu0 %v359
  %361 = vmatprep.subr.mxu0 0.0
  %v362 = vand.u32 %v46, 4294901760
  %v363 = vsub.f32 %v46, %v362
  %v364 = vand.u32 %v363, 4294901760
  %v365 = vsub.f32 %v363, %v364
  %v366 = vand.u32 %v365, 4294901760
  %367 = vmatpush1.msra.mxu0 %v366
  %368 = vmatprep.subr.mxu0 0.0
  %v369 = vand.u32 %v47, 4294901760
  %v370 = vsub.f32 %v47, %v369
  %v371 = vand.u32 %v370, 4294901760
  %v372 = vsub.f32 %v370, %v371
  %v373 = vand.u32 %v372, 4294901760
  %374 = vmatpush1.msra.mxu0 %v373
  %375 = vmatprep.subr.mxu0 0.0
  %v376 = vand.u32 %v48, 4294901760
  %v377 = vsub.f32 %v48, %v376
  %v378 = vand.u32 %v377, 4294901760
  %v379 = vsub.f32 %v377, %v378
  %v380 = vand.u32 %v379, 4294901760
  %381 = vmatpush1.msra.mxu0 %v380
  %382 = vmatprep.subr.mxu0 0.0
  %v383 = vand.u32 %v49, 4294901760
  %v384 = vsub.f32 %v49, %v383
  %v385 = vand.u32 %v384, 4294901760
  %v386 = vsub.f32 %v384, %v385
  %v387 = vand.u32 %v386, 4294901760
  %388 = vmatpush1.msra.mxu0 %v387
  %389 = vmatprep.subr.mxu0 0.0
  %v390 = vand.u32 %v50, 4294901760
  %v391 = vsub.f32 %v50, %v390
  %v392 = vand.u32 %v391, 4294901760
  %v393 = vsub.f32 %v391, %v392
  %v394 = vand.u32 %v393, 4294901760
  %395 = vmatpush1.msra.mxu0 %v394
  %396 = vmatprep.subr.mxu0 0.0
  %v397 = vand.u32 %v51, 4294901760
  %v398 = vsub.f32 %v51, %v397
  %v399 = vand.u32 %v398, 4294901760
  %v400 = vsub.f32 %v398, %v399
  %v401 = vand.u32 %v400, 4294901760
  %402 = vmatpush1.msra.mxu0 %v401
  %403 = vmatprep.subr.mxu0 0.0
  %v404 = vand.u32 %v52, 4294901760
  %v405 = vsub.f32 %v52, %v404
  %v406 = vand.u32 %v405, 4294901760
  %v407 = vsub.f32 %v405, %v406
  %v408 = vand.u32 %v407, 4294901760
  %409 = vmatpush1.msra.mxu0 %v408
  %410 = vmatprep.subr.mxu0 0.0
  %v411 = vand.u32 %v53, 4294901760
  %v412 = vsub.f32 %v53, %v411
  %v413 = vand.u32 %v412, 4294901760
  %v414 = vsub.f32 %v412, %v413
  %v415 = vand.u32 %v414, 4294901760
  %416 = vmatpush1.msra.mxu0 %v415
  %417 = vmatprep.subr.mxu0 0.0
  %v418 = vand.u32 %v54, 4294901760
  %v419 = vsub.f32 %v54, %v418
  %v420 = vand.u32 %v419, 4294901760
  %v421 = vsub.f32 %v419, %v420
  %v422 = vand.u32 %v421, 4294901760
  %423 = vmatpush1.msra.mxu0 %v422
  %424 = vmatprep.subr.mxu0 0.0
  %v425 = vand.u32 %v55, 4294901760
  %v426 = vsub.f32 %v55, %v425
  %v427 = vand.u32 %v426, 4294901760
  %v428 = vsub.f32 %v426, %v427
  %v429 = vand.u32 %v428, 4294901760
  %430 = vmatpush1.msra.mxu0 %v429
  %431 = vmatprep.subr.mxu0 0.0
  %v432 = vand.u32 %v56, 4294901760
  %v433 = vsub.f32 %v56, %v432
  %v434 = vand.u32 %v433, 4294901760
  %v435 = vsub.f32 %v433, %v434
  %v436 = vand.u32 %v435, 4294901760
  %437 = vmatpush1.msra.mxu0 %v436
  %v438 = vand.u32 %v18, 4294901760
  %439 = vmatprep.mubr.f32.mxu0 %v438
  %v440 = vand.u32 %v17, 4294901760
  %441 = vmatmul.mubr.f32.gmra.mrb[0].mxu0 %v440
  %v442 = vpop.f32.mrb[0].mxu0
  %v443 = vadd.f32 %v166, %v442
  %v444 = vpop.f32.mrb[0].mxu0
  %v445 = vand.u32 %v20, 4294901760
  %446 = vmatprep.mubr.f32.mxu0 %v445
  %v447 = vand.u32 %v19, 4294901760
  %448 = vmatmul.mubr.f32.gmra.mrb[0].mxu0 %v447
  %v449 = vpop.f32.mrb[0].mxu0
  %v450 = vadd.f32 %v181, %v449
  %v451 = vpop.f32.mrb[0].mxu0
  %v452 = vand.u32 %v22, 4294901760
  %453 = vmatprep.mubr.f32.mxu0 %v452
  %v454 = vand.u32 %v21, 4294901760
  %455 = vmatmul.mubr.f32.gmra.mrb[0].mxu0 %v454
  %v456 = vpop.f32.mrb[0].mxu0
  %v457 = vadd.f32 %v196, %v456
  %v458 = vpop.f32.mrb[0].mxu0
  %v459 = vand.u32 %v24, 4294901760
  %460 = vmatprep.mubr.f32.mxu0 %v459
  %v461 = vand.u32 %v23, 4294901760
  %462 = vmatmul.mubr.f32.gmra.mrb[0].mxu0 %v461
  %v463 = vpop.f32.mrb[0].mxu0
  %v464 = vadd.f32 %v211, %v463
  %v465 = vpop.f32.mrb[0].mxu0
  %466 = vdwg.mxu0
  %467 = vmatprep.subr.mxu0 0.0
  %v468 = vand.u32 %v25, 4294901760
  %v469 = vsub.f32 %v25, %v468
  %470 = vmatpush1.msra.mxu0 %v469
  %471 = vmatprep.subr.mxu0 0.0
  %v472 = vand.u32 %v26, 4294901760
  %v473 = vsub.f32 %v26, %v472
  %474 = vmatpush1.msra.mxu0 %v473
  %475 = vmatprep.subr.mxu0 0.0
  %v476 = vand.u32 %v27, 4294901760
  %v477 = vsub.f32 %v27, %v476
  %478 = vmatpush1.msra.mxu0 %v477
  %479 = vmatprep.subr.mxu0 0.0
  %v480 = vand.u32 %v28, 4294901760
  %v481 = vsub.f32 %v28, %v480
  %482 = vmatpush1.msra.mxu0 %v481
  %483 = vmatprep.subr.mxu0 0.0
  %v484 = vand.u32 %v29, 4294901760
  %v485 = vsub.f32 %v29, %v484
  %486 = vmatpush1.msra.mxu0 %v485
  %487 = vmatprep.subr.mxu0 0.0
  %v488 = vand.u32 %v30, 4294901760
  %v489 = vsub.f32 %v30, %v488
  %490 = vmatpush1.msra.mxu0 %v489
  %491 = vmatprep.subr.mxu0 0.0
  %v492 = vand.u32 %v31, 4294901760
  %v493 = vsub.f32 %v31, %v492
  %494 = vmatpush1.msra.mxu0 %v493
  %495 = vmatprep.subr.mxu0 0.0
  %v496 = vand.u32 %v32, 4294901760
  %v497 = vsub.f32 %v32, %v496
  %498 = vmatpush1.msra.mxu0 %v497
  %499 = vmatprep.subr.mxu0 0.0
  %v500 = vand.u32 %v33, 4294901760
  %v501 = vsub.f32 %v33, %v500
  %502 = vmatpush1.msra.mxu0 %v501
  %503 = vmatprep.subr.mxu0 0.0
  %v504 = vand.u32 %v34, 4294901760
  %v505 = vsub.f32 %v34, %v504
  %506 = vmatpush1.msra.mxu0 %v505
  %507 = vmatprep.subr.mxu0 0.0
  %v508 = vand.u32 %v35, 4294901760
  %v509 = vsub.f32 %v35, %v508
  %510 = vmatpush1.msra.mxu0 %v509
  %511 = vmatprep.subr.mxu0 0.0
  %v512 = vand.u32 %v36, 4294901760
  %v513 = vsub.f32 %v36, %v512
  %514 = vmatpush1.msra.mxu0 %v513
  %515 = vmatprep.subr.mxu0 0.0
  %v516 = vand.u32 %v37, 4294901760
  %v517 = vsub.f32 %v37, %v516
  %518 = vmatpush1.msra.mxu0 %v517
  %519 = vmatprep.subr.mxu0 0.0
  %v520 = vand.u32 %v38, 4294901760
  %v521 = vsub.f32 %v38, %v520
  %522 = vmatpush1.msra.mxu0 %v521
  %523 = vmatprep.subr.mxu0 0.0
  %v524 = vand.u32 %v39, 4294901760
  %v525 = vsub.f32 %v39, %v524
  %526 = vmatpush1.msra.mxu0 %v525
  %527 = vmatprep.subr.mxu0 0.0
  %v528 = vand.u32 %v40, 4294901760
  %v529 = vsub.f32 %v40, %v528
  %530 = vmatpush1.msra.mxu0 %v529
  %531 = vmatprep.subr.mxu0 0.0
  %v532 = vand.u32 %v41, 4294901760
  %v533 = vsub.f32 %v41, %v532
  %534 = vmatpush1.msra.mxu0 %v533
  %535 = vmatprep.subr.mxu0 0.0
  %v536 = vand.u32 %v42, 4294901760
  %v537 = vsub.f32 %v42, %v536
  %538 = vmatpush1.msra.mxu0 %v537
  %539 = vmatprep.subr.mxu0 0.0
  %v540 = vand.u32 %v43, 4294901760
  %v541 = vsub.f32 %v43, %v540
  %542 = vmatpush1.msra.mxu0 %v541
  %543 = vmatprep.subr.mxu0 0.0
  %v544 = vand.u32 %v44, 4294901760
  %v545 = vsub.f32 %v44, %v544
  %546 = vmatpush1.msra.mxu0 %v545
  %547 = vmatprep.subr.mxu0 0.0
  %v548 = vand.u32 %v45, 4294901760
  %v549 = vsub.f32 %v45, %v548
  %550 = vmatpush1.msra.mxu0 %v549
  %551 = vmatprep.subr.mxu0 0.0
  %v552 = vand.u32 %v46, 4294901760
  %v553 = vsub.f32 %v46, %v552
  %554 = vmatpush1.msra.mxu0 %v553
  %555 = vmatprep.subr.mxu0 0.0
  %v556 = vand.u32 %v47, 4294901760
  %v557 = vsub.f32 %v47, %v556
  %558 = vmatpush1.msra.mxu0 %v557
  %559 = vmatprep.subr.mxu0 0.0
  %v560 = vand.u32 %v48, 4294901760
  %v561 = vsub.f32 %v48, %v560
  %562 = vmatpush1.msra.mxu0 %v561
  %563 = vmatprep.subr.mxu0 0.0
  %v564 = vand.u32 %v49, 4294901760
  %v565 = vsub.f32 %v49, %v564
  %566 = vmatpush1.msra.mxu0 %v565
  %567 = vmatprep.subr.mxu0 0.0
  %v568 = vand.u32 %v50, 4294901760
  %v569 = vsub.f32 %v50, %v568
  %570 = vmatpush1.msra.mxu0 %v569
  %571 = vmatprep.subr.mxu0 0.0
  %v572 = vand.u32 %v51, 4294901760
  %v573 = vsub.f32 %v51, %v572
  %574 = vmatpush1.msra.mxu0 %v573
  %575 = vmatprep.subr.mxu0 0.0
  %v576 = vand.u32 %v52, 4294901760
  %v577 = vsub.f32 %v52, %v576
  %578 = vmatpush1.msra.mxu0 %v577
  %579 = vmatprep.subr.mxu0 0.0
  %v580 = vand.u32 %v53, 4294901760
  %v581 = vsub.f32 %v53, %v580
  %582 = vmatpush1.msra.mxu0 %v581
  %583 = vmatprep.subr.mxu0 0.0
  %v584 = vand.u32 %v54, 4294901760
  %v585 = vsub.f32 %v54, %v584
  %586 = vmatpush1.msra.mxu0 %v585
  %587 = vmatprep.subr.mxu0 0.0
  %v588 = vand.u32 %v55, 4294901760
  %v589 = vsub.f32 %v55, %v588
  %590 = vmatpush1.msra.mxu0 %v589
  %591 = vmatprep.subr.mxu0 0.0
  %v592 = vand.u32 %v56, 4294901760
  %v593 = vsub.f32 %v56, %v592
  %594 = vmatpush1.msra.mxu0 %v593
  %v595 = vand.u32 %v18, 4294901760
  %v596 = vsub.f32 %v18, %v595
  %597 = vmatprep.mubr.f32.mxu0 %v596
  %v598 = vand.u32 %v17, 4294901760
  %v599 = vsub.f32 %v17, %v598
  %600 = vmatmul.mubr.f32.gmra.mrb[0].mxu0 %v599
  %v601 = vpop.f32.mrb[0].mxu0
  %v602 = vadd.f32 %v443, %v601
  %v603 = vpop.f32.mrb[0].mxu0
  %v604 = vand.u32 %v20, 4294901760
  %v605 = vsub.f32 %v20, %v604
  %606 = vmatprep.mubr.f32.mxu0 %v605
  %v607 = vand.u32 %v19, 4294901760
  %v608 = vsub.f32 %v19, %v607
  %609 = vmatmul.mubr.f32.gmra.mrb[0].mxu0 %v608
  %v610 = vpop.f32.mrb[0].mxu0
  %v611 = vadd.f32 %v450, %v610
  %v612 = vpop.f32.mrb[0].mxu0
  %v613 = vand.u32 %v22, 4294901760
  %v614 = vsub.f32 %v22, %v613
  %615 = vmatprep.mubr.f32.mxu0 %v614
  %v616 = vand.u32 %v21, 4294901760
  %v617 = vsub.f32 %v21, %v616
  %618 = vmatmul.mubr.f32.gmra.mrb[0].mxu0 %v617
  %v619 = vpop.f32.mrb[0].mxu0
  %v620 = vadd.f32 %v457, %v619
  %v621 = vpop.f32.mrb[0].mxu0
  %v622 = vand.u32 %v24, 4294901760
  %v623 = vsub.f32 %v24, %v622
  %624 = vmatprep.mubr.f32.mxu0 %v623
  %v625 = vand.u32 %v23, 4294901760
  %v626 = vsub.f32 %v23, %v625
  %627 = vmatmul.mubr.f32.gmra.mrb[0].mxu0 %v626
  %v628 = vpop.f32.mrb[0].mxu0
  %v629 = vadd.f32 %v464, %v628
  %v630 = vpop.f32.mrb[0].mxu0
  %631 = vdwg.mxu0
  %632 = vmatprep.subr.mxu0 0.0
  %v633 = vand.u32 %v25, 4294901760
  %634 = vmatpush1.msra.mxu0 %v633
  %635 = vmatprep.subr.mxu0 0.0
  %v636 = vand.u32 %v26, 4294901760
  %637 = vmatpush1.msra.mxu0 %v636
  %638 = vmatprep.subr.mxu0 0.0
  %v639 = vand.u32 %v27, 4294901760
  %640 = vmatpush1.msra.mxu0 %v639
  %641 = vmatprep.subr.mxu0 0.0
  %v642 = vand.u32 %v28, 4294901760
  %643 = vmatpush1.msra.mxu0 %v642
  %644 = vmatprep.subr.mxu0 0.0
  %v645 = vand.u32 %v29, 4294901760
  %646 = vmatpush1.msra.mxu0 %v645
  %647 = vmatprep.subr.mxu0 0.0
  %v648 = vand.u32 %v30, 4294901760
  %649 = vmatpush1.msra.mxu0 %v648
  %650 = vmatprep.subr.mxu0 0.0
  %v651 = vand.u32 %v31, 4294901760
  %652 = vmatpush1.msra.mxu0 %v651
  %653 = vmatprep.subr.mxu0 0.0
  %v654 = vand.u32 %v32, 4294901760
  %655 = vmatpush1.msra.mxu0 %v654
  %656 = vmatprep.subr.mxu0 0.0
  %v657 = vand.u32 %v33, 4294901760
  %658 = vmatpush1.msra.mxu0 %v657
  %659 = vmatprep.subr.mxu0 0.0
  %v660 = vand.u32 %v34, 4294901760
  %661 = vmatpush1.msra.mxu0 %v660
  %662 = vmatprep.subr.mxu0 0.0
  %v663 = vand.u32 %v35, 4294901760
  %664 = vmatpush1.msra.mxu0 %v663
  %665 = vmatprep.subr.mxu0 0.0
  %v666 = vand.u32 %v36, 4294901760
  %667 = vmatpush1.msra.mxu0 %v666
  %668 = vmatprep.subr.mxu0 0.0
  %v669 = vand.u32 %v37, 4294901760
  %670 = vmatpush1.msra.mxu0 %v669
  %671 = vmatprep.subr.mxu0 0.0
  %v672 = vand.u32 %v38, 4294901760
  %673 = vmatpush1.msra.mxu0 %v672
  %674 = vmatprep.subr.mxu0 0.0
  %v675 = vand.u32 %v39, 4294901760
  %676 = vmatpush1.msra.mxu0 %v675
  %677 = vmatprep.subr.mxu0 0.0
  %v678 = vand.u32 %v40, 4294901760
  %679 = vmatpush1.msra.mxu0 %v678
  %680 = vmatprep.subr.mxu0 0.0
  %v681 = vand.u32 %v41, 4294901760
  %682 = vmatpush1.msra.mxu0 %v681
  %683 = vmatprep.subr.mxu0 0.0
  %v684 = vand.u32 %v42, 4294901760
  %685 = vmatpush1.msra.mxu0 %v684
  %686 = vmatprep.subr.mxu0 0.0
  %v687 = vand.u32 %v43, 4294901760
  %688 = vmatpush1.msra.mxu0 %v687
  %689 = vmatprep.subr.mxu0 0.0
  %v690 = vand.u32 %v44, 4294901760
  %691 = vmatpush1.msra.mxu0 %v690
  %692 = vmatprep.subr.mxu0 0.0
  %v693 = vand.u32 %v45, 4294901760
  %694 = vmatpush1.msra.mxu0 %v693
  %695 = vmatprep.subr.mxu0 0.0
  %v696 = vand.u32 %v46, 4294901760
  %697 = vmatpush1.msra.mxu0 %v696
  %698 = vmatprep.subr.mxu0 0.0
  %v699 = vand.u32 %v47, 4294901760
  %700 = vmatpush1.msra.mxu0 %v699
  %701 = vmatprep.subr.mxu0 0.0
  %v702 = vand.u32 %v48, 4294901760
  %703 = vmatpush1.msra.mxu0 %v702
  %704 = vmatprep.subr.mxu0 0.0
  %v705 = vand.u32 %v49, 4294901760
  %706 = vmatpush1.msra.mxu0 %v705
  %707 = vmatprep.subr.mxu0 0.0
  %v708 = vand.u32 %v50, 4294901760
  %709 = vmatpush1.msra.mxu0 %v708
  %710 = vmatprep.subr.mxu0 0.0
  %v711 = vand.u32 %v51, 4294901760
  %712 = vmatpush1.msra.mxu0 %v711
  %713 = vmatprep.subr.mxu0 0.0
  %v714 = vand.u32 %v52, 4294901760
  %715 = vmatpush1.msra.mxu0 %v714
  %716 = vmatprep.subr.mxu0 0.0
  %v717 = vand.u32 %v53, 4294901760
  %718 = vmatpush1.msra.mxu0 %v717
  %719 = vmatprep.subr.mxu0 0.0
  %v720 = vand.u32 %v54, 4294901760
  %721 = vmatpush1.msra.mxu0 %v720
  %722 = vmatprep.subr.mxu0 0.0
  %v723 = vand.u32 %v55, 4294901760
  %724 = vmatpush1.msra.mxu0 %v723
  %725 = vmatprep.subr.mxu0 0.0
  %v726 = vand.u32 %v56, 4294901760
  %727 = vmatpush1.msra.mxu0 %v726
  %v728 = vand.u32 %v18, 4294901760
  %v729 = vsub.f32 %v18, %v728
  %v730 = vand.u32 %v729, 4294901760
  %731 = vmatprep.mubr.f32.mxu0 %v730
  %v732 = vand.u32 %v17, 4294901760
  %v733 = vsub.f32 %v17, %v732
  %v734 = vand.u32 %v733, 4294901760
  %735 = vmatmul.mubr.f32.gmra.mrb[0].mxu0 %v734
  %v736 = vpop.f32.mrb[0].mxu0
  %v737 = vadd.f32 %v602, %v736
  %v738 = vpop.f32.mrb[0].mxu0
  %v739 = vand.u32 %v20, 4294901760
  %v740 = vsub.f32 %v20, %v739
  %v741 = vand.u32 %v740, 4294901760
  %742 = vmatprep.mubr.f32.mxu0 %v741
  %v743 = vand.u32 %v19, 4294901760
  %v744 = vsub.f32 %v19, %v743
  %v745 = vand.u32 %v744, 4294901760
  %746 = vmatmul.mubr.f32.gmra.mrb[0].mxu0 %v745
  %v747 = vpop.f32.mrb[0].mxu0
  %v748 = vadd.f32 %v611, %v747
  %v749 = vpop.f32.mrb[0].mxu0
  %v750 = vand.u32 %v22, 4294901760
  %v751 = vsub.f32 %v22, %v750
  %v752 = vand.u32 %v751, 4294901760
  %753 = vmatprep.mubr.f32.mxu0 %v752
  %v754 = vand.u32 %v21, 4294901760
  %v755 = vsub.f32 %v21, %v754
  %v756 = vand.u32 %v755, 4294901760
  %757 = vmatmul.mubr.f32.gmra.mrb[0].mxu0 %v756
  %v758 = vpop.f32.mrb[0].mxu0
  %v759 = vadd.f32 %v620, %v758
  %v760 = vpop.f32.mrb[0].mxu0
  %v761 = vand.u32 %v24, 4294901760
  %v762 = vsub.f32 %v24, %v761
  %v763 = vand.u32 %v762, 4294901760
  %764 = vmatprep.mubr.f32.mxu0 %v763
  %v765 = vand.u32 %v23, 4294901760
  %v766 = vsub.f32 %v23, %v765
  %v767 = vand.u32 %v766, 4294901760
  %768 = vmatmul.mubr.f32.gmra.mrb[0].mxu0 %v767
  %v769 = vpop.f32.mrb[0].mxu0
  %v770 = vadd.f32 %v629, %v769
  %v771 = vpop.f32.mrb[0].mxu0
  %772 = vdwg.mxu0
  %773 = vmatprep.subr.mxu0 0.0
  %v774 = vand.u32 %v25, 4294901760
  %v775 = vsub.f32 %v25, %v774
  %v776 = vand.u32 %v775, 4294901760
  %777 = vmatpush1.msra.mxu0 %v776
  %778 = vmatprep.subr.mxu0 0.0
  %v779 = vand.u32 %v26, 4294901760
  %v780 = vsub.f32 %v26, %v779
  %v781 = vand.u32 %v780, 4294901760
  %782 = vmatpush1.msra.mxu0 %v781
  %783 = vmatprep.subr.mxu0 0.0
  %v784 = vand.u32 %v27, 4294901760
  %v785 = vsub.f32 %v27, %v784
  %v786 = vand.u32 %v785, 4294901760
  %787 = vmatpush1.msra.mxu0 %v786
  %788 = vmatprep.subr.mxu0 0.0
  %v789 = vand.u32 %v28, 4294901760
  %v790 = vsub.f32 %v28, %v789
  %v791 = vand.u32 %v790, 4294901760
  %792 = vmatpush1.msra.mxu0 %v791
  %793 = vmatprep.subr.mxu0 0.0
  %v794 = vand.u32 %v29, 4294901760
  %v795 = vsub.f32 %v29, %v794
  %v796 = vand.u32 %v795, 4294901760
  %797 = vmatpush1.msra.mxu0 %v796
  %798 = vmatprep.subr.mxu0 0.0
  %v799 = vand.u32 %v30, 4294901760
  %v800 = vsub.f32 %v30, %v799
  %v801 = vand.u32 %v800, 4294901760
  %802 = vmatpush1.msra.mxu0 %v801
  %803 = vmatprep.subr.mxu0 0.0
  %v804 = vand.u32 %v31, 4294901760
  %v805 = vsub.f32 %v31, %v804
  %v806 = vand.u32 %v805, 4294901760
  %807 = vmatpush1.msra.mxu0 %v806
  %808 = vmatprep.subr.mxu0 0.0
  %v809 = vand.u32 %v32, 4294901760
  %v810 = vsub.f32 %v32, %v809
  %v811 = vand.u32 %v810, 4294901760
  %812 = vmatpush1.msra.mxu0 %v811
  %813 = vmatprep.subr.mxu0 0.0
  %v814 = vand.u32 %v33, 4294901760
  %v815 = vsub.f32 %v33, %v814
  %v816 = vand.u32 %v815, 4294901760
  %817 = vmatpush1.msra.mxu0 %v816
  %818 = vmatprep.subr.mxu0 0.0
  %v819 = vand.u32 %v34, 4294901760
  %v820 = vsub.f32 %v34, %v819
  %v821 = vand.u32 %v820, 4294901760
  %822 = vmatpush1.msra.mxu0 %v821
  %823 = vmatprep.subr.mxu0 0.0
  %v824 = vand.u32 %v35, 4294901760
  %v825 = vsub.f32 %v35, %v824
  %v826 = vand.u32 %v825, 4294901760
  %827 = vmatpush1.msra.mxu0 %v826
  %828 = vmatprep.subr.mxu0 0.0
  %v829 = vand.u32 %v36, 4294901760
  %v830 = vsub.f32 %v36, %v829
  %v831 = vand.u32 %v830, 4294901760
  %832 = vmatpush1.msra.mxu0 %v831
  %833 = vmatprep.subr.mxu0 0.0
  %v834 = vand.u32 %v37, 4294901760
  %v835 = vsub.f32 %v37, %v834
  %v836 = vand.u32 %v835, 4294901760
  %837 = vmatpush1.msra.mxu0 %v836
  %838 = vmatprep.subr.mxu0 0.0
  %v839 = vand.u32 %v38, 4294901760
  %v840 = vsub.f32 %v38, %v839
  %v841 = vand.u32 %v840, 4294901760
  %842 = vmatpush1.msra.mxu0 %v841
  %843 = vmatprep.subr.mxu0 0.0
  %v844 = vand.u32 %v39, 4294901760
  %v845 = vsub.f32 %v39, %v844
  %v846 = vand.u32 %v845, 4294901760
  %847 = vmatpush1.msra.mxu0 %v846
  %848 = vmatprep.subr.mxu0 0.0
  %v849 = vand.u32 %v40, 4294901760
  %v850 = vsub.f32 %v40, %v849
  %v851 = vand.u32 %v850, 4294901760
  %852 = vmatpush1.msra.mxu0 %v851
  %853 = vmatprep.subr.mxu0 0.0
  %v854 = vand.u32 %v41, 4294901760
  %v855 = vsub.f32 %v41, %v854
  %v856 = vand.u32 %v855, 4294901760
  %857 = vmatpush1.msra.mxu0 %v856
  %858 = vmatprep.subr.mxu0 0.0
  %v859 = vand.u32 %v42, 4294901760
  %v860 = vsub.f32 %v42, %v859
  %v861 = vand.u32 %v860, 4294901760
  %862 = vmatpush1.msra.mxu0 %v861
  %863 = vmatprep.subr.mxu0 0.0
  %v864 = vand.u32 %v43, 4294901760
  %v865 = vsub.f32 %v43, %v864
  %v866 = vand.u32 %v865, 4294901760
  %867 = vmatpush1.msra.mxu0 %v866
  %868 = vmatprep.subr.mxu0 0.0
  %v869 = vand.u32 %v44, 4294901760
  %v870 = vsub.f32 %v44, %v869
  %v871 = vand.u32 %v870, 4294901760
  %872 = vmatpush1.msra.mxu0 %v871
  %873 = vmatprep.subr.mxu0 0.0
  %v874 = vand.u32 %v45, 4294901760
  %v875 = vsub.f32 %v45, %v874
  %v876 = vand.u32 %v875, 4294901760
  %877 = vmatpush1.msra.mxu0 %v876
  %878 = vmatprep.subr.mxu0 0.0
  %v879 = vand.u32 %v46, 4294901760
  %v880 = vsub.f32 %v46, %v879
  %v881 = vand.u32 %v880, 4294901760
  %882 = vmatpush1.msra.mxu0 %v881
  %883 = vmatprep.subr.mxu0 0.0
  %v884 = vand.u32 %v47, 4294901760
  %v885 = vsub.f32 %v47, %v884
  %v886 = vand.u32 %v885, 4294901760
  %887 = vmatpush1.msra.mxu0 %v886
  %888 = vmatprep.subr.mxu0 0.0
  %v889 = vand.u32 %v48, 4294901760
  %v890 = vsub.f32 %v48, %v889
  %v891 = vand.u32 %v890, 4294901760
  %892 = vmatpush1.msra.mxu0 %v891
  %893 = vmatprep.subr.mxu0 0.0
  %v894 = vand.u32 %v49, 4294901760
  %v895 = vsub.f32 %v49, %v894
  %v896 = vand.u32 %v895, 4294901760
  %897 = vmatpush1.msra.mxu0 %v896
  %898 = vmatprep.subr.mxu0 0.0
  %v899 = vand.u32 %v50, 4294901760
  %v900 = vsub.f32 %v50, %v899
  %v901 = vand.u32 %v900, 4294901760
  %902 = vmatpush1.msra.mxu0 %v901
  %903 = vmatprep.subr.mxu0 0.0
  %v904 = vand.u32 %v51, 4294901760
  %v905 = vsub.f32 %v51, %v904
  %v906 = vand.u32 %v905, 4294901760
  %907 = vmatpush1.msra.mxu0 %v906
  %908 = vmatprep.subr.mxu0 0.0
  %v909 = vand.u32 %v52, 4294901760
  %v910 = vsub.f32 %v52, %v909
  %v911 = vand.u32 %v910, 4294901760
  %912 = vmatpush1.msra.mxu0 %v911
  %913 = vmatprep.subr.mxu0 0.0
  %v914 = vand.u32 %v53, 4294901760
  %v915 = vsub.f32 %v53, %v914
  %v916 = vand.u32 %v915, 4294901760
  %917 = vmatpush1.msra.mxu0 %v916
  %918 = vmatprep.subr.mxu0 0.0
  %v919 = vand.u32 %v54, 4294901760
  %v920 = vsub.f32 %v54, %v919
  %v921 = vand.u32 %v920, 4294901760
  %922 = vmatpush1.msra.mxu0 %v921
  %923 = vmatprep.subr.mxu0 0.0
  %v924 = vand.u32 %v55, 4294901760
  %v925 = vsub.f32 %v55, %v924
  %v926 = vand.u32 %v925, 4294901760
  %927 = vmatpush1.msra.mxu0 %v926
  %928 = vmatprep.subr.mxu0 0.0
  %v929 = vand.u32 %v56, 4294901760
  %v930 = vsub.f32 %v56, %v929
  %v931 = vand.u32 %v930, 4294901760
  %932 = vmatpush1.msra.mxu0 %v931
  %v933 = vand.u32 %v18, 4294901760
  %934 = vmatprep.mubr.f32.mxu0 %v933
  %v935 = vand.u32 %v17, 4294901760
  %936 = vmatmul.mubr.f32.gmra.mrb[0].mxu0 %v935
  %v937 = vpop.f32.mrb[0].mxu0
  %v938 = vadd.f32 %v737, %v937
  %v939 = vpop.f32.mrb[0].mxu0
  %v940 = vand.u32 %v20, 4294901760
  %941 = vmatprep.mubr.f32.mxu0 %v940
  %v942 = vand.u32 %v19, 4294901760
  %943 = vmatmul.mubr.f32.gmra.mrb[0].mxu0 %v942
  %v944 = vpop.f32.mrb[0].mxu0
  %v945 = vadd.f32 %v748, %v944
  %v946 = vpop.f32.mrb[0].mxu0
  %v947 = vand.u32 %v22, 4294901760
  %948 = vmatprep.mubr.f32.mxu0 %v947
  %v949 = vand.u32 %v21, 4294901760
  %950 = vmatmul.mubr.f32.gmra.mrb[0].mxu0 %v949
  %v951 = vpop.f32.mrb[0].mxu0
  %v952 = vadd.f32 %v759, %v951
  %v953 = vpop.f32.mrb[0].mxu0
  %v954 = vand.u32 %v24, 4294901760
  %955 = vmatprep.mubr.f32.mxu0 %v954
  %v956 = vand.u32 %v23, 4294901760
  %957 = vmatmul.mubr.f32.gmra.mrb[0].mxu0 %v956
  %v958 = vpop.f32.mrb[0].mxu0
  %v959 = vadd.f32 %v770, %v958
  %v960 = vpop.f32.mrb[0].mxu0
  %961 = vdwg.mxu0
  %962 = vmatprep.subr.mxu0 0.0
  %v963 = vand.u32 %v25, 4294901760
  %964 = vmatpush1.msra.mxu0 %v963
  %965 = vmatprep.subr.mxu0 0.0
  %v966 = vand.u32 %v26, 4294901760
  %967 = vmatpush1.msra.mxu0 %v966
  %968 = vmatprep.subr.mxu0 0.0
  %v969 = vand.u32 %v27, 4294901760
  %970 = vmatpush1.msra.mxu0 %v969
  %971 = vmatprep.subr.mxu0 0.0
  %v972 = vand.u32 %v28, 4294901760
  %973 = vmatpush1.msra.mxu0 %v972
  %974 = vmatprep.subr.mxu0 0.0
  %v975 = vand.u32 %v29, 4294901760
  %976 = vmatpush1.msra.mxu0 %v975
  %977 = vmatprep.subr.mxu0 0.0
  %v978 = vand.u32 %v30, 4294901760
  %979 = vmatpush1.msra.mxu0 %v978
  %980 = vmatprep.subr.mxu0 0.0
  %v981 = vand.u32 %v31, 4294901760
  %982 = vmatpush1.msra.mxu0 %v981
  %983 = vmatprep.subr.mxu0 0.0
  %v984 = vand.u32 %v32, 4294901760
  %985 = vmatpush1.msra.mxu0 %v984
  %986 = vmatprep.subr.mxu0 0.0
  %v987 = vand.u32 %v33, 4294901760
  %988 = vmatpush1.msra.mxu0 %v987
  %989 = vmatprep.subr.mxu0 0.0
  %v990 = vand.u32 %v34, 4294901760
  %991 = vmatpush1.msra.mxu0 %v990
  %992 = vmatprep.subr.mxu0 0.0
  %v993 = vand.u32 %v35, 4294901760
  %994 = vmatpush1.msra.mxu0 %v993
  %995 = vmatprep.subr.mxu0 0.0
  %v996 = vand.u32 %v36, 4294901760
  %997 = vmatpush1.msra.mxu0 %v996
  %998 = vmatprep.subr.mxu0 0.0
  %v999 = vand.u32 %v37, 4294901760
  %1000 = vmatpush1.msra.mxu0 %v999
  %1001 = vmatprep.subr.mxu0 0.0
  %v1002 = vand.u32 %v38, 4294901760
  %1003 = vmatpush1.msra.mxu0 %v1002
  %1004 = vmatprep.subr.mxu0 0.0
  %v1005 = vand.u32 %v39, 4294901760
  %1006 = vmatpush1.msra.mxu0 %v1005
  %1007 = vmatprep.subr.mxu0 0.0
  %v1008 = vand.u32 %v40, 4294901760
  %1009 = vmatpush1.msra.mxu0 %v1008
  %1010 = vmatprep.subr.mxu0 0.0
  %v1011 = vand.u32 %v41, 4294901760
  %1012 = vmatpush1.msra.mxu0 %v1011
  %1013 = vmatprep.subr.mxu0 0.0
  %v1014 = vand.u32 %v42, 4294901760
  %1015 = vmatpush1.msra.mxu0 %v1014
  %1016 = vmatprep.subr.mxu0 0.0
  %v1017 = vand.u32 %v43, 4294901760
  %1018 = vmatpush1.msra.mxu0 %v1017
  %1019 = vmatprep.subr.mxu0 0.0
  %v1020 = vand.u32 %v44, 4294901760
  %1021 = vmatpush1.msra.mxu0 %v1020
  %1022 = vmatprep.subr.mxu0 0.0
  %v1023 = vand.u32 %v45, 4294901760
  %1024 = vmatpush1.msra.mxu0 %v1023
  %1025 = vmatprep.subr.mxu0 0.0
  %v1026 = vand.u32 %v46, 4294901760
  %1027 = vmatpush1.msra.mxu0 %v1026
  %1028 = vmatprep.subr.mxu0 0.0
  %v1029 = vand.u32 %v47, 4294901760
  %1030 = vmatpush1.msra.mxu0 %v1029
  %1031 = vmatprep.subr.mxu0 0.0
  %v1032 = vand.u32 %v48, 4294901760
  %1033 = vmatpush1.msra.mxu0 %v1032
  %1034 = vmatprep.subr.mxu0 0.0
  %v1035 = vand.u32 %v49, 4294901760
  %1036 = vmatpush1.msra.mxu0 %v1035
  %1037 = vmatprep.subr.mxu0 0.0
  %v1038 = vand.u32 %v50, 4294901760
  %1039 = vmatpush1.msra.mxu0 %v1038
  %1040 = vmatprep.subr.mxu0 0.0
  %v1041 = vand.u32 %v51, 4294901760
  %1042 = vmatpush1.msra.mxu0 %v1041
  %1043 = vmatprep.subr.mxu0 0.0
  %v1044 = vand.u32 %v52, 4294901760
  %1045 = vmatpush1.msra.mxu0 %v1044
  %1046 = vmatprep.subr.mxu0 0.0
  %v1047 = vand.u32 %v53, 4294901760
  %1048 = vmatpush1.msra.mxu0 %v1047
  %1049 = vmatprep.subr.mxu0 0.0
  %v1050 = vand.u32 %v54, 4294901760
  %1051 = vmatpush1.msra.mxu0 %v1050
  %1052 = vmatprep.subr.mxu0 0.0
  %v1053 = vand.u32 %v55, 4294901760
  %1054 = vmatpush1.msra.mxu0 %v1053
  %1055 = vmatprep.subr.mxu0 0.0
  %v1056 = vand.u32 %v56, 4294901760
  %1057 = vmatpush1.msra.mxu0 %v1056
  %v1058 = vand.u32 %v18, 4294901760
  %1059 = vmatprep.mubr.f32.mxu0 %v1058
  %v1060 = vand.u32 %v17, 4294901760
  %1061 = vmatmul.mubr.f32.gmra.mrb[0].mxu0 %v1060
  %v1062 = vpop.f32.mrb[0].mxu0
  %v1063 = vadd.f32 %v938, %v1062
  %v1064 = vpop.f32.mrb[0].mxu0
  %v1065 = vand.u32 %v20, 4294901760
  %1066 = vmatprep.mubr.f32.mxu0 %v1065
  %v1067 = vand.u32 %v19, 4294901760
  %1068 = vmatmul.mubr.f32.gmra.mrb[0].mxu0 %v1067
  %v1069 = vpop.f32.mrb[0].mxu0
  %v1070 = vadd.f32 %v945, %v1069
  %v1071 = vpop.f32.mrb[0].mxu0
  %v1072 = vand.u32 %v22, 4294901760
  %1073 = vmatprep.mubr.f32.mxu0 %v1072
  %v1074 = vand.u32 %v21, 4294901760
  %1075 = vmatmul.mubr.f32.gmra.mrb[0].mxu0 %v1074
  %v1076 = vpop.f32.mrb[0].mxu0
  %v1077 = vadd.f32 %v952, %v1076
  %v1078 = vpop.f32.mrb[0].mxu0
  %v1079 = vand.u32 %v24, 4294901760
  %1080 = vmatprep.mubr.f32.mxu0 %v1079
  %v1081 = vand.u32 %v23, 4294901760
  %1082 = vmatmul.mubr.f32.gmra.mrb[0].mxu0 %v1081
  %v1083 = vpop.f32.mrb[0].mxu0
  %v1084 = vadd.f32 %v959, %v1083
  %v1085 = vpop.f32.mrb[0].mxu0
  %1086 = vdwg.mxu0
  %v1087 = vld [vmem:[%s2] sm:$0x1]
  %v1089 = vlaneseq
  %v1090 = vshrl.u32 %v1089, 7
  %v1091 = vsub.s32 0, %v1090
  %v1092 = vrot.slane %v1087, %v1091
  %v1094 = vmul.f32 %v1063, %v1092
  %v1095 = vmul.f32 %v1070, %v1092
  %v1096 = vmul.f32 %v1077, %v1092
  %v1097 = vmul.f32 %v1084, %v1092
  %v1098 = vld [vmem:[%s3] sm:$0x1]
  %v1100 = vlaneseq
  %v1101 = vshrl.u32 %v1100, 7
  %v1102 = vsub.s32 0, %v1101
  %v1103 = vrot.slane %v1098, %v1102
  %v1105 = vadd.f32 %v1094, %v1103
  %v1106 = vadd.f32 %v1095, %v1103
  %v1107 = vadd.f32 %v1096, %v1103
  %v1108 = vadd.f32 %v1097, %v1103
  %vm1109 = vcmp.ge.f32.partialorder %v1105, 0.0
  %vm1110 = vcmp.ge.f32.partialorder %v1106, 0.0
  %vm1111 = vcmp.ge.f32.partialorder %v1107, 0.0
  %vm1112 = vcmp.ge.f32.partialorder %v1108, 0.0
  %v1113 = vmul.f32 %v1105, 0.2
  %v1114 = vmul.f32 %v1106, 0.2
  %v1115 = vmul.f32 %v1107, 0.2
  %v1116 = vmul.f32 %v1108, 0.2
  %v1117 = vsel %vm1109, %v1105, %v1113
  %v1118 = vsel %vm1110, %v1106, %v1114
  %v1119 = vsel %vm1111, %v1107, %v1115
  %v1120 = vsel %vm1112, %v1108, %v1116
  %1121 = vst [vmem:[%s4] sm:$0xff] %v1117
  %1122 = vst [vmem:[%s4 + $0x8] sm:$0xff] %v1118
  %1123 = vst [vmem:[%s4 + $0x10] sm:$0xff] %v1119
  %1124 = vst [vmem:[%s4 + $0x18] sm:$0xff] %v1120
  // Predicated region
  $region18: #{_lambda_.7} parent=0 // pred_check
    _
  $region19: #{_lambda_.7} parent=0 // pred_check_branch
    %1126 = sbr.rel (0) target = $region21
  $region20: #{_lambda_.7} parent=0 // pred_region
    _
  $region21: #{_lambda_.7} parent=0 // pred_fallthru
    _
  // Predicated region
  $region22: #{_lambda_.7} parent=0 // pred_check
    _
  $region23: #{_lambda_.7} parent=0 // pred_check_branch
    %1128 = sbr.rel (0) target = $region25
  $region24: #{_lambda_.7} parent=0 // pred_region
    _
  $region25: #{_lambda_.7} parent=0 // pred_fallthru
    _

// kernel: _lambda_.8
$region0: #{_lambda_.8}
  #allocation0 [shape = 'u32[]', space=smem, size = 0x4, offset = 0x4, fixed_abs, tag = 'smem constant byte address 0x4 - core index']
  #allocation1 [shape = 'u32[144,128]{1,0:T(1,128)}', space=vmem, size = 0x12000, scoped, tag = 'internal scratch']
  %s0 = inlined_call_operand.vmem [shape: f32[24,512], index: 0, kind: input, shape index: {}]
  %s1 = inlined_call_operand.vmem [shape: f32[512,128], index: 1, kind: input, shape index: {}]
  %s2 = inlined_call_operand.vmem [shape: f32[1,128], index: 2, kind: input, shape index: {}]
  %s3 = inlined_call_operand.vmem [shape: f32[1,128], index: 3, kind: input, shape index: {}]
  %s4 = inlined_call_operand.vmem [shape: f32[24,128], index: 4, kind: output, shape index: {}]
  %s5 = sld [smem:[#allocation0]]
  $region26: #{_lambda_.8} parent=0
    _
  %s7 = ssub.s32 1, %s5
  %s8 = scalar_select 0, %s7, %s5
  // Predicated region
  $region2: #{_lambda_.8} parent=0 // pred_check
    _
  $region3: #{_lambda_.8} parent=0 // pred_check_branch
    %10 = sbr.rel (0) target = $region5
  $region4: #{_lambda_.8} parent=0 // pred_region
    _
  $region5: #{_lambda_.8} parent=0 // pred_fallthru
    _
  // Predicated region
  $region6: #{_lambda_.8} parent=0 // pred_check
    _
  $region7: #{_lambda_.8} parent=0 // pred_check_branch
    %12 = sbr.rel (0) target = $region9
  $region8: #{_lambda_.8} parent=0 // pred_region
    _
  $region9: #{_lambda_.8} parent=0 // pred_fallthru
    _
  // Predicated region
  $region10: #{_lambda_.8} parent=0 // pred_check
    _
  $region11: #{_lambda_.8} parent=0 // pred_check_branch
    %14 = sbr.rel (0) target = $region13
  $region12: #{_lambda_.8} parent=0 // pred_region
    _
  $region13: #{_lambda_.8} parent=0 // pred_fallthru
    _
  // Predicated region
  $region14: #{_lambda_.8} parent=0 // pred_check
    _
  $region15: #{_lambda_.8} parent=0 // pred_check_branch
    %16 = sbr.rel (0) target = $region17
  $region16: #{_lambda_.8} parent=0 // pred_region
    _
  $region17: #{_lambda_.8} parent=0 // pred_fallthru
    _
  %v17 = vld [vmem:[%s0] sm:$0xff]
  %v18 = vld [vmem:[%s0 + $0x8] sm:$0xff]
  %v19 = vld [vmem:[%s0 + $0x10] sm:$0xff]
  %v20 = vld [vmem:[%s0 + $0x18] sm:$0xff]
  %v21 = vld [vmem:[%s0 + $0x20] sm:$0xff]
  %v22 = vld [vmem:[%s0 + $0x28] sm:$0xff]
  %v23 = vld [vmem:[%s0 + $0x30] sm:$0xff]
  %v24 = vld [vmem:[%s0 + $0x38] sm:$0xff]
  %v25 = vld [vmem:[%s0 + $0x40] sm:$0xff]
  %v26 = vld [vmem:[%s0 + $0x48] sm:$0xff]
  %v27 = vld [vmem:[%s0 + $0x50] sm:$0xff]
  %v28 = vld [vmem:[%s0 + $0x58] sm:$0xff]
  %v29 = vld [vmem:[%s1] sm:$0xff]
  %v30 = vld [vmem:[%s1 + $0x8] sm:$0xff]
  %v31 = vld [vmem:[%s1 + $0x10] sm:$0xff]
  %v32 = vld [vmem:[%s1 + $0x18] sm:$0xff]
  %v33 = vld [vmem:[%s1 + $0x20] sm:$0xff]
  %v34 = vld [vmem:[%s1 + $0x28] sm:$0xff]
  %v35 = vld [vmem:[%s1 + $0x30] sm:$0xff]
  %v36 = vld [vmem:[%s1 + $0x38] sm:$0xff]
  %v37 = vld [vmem:[%s1 + $0x40] sm:$0xff]
  %v38 = vld [vmem:[%s1 + $0x48] sm:$0xff]
  %v39 = vld [vmem:[%s1 + $0x50] sm:$0xff]
  %v40 = vld [vmem:[%s1 + $0x58] sm:$0xff]
  %v41 = vld [vmem:[%s1 + $0x60] sm:$0xff]
  %v42 = vld [vmem:[%s1 + $0x68] sm:$0xff]
  %v43 = vld [vmem:[%s1 + $0x70] sm:$0xff]
  %v44 = vld [vmem:[%s1 + $0x78] sm:$0xff]
  %v45 = vld [vmem:[%s1 + $0x80] sm:$0xff]
  %v46 = vld [vmem:[%s1 + $0x88] sm:$0xff]
  %v47 = vld [vmem:[%s1 + $0x90] sm:$0xff]
  %v48 = vld [vmem:[%s1 + $0x98] sm:$0xff]
  %v49 = vld [vmem:[%s1 + $0xa0] sm:$0xff]
  %v50 = vld [vmem:[%s1 + $0xa8] sm:$0xff]
  %v51 = vld [vmem:[%s1 + $0xb0] sm:$0xff]
  %v52 = vld [vmem:[%s1 + $0xb8] sm:$0xff]
  %v53 = vld [vmem:[%s1 + $0xc0] sm:$0xff]
  %v54 = vld [vmem:[%s1 + $0xc8] sm:$0xff]
  %v55 = vld [vmem:[%s1 + $0xd0] sm:$0xff]
  %v56 = vld [vmem:[%s1 + $0xd8] sm:$0xff]
  %v57 = vld [vmem:[%s1 + $0xe0] sm:$0xff]
  %v58 = vld [vmem:[%s1 + $0xe8] sm:$0xff]
  %v59 = vld [vmem:[%s1 + $0xf0] sm:$0xff]
  %v60 = vld [vmem:[%s1 + $0xf8] sm:$0xff]
  %v61 = vld [vmem:[%s1 + $0x100] sm:$0xff]
  %v62 = vld [vmem:[%s1 + $0x108] sm:$0xff]
  %v63 = vld [vmem:[%s1 + $0x110] sm:$0xff]
  %v64 = vld [vmem:[%s1 + $0x118] sm:$0xff]
  %v65 = vld [vmem:[%s1 + $0x120] sm:$0xff]
  %v66 = vld [vmem:[%s1 + $0x128] sm:$0xff]
  %v67 = vld [vmem:[%s1 + $0x130] sm:$0xff]
  %v68 = vld [vmem:[%s1 + $0x138] sm:$0xff]
  %v69 = vld [vmem:[%s1 + $0x140] sm:$0xff]
  %v70 = vld [vmem:[%s1 + $0x148] sm:$0xff]
  %v71 = vld [vmem:[%s1 + $0x150] sm:$0xff]
  %v72 = vld [vmem:[%s1 + $0x158] sm:$0xff]
  %v73 = vld [vmem:[%s1 + $0x160] sm:$0xff]
  %v74 = vld [vmem:[%s1 + $0x168] sm:$0xff]
  %v75 = vld [vmem:[%s1 + $0x170] sm:$0xff]
  %v76 = vld [vmem:[%s1 + $0x178] sm:$0xff]
  %v77 = vld [vmem:[%s1 + $0x180] sm:$0xff]
  %v78 = vld [vmem:[%s1 + $0x188] sm:$0xff]
  %v79 = vld [vmem:[%s1 + $0x190] sm:$0xff]
  %v80 = vld [vmem:[%s1 + $0x198] sm:$0xff]
  %v81 = vld [vmem:[%s1 + $0x1a0] sm:$0xff]
  %v82 = vld [vmem:[%s1 + $0x1a8] sm:$0xff]
  %v83 = vld [vmem:[%s1 + $0x1b0] sm:$0xff]
  %v84 = vld [vmem:[%s1 + $0x1b8] sm:$0xff]
  %v85 = vld [vmem:[%s1 + $0x1c0] sm:$0xff]
  %v86 = vld [vmem:[%s1 + $0x1c8] sm:$0xff]
  %v87 = vld [vmem:[%s1 + $0x1d0] sm:$0xff]
  %v88 = vld [vmem:[%s1 + $0x1d8] sm:$0xff]
  %v89 = vld [vmem:[%s1 + $0x1e0] sm:$0xff]
  %v90 = vld [vmem:[%s1 + $0x1e8] sm:$0xff]
  %v91 = vld [vmem:[%s1 + $0x1f0] sm:$0xff]
  %v92 = vld [vmem:[%s1 + $0x1f8] sm:$0xff]
  %93 = vmatprep.subr.mxu0 0.0
  %v94 = vand.u32 %v29, 4294901760
  %95 = vmatpush1.msra.mxu0 %v94
  %96 = vmatprep.subr.mxu0 0.0
  %v97 = vand.u32 %v30, 4294901760
  %98 = vmatpush1.msra.mxu0 %v97
  %99 = vmatprep.subr.mxu0 0.0
  %v100 = vand.u32 %v31, 4294901760
  %101 = vmatpush1.msra.mxu0 %v100
  %102 = vmatprep.subr.mxu0 0.0
  %v103 = vand.u32 %v32, 4294901760
  %104 = vmatpush1.msra.mxu0 %v103
  %105 = vmatprep.subr.mxu0 0.0
  %v106 = vand.u32 %v33, 4294901760
  %107 = vmatpush1.msra.mxu0 %v106
  %108 = vmatprep.subr.mxu0 0.0
  %v109 = vand.u32 %v34, 4294901760
  %110 = vmatpush1.msra.mxu0 %v109
  %111 = vmatprep.subr.mxu0 0.0
  %v112 = vand.u32 %v35, 4294901760
  %113 = vmatpush1.msra.mxu0 %v112
  %114 = vmatprep.subr.mxu0 0.0
  %v115 = vand.u32 %v36, 4294901760
  %116 = vmatpush1.msra.mxu0 %v115
  %117 = vmatprep.subr.mxu0 0.0
  %v118 = vand.u32 %v37, 4294901760
  %119 = vmatpush1.msra.mxu0 %v118
  %120 = vmatprep.subr.mxu0 0.0
  %v121 = vand.u32 %v38, 4294901760
  %122 = vmatpush1.msra.mxu0 %v121
  %123 = vmatprep.subr.mxu0 0.0
  %v124 = vand.u32 %v39, 4294901760
  %125 = vmatpush1.msra.mxu0 %v124
  %126 = vmatprep.subr.mxu0 0.0
  %v127 = vand.u32 %v40, 4294901760
  %128 = vmatpush1.msra.mxu0 %v127
  %129 = vmatprep.subr.mxu0 0.0
  %v130 = vand.u32 %v41, 4294901760
  %131 = vmatpush1.msra.mxu0 %v130
  %132 = vmatprep.subr.mxu0 0.0
  %v133 = vand.u32 %v42, 4294901760
  %134 = vmatpush1.msra.mxu0 %v133
  %135 = vmatprep.subr.mxu0 0.0
  %v136 = vand.u32 %v43, 4294901760
  %137 = vmatpush1.msra.mxu0 %v136
  %138 = vmatprep.subr.mxu0 0.0
  %v139 = vand.u32 %v44, 4294901760
  %140 = vmatpush1.msra.mxu0 %v139
  %141 = vmatprep.subr.mxu0 0.0
  %v142 = vand.u32 %v45, 4294901760
  %143 = vmatpush1.msra.mxu0 %v142
  %144 = vmatprep.subr.mxu0 0.0
  %v145 = vand.u32 %v46, 4294901760
  %146 = vmatpush1.msra.mxu0 %v145
  %147 = vmatprep.subr.mxu0 0.0
  %v148 = vand.u32 %v47, 4294901760
  %149 = vmatpush1.msra.mxu0 %v148
  %150 = vmatprep.subr.mxu0 0.0
  %v151 = vand.u32 %v48, 4294901760
  %152 = vmatpush1.msra.mxu0 %v151
  %153 = vmatprep.subr.mxu0 0.0
  %v154 = vand.u32 %v49, 4294901760
  %155 = vmatpush1.msra.mxu0 %v154
  %156 = vmatprep.subr.mxu0 0.0
  %v157 = vand.u32 %v50, 4294901760
  %158 = vmatpush1.msra.mxu0 %v157
  %159 = vmatprep.subr.mxu0 0.0
  %v160 = vand.u32 %v51, 4294901760
  %161 = vmatpush1.msra.mxu0 %v160
  %162 = vmatprep.subr.mxu0 0.0
  %v163 = vand.u32 %v52, 4294901760
  %164 = vmatpush1.msra.mxu0 %v163
  %165 = vmatprep.subr.mxu0 0.0
  %v166 = vand.u32 %v53, 4294901760
  %167 = vmatpush1.msra.mxu0 %v166
  %168 = vmatprep.subr.mxu0 0.0
  %v169 = vand.u32 %v54, 4294901760
  %170 = vmatpush1.msra.mxu0 %v169
  %171 = vmatprep.subr.mxu0 0.0
  %v172 = vand.u32 %v55, 4294901760
  %173 = vmatpush1.msra.mxu0 %v172
  %174 = vmatprep.subr.mxu0 0.0
  %v175 = vand.u32 %v56, 4294901760
  %176 = vmatpush1.msra.mxu0 %v175
  %177 = vmatprep.subr.mxu0 0.0
  %v178 = vand.u32 %v57, 4294901760
  %179 = vmatpush1.msra.mxu0 %v178
  %180 = vmatprep.subr.mxu0 0.0
  %v181 = vand.u32 %v58, 4294901760
  %182 = vmatpush1.msra.mxu0 %v181
  %183 = vmatprep.subr.mxu0 0.0
  %v184 = vand.u32 %v59, 4294901760
  %185 = vmatpush1.msra.mxu0 %v184
  %186 = vmatprep.subr.mxu0 0.0
  %v187 = vand.u32 %v60, 4294901760
  %188 = vmatpush1.msra.mxu0 %v187
  %v189 = vand.u32 %v18, 4294901760
  %v190 = vsub.f32 %v18, %v189
  %v191 = vand.u32 %v190, 4294901760
  %v192 = vsub.f32 %v190, %v191
  %v193 = vand.u32 %v192, 4294901760
  %194 = vmatprep.mubr.f32.mxu0 %v193
  %v195 = vand.u32 %v17, 4294901760
  %v196 = vsub.f32 %v17, %v195
  %v197 = vand.u32 %v196, 4294901760
  %v198 = vsub.f32 %v196, %v197
  %v199 = vand.u32 %v198, 4294901760
  %200 = vmatmul.mubr.f32.gmra.mrb[0].mxu0 %v199
  %v201 = vpop.f32.mrb[0].mxu0
  %v202 = vadd.f32 0.0, %v201
  %v203 = vpop.f32.mrb[0].mxu0
  %v204 = vand.u32 %v22, 4294901760
  %v205 = vsub.f32 %v22, %v204
  %v206 = vand.u32 %v205, 4294901760
  %v207 = vsub.f32 %v205, %v206
  %v208 = vand.u32 %v207, 4294901760
  %209 = vmatprep.mubr.f32.mxu0 %v208
  %v210 = vand.u32 %v21, 4294901760
  %v211 = vsub.f32 %v21, %v210
  %v212 = vand.u32 %v211, 4294901760
  %v213 = vsub.f32 %v211, %v212
  %v214 = vand.u32 %v213, 4294901760
  %215 = vmatmul.mubr.f32.gmra.mrb[0].mxu0 %v214
  %v216 = vpop.f32.mrb[0].mxu0
  %v217 = vadd.f32 0.0, %v216
  %v218 = vpop.f32.mrb[0].mxu0
  %v219 = vand.u32 %v26, 4294901760
  %v220 = vsub.f32 %v26, %v219
  %v221 = vand.u32 %v220, 4294901760
  %v222 = vsub.f32 %v220, %v221
  %v223 = vand.u32 %v222, 4294901760
  %224 = vmatprep.mubr.f32.mxu0 %v223
  %v225 = vand.u32 %v25, 4294901760
  %v226 = vsub.f32 %v25, %v225
  %v227 = vand.u32 %v226, 4294901760
  %v228 = vsub.f32 %v226, %v227
  %v229 = vand.u32 %v228, 4294901760
  %230 = vmatmul.mubr.f32.gmra.mrb[0].mxu0 %v229
  %v231 = vpop.f32.mrb[0].mxu0
  %v232 = vadd.f32 0.0, %v231
  %v233 = vpop.f32.mrb[0].mxu0
  %234 = vdwg.mxu0
  %235 = vmatprep.subr.mxu0 0.0
  %v236 = vand.u32 %v29, 4294901760
  %v237 = vsub.f32 %v29, %v236
  %v238 = vand.u32 %v237, 4294901760
  %v239 = vsub.f32 %v237, %v238
  %v240 = vand.u32 %v239, 4294901760
  %241 = vmatpush1.msra.mxu0 %v240
  %242 = vmatprep.subr.mxu0 0.0
  %v243 = vand.u32 %v30, 4294901760
  %v244 = vsub.f32 %v30, %v243
  %v245 = vand.u32 %v244, 4294901760
  %v246 = vsub.f32 %v244, %v245
  %v247 = vand.u32 %v246, 4294901760
  %248 = vmatpush1.msra.mxu0 %v247
  %249 = vmatprep.subr.mxu0 0.0
  %v250 = vand.u32 %v31, 4294901760
  %v251 = vsub.f32 %v31, %v250
  %v252 = vand.u32 %v251, 4294901760
  %v253 = vsub.f32 %v251, %v252
  %v254 = vand.u32 %v253, 4294901760
  %255 = vmatpush1.msra.mxu0 %v254
  %256 = vmatprep.subr.mxu0 0.0
  %v257 = vand.u32 %v32, 4294901760
  %v258 = vsub.f32 %v32, %v257
  %v259 = vand.u32 %v258, 4294901760
  %v260 = vsub.f32 %v258, %v259
  %v261 = vand.u32 %v260, 4294901760
  %262 = vmatpush1.msra.mxu0 %v261
  %263 = vmatprep.subr.mxu0 0.0
  %v264 = vand.u32 %v33, 4294901760
  %v265 = vsub.f32 %v33, %v264
  %v266 = vand.u32 %v265, 4294901760
  %v267 = vsub.f32 %v265, %v266
  %v268 = vand.u32 %v267, 4294901760
  %269 = vmatpush1.msra.mxu0 %v268
  %270 = vmatprep.subr.mxu0 0.0
  %v271 = vand.u32 %v34, 4294901760
  %v272 = vsub.f32 %v34, %v271
  %v273 = vand.u32 %v272, 4294901760
  %v274 = vsub.f32 %v272, %v273
  %v275 = vand.u32 %v274, 4294901760
  %276 = vmatpush1.msra.mxu0 %v275
  %277 = vmatprep.subr.mxu0 0.0
  %v278 = vand.u32 %v35, 4294901760
  %v279 = vsub.f32 %v35, %v278
  %v280 = vand.u32 %v279, 4294901760
  %v281 = vsub.f32 %v279, %v280
  %v282 = vand.u32 %v281, 4294901760
  %283 = vmatpush1.msra.mxu0 %v282
  %284 = vmatprep.subr.mxu0 0.0
  %v285 = vand.u32 %v36, 4294901760
  %v286 = vsub.f32 %v36, %v285
  %v287 = vand.u32 %v286, 4294901760
  %v288 = vsub.f32 %v286, %v287
  %v289 = vand.u32 %v288, 4294901760
  %290 = vmatpush1.msra.mxu0 %v289
  %291 = vmatprep.subr.mxu0 0.0
  %v292 = vand.u32 %v37, 4294901760
  %v293 = vsub.f32 %v37, %v292
  %v294 = vand.u32 %v293, 4294901760
  %v295 = vsub.f32 %v293, %v294
  %v296 = vand.u32 %v295, 4294901760
  %297 = vmatpush1.msra.mxu0 %v296
  %298 = vmatprep.subr.mxu0 0.0
  %v299 = vand.u32 %v38, 4294901760
  %v300 = vsub.f32 %v38, %v299
  %v301 = vand.u32 %v300, 4294901760
  %v302 = vsub.f32 %v300, %v301
  %v303 = vand.u32 %v302, 4294901760
  %304 = vmatpush1.msra.mxu0 %v303
  %305 = vmatprep.subr.mxu0 0.0
  %v306 = vand.u32 %v39, 4294901760
  %v307 = vsub.f32 %v39, %v306
  %v308 = vand.u32 %v307, 4294901760
  %v309 = vsub.f32 %v307, %v308
  %v310 = vand.u32 %v309, 4294901760
  %311 = vmatpush1.msra.mxu0 %v310
  %312 = vmatprep.subr.mxu0 0.0
  %v313 = vand.u32 %v40, 4294901760
  %v314 = vsub.f32 %v40, %v313
  %v315 = vand.u32 %v314, 4294901760
  %v316 = vsub.f32 %v314, %v315
  %v317 = vand.u32 %v316, 4294901760
  %318 = vmatpush1.msra.mxu0 %v317
  %319 = vmatprep.subr.mxu0 0.0
  %v320 = vand.u32 %v41, 4294901760
  %v321 = vsub.f32 %v41, %v320
  %v322 = vand.u32 %v321, 4294901760
  %v323 = vsub.f32 %v321, %v322
  %v324 = vand.u32 %v323, 4294901760
  %325 = vmatpush1.msra.mxu0 %v324
  %326 = vmatprep.subr.mxu0 0.0
  %v327 = vand.u32 %v42, 4294901760
  %v328 = vsub.f32 %v42, %v327
  %v329 = vand.u32 %v328, 4294901760
  %v330 = vsub.f32 %v328, %v329
  %v331 = vand.u32 %v330, 4294901760
  %332 = vmatpush1.msra.mxu0 %v331
  %333 = vmatprep.subr.mxu0 0.0
  %v334 = vand.u32 %v43, 4294901760
  %v335 = vsub.f32 %v43, %v334
  %v336 = vand.u32 %v335, 4294901760
  %v337 = vsub.f32 %v335, %v336
  %v338 = vand.u32 %v337, 4294901760
  %339 = vmatpush1.msra.mxu0 %v338
  %340 = vmatprep.subr.mxu0 0.0
  %v341 = vand.u32 %v44, 4294901760
  %v342 = vsub.f32 %v44, %v341
  %v343 = vand.u32 %v342, 4294901760
  %v344 = vsub.f32 %v342, %v343
  %v345 = vand.u32 %v344, 4294901760
  %346 = vmatpush1.msra.mxu0 %v345
  %347 = vmatprep.subr.mxu0 0.0
  %v348 = vand.u32 %v45, 4294901760
  %v349 = vsub.f32 %v45, %v348
  %v350 = vand.u32 %v349, 4294901760
  %v351 = vsub.f32 %v349, %v350
  %v352 = vand.u32 %v351, 4294901760
  %353 = vmatpush1.msra.mxu0 %v352
  %354 = vmatprep.subr.mxu0 0.0
  %v355 = vand.u32 %v46, 4294901760
  %v356 = vsub.f32 %v46, %v355
  %v357 = vand.u32 %v356, 4294901760
  %v358 = vsub.f32 %v356, %v357
  %v359 = vand.u32 %v358, 4294901760
  %360 = vmatpush1.msra.mxu0 %v359
  %361 = vmatprep.subr.mxu0 0.0
  %v362 = vand.u32 %v47, 4294901760
  %v363 = vsub.f32 %v47, %v362
  %v364 = vand.u32 %v363, 4294901760
  %v365 = vsub.f32 %v363, %v364
  %v366 = vand.u32 %v365, 4294901760
  %367 = vmatpush1.msra.mxu0 %v366
  %368 = vmatprep.subr.mxu0 0.0
  %v369 = vand.u32 %v48, 4294901760
  %v370 = vsub.f32 %v48, %v369
  %v371 = vand.u32 %v370, 4294901760
  %v372 = vsub.f32 %v370, %v371
  %v373 = vand.u32 %v372, 4294901760
  %374 = vmatpush1.msra.mxu0 %v373
  %375 = vmatprep.subr.mxu0 0.0
  %v376 = vand.u32 %v49, 4294901760
  %v377 = vsub.f32 %v49, %v376
  %v378 = vand.u32 %v377, 4294901760
  %v379 = vsub.f32 %v377, %v378
  %v380 = vand.u32 %v379, 4294901760
  %381 = vmatpush1.msra.mxu0 %v380
  %382 = vmatprep.subr.mxu0 0.0
  %v383 = vand.u32 %v50, 4294901760
  %v384 = vsub.f32 %v50, %v383
  %v385 = vand.u32 %v384, 4294901760
  %v386 = vsub.f32 %v384, %v385
  %v387 = vand.u32 %v386, 4294901760
  %388 = vmatpush1.msra.mxu0 %v387
  %389 = vmatprep.subr.mxu0 0.0
  %v390 = vand.u32 %v51, 4294901760
  %v391 = vsub.f32 %v51, %v390
  %v392 = vand.u32 %v391, 4294901760
  %v393 = vsub.f32 %v391, %v392
  %v394 = vand.u32 %v393, 4294901760
  %395 = vmatpush1.msra.mxu0 %v394
  %396 = vmatprep.subr.mxu0 0.0
  %v397 = vand.u32 %v52, 4294901760
  %v398 = vsub.f32 %v52, %v397
  %v399 = vand.u32 %v398, 4294901760
  %v400 = vsub.f32 %v398, %v399
  %v401 = vand.u32 %v400, 4294901760
  %402 = vmatpush1.msra.mxu0 %v401
  %403 = vmatprep.subr.mxu0 0.0
  %v404 = vand.u32 %v53, 4294901760
  %v405 = vsub.f32 %v53, %v404
  %v406 = vand.u32 %v405, 4294901760
  %v407 = vsub.f32 %v405, %v406
  %v408 = vand.u32 %v407, 4294901760
  %409 = vmatpush1.msra.mxu0 %v408
  %410 = vmatprep.subr.mxu0 0.0
  %v411 = vand.u32 %v54, 4294901760
  %v412 = vsub.f32 %v54, %v411
  %v413 = vand.u32 %v412, 4294901760
  %v414 = vsub.f32 %v412, %v413
  %v415 = vand.u32 %v414, 4294901760
  %416 = vmatpush1.msra.mxu0 %v415
  %417 = vmatprep.subr.mxu0 0.0
  %v418 = vand.u32 %v55, 4294901760
  %v419 = vsub.f32 %v55, %v418
  %v420 = vand.u32 %v419, 4294901760
  %v421 = vsub.f32 %v419, %v420
  %v422 = vand.u32 %v421, 4294901760
  %423 = vmatpush1.msra.mxu0 %v422
  %424 = vmatprep.subr.mxu0 0.0
  %v425 = vand.u32 %v56, 4294901760
  %v426 = vsub.f32 %v56, %v425
  %v427 = vand.u32 %v426, 4294901760
  %v428 = vsub.f32 %v426, %v427
  %v429 = vand.u32 %v428, 4294901760
  %430 = vmatpush1.msra.mxu0 %v429
  %431 = vmatprep.subr.mxu0 0.0
  %v432 = vand.u32 %v57, 4294901760
  %v433 = vsub.f32 %v57, %v432
  %v434 = vand.u32 %v433, 4294901760
  %v435 = vsub.f32 %v433, %v434
  %v436 = vand.u32 %v435, 4294901760
  %437 = vmatpush1.msra.mxu0 %v436
  %438 = vmatprep.subr.mxu0 0.0
  %v439 = vand.u32 %v58, 4294901760
  %v440 = vsub.f32 %v58, %v439
  %v441 = vand.u32 %v440, 4294901760
  %v442 = vsub.f32 %v440, %v441
  %v443 = vand.u32 %v442, 4294901760
  %444 = vmatpush1.msra.mxu0 %v443
  %445 = vmatprep.subr.mxu0 0.0
  %v446 = vand.u32 %v59, 4294901760
  %v447 = vsub.f32 %v59, %v446
  %v448 = vand.u32 %v447, 4294901760
  %v449 = vsub.f32 %v447, %v448
  %v450 = vand.u32 %v449, 4294901760
  %451 = vmatpush1.msra.mxu0 %v450
  %452 = vmatprep.subr.mxu0 0.0
  %v453 = vand.u32 %v60, 4294901760
  %v454 = vsub.f32 %v60, %v453
  %v455 = vand.u32 %v454, 4294901760
  %v456 = vsub.f32 %v454, %v455
  %v457 = vand.u32 %v456, 4294901760
  %458 = vmatpush1.msra.mxu0 %v457
  %v459 = vand.u32 %v18, 4294901760
  %460 = vmatprep.mubr.f32.mxu0 %v459
  %v461 = vand.u32 %v17, 4294901760
  %462 = vmatmul.mubr.f32.gmra.mrb[0].mxu0 %v461
  %v463 = vpop.f32.mrb[0].mxu0
  %v464 = vadd.f32 %v202, %v463
  %v465 = vpop.f32.mrb[0].mxu0
  %v466 = vand.u32 %v22, 4294901760
  %467 = vmatprep.mubr.f32.mxu0 %v466
  %v468 = vand.u32 %v21, 4294901760
  %469 = vmatmul.mubr.f32.gmra.mrb[0].mxu0 %v468
  %v470 = vpop.f32.mrb[0].mxu0
  %v471 = vadd.f32 %v217, %v470
  %v472 = vpop.f32.mrb[0].mxu0
  %v473 = vand.u32 %v26, 4294901760
  %474 = vmatprep.mubr.f32.mxu0 %v473
  %v475 = vand.u32 %v25, 4294901760
  %476 = vmatmul.mubr.f32.gmra.mrb[0].mxu0 %v475
  %v477 = vpop.f32.mrb[0].mxu0
  %v478 = vadd.f32 %v232, %v477
  %v479 = vpop.f32.mrb[0].mxu0
  %480 = vdwg.mxu0
  %481 = vmatprep.subr.mxu0 0.0
  %v482 = vand.u32 %v29, 4294901760
  %v483 = vsub.f32 %v29, %v482
  %484 = vmatpush1.msra.mxu0 %v483
  %485 = vmatprep.subr.mxu0 0.0
  %v486 = vand.u32 %v30, 4294901760
  %v487 = vsub.f32 %v30, %v486
  %488 = vmatpush1.msra.mxu0 %v487
  %489 = vmatprep.subr.mxu0 0.0
  %v490 = vand.u32 %v31, 4294901760
  %v491 = vsub.f32 %v31, %v490
  %492 = vmatpush1.msra.mxu0 %v491
  %493 = vmatprep.subr.mxu0 0.0
  %v494 = vand.u32 %v32, 4294901760
  %v495 = vsub.f32 %v32, %v494
  %496 = vmatpush1.msra.mxu0 %v495
  %497 = vmatprep.subr.mxu0 0.0
  %v498 = vand.u32 %v33, 4294901760
  %v499 = vsub.f32 %v33, %v498
  %500 = vmatpush1.msra.mxu0 %v499
  %501 = vmatprep.subr.mxu0 0.0
  %v502 = vand.u32 %v34, 4294901760
  %v503 = vsub.f32 %v34, %v502
  %504 = vmatpush1.msra.mxu0 %v503
  %505 = vmatprep.subr.mxu0 0.0
  %v506 = vand.u32 %v35, 4294901760
  %v507 = vsub.f32 %v35, %v506
  %508 = vmatpush1.msra.mxu0 %v507
  %509 = vmatprep.subr.mxu0 0.0
  %v510 = vand.u32 %v36, 4294901760
  %v511 = vsub.f32 %v36, %v510
  %512 = vmatpush1.msra.mxu0 %v511
  %513 = vmatprep.subr.mxu0 0.0
  %v514 = vand.u32 %v37, 4294901760
  %v515 = vsub.f32 %v37, %v514
  %516 = vmatpush1.msra.mxu0 %v515
  %517 = vmatprep.subr.mxu0 0.0
  %v518 = vand.u32 %v38, 4294901760
  %v519 = vsub.f32 %v38, %v518
  %520 = vmatpush1.msra.mxu0 %v519
  %521 = vmatprep.subr.mxu0 0.0
  %v522 = vand.u32 %v39, 4294901760
  %v523 = vsub.f32 %v39, %v522
  %524 = vmatpush1.msra.mxu0 %v523
  %525 = vmatprep.subr.mxu0 0.0
  %v526 = vand.u32 %v40, 4294901760
  %v527 = vsub.f32 %v40, %v526
  %528 = vmatpush1.msra.mxu0 %v527
  %529 = vmatprep.subr.mxu0 0.0
  %v530 = vand.u32 %v41, 4294901760
  %v531 = vsub.f32 %v41, %v530
  %532 = vmatpush1.msra.mxu0 %v531
  %533 = vmatprep.subr.mxu0 0.0
  %v534 = vand.u32 %v42, 4294901760
  %v535 = vsub.f32 %v42, %v534
  %536 = vmatpush1.msra.mxu0 %v535
  %537 = vmatprep.subr.mxu0 0.0
  %v538 = vand.u32 %v43, 4294901760
  %v539 = vsub.f32 %v43, %v538
  %540 = vmatpush1.msra.mxu0 %v539
  %541 = vmatprep.subr.mxu0 0.0
  %v542 = vand.u32 %v44, 4294901760
  %v543 = vsub.f32 %v44, %v542
  %544 = vmatpush1.msra.mxu0 %v543
  %545 = vmatprep.subr.mxu0 0.0
  %v546 = vand.u32 %v45, 4294901760
  %v547 = vsub.f32 %v45, %v546
  %548 = vmatpush1.msra.mxu0 %v547
  %549 = vmatprep.subr.mxu0 0.0
  %v550 = vand.u32 %v46, 4294901760
  %v551 = vsub.f32 %v46, %v550
  %552 = vmatpush1.msra.mxu0 %v551
  %553 = vmatprep.subr.mxu0 0.0
  %v554 = vand.u32 %v47, 4294901760
  %v555 = vsub.f32 %v47, %v554
  %556 = vmatpush1.msra.mxu0 %v555
  %557 = vmatprep.subr.mxu0 0.0
  %v558 = vand.u32 %v48, 4294901760
  %v559 = vsub.f32 %v48, %v558
  %560 = vmatpush1.msra.mxu0 %v559
  %561 = vmatprep.subr.mxu0 0.0
  %v562 = vand.u32 %v49, 4294901760
  %v563 = vsub.f32 %v49, %v562
  %564 = vmatpush1.msra.mxu0 %v563
  %565 = vmatprep.subr.mxu0 0.0
  %v566 = vand.u32 %v50, 4294901760
  %v567 = vsub.f32 %v50, %v566
  %568 = vmatpush1.msra.mxu0 %v567
  %569 = vmatprep.subr.mxu0 0.0
  %v570 = vand.u32 %v51, 4294901760
  %v571 = vsub.f32 %v51, %v570
  %572 = vmatpush1.msra.mxu0 %v571
  %573 = vmatprep.subr.mxu0 0.0
  %v574 = vand.u32 %v52, 4294901760
  %v575 = vsub.f32 %v52, %v574
  %576 = vmatpush1.msra.mxu0 %v575
  %577 = vmatprep.subr.mxu0 0.0
  %v578 = vand.u32 %v53, 4294901760
  %v579 = vsub.f32 %v53, %v578
  %580 = vmatpush1.msra.mxu0 %v579
  %581 = vmatprep.subr.mxu0 0.0
  %v582 = vand.u32 %v54, 4294901760
  %v583 = vsub.f32 %v54, %v582
  %584 = vmatpush1.msra.mxu0 %v583
  %585 = vmatprep.subr.mxu0 0.0
  %v586 = vand.u32 %v55, 4294901760
  %v587 = vsub.f32 %v55, %v586
  %588 = vmatpush1.msra.mxu0 %v587
  %589 = vmatprep.subr.mxu0 0.0
  %v590 = vand.u32 %v56, 4294901760
  %v591 = vsub.f32 %v56, %v590
  %592 = vmatpush1.msra.mxu0 %v591
  %593 = vmatprep.subr.mxu0 0.0
  %v594 = vand.u32 %v57, 4294901760
  %v595 = vsub.f32 %v57, %v594
  %596 = vmatpush1.msra.mxu0 %v595
  %597 = vmatprep.subr.mxu0 0.0
  %v598 = vand.u32 %v58, 4294901760
  %v599 = vsub.f32 %v58, %v598
  %600 = vmatpush1.msra.mxu0 %v599
  %601 = vmatprep.subr.mxu0 0.0
  %v602 = vand.u32 %v59, 4294901760
  %v603 = vsub.f32 %v59, %v602
  %604 = vmatpush1.msra.mxu0 %v603
  %605 = vmatprep.subr.mxu0 0.0
  %v606 = vand.u32 %v60, 4294901760
  %v607 = vsub.f32 %v60, %v606
  %608 = vmatpush1.msra.mxu0 %v607
  %v609 = vand.u32 %v18, 4294901760
  %v610 = vsub.f32 %v18, %v609
  %611 = vmatprep.mubr.f32.mxu0 %v610
  %v612 = vand.u32 %v17, 4294901760
  %v613 = vsub.f32 %v17, %v612
  %614 = vmatmul.mubr.f32.gmra.mrb[0].mxu0 %v613
  %v615 = vpop.f32.mrb[0].mxu0
  %v616 = vadd.f32 %v464, %v615
  %v617 = vpop.f32.mrb[0].mxu0
  %v618 = vand.u32 %v22, 4294901760
  %v619 = vsub.f32 %v22, %v618
  %620 = vmatprep.mubr.f32.mxu0 %v619
  %v621 = vand.u32 %v21, 4294901760
  %v622 = vsub.f32 %v21, %v621
  %623 = vmatmul.mubr.f32.gmra.mrb[0].mxu0 %v622
  %v624 = vpop.f32.mrb[0].mxu0
  %v625 = vadd.f32 %v471, %v624
  %v626 = vpop.f32.mrb[0].mxu0
  %v627 = vand.u32 %v26, 4294901760
  %v628 = vsub.f32 %v26, %v627
  %629 = vmatprep.mubr.f32.mxu0 %v628
  %v630 = vand.u32 %v25, 4294901760
  %v631 = vsub.f32 %v25, %v630
  %632 = vmatmul.mubr.f32.gmra.mrb[0].mxu0 %v631
  %v633 = vpop.f32.mrb[0].mxu0
  %v634 = vadd.f32 %v478, %v633
  %v635 = vpop.f32.mrb[0].mxu0
  %636 = vdwg.mxu0
  %637 = vmatprep.subr.mxu0 0.0
  %v638 = vand.u32 %v29, 4294901760
  %639 = vmatpush1.msra.mxu0 %v638
  %640 = vmatprep.subr.mxu0 0.0
  %v641 = vand.u32 %v30, 4294901760
  %642 = vmatpush1.msra.mxu0 %v641
  %643 = vmatprep.subr.mxu0 0.0
  %v644 = vand.u32 %v31, 4294901760
  %645 = vmatpush1.msra.mxu0 %v644
  %646 = vmatprep.subr.mxu0 0.0
  %v647 = vand.u32 %v32, 4294901760
  %648 = vmatpush1.msra.mxu0 %v647
  %649 = vmatprep.subr.mxu0 0.0
  %v650 = vand.u32 %v33, 4294901760
  %651 = vmatpush1.msra.mxu0 %v650
  %652 = vmatprep.subr.mxu0 0.0
  %v653 = vand.u32 %v34, 4294901760
  %654 = vmatpush1.msra.mxu0 %v653
  %655 = vmatprep.subr.mxu0 0.0
  %v656 = vand.u32 %v35, 4294901760
  %657 = vmatpush1.msra.mxu0 %v656
  %658 = vmatprep.subr.mxu0 0.0
  %v659 = vand.u32 %v36, 4294901760
  %660 = vmatpush1.msra.mxu0 %v659
  %661 = vmatprep.subr.mxu0 0.0
  %v662 = vand.u32 %v37, 4294901760
  %663 = vmatpush1.msra.mxu0 %v662
  %664 = vmatprep.subr.mxu0 0.0
  %v665 = vand.u32 %v38, 4294901760
  %666 = vmatpush1.msra.mxu0 %v665
  %667 = vmatprep.subr.mxu0 0.0
  %v668 = vand.u32 %v39, 4294901760
  %669 = vmatpush1.msra.mxu0 %v668
  %670 = vmatprep.subr.mxu0 0.0
  %v671 = vand.u32 %v40, 4294901760
  %672 = vmatpush1.msra.mxu0 %v671
  %673 = vmatprep.subr.mxu0 0.0
  %v674 = vand.u32 %v41, 4294901760
  %675 = vmatpush1.msra.mxu0 %v674
  %676 = vmatprep.subr.mxu0 0.0
  %v677 = vand.u32 %v42, 4294901760
  %678 = vmatpush1.msra.mxu0 %v677
  %679 = vmatprep.subr.mxu0 0.0
  %v680 = vand.u32 %v43, 4294901760
  %681 = vmatpush1.msra.mxu0 %v680
  %682 = vmatprep.subr.mxu0 0.0
  %v683 = vand.u32 %v44, 4294901760
  %684 = vmatpush1.msra.mxu0 %v683
  %685 = vmatprep.subr.mxu0 0.0
  %v686 = vand.u32 %v45, 4294901760
  %687 = vmatpush1.msra.mxu0 %v686
  %688 = vmatprep.subr.mxu0 0.0
  %v689 = vand.u32 %v46, 4294901760
  %690 = vmatpush1.msra.mxu0 %v689
  %691 = vmatprep.subr.mxu0 0.0
  %v692 = vand.u32 %v47, 4294901760
  %693 = vmatpush1.msra.mxu0 %v692
  %694 = vmatprep.subr.mxu0 0.0
  %v695 = vand.u32 %v48, 4294901760
  %696 = vmatpush1.msra.mxu0 %v695
  %697 = vmatprep.subr.mxu0 0.0
  %v698 = vand.u32 %v49, 4294901760
  %699 = vmatpush1.msra.mxu0 %v698
  %700 = vmatprep.subr.mxu0 0.0
  %v701 = vand.u32 %v50, 4294901760
  %702 = vmatpush1.msra.mxu0 %v701
  %703 = vmatprep.subr.mxu0 0.0
  %v704 = vand.u32 %v51, 4294901760
  %705 = vmatpush1.msra.mxu0 %v704
  %706 = vmatprep.subr.mxu0 0.0
  %v707 = vand.u32 %v52, 4294901760
  %708 = vmatpush1.msra.mxu0 %v707
  %709 = vmatprep.subr.mxu0 0.0
  %v710 = vand.u32 %v53, 4294901760
  %711 = vmatpush1.msra.mxu0 %v710
  %712 = vmatprep.subr.mxu0 0.0
  %v713 = vand.u32 %v54, 4294901760
  %714 = vmatpush1.msra.mxu0 %v713
  %715 = vmatprep.subr.mxu0 0.0
  %v716 = vand.u32 %v55, 4294901760
  %717 = vmatpush1.msra.mxu0 %v716
  %718 = vmatprep.subr.mxu0 0.0
  %v719 = vand.u32 %v56, 4294901760
  %720 = vmatpush1.msra.mxu0 %v719
  %721 = vmatprep.subr.mxu0 0.0
  %v722 = vand.u32 %v57, 4294901760
  %723 = vmatpush1.msra.mxu0 %v722
  %724 = vmatprep.subr.mxu0 0.0
  %v725 = vand.u32 %v58, 4294901760
  %726 = vmatpush1.msra.mxu0 %v725
  %727 = vmatprep.subr.mxu0 0.0
  %v728 = vand.u32 %v59, 4294901760
  %729 = vmatpush1.msra.mxu0 %v728
  %730 = vmatprep.subr.mxu0 0.0
  %v731 = vand.u32 %v60, 4294901760
  %732 = vmatpush1.msra.mxu0 %v731
  %v733 = vand.u32 %v18, 4294901760
  %v734 = vsub.f32 %v18, %v733
  %v735 = vand.u32 %v734, 4294901760
  %736 = vmatprep.mubr.f32.mxu0 %v735
  %v737 = vand.u32 %v17, 4294901760
  %v738 = vsub.f32 %v17, %v737
  %v739 = vand.u32 %v738, 4294901760
  %740 = vmatmul.mubr.f32.gmra.mrb[0].mxu0 %v739
  %v741 = vpop.f32.mrb[0].mxu0
  %v742 = vadd.f32 %v616, %v741
  %v743 = vpop.f32.mrb[0].mxu0
  %v744 = vand.u32 %v22, 4294901760
  %v745 = vsub.f32 %v22, %v744
  %v746 = vand.u32 %v745, 4294901760
  %747 = vmatprep.mubr.f32.mxu0 %v746
  %v748 = vand.u32 %v21, 4294901760
  %v749 = vsub.f32 %v21, %v748
  %v750 = vand.u32 %v749, 4294901760
  %751 = vmatmul.mubr.f32.gmra.mrb[0].mxu0 %v750
  %v752 = vpop.f32.mrb[0].mxu0
  %v753 = vadd.f32 %v625, %v752
  %v754 = vpop.f32.mrb[0].mxu0
  %v755 = vand.u32 %v26, 4294901760
  %v756 = vsub.f32 %v26, %v755
  %v757 = vand.u32 %v756, 4294901760
  %758 = vmatprep.mubr.f32.mxu0 %v757
  %v759 = vand.u32 %v25, 4294901760
  %v760 = vsub.f32 %v25, %v759
  %v761 = vand.u32 %v760, 4294901760
  %762 = vmatmul.mubr.f32.gmra.mrb[0].mxu0 %v761
  %v763 = vpop.f32.mrb[0].mxu0
  %v764 = vadd.f32 %v634, %v763
  %v765 = vpop.f32.mrb[0].mxu0
  %766 = vdwg.mxu0
  %767 = vmatprep.subr.mxu0 0.0
  %v768 = vand.u32 %v29, 4294901760
  %v769 = vsub.f32 %v29, %v768
  %v770 = vand.u32 %v769, 4294901760
  %771 = vmatpush1.msra.mxu0 %v770
  %772 = vmatprep.subr.mxu0 0.0
  %v773 = vand.u32 %v30, 4294901760
  %v774 = vsub.f32 %v30, %v773
  %v775 = vand.u32 %v774, 4294901760
  %776 = vmatpush1.msra.mxu0 %v775
  %777 = vmatprep.subr.mxu0 0.0
  %v778 = vand.u32 %v31, 4294901760
  %v779 = vsub.f32 %v31, %v778
  %v780 = vand.u32 %v779, 4294901760
  %781 = vmatpush1.msra.mxu0 %v780
  %782 = vmatprep.subr.mxu0 0.0
  %v783 = vand.u32 %v32, 4294901760
  %v784 = vsub.f32 %v32, %v783
  %v785 = vand.u32 %v784, 4294901760
  %786 = vmatpush1.msra.mxu0 %v785
  %787 = vmatprep.subr.mxu0 0.0
  %v788 = vand.u32 %v33, 4294901760
  %v789 = vsub.f32 %v33, %v788
  %v790 = vand.u32 %v789, 4294901760
  %791 = vmatpush1.msra.mxu0 %v790
  %792 = vmatprep.subr.mxu0 0.0
  %v793 = vand.u32 %v34, 4294901760
  %v794 = vsub.f32 %v34, %v793
  %v795 = vand.u32 %v794, 4294901760
  %796 = vmatpush1.msra.mxu0 %v795
  %797 = vmatprep.subr.mxu0 0.0
  %v798 = vand.u32 %v35, 4294901760
  %v799 = vsub.f32 %v35, %v798
  %v800 = vand.u32 %v799, 4294901760
  %801 = vmatpush1.msra.mxu0 %v800
  %802 = vmatprep.subr.mxu0 0.0
  %v803 = vand.u32 %v36, 4294901760
  %v804 = vsub.f32 %v36, %v803
  %v805 = vand.u32 %v804, 4294901760
  %806 = vmatpush1.msra.mxu0 %v805
  %807 = vmatprep.subr.mxu0 0.0
  %v808 = vand.u32 %v37, 4294901760
  %v809 = vsub.f32 %v37, %v808
  %v810 = vand.u32 %v809, 4294901760
  %811 = vmatpush1.msra.mxu0 %v810
  %812 = vmatprep.subr.mxu0 0.0
  %v813 = vand.u32 %v38, 4294901760
  %v814 = vsub.f32 %v38, %v813
  %v815 = vand.u32 %v814, 4294901760
  %816 = vmatpush1.msra.mxu0 %v815
  %817 = vmatprep.subr.mxu0 0.0
  %v818 = vand.u32 %v39, 4294901760
  %v819 = vsub.f32 %v39, %v818
  %v820 = vand.u32 %v819, 4294901760
  %821 = vmatpush1.msra.mxu0 %v820
  %822 = vmatprep.subr.mxu0 0.0
  %v823 = vand.u32 %v40, 4294901760
  %v824 = vsub.f32 %v40, %v823
  %v825 = vand.u32 %v824, 4294901760
  %826 = vmatpush1.msra.mxu0 %v825
  %827 = vmatprep.subr.mxu0 0.0
  %v828 = vand.u32 %v41, 4294901760
  %v829 = vsub.f32 %v41, %v828
  %v830 = vand.u32 %v829, 4294901760
  %831 = vmatpush1.msra.mxu0 %v830
  %832 = vmatprep.subr.mxu0 0.0
  %v833 = vand.u32 %v42, 4294901760
  %v834 = vsub.f32 %v42, %v833
  %v835 = vand.u32 %v834, 4294901760
  %836 = vmatpush1.msra.mxu0 %v835
  %837 = vmatprep.subr.mxu0 0.0
  %v838 = vand.u32 %v43, 4294901760
  %v839 = vsub.f32 %v43, %v838
  %v840 = vand.u32 %v839, 4294901760
  %841 = vmatpush1.msra.mxu0 %v840
  %842 = vmatprep.subr.mxu0 0.0
  %v843 = vand.u32 %v44, 4294901760
  %v844 = vsub.f32 %v44, %v843
  %v845 = vand.u32 %v844, 4294901760
  %846 = vmatpush1.msra.mxu0 %v845
  %847 = vmatprep.subr.mxu0 0.0
  %v848 = vand.u32 %v45, 4294901760
  %v849 = vsub.f32 %v45, %v848
  %v850 = vand.u32 %v849, 4294901760
  %851 = vmatpush1.msra.mxu0 %v850
  %852 = vmatprep.subr.mxu0 0.0
  %v853 = vand.u32 %v46, 4294901760
  %v854 = vsub.f32 %v46, %v853
  %v855 = vand.u32 %v854, 4294901760
  %856 = vmatpush1.msra.mxu0 %v855
  %857 = vmatprep.subr.mxu0 0.0
  %v858 = vand.u32 %v47, 4294901760
  %v859 = vsub.f32 %v47, %v858
  %v860 = vand.u32 %v859, 4294901760
  %861 = vmatpush1.msra.mxu0 %v860
  %862 = vmatprep.subr.mxu0 0.0
  %v863 = vand.u32 %v48, 4294901760
  %v864 = vsub.f32 %v48, %v863
  %v865 = vand.u32 %v864, 4294901760
  %866 = vmatpush1.msra.mxu0 %v865
  %867 = vmatprep.subr.mxu0 0.0
  %v868 = vand.u32 %v49, 4294901760
  %v869 = vsub.f32 %v49, %v868
  %v870 = vand.u32 %v869, 4294901760
  %871 = vmatpush1.msra.mxu0 %v870
  %872 = vmatprep.subr.mxu0 0.0
  %v873 = vand.u32 %v50, 4294901760
  %v874 = vsub.f32 %v50, %v873
  %v875 = vand.u32 %v874, 4294901760
  %876 = vmatpush1.msra.mxu0 %v875
  %877 = vmatprep.subr.mxu0 0.0
  %v878 = vand.u32 %v51, 4294901760
  %v879 = vsub.f32 %v51, %v878
  %v880 = vand.u32 %v879, 4294901760
  %881 = vmatpush1.msra.mxu0 %v880
  %882 = vmatprep.subr.mxu0 0.0
  %v883 = vand.u32 %v52, 4294901760
  %v884 = vsub.f32 %v52, %v883
  %v885 = vand.u32 %v884, 4294901760
  %886 = vmatpush1.msra.mxu0 %v885
  %887 = vmatprep.subr.mxu0 0.0
  %v888 = vand.u32 %v53, 4294901760
  %v889 = vsub.f32 %v53, %v888
  %v890 = vand.u32 %v889, 4294901760
  %891 = vmatpush1.msra.mxu0 %v890
  %892 = vmatprep.subr.mxu0 0.0
  %v893 = vand.u32 %v54, 4294901760
  %v894 = vsub.f32 %v54, %v893
  %v895 = vand.u32 %v894, 4294901760
  %896 = vmatpush1.msra.mxu0 %v895
  %897 = vmatprep.subr.mxu0 0.0
  %v898 = vand.u32 %v55, 4294901760
  %v899 = vsub.f32 %v55, %v898
  %v900 = vand.u32 %v899, 4294901760
  %901 = vmatpush1.msra.mxu0 %v900
  %902 = vmatprep.subr.mxu0 0.0
  %v903 = vand.u32 %v56, 4294901760
  %v904 = vsub.f32 %v56, %v903
  %v905 = vand.u32 %v904, 4294901760
  %906 = vmatpush1.msra.mxu0 %v905
  %907 = vmatprep.subr.mxu0 0.0
  %v908 = vand.u32 %v57, 4294901760
  %v909 = vsub.f32 %v57, %v908
  %v910 = vand.u32 %v909, 4294901760
  %911 = vmatpush1.msra.mxu0 %v910
  %912 = vmatprep.subr.mxu0 0.0
  %v913 = vand.u32 %v58, 4294901760
  %v914 = vsub.f32 %v58, %v913
  %v915 = vand.u32 %v914, 4294901760
  %916 = vmatpush1.msra.mxu0 %v915
  %917 = vmatprep.subr.mxu0 0.0
  %v918 = vand.u32 %v59, 4294901760
  %v919 = vsub.f32 %v59, %v918
  %v920 = vand.u32 %v919, 4294901760
  %921 = vmatpush1.msra.mxu0 %v920
  %922 = vmatprep.subr.mxu0 0.0
  %v923 = vand.u32 %v60, 4294901760
  %v924 = vsub.f32 %v60, %v923
  %v925 = vand.u32 %v924, 4294901760
  %926 = vmatpush1.msra.mxu0 %v925
  %v927 = vand.u32 %v18, 4294901760
  %928 = vmatprep.mubr.f32.mxu0 %v927
  %v929 = vand.u32 %v17, 4294901760
  %930 = vmatmul.mubr.f32.gmra.mrb[0].mxu0 %v929
  %v931 = vpop.f32.mrb[0].mxu0
  %v932 = vadd.f32 %v742, %v931
  %v933 = vpop.f32.mrb[0].mxu0
  %v934 = vand.u32 %v22, 4294901760
  %935 = vmatprep.mubr.f32.mxu0 %v934
  %v936 = vand.u32 %v21, 4294901760
  %937 = vmatmul.mubr.f32.gmra.mrb[0].mxu0 %v936
  %v938 = vpop.f32.mrb[0].mxu0
  %v939 = vadd.f32 %v753, %v938
  %v940 = vpop.f32.mrb[0].mxu0
  %v941 = vand.u32 %v26, 4294901760
  %942 = vmatprep.mubr.f32.mxu0 %v941
  %v943 = vand.u32 %v25, 4294901760
  %944 = vmatmul.mubr.f32.gmra.mrb[0].mxu0 %v943
  %v945 = vpop.f32.mrb[0].mxu0
  %v946 = vadd.f32 %v764, %v945
  %v947 = vpop.f32.mrb[0].mxu0
  %948 = vdwg.mxu0
  %949 = vmatprep.subr.mxu0 0.0
  %v950 = vand.u32 %v29, 4294901760
  %951 = vmatpush1.msra.mxu0 %v950
  %952 = vmatprep.subr.mxu0 0.0
  %v953 = vand.u32 %v30, 4294901760
  %954 = vmatpush1.msra.mxu0 %v953
  %955 = vmatprep.subr.mxu0 0.0
  %v956 = vand.u32 %v31, 4294901760
  %957 = vmatpush1.msra.mxu0 %v956
  %958 = vmatprep.subr.mxu0 0.0
  %v959 = vand.u32 %v32, 4294901760
  %960 = vmatpush1.msra.mxu0 %v959
  %961 = vmatprep.subr.mxu0 0.0
  %v962 = vand.u32 %v33, 4294901760
  %963 = vmatpush1.msra.mxu0 %v962
  %964 = vmatprep.subr.mxu0 0.0
  %v965 = vand.u32 %v34, 4294901760
  %966 = vmatpush1.msra.mxu0 %v965
  %967 = vmatprep.subr.mxu0 0.0
  %v968 = vand.u32 %v35, 4294901760
  %969 = vmatpush1.msra.mxu0 %v968
  %970 = vmatprep.subr.mxu0 0.0
  %v971 = vand.u32 %v36, 4294901760
  %972 = vmatpush1.msra.mxu0 %v971
  %973 = vmatprep.subr.mxu0 0.0
  %v974 = vand.u32 %v37, 4294901760
  %975 = vmatpush1.msra.mxu0 %v974
  %976 = vmatprep.subr.mxu0 0.0
  %v977 = vand.u32 %v38, 4294901760
  %978 = vmatpush1.msra.mxu0 %v977
  %979 = vmatprep.subr.mxu0 0.0
  %v980 = vand.u32 %v39, 4294901760
  %981 = vmatpush1.msra.mxu0 %v980
  %982 = vmatprep.subr.mxu0 0.0
  %v983 = vand.u32 %v40, 4294901760
  %984 = vmatpush1.msra.mxu0 %v983
  %985 = vmatprep.subr.mxu0 0.0
  %v986 = vand.u32 %v41, 4294901760
  %987 = vmatpush1.msra.mxu0 %v986
  %988 = vmatprep.subr.mxu0 0.0
  %v989 = vand.u32 %v42, 4294901760
  %990 = vmatpush1.msra.mxu0 %v989
  %991 = vmatprep.subr.mxu0 0.0
  %v992 = vand.u32 %v43, 4294901760
  %993 = vmatpush1.msra.mxu0 %v992
  %994 = vmatprep.subr.mxu0 0.0
  %v995 = vand.u32 %v44, 4294901760
  %996 = vmatpush1.msra.mxu0 %v995
  %997 = vmatprep.subr.mxu0 0.0
  %v998 = vand.u32 %v45, 4294901760
  %999 = vmatpush1.msra.mxu0 %v998
  %1000 = vmatprep.subr.mxu0 0.0
  %v1001 = vand.u32 %v46, 4294901760
  %1002 = vmatpush1.msra.mxu0 %v1001
  %1003 = vmatprep.subr.mxu0 0.0
  %v1004 = vand.u32 %v47, 4294901760
  %1005 = vmatpush1.msra.mxu0 %v1004
  %1006 = vmatprep.subr.mxu0 0.0
  %v1007 = vand.u32 %v48, 4294901760
  %1008 = vmatpush1.msra.mxu0 %v1007
  %1009 = vmatprep.subr.mxu0 0.0
  %v1010 = vand.u32 %v49, 4294901760
  %1011 = vmatpush1.msra.mxu0 %v1010
  %1012 = vmatprep.subr.mxu0 0.0
  %v1013 = vand.u32 %v50, 4294901760
  %1014 = vmatpush1.msra.mxu0 %v1013
  %1015 = vmatprep.subr.mxu0 0.0
  %v1016 = vand.u32 %v51, 4294901760
  %1017 = vmatpush1.msra.mxu0 %v1016
  %1018 = vmatprep.subr.mxu0 0.0
  %v1019 = vand.u32 %v52, 4294901760
  %1020 = vmatpush1.msra.mxu0 %v1019
  %1021 = vmatprep.subr.mxu0 0.0
  %v1022 = vand.u32 %v53, 4294901760
  %1023 = vmatpush1.msra.mxu0 %v1022
  %1024 = vmatprep.subr.mxu0 0.0
  %v1025 = vand.u32 %v54, 4294901760
  %1026 = vmatpush1.msra.mxu0 %v1025
  %1027 = vmatprep.subr.mxu0 0.0
  %v1028 = vand.u32 %v55, 4294901760
  %1029 = vmatpush1.msra.mxu0 %v1028
  %1030 = vmatprep.subr.mxu0 0.0
  %v1031 = vand.u32 %v56, 4294901760
  %1032 = vmatpush1.msra.mxu0 %v1031
  %1033 = vmatprep.subr.mxu0 0.0
  %v1034 = vand.u32 %v57, 4294901760
  %1035 = vmatpush1.msra.mxu0 %v1034
  %1036 = vmatprep.subr.mxu0 0.0
  %v1037 = vand.u32 %v58, 4294901760
  %1038 = vmatpush1.msra.mxu0 %v1037
  %1039 = vmatprep.subr.mxu0 0.0
  %v1040 = vand.u32 %v59, 4294901760
  %1041 = vmatpush1.msra.mxu0 %v1040
  %1042 = vmatprep.subr.mxu0 0.0
  %v1043 = vand.u32 %v60, 4294901760
  %1044 = vmatpush1.msra.mxu0 %v1043
  %v1045 = vand.u32 %v18, 4294901760
  %1046 = vmatprep.mubr.f32.mxu0 %v1045
  %v1047 = vand.u32 %v17, 4294901760
  %1048 = vmatmul.mubr.f32.gmra.mrb[0].mxu0 %v1047
  %v1049 = vpop.f32.mrb[0].mxu0
  %v1050 = vadd.f32 %v932, %v1049
  %v1051 = vpop.f32.mrb[0].mxu0
  %v1052 = vand.u32 %v22, 4294901760
  %1053 = vmatprep.mubr.f32.mxu0 %v1052
  %v1054 = vand.u32 %v21, 4294901760
  %1055 = vmatmul.mubr.f32.gmra.mrb[0].mxu0 %v1054
  %v1056 = vpop.f32.mrb[0].mxu0
  %v1057 = vadd.f32 %v939, %v1056
  %v1058 = vpop.f32.mrb[0].mxu0
  %v1059 = vand.u32 %v26, 4294901760
  %1060 = vmatprep.mubr.f32.mxu0 %v1059
  %v1061 = vand.u32 %v25, 4294901760
  %1062 = vmatmul.mubr.f32.gmra.mrb[0].mxu0 %v1061
  %v1063 = vpop.f32.mrb[0].mxu0
  %v1064 = vadd.f32 %v946, %v1063
  %v1065 = vpop.f32.mrb[0].mxu0
  %1066 = vdwg.mxu0
  %1067 = vmatprep.subr.mxu0 0.0
  %v1068 = vand.u32 %v61, 4294901760
  %1069 = vmatpush1.msra.mxu0 %v1068
  %1070 = vmatprep.subr.mxu0 0.0
  %v1071 = vand.u32 %v62, 4294901760
  %1072 = vmatpush1.msra.mxu0 %v1071
  %1073 = vmatprep.subr.mxu0 0.0
  %v1074 = vand.u32 %v63, 4294901760
  %1075 = vmatpush1.msra.mxu0 %v1074
  %1076 = vmatprep.subr.mxu0 0.0
  %v1077 = vand.u32 %v64, 4294901760
  %1078 = vmatpush1.msra.mxu0 %v1077
  %1079 = vmatprep.subr.mxu0 0.0
  %v1080 = vand.u32 %v65, 4294901760
  %1081 = vmatpush1.msra.mxu0 %v1080
  %1082 = vmatprep.subr.mxu0 0.0
  %v1083 = vand.u32 %v66, 4294901760
  %1084 = vmatpush1.msra.mxu0 %v1083
  %1085 = vmatprep.subr.mxu0 0.0
  %v1086 = vand.u32 %v67, 4294901760
  %1087 = vmatpush1.msra.mxu0 %v1086
  %1088 = vmatprep.subr.mxu0 0.0
  %v1089 = vand.u32 %v68, 4294901760
  %1090 = vmatpush1.msra.mxu0 %v1089
  %1091 = vmatprep.subr.mxu0 0.0
  %v1092 = vand.u32 %v69, 4294901760
  %1093 = vmatpush1.msra.mxu0 %v1092
  %1094 = vmatprep.subr.mxu0 0.0
  %v1095 = vand.u32 %v70, 4294901760
  %1096 = vmatpush1.msra.mxu0 %v1095
  %1097 = vmatprep.subr.mxu0 0.0
  %v1098 = vand.u32 %v71, 4294901760
  %1099 = vmatpush1.msra.mxu0 %v1098
  %1100 = vmatprep.subr.mxu0 0.0
  %v1101 = vand.u32 %v72, 4294901760
  %1102 = vmatpush1.msra.mxu0 %v1101
  %1103 = vmatprep.subr.mxu0 0.0
  %v1104 = vand.u32 %v73, 4294901760
  %1105 = vmatpush1.msra.mxu0 %v1104
  %1106 = vmatprep.subr.mxu0 0.0
  %v1107 = vand.u32 %v74, 4294901760
  %1108 = vmatpush1.msra.mxu0 %v1107
  %1109 = vmatprep.subr.mxu0 0.0
  %v1110 = vand.u32 %v75, 4294901760
  %1111 = vmatpush1.msra.mxu0 %v1110
  %1112 = vmatprep.subr.mxu0 0.0
  %v1113 = vand.u32 %v76, 4294901760
  %1114 = vmatpush1.msra.mxu0 %v1113
  %1115 = vmatprep.subr.mxu0 0.0
  %v1116 = vand.u32 %v77, 4294901760
  %1117 = vmatpush1.msra.mxu0 %v1116
  %1118 = vmatprep.subr.mxu0 0.0
  %v1119 = vand.u32 %v78, 4294901760
  %1120 = vmatpush1.msra.mxu0 %v1119
  %1121 = vmatprep.subr.mxu0 0.0
  %v1122 = vand.u32 %v79, 4294901760
  %1123 = vmatpush1.msra.mxu0 %v1122
  %1124 = vmatprep.subr.mxu0 0.0
  %v1125 = vand.u32 %v80, 4294901760
  %1126 = vmatpush1.msra.mxu0 %v1125
  %1127 = vmatprep.subr.mxu0 0.0
  %v1128 = vand.u32 %v81, 4294901760
  %1129 = vmatpush1.msra.mxu0 %v1128
  %1130 = vmatprep.subr.mxu0 0.0
  %v1131 = vand.u32 %v82, 4294901760
  %1132 = vmatpush1.msra.mxu0 %v1131
  %1133 = vmatprep.subr.mxu0 0.0
  %v1134 = vand.u32 %v83, 4294901760
  %1135 = vmatpush1.msra.mxu0 %v1134
  %1136 = vmatprep.subr.mxu0 0.0
  %v1137 = vand.u32 %v84, 4294901760
  %1138 = vmatpush1.msra.mxu0 %v1137
  %1139 = vmatprep.subr.mxu0 0.0
  %v1140 = vand.u32 %v85, 4294901760
  %1141 = vmatpush1.msra.mxu0 %v1140
  %1142 = vmatprep.subr.mxu0 0.0
  %v1143 = vand.u32 %v86, 4294901760
  %1144 = vmatpush1.msra.mxu0 %v1143
  %1145 = vmatprep.subr.mxu0 0.0
  %v1146 = vand.u32 %v87, 4294901760
  %1147 = vmatpush1.msra.mxu0 %v1146
  %1148 = vmatprep.subr.mxu0 0.0
  %v1149 = vand.u32 %v88, 4294901760
  %1150 = vmatpush1.msra.mxu0 %v1149
  %1151 = vmatprep.subr.mxu0 0.0
  %v1152 = vand.u32 %v89, 4294901760
  %1153 = vmatpush1.msra.mxu0 %v1152
  %1154 = vmatprep.subr.mxu0 0.0
  %v1155 = vand.u32 %v90, 4294901760
  %1156 = vmatpush1.msra.mxu0 %v1155
  %1157 = vmatprep.subr.mxu0 0.0
  %v1158 = vand.u32 %v91, 4294901760
  %1159 = vmatpush1.msra.mxu0 %v1158
  %1160 = vmatprep.subr.mxu0 0.0
  %v1161 = vand.u32 %v92, 4294901760
  %1162 = vmatpush1.msra.mxu0 %v1161
  %v1163 = vand.u32 %v20, 4294901760
  %v1164 = vsub.f32 %v20, %v1163
  %v1165 = vand.u32 %v1164, 4294901760
  %v1166 = vsub.f32 %v1164, %v1165
  %v1167 = vand.u32 %v1166, 4294901760
  %1168 = vmatprep.mubr.f32.mxu0 %v1167
  %v1169 = vand.u32 %v19, 4294901760
  %v1170 = vsub.f32 %v19, %v1169
  %v1171 = vand.u32 %v1170, 4294901760
  %v1172 = vsub.f32 %v1170, %v1171
  %v1173 = vand.u32 %v1172, 4294901760
  %1174 = vmatmul.mubr.f32.gmra.mrb[0].mxu0 %v1173
  %v1175 = vpop.f32.mrb[0].mxu0
  %v1176 = vadd.f32 %v1050, %v1175
  %v1177 = vpop.f32.mrb[0].mxu0
  %v1178 = vand.u32 %v24, 4294901760
  %v1179 = vsub.f32 %v24, %v1178
  %v1180 = vand.u32 %v1179, 4294901760
  %v1181 = vsub.f32 %v1179, %v1180
  %v1182 = vand.u32 %v1181, 4294901760
  %1183 = vmatprep.mubr.f32.mxu0 %v1182
  %v1184 = vand.u32 %v23, 4294901760
  %v1185 = vsub.f32 %v23, %v1184
  %v1186 = vand.u32 %v1185, 4294901760
  %v1187 = vsub.f32 %v1185, %v1186
  %v1188 = vand.u32 %v1187, 4294901760
  %1189 = vmatmul.mubr.f32.gmra.mrb[0].mxu0 %v1188
  %v1190 = vpop.f32.mrb[0].mxu0
  %v1191 = vadd.f32 %v1057, %v1190
  %v1192 = vpop.f32.mrb[0].mxu0
  %v1193 = vand.u32 %v28, 4294901760
  %v1194 = vsub.f32 %v28, %v1193
  %v1195 = vand.u32 %v1194, 4294901760
  %v1196 = vsub.f32 %v1194, %v1195
  %v1197 = vand.u32 %v1196, 4294901760
  %1198 = vmatprep.mubr.f32.mxu0 %v1197
  %v1199 = vand.u32 %v27, 4294901760
  %v1200 = vsub.f32 %v27, %v1199
  %v1201 = vand.u32 %v1200, 4294901760
  %v1202 = vsub.f32 %v1200, %v1201
  %v1203 = vand.u32 %v1202, 4294901760
  %1204 = vmatmul.mubr.f32.gmra.mrb[0].mxu0 %v1203
  %v1205 = vpop.f32.mrb[0].mxu0
  %v1206 = vadd.f32 %v1064, %v1205
  %v1207 = vpop.f32.mrb[0].mxu0
  %1208 = vdwg.mxu0
  %1209 = vmatprep.subr.mxu0 0.0
  %v1210 = vand.u32 %v61, 4294901760
  %v1211 = vsub.f32 %v61, %v1210
  %v1212 = vand.u32 %v1211, 4294901760
  %v1213 = vsub.f32 %v1211, %v1212
  %v1214 = vand.u32 %v1213, 4294901760
  %1215 = vmatpush1.msra.mxu0 %v1214
  %1216 = vmatprep.subr.mxu0 0.0
  %v1217 = vand.u32 %v62, 4294901760
  %v1218 = vsub.f32 %v62, %v1217
  %v1219 = vand.u32 %v1218, 4294901760
  %v1220 = vsub.f32 %v1218, %v1219
  %v1221 = vand.u32 %v1220, 4294901760
  %1222 = vmatpush1.msra.mxu0 %v1221
  %1223 = vmatprep.subr.mxu0 0.0
  %v1224 = vand.u32 %v63, 4294901760
  %v1225 = vsub.f32 %v63, %v1224
  %v1226 = vand.u32 %v1225, 4294901760
  %v1227 = vsub.f32 %v1225, %v1226
  %v1228 = vand.u32 %v1227, 4294901760
  %1229 = vmatpush1.msra.mxu0 %v1228
  %1230 = vmatprep.subr.mxu0 0.0
  %v1231 = vand.u32 %v64, 4294901760
  %v1232 = vsub.f32 %v64, %v1231
  %v1233 = vand.u32 %v1232, 4294901760
  %v1234 = vsub.f32 %v1232, %v1233
  %v1235 = vand.u32 %v1234, 4294901760
  %1236 = vmatpush1.msra.mxu0 %v1235
  %1237 = vmatprep.subr.mxu0 0.0
  %v1238 = vand.u32 %v65, 4294901760
  %v1239 = vsub.f32 %v65, %v1238
  %v1240 = vand.u32 %v1239, 4294901760
  %v1241 = vsub.f32 %v1239, %v1240
  %v1242 = vand.u32 %v1241, 4294901760
  %1243 = vmatpush1.msra.mxu0 %v1242
  %1244 = vmatprep.subr.mxu0 0.0
  %v1245 = vand.u32 %v66, 4294901760
  %v1246 = vsub.f32 %v66, %v1245
  %v1247 = vand.u32 %v1246, 4294901760
  %v1248 = vsub.f32 %v1246, %v1247
  %v1249 = vand.u32 %v1248, 4294901760
  %1250 = vmatpush1.msra.mxu0 %v1249
  %1251 = vmatprep.subr.mxu0 0.0
  %v1252 = vand.u32 %v67, 4294901760
  %v1253 = vsub.f32 %v67, %v1252
  %v1254 = vand.u32 %v1253, 4294901760
  %v1255 = vsub.f32 %v1253, %v1254
  %v1256 = vand.u32 %v1255, 4294901760
  %1257 = vmatpush1.msra.mxu0 %v1256
  %1258 = vmatprep.subr.mxu0 0.0
  %v1259 = vand.u32 %v68, 4294901760
  %v1260 = vsub.f32 %v68, %v1259
  %v1261 = vand.u32 %v1260, 4294901760
  %v1262 = vsub.f32 %v1260, %v1261
  %v1263 = vand.u32 %v1262, 4294901760
  %1264 = vmatpush1.msra.mxu0 %v1263
  %1265 = vmatprep.subr.mxu0 0.0
  %v1266 = vand.u32 %v69, 4294901760
  %v1267 = vsub.f32 %v69, %v1266
  %v1268 = vand.u32 %v1267, 4294901760
  %v1269 = vsub.f32 %v1267, %v1268
  %v1270 = vand.u32 %v1269, 4294901760
  %1271 = vmatpush1.msra.mxu0 %v1270
  %1272 = vmatprep.subr.mxu0 0.0
  %v1273 = vand.u32 %v70, 4294901760
  %v1274 = vsub.f32 %v70, %v1273
  %v1275 = vand.u32 %v1274, 4294901760
  %v1276 = vsub.f32 %v1274, %v1275
  %v1277 = vand.u32 %v1276, 4294901760
  %1278 = vmatpush1.msra.mxu0 %v1277
  %1279 = vmatprep.subr.mxu0 0.0
  %v1280 = vand.u32 %v71, 4294901760
  %v1281 = vsub.f32 %v71, %v1280
  %v1282 = vand.u32 %v1281, 4294901760
  %v1283 = vsub.f32 %v1281, %v1282
  %v1284 = vand.u32 %v1283, 4294901760
  %1285 = vmatpush1.msra.mxu0 %v1284
  %1286 = vmatprep.subr.mxu0 0.0
  %v1287 = vand.u32 %v72, 4294901760
  %v1288 = vsub.f32 %v72, %v1287
  %v1289 = vand.u32 %v1288, 4294901760
  %v1290 = vsub.f32 %v1288, %v1289
  %v1291 = vand.u32 %v1290, 4294901760
  %1292 = vmatpush1.msra.mxu0 %v1291
  %1293 = vmatprep.subr.mxu0 0.0
  %v1294 = vand.u32 %v73, 4294901760
  %v1295 = vsub.f32 %v73, %v1294
  %v1296 = vand.u32 %v1295, 4294901760
  %v1297 = vsub.f32 %v1295, %v1296
  %v1298 = vand.u32 %v1297, 4294901760
  %1299 = vmatpush1.msra.mxu0 %v1298
  %1300 = vmatprep.subr.mxu0 0.0
  %v1301 = vand.u32 %v74, 4294901760
  %v1302 = vsub.f32 %v74, %v1301
  %v1303 = vand.u32 %v1302, 4294901760
  %v1304 = vsub.f32 %v1302, %v1303
  %v1305 = vand.u32 %v1304, 4294901760
  %1306 = vmatpush1.msra.mxu0 %v1305
  %1307 = vmatprep.subr.mxu0 0.0
  %v1308 = vand.u32 %v75, 4294901760
  %v1309 = vsub.f32 %v75, %v1308
  %v1310 = vand.u32 %v1309, 4294901760
  %v1311 = vsub.f32 %v1309, %v1310
  %v1312 = vand.u32 %v1311, 4294901760
  %1313 = vmatpush1.msra.mxu0 %v1312
  %1314 = vmatprep.subr.mxu0 0.0
  %v1315 = vand.u32 %v76, 4294901760
  %v1316 = vsub.f32 %v76, %v1315
  %v1317 = vand.u32 %v1316, 4294901760
  %v1318 = vsub.f32 %v1316, %v1317
  %v1319 = vand.u32 %v1318, 4294901760
  %1320 = vmatpush1.msra.mxu0 %v1319
  %1321 = vmatprep.subr.mxu0 0.0
  %v1322 = vand.u32 %v77, 4294901760
  %v1323 = vsub.f32 %v77, %v1322
  %v1324 = vand.u32 %v1323, 4294901760
  %v1325 = vsub.f32 %v1323, %v1324
  %v1326 = vand.u32 %v1325, 4294901760
  %1327 = vmatpush1.msra.mxu0 %v1326
  %1328 = vmatprep.subr.mxu0 0.0
  %v1329 = vand.u32 %v78, 4294901760
  %v1330 = vsub.f32 %v78, %v1329
  %v1331 = vand.u32 %v1330, 4294901760
  %v1332 = vsub.f32 %v1330, %v1331
  %v1333 = vand.u32 %v1332, 4294901760
  %1334 = vmatpush1.msra.mxu0 %v1333
  %1335 = vmatprep.subr.mxu0 0.0
  %v1336 = vand.u32 %v79, 4294901760
  %v1337 = vsub.f32 %v79, %v1336
  %v1338 = vand.u32 %v1337, 4294901760
  %v1339 = vsub.f32 %v1337, %v1338
  %v1340 = vand.u32 %v1339, 4294901760
  %1341 = vmatpush1.msra.mxu0 %v1340
  %1342 = vmatprep.subr.mxu0 0.0
  %v1343 = vand.u32 %v80, 4294901760
  %v1344 = vsub.f32 %v80, %v1343
  %v1345 = vand.u32 %v1344, 4294901760
  %v1346 = vsub.f32 %v1344, %v1345
  %v1347 = vand.u32 %v1346, 4294901760
  %1348 = vmatpush1.msra.mxu0 %v1347
  %1349 = vmatprep.subr.mxu0 0.0
  %v1350 = vand.u32 %v81, 4294901760
  %v1351 = vsub.f32 %v81, %v1350
  %v1352 = vand.u32 %v1351, 4294901760
  %v1353 = vsub.f32 %v1351, %v1352
  %v1354 = vand.u32 %v1353, 4294901760
  %1355 = vmatpush1.msra.mxu0 %v1354
  %1356 = vmatprep.subr.mxu0 0.0
  %v1357 = vand.u32 %v82, 4294901760
  %v1358 = vsub.f32 %v82, %v1357
  %v1359 = vand.u32 %v1358, 4294901760
  %v1360 = vsub.f32 %v1358, %v1359
  %v1361 = vand.u32 %v1360, 4294901760
  %1362 = vmatpush1.msra.mxu0 %v1361
  %1363 = vmatprep.subr.mxu0 0.0
  %v1364 = vand.u32 %v83, 4294901760
  %v1365 = vsub.f32 %v83, %v1364
  %v1366 = vand.u32 %v1365, 4294901760
  %v1367 = vsub.f32 %v1365, %v1366
  %v1368 = vand.u32 %v1367, 4294901760
  %1369 = vmatpush1.msra.mxu0 %v1368
  %1370 = vmatprep.subr.mxu0 0.0
  %v1371 = vand.u32 %v84, 4294901760
  %v1372 = vsub.f32 %v84, %v1371
  %v1373 = vand.u32 %v1372, 4294901760
  %v1374 = vsub.f32 %v1372, %v1373
  %v1375 = vand.u32 %v1374, 4294901760
  %1376 = vmatpush1.msra.mxu0 %v1375
  %1377 = vmatprep.subr.mxu0 0.0
  %v1378 = vand.u32 %v85, 4294901760
  %v1379 = vsub.f32 %v85, %v1378
  %v1380 = vand.u32 %v1379, 4294901760
  %v1381 = vsub.f32 %v1379, %v1380
  %v1382 = vand.u32 %v1381, 4294901760
  %1383 = vmatpush1.msra.mxu0 %v1382
  %1384 = vmatprep.subr.mxu0 0.0
  %v1385 = vand.u32 %v86, 4294901760
  %v1386 = vsub.f32 %v86, %v1385
  %v1387 = vand.u32 %v1386, 4294901760
  %v1388 = vsub.f32 %v1386, %v1387
  %v1389 = vand.u32 %v1388, 4294901760
  %1390 = vmatpush1.msra.mxu0 %v1389
  %1391 = vmatprep.subr.mxu0 0.0
  %v1392 = vand.u32 %v87, 4294901760
  %v1393 = vsub.f32 %v87, %v1392
  %v1394 = vand.u32 %v1393, 4294901760
  %v1395 = vsub.f32 %v1393, %v1394
  %v1396 = vand.u32 %v1395, 4294901760
  %1397 = vmatpush1.msra.mxu0 %v1396
  %1398 = vmatprep.subr.mxu0 0.0
  %v1399 = vand.u32 %v88, 4294901760
  %v1400 = vsub.f32 %v88, %v1399
  %v1401 = vand.u32 %v1400, 4294901760
  %v1402 = vsub.f32 %v1400, %v1401
  %v1403 = vand.u32 %v1402, 4294901760
  %1404 = vmatpush1.msra.mxu0 %v1403
  %1405 = vmatprep.subr.mxu0 0.0
  %v1406 = vand.u32 %v89, 4294901760
  %v1407 = vsub.f32 %v89, %v1406
  %v1408 = vand.u32 %v1407, 4294901760
  %v1409 = vsub.f32 %v1407, %v1408
  %v1410 = vand.u32 %v1409, 4294901760
  %1411 = vmatpush1.msra.mxu0 %v1410
  %1412 = vmatprep.subr.mxu0 0.0
  %v1413 = vand.u32 %v90, 4294901760
  %v1414 = vsub.f32 %v90, %v1413
  %v1415 = vand.u32 %v1414, 4294901760
  %v1416 = vsub.f32 %v1414, %v1415
  %v1417 = vand.u32 %v1416, 4294901760
  %1418 = vmatpush1.msra.mxu0 %v1417
  %1419 = vmatprep.subr.mxu0 0.0
  %v1420 = vand.u32 %v91, 4294901760
  %v1421 = vsub.f32 %v91, %v1420
  %v1422 = vand.u32 %v1421, 4294901760
  %v1423 = vsub.f32 %v1421, %v1422
  %v1424 = vand.u32 %v1423, 4294901760
  %1425 = vmatpush1.msra.mxu0 %v1424
  %1426 = vmatprep.subr.mxu0 0.0
  %v1427 = vand.u32 %v92, 4294901760
  %v1428 = vsub.f32 %v92, %v1427
  %v1429 = vand.u32 %v1428, 4294901760
  %v1430 = vsub.f32 %v1428, %v1429
  %v1431 = vand.u32 %v1430, 4294901760
  %1432 = vmatpush1.msra.mxu0 %v1431
  %v1433 = vand.u32 %v20, 4294901760
  %1434 = vmatprep.mubr.f32.mxu0 %v1433
  %v1435 = vand.u32 %v19, 4294901760
  %1436 = vmatmul.mubr.f32.gmra.mrb[0].mxu0 %v1435
  %v1437 = vpop.f32.mrb[0].mxu0
  %v1438 = vadd.f32 %v1176, %v1437
  %v1439 = vpop.f32.mrb[0].mxu0
  %v1440 = vand.u32 %v24, 4294901760
  %1441 = vmatprep.mubr.f32.mxu0 %v1440
  %v1442 = vand.u32 %v23, 4294901760
  %1443 = vmatmul.mubr.f32.gmra.mrb[0].mxu0 %v1442
  %v1444 = vpop.f32.mrb[0].mxu0
  %v1445 = vadd.f32 %v1191, %v1444
  %v1446 = vpop.f32.mrb[0].mxu0
  %v1447 = vand.u32 %v28, 4294901760
  %1448 = vmatprep.mubr.f32.mxu0 %v1447
  %v1449 = vand.u32 %v27, 4294901760
  %1450 = vmatmul.mubr.f32.gmra.mrb[0].mxu0 %v1449
  %v1451 = vpop.f32.mrb[0].mxu0
  %v1452 = vadd.f32 %v1206, %v1451
  %v1453 = vpop.f32.mrb[0].mxu0
  %1454 = vdwg.mxu0
  %1455 = vmatprep.subr.mxu0 0.0
  %v1456 = vand.u32 %v61, 4294901760
  %v1457 = vsub.f32 %v61, %v1456
  %1458 = vmatpush1.msra.mxu0 %v1457
  %1459 = vmatprep.subr.mxu0 0.0
  %v1460 = vand.u32 %v62, 4294901760
  %v1461 = vsub.f32 %v62, %v1460
  %1462 = vmatpush1.msra.mxu0 %v1461
  %1463 = vmatprep.subr.mxu0 0.0
  %v1464 = vand.u32 %v63, 4294901760
  %v1465 = vsub.f32 %v63, %v1464
  %1466 = vmatpush1.msra.mxu0 %v1465
  %1467 = vmatprep.subr.mxu0 0.0
  %v1468 = vand.u32 %v64, 4294901760
  %v1469 = vsub.f32 %v64, %v1468
  %1470 = vmatpush1.msra.mxu0 %v1469
  %1471 = vmatprep.subr.mxu0 0.0
  %v1472 = vand.u32 %v65, 4294901760
  %v1473 = vsub.f32 %v65, %v1472
  %1474 = vmatpush1.msra.mxu0 %v1473
  %1475 = vmatprep.subr.mxu0 0.0
  %v1476 = vand.u32 %v66, 4294901760
  %v1477 = vsub.f32 %v66, %v1476
  %1478 = vmatpush1.msra.mxu0 %v1477
  %1479 = vmatprep.subr.mxu0 0.0
  %v1480 = vand.u32 %v67, 4294901760
  %v1481 = vsub.f32 %v67, %v1480
  %1482 = vmatpush1.msra.mxu0 %v1481
  %1483 = vmatprep.subr.mxu0 0.0
  %v1484 = vand.u32 %v68, 4294901760
  %v1485 = vsub.f32 %v68, %v1484
  %1486 = vmatpush1.msra.mxu0 %v1485
  %1487 = vmatprep.subr.mxu0 0.0
  %v1488 = vand.u32 %v69, 4294901760
  %v1489 = vsub.f32 %v69, %v1488
  %1490 = vmatpush1.msra.mxu0 %v1489
  %1491 = vmatprep.subr.mxu0 0.0
  %v1492 = vand.u32 %v70, 4294901760
  %v1493 = vsub.f32 %v70, %v1492
  %1494 = vmatpush1.msra.mxu0 %v1493
  %1495 = vmatprep.subr.mxu0 0.0
  %v1496 = vand.u32 %v71, 4294901760
  %v1497 = vsub.f32 %v71, %v1496
  %1498 = vmatpush1.msra.mxu0 %v1497
  %1499 = vmatprep.subr.mxu0 0.0
  %v1500 = vand.u32 %v72, 4294901760
  %v1501 = vsub.f32 %v72, %v1500
  %1502 = vmatpush1.msra.mxu0 %v1501
  %1503 = vmatprep.subr.mxu0 0.0
  %v1504 = vand.u32 %v73, 4294901760
  %v1505 = vsub.f32 %v73, %v1504
  %1506 = vmatpush1.msra.mxu0 %v1505
  %1507 = vmatprep.subr.mxu0 0.0
  %v1508 = vand.u32 %v74, 4294901760
  %v1509 = vsub.f32 %v74, %v1508
  %1510 = vmatpush1.msra.mxu0 %v1509
  %1511 = vmatprep.subr.mxu0 0.0
  %v1512 = vand.u32 %v75, 4294901760
  %v1513 = vsub.f32 %v75, %v1512
  %1514 = vmatpush1.msra.mxu0 %v1513
  %1515 = vmatprep.subr.mxu0 0.0
  %v1516 = vand.u32 %v76, 4294901760
  %v1517 = vsub.f32 %v76, %v1516
  %1518 = vmatpush1.msra.mxu0 %v1517
  %1519 = vmatprep.subr.mxu0 0.0
  %v1520 = vand.u32 %v77, 4294901760
  %v1521 = vsub.f32 %v77, %v1520
  %1522 = vmatpush1.msra.mxu0 %v1521
  %1523 = vmatprep.subr.mxu0 0.0
  %v1524 = vand.u32 %v78, 4294901760
  %v1525 = vsub.f32 %v78, %v1524
  %1526 = vmatpush1.msra.mxu0 %v1525
  %1527 = vmatprep.subr.mxu0 0.0
  %v1528 = vand.u32 %v79, 4294901760
  %v1529 = vsub.f32 %v79, %v1528
  %1530 = vmatpush1.msra.mxu0 %v1529
  %1531 = vmatprep.subr.mxu0 0.0
  %v1532 = vand.u32 %v80, 4294901760
  %v1533 = vsub.f32 %v80, %v1532
  %1534 = vmatpush1.msra.mxu0 %v1533
  %1535 = vmatprep.subr.mxu0 0.0
  %v1536 = vand.u32 %v81, 4294901760
  %v1537 = vsub.f32 %v81, %v1536
  %1538 = vmatpush1.msra.mxu0 %v1537
  %1539 = vmatprep.subr.mxu0 0.0
  %v1540 = vand.u32 %v82, 4294901760
  %v1541 = vsub.f32 %v82, %v1540
  %1542 = vmatpush1.msra.mxu0 %v1541
  %1543 = vmatprep.subr.mxu0 0.0
  %v1544 = vand.u32 %v83, 4294901760
  %v1545 = vsub.f32 %v83, %v1544
  %1546 = vmatpush1.msra.mxu0 %v1545
  %1547 = vmatprep.subr.mxu0 0.0
  %v1548 = vand.u32 %v84, 4294901760
  %v1549 = vsub.f32 %v84, %v1548
  %1550 = vmatpush1.msra.mxu0 %v1549
  %1551 = vmatprep.subr.mxu0 0.0
  %v1552 = vand.u32 %v85, 4294901760
  %v1553 = vsub.f32 %v85, %v1552
  %1554 = vmatpush1.msra.mxu0 %v1553
  %1555 = vmatprep.subr.mxu0 0.0
  %v1556 = vand.u32 %v86, 4294901760
  %v1557 = vsub.f32 %v86, %v1556
  %1558 = vmatpush1.msra.mxu0 %v1557
  %1559 = vmatprep.subr.mxu0 0.0
  %v1560 = vand.u32 %v87, 4294901760
  %v1561 = vsub.f32 %v87, %v1560
  %1562 = vmatpush1.msra.mxu0 %v1561
  %1563 = vmatprep.subr.mxu0 0.0
  %v1564 = vand.u32 %v88, 4294901760
  %v1565 = vsub.f32 %v88, %v1564
  %1566 = vmatpush1.msra.mxu0 %v1565
  %1567 = vmatprep.subr.mxu0 0.0
  %v1568 = vand.u32 %v89, 4294901760
  %v1569 = vsub.f32 %v89, %v1568
  %1570 = vmatpush1.msra.mxu0 %v1569
  %1571 = vmatprep.subr.mxu0 0.0
  %v1572 = vand.u32 %v90, 4294901760
  %v1573 = vsub.f32 %v90, %v1572
  %1574 = vmatpush1.msra.mxu0 %v1573
  %1575 = vmatprep.subr.mxu0 0.0
  %v1576 = vand.u32 %v91, 4294901760
  %v1577 = vsub.f32 %v91, %v1576
  %1578 = vmatpush1.msra.mxu0 %v1577
  %1579 = vmatprep.subr.mxu0 0.0
  %v1580 = vand.u32 %v92, 4294901760
  %v1581 = vsub.f32 %v92, %v1580
  %1582 = vmatpush1.msra.mxu0 %v1581
  %v1583 = vand.u32 %v20, 4294901760
  %v1584 = vsub.f32 %v20, %v1583
  %1585 = vmatprep.mubr.f32.mxu0 %v1584
  %v1586 = vand.u32 %v19, 4294901760
  %v1587 = vsub.f32 %v19, %v1586
  %1588 = vmatmul.mubr.f32.gmra.mrb[0].mxu0 %v1587
  %v1589 = vpop.f32.mrb[0].mxu0
  %v1590 = vadd.f32 %v1438, %v1589
  %v1591 = vpop.f32.mrb[0].mxu0
  %v1592 = vand.u32 %v24, 4294901760
  %v1593 = vsub.f32 %v24, %v1592
  %1594 = vmatprep.mubr.f32.mxu0 %v1593
  %v1595 = vand.u32 %v23, 4294901760
  %v1596 = vsub.f32 %v23, %v1595
  %1597 = vmatmul.mubr.f32.gmra.mrb[0].mxu0 %v1596
  %v1598 = vpop.f32.mrb[0].mxu0
  %v1599 = vadd.f32 %v1445, %v1598
  %v1600 = vpop.f32.mrb[0].mxu0
  %v1601 = vand.u32 %v28, 4294901760
  %v1602 = vsub.f32 %v28, %v1601
  %1603 = vmatprep.mubr.f32.mxu0 %v1602
  %v1604 = vand.u32 %v27, 4294901760
  %v1605 = vsub.f32 %v27, %v1604
  %1606 = vmatmul.mubr.f32.gmra.mrb[0].mxu0 %v1605
  %v1607 = vpop.f32.mrb[0].mxu0
  %v1608 = vadd.f32 %v1452, %v1607
  %v1609 = vpop.f32.mrb[0].mxu0
  %1610 = vdwg.mxu0
  %1611 = vmatprep.subr.mxu0 0.0
  %v1612 = vand.u32 %v61, 4294901760
  %1613 = vmatpush1.msra.mxu0 %v1612
  %1614 = vmatprep.subr.mxu0 0.0
  %v1615 = vand.u32 %v62, 4294901760
  %1616 = vmatpush1.msra.mxu0 %v1615
  %1617 = vmatprep.subr.mxu0 0.0
  %v1618 = vand.u32 %v63, 4294901760
  %1619 = vmatpush1.msra.mxu0 %v1618
  %1620 = vmatprep.subr.mxu0 0.0
  %v1621 = vand.u32 %v64, 4294901760
  %1622 = vmatpush1.msra.mxu0 %v1621
  %1623 = vmatprep.subr.mxu0 0.0
  %v1624 = vand.u32 %v65, 4294901760
  %1625 = vmatpush1.msra.mxu0 %v1624
  %1626 = vmatprep.subr.mxu0 0.0
  %v1627 = vand.u32 %v66, 4294901760
  %1628 = vmatpush1.msra.mxu0 %v1627
  %1629 = vmatprep.subr.mxu0 0.0
  %v1630 = vand.u32 %v67, 4294901760
  %1631 = vmatpush1.msra.mxu0 %v1630
  %1632 = vmatprep.subr.mxu0 0.0
  %v1633 = vand.u32 %v68, 4294901760
  %1634 = vmatpush1.msra.mxu0 %v1633
  %1635 = vmatprep.subr.mxu0 0.0
  %v1636 = vand.u32 %v69, 4294901760
  %1637 = vmatpush1.msra.mxu0 %v1636
  %1638 = vmatprep.subr.mxu0 0.0
  %v1639 = vand.u32 %v70, 4294901760
  %1640 = vmatpush1.msra.mxu0 %v1639
  %1641 = vmatprep.subr.mxu0 0.0
  %v1642 = vand.u32 %v71, 4294901760
  %1643 = vmatpush1.msra.mxu0 %v1642
  %1644 = vmatprep.subr.mxu0 0.0
  %v1645 = vand.u32 %v72, 4294901760
  %1646 = vmatpush1.msra.mxu0 %v1645
  %1647 = vmatprep.subr.mxu0 0.0
  %v1648 = vand.u32 %v73, 4294901760
  %1649 = vmatpush1.msra.mxu0 %v1648
  %1650 = vmatprep.subr.mxu0 0.0
  %v1651 = vand.u32 %v74, 4294901760
  %1652 = vmatpush1.msra.mxu0 %v1651
  %1653 = vmatprep.subr.mxu0 0.0
  %v1654 = vand.u32 %v75, 4294901760
  %1655 = vmatpush1.msra.mxu0 %v1654
  %1656 = vmatprep.subr.mxu0 0.0
  %v1657 = vand.u32 %v76, 4294901760
  %1658 = vmatpush1.msra.mxu0 %v1657
  %1659 = vmatprep.subr.mxu0 0.0
  %v1660 = vand.u32 %v77, 4294901760
  %1661 = vmatpush1.msra.mxu0 %v1660
  %1662 = vmatprep.subr.mxu0 0.0
  %v1663 = vand.u32 %v78, 4294901760
  %1664 = vmatpush1.msra.mxu0 %v1663
  %1665 = vmatprep.subr.mxu0 0.0
  %v1666 = vand.u32 %v79, 4294901760
  %1667 = vmatpush1.msra.mxu0 %v1666
  %1668 = vmatprep.subr.mxu0 0.0
  %v1669 = vand.u32 %v80, 4294901760
  %1670 = vmatpush1.msra.mxu0 %v1669
  %1671 = vmatprep.subr.mxu0 0.0
  %v1672 = vand.u32 %v81, 4294901760
  %1673 = vmatpush1.msra.mxu0 %v1672
  %1674 = vmatprep.subr.mxu0 0.0
  %v1675 = vand.u32 %v82, 4294901760
  %1676 = vmatpush1.msra.mxu0 %v1675
  %1677 = vmatprep.subr.mxu0 0.0
  %v1678 = vand.u32 %v83, 4294901760
  %1679 = vmatpush1.msra.mxu0 %v1678
  %1680 = vmatprep.subr.mxu0 0.0
  %v1681 = vand.u32 %v84, 4294901760
  %1682 = vmatpush1.msra.mxu0 %v1681
  %1683 = vmatprep.subr.mxu0 0.0
  %v1684 = vand.u32 %v85, 4294901760
  %1685 = vmatpush1.msra.mxu0 %v1684
  %1686 = vmatprep.subr.mxu0 0.0
  %v1687 = vand.u32 %v86, 4294901760
  %1688 = vmatpush1.msra.mxu0 %v1687
  %1689 = vmatprep.subr.mxu0 0.0
  %v1690 = vand.u32 %v87, 4294901760
  %1691 = vmatpush1.msra.mxu0 %v1690
  %1692 = vmatprep.subr.mxu0 0.0
  %v1693 = vand.u32 %v88, 4294901760
  %1694 = vmatpush1.msra.mxu0 %v1693
  %1695 = vmatprep.subr.mxu0 0.0
  %v1696 = vand.u32 %v89, 4294901760
  %1697 = vmatpush1.msra.mxu0 %v1696
  %1698 = vmatprep.subr.mxu0 0.0
  %v1699 = vand.u32 %v90, 4294901760
  %1700 = vmatpush1.msra.mxu0 %v1699
  %1701 = vmatprep.subr.mxu0 0.0
  %v1702 = vand.u32 %v91, 4294901760
  %1703 = vmatpush1.msra.mxu0 %v1702
  %1704 = vmatprep.subr.mxu0 0.0
  %v1705 = vand.u32 %v92, 4294901760
  %1706 = vmatpush1.msra.mxu0 %v1705
  %v1707 = vand.u32 %v20, 4294901760
  %v1708 = vsub.f32 %v20, %v1707
  %v1709 = vand.u32 %v1708, 4294901760
  %1710 = vmatprep.mubr.f32.mxu0 %v1709
  %v1711 = vand.u32 %v19, 4294901760
  %v1712 = vsub.f32 %v19, %v1711
  %v1713 = vand.u32 %v1712, 4294901760
  %1714 = vmatmul.mubr.f32.gmra.mrb[0].mxu0 %v1713
  %v1715 = vpop.f32.mrb[0].mxu0
  %v1716 = vadd.f32 %v1590, %v1715
  %v1717 = vpop.f32.mrb[0].mxu0
  %v1718 = vand.u32 %v24, 4294901760
  %v1719 = vsub.f32 %v24, %v1718
  %v1720 = vand.u32 %v1719, 4294901760
  %1721 = vmatprep.mubr.f32.mxu0 %v1720
  %v1722 = vand.u32 %v23, 4294901760
  %v1723 = vsub.f32 %v23, %v1722
  %v1724 = vand.u32 %v1723, 4294901760
  %1725 = vmatmul.mubr.f32.gmra.mrb[0].mxu0 %v1724
  %v1726 = vpop.f32.mrb[0].mxu0
  %v1727 = vadd.f32 %v1599, %v1726
  %v1728 = vpop.f32.mrb[0].mxu0
  %v1729 = vand.u32 %v28, 4294901760
  %v1730 = vsub.f32 %v28, %v1729
  %v1731 = vand.u32 %v1730, 4294901760
  %1732 = vmatprep.mubr.f32.mxu0 %v1731
  %v1733 = vand.u32 %v27, 4294901760
  %v1734 = vsub.f32 %v27, %v1733
  %v1735 = vand.u32 %v1734, 4294901760
  %1736 = vmatmul.mubr.f32.gmra.mrb[0].mxu0 %v1735
  %v1737 = vpop.f32.mrb[0].mxu0
  %v1738 = vadd.f32 %v1608, %v1737
  %v1739 = vpop.f32.mrb[0].mxu0
  %1740 = vdwg.mxu0
  %1741 = vmatprep.subr.mxu0 0.0
  %v1742 = vand.u32 %v61, 4294901760
  %v1743 = vsub.f32 %v61, %v1742
  %v1744 = vand.u32 %v1743, 4294901760
  %1745 = vmatpush1.msra.mxu0 %v1744
  %1746 = vmatprep.subr.mxu0 0.0
  %v1747 = vand.u32 %v62, 4294901760
  %v1748 = vsub.f32 %v62, %v1747
  %v1749 = vand.u32 %v1748, 4294901760
  %1750 = vmatpush1.msra.mxu0 %v1749
  %1751 = vmatprep.subr.mxu0 0.0
  %v1752 = vand.u32 %v63, 4294901760
  %v1753 = vsub.f32 %v63, %v1752
  %v1754 = vand.u32 %v1753, 4294901760
  %1755 = vmatpush1.msra.mxu0 %v1754
  %1756 = vmatprep.subr.mxu0 0.0
  %v1757 = vand.u32 %v64, 4294901760
  %v1758 = vsub.f32 %v64, %v1757
  %v1759 = vand.u32 %v1758, 4294901760
  %1760 = vmatpush1.msra.mxu0 %v1759
  %1761 = vmatprep.subr.mxu0 0.0
  %v1762 = vand.u32 %v65, 4294901760
  %v1763 = vsub.f32 %v65, %v1762
  %v1764 = vand.u32 %v1763, 4294901760
  %1765 = vmatpush1.msra.mxu0 %v1764
  %1766 = vmatprep.subr.mxu0 0.0
  %v1767 = vand.u32 %v66, 4294901760
  %v1768 = vsub.f32 %v66, %v1767
  %v1769 = vand.u32 %v1768, 4294901760
  %1770 = vmatpush1.msra.mxu0 %v1769
  %1771 = vmatprep.subr.mxu0 0.0
  %v1772 = vand.u32 %v67, 4294901760
  %v1773 = vsub.f32 %v67, %v1772
  %v1774 = vand.u32 %v1773, 4294901760
  %1775 = vmatpush1.msra.mxu0 %v1774
  %1776 = vmatprep.subr.mxu0 0.0
  %v1777 = vand.u32 %v68, 4294901760
  %v1778 = vsub.f32 %v68, %v1777
  %v1779 = vand.u32 %v1778, 4294901760
  %1780 = vmatpush1.msra.mxu0 %v1779
  %1781 = vmatprep.subr.mxu0 0.0
  %v1782 = vand.u32 %v69, 4294901760
  %v1783 = vsub.f32 %v69, %v1782
  %v1784 = vand.u32 %v1783, 4294901760
  %1785 = vmatpush1.msra.mxu0 %v1784
  %1786 = vmatprep.subr.mxu0 0.0
  %v1787 = vand.u32 %v70, 4294901760
  %v1788 = vsub.f32 %v70, %v1787
  %v1789 = vand.u32 %v1788, 4294901760
  %1790 = vmatpush1.msra.mxu0 %v1789
  %1791 = vmatprep.subr.mxu0 0.0
  %v1792 = vand.u32 %v71, 4294901760
  %v1793 = vsub.f32 %v71, %v1792
  %v1794 = vand.u32 %v1793, 4294901760
  %1795 = vmatpush1.msra.mxu0 %v1794
  %1796 = vmatprep.subr.mxu0 0.0
  %v1797 = vand.u32 %v72, 4294901760
  %v1798 = vsub.f32 %v72, %v1797
  %v1799 = vand.u32 %v1798, 4294901760
  %1800 = vmatpush1.msra.mxu0 %v1799
  %1801 = vmatprep.subr.mxu0 0.0
  %v1802 = vand.u32 %v73, 4294901760
  %v1803 = vsub.f32 %v73, %v1802
  %v1804 = vand.u32 %v1803, 4294901760
  %1805 = vmatpush1.msra.mxu0 %v1804
  %1806 = vmatprep.subr.mxu0 0.0
  %v1807 = vand.u32 %v74, 4294901760
  %v1808 = vsub.f32 %v74, %v1807
  %v1809 = vand.u32 %v1808, 4294901760
  %1810 = vmatpush1.msra.mxu0 %v1809
  %1811 = vmatprep.subr.mxu0 0.0
  %v1812 = vand.u32 %v75, 4294901760
  %v1813 = vsub.f32 %v75, %v1812
  %v1814 = vand.u32 %v1813, 4294901760
  %1815 = vmatpush1.msra.mxu0 %v1814
  %1816 = vmatprep.subr.mxu0 0.0
  %v1817 = vand.u32 %v76, 4294901760
  %v1818 = vsub.f32 %v76, %v1817
  %v1819 = vand.u32 %v1818, 4294901760
  %1820 = vmatpush1.msra.mxu0 %v1819
  %1821 = vmatprep.subr.mxu0 0.0
  %v1822 = vand.u32 %v77, 4294901760
  %v1823 = vsub.f32 %v77, %v1822
  %v1824 = vand.u32 %v1823, 4294901760
  %1825 = vmatpush1.msra.mxu0 %v1824
  %1826 = vmatprep.subr.mxu0 0.0
  %v1827 = vand.u32 %v78, 4294901760
  %v1828 = vsub.f32 %v78, %v1827
  %v1829 = vand.u32 %v1828, 4294901760
  %1830 = vmatpush1.msra.mxu0 %v1829
  %1831 = vmatprep.subr.mxu0 0.0
  %v1832 = vand.u32 %v79, 4294901760
  %v1833 = vsub.f32 %v79, %v1832
  %v1834 = vand.u32 %v1833, 4294901760
  %1835 = vmatpush1.msra.mxu0 %v1834
  %1836 = vmatprep.subr.mxu0 0.0
  %v1837 = vand.u32 %v80, 4294901760
  %v1838 = vsub.f32 %v80, %v1837
  %v1839 = vand.u32 %v1838, 4294901760
  %1840 = vmatpush1.msra.mxu0 %v1839
  %1841 = vmatprep.subr.mxu0 0.0
  %v1842 = vand.u32 %v81, 4294901760
  %v1843 = vsub.f32 %v81, %v1842
  %v1844 = vand.u32 %v1843, 4294901760
  %1845 = vmatpush1.msra.mxu0 %v1844
  %1846 = vmatprep.subr.mxu0 0.0
  %v1847 = vand.u32 %v82, 4294901760
  %v1848 = vsub.f32 %v82, %v1847
  %v1849 = vand.u32 %v1848, 4294901760
  %1850 = vmatpush1.msra.mxu0 %v1849
  %1851 = vmatprep.subr.mxu0 0.0
  %v1852 = vand.u32 %v83, 4294901760
  %v1853 = vsub.f32 %v83, %v1852
  %v1854 = vand.u32 %v1853, 4294901760
  %1855 = vmatpush1.msra.mxu0 %v1854
  %1856 = vmatprep.subr.mxu0 0.0
  %v1857 = vand.u32 %v84, 4294901760
  %v1858 = vsub.f32 %v84, %v1857
  %v1859 = vand.u32 %v1858, 4294901760
  %1860 = vmatpush1.msra.mxu0 %v1859
  %1861 = vmatprep.subr.mxu0 0.0
  %v1862 = vand.u32 %v85, 4294901760
  %v1863 = vsub.f32 %v85, %v1862
  %v1864 = vand.u32 %v1863, 4294901760
  %1865 = vmatpush1.msra.mxu0 %v1864
  %1866 = vmatprep.subr.mxu0 0.0
  %v1867 = vand.u32 %v86, 4294901760
  %v1868 = vsub.f32 %v86, %v1867
  %v1869 = vand.u32 %v1868, 4294901760
  %1870 = vmatpush1.msra.mxu0 %v1869
  %1871 = vmatprep.subr.mxu0 0.0
  %v1872 = vand.u32 %v87, 4294901760
  %v1873 = vsub.f32 %v87, %v1872
  %v1874 = vand.u32 %v1873, 4294901760
  %1875 = vmatpush1.msra.mxu0 %v1874
  %1876 = vmatprep.subr.mxu0 0.0
  %v1877 = vand.u32 %v88, 4294901760
  %v1878 = vsub.f32 %v88, %v1877
  %v1879 = vand.u32 %v1878, 4294901760
  %1880 = vmatpush1.msra.mxu0 %v1879
  %1881 = vmatprep.subr.mxu0 0.0
  %v1882 = vand.u32 %v89, 4294901760
  %v1883 = vsub.f32 %v89, %v1882
  %v1884 = vand.u32 %v1883, 4294901760
  %1885 = vmatpush1.msra.mxu0 %v1884
  %1886 = vmatprep.subr.mxu0 0.0
  %v1887 = vand.u32 %v90, 4294901760
  %v1888 = vsub.f32 %v90, %v1887
  %v1889 = vand.u32 %v1888, 4294901760
  %1890 = vmatpush1.msra.mxu0 %v1889
  %1891 = vmatprep.subr.mxu0 0.0
  %v1892 = vand.u32 %v91, 4294901760
  %v1893 = vsub.f32 %v91, %v1892
  %v1894 = vand.u32 %v1893, 4294901760
  %1895 = vmatpush1.msra.mxu0 %v1894
  %1896 = vmatprep.subr.mxu0 0.0
  %v1897 = vand.u32 %v92, 4294901760
  %v1898 = vsub.f32 %v92, %v1897
  %v1899 = vand.u32 %v1898, 4294901760
  %1900 = vmatpush1.msra.mxu0 %v1899
  %v1901 = vand.u32 %v20, 4294901760
  %1902 = vmatprep.mubr.f32.mxu0 %v1901
  %v1903 = vand.u32 %v19, 4294901760
  %1904 = vmatmul.mubr.f32.gmra.mrb[0].mxu0 %v1903
  %v1905 = vpop.f32.mrb[0].mxu0
  %v1906 = vadd.f32 %v1716, %v1905
  %v1907 = vpop.f32.mrb[0].mxu0
  %v1908 = vand.u32 %v24, 4294901760
  %1909 = vmatprep.mubr.f32.mxu0 %v1908
  %v1910 = vand.u32 %v23, 4294901760
  %1911 = vmatmul.mubr.f32.gmra.mrb[0].mxu0 %v1910
  %v1912 = vpop.f32.mrb[0].mxu0
  %v1913 = vadd.f32 %v1727, %v1912
  %v1914 = vpop.f32.mrb[0].mxu0
  %v1915 = vand.u32 %v28, 4294901760
  %1916 = vmatprep.mubr.f32.mxu0 %v1915
  %v1917 = vand.u32 %v27, 4294901760
  %1918 = vmatmul.mubr.f32.gmra.mrb[0].mxu0 %v1917
  %v1919 = vpop.f32.mrb[0].mxu0
  %v1920 = vadd.f32 %v1738, %v1919
  %v1921 = vpop.f32.mrb[0].mxu0
  %1922 = vdwg.mxu0
  %1923 = vmatprep.subr.mxu0 0.0
  %v1924 = vand.u32 %v61, 4294901760
  %1925 = vmatpush1.msra.mxu0 %v1924
  %1926 = vmatprep.subr.mxu0 0.0
  %v1927 = vand.u32 %v62, 4294901760
  %1928 = vmatpush1.msra.mxu0 %v1927
  %1929 = vmatprep.subr.mxu0 0.0
  %v1930 = vand.u32 %v63, 4294901760
  %1931 = vmatpush1.msra.mxu0 %v1930
  %1932 = vmatprep.subr.mxu0 0.0
  %v1933 = vand.u32 %v64, 4294901760
  %1934 = vmatpush1.msra.mxu0 %v1933
  %1935 = vmatprep.subr.mxu0 0.0
  %v1936 = vand.u32 %v65, 4294901760
  %1937 = vmatpush1.msra.mxu0 %v1936
  %1938 = vmatprep.subr.mxu0 0.0
  %v1939 = vand.u32 %v66, 4294901760
  %1940 = vmatpush1.msra.mxu0 %v1939
  %1941 = vmatprep.subr.mxu0 0.0
  %v1942 = vand.u32 %v67, 4294901760
  %1943 = vmatpush1.msra.mxu0 %v1942
  %1944 = vmatprep.subr.mxu0 0.0
  %v1945 = vand.u32 %v68, 4294901760
  %1946 = vmatpush1.msra.mxu0 %v1945
  %1947 = vmatprep.subr.mxu0 0.0
  %v1948 = vand.u32 %v69, 4294901760
  %1949 = vmatpush1.msra.mxu0 %v1948
  %1950 = vmatprep.subr.mxu0 0.0
  %v1951 = vand.u32 %v70, 4294901760
  %1952 = vmatpush1.msra.mxu0 %v1951
  %1953 = vmatprep.subr.mxu0 0.0
  %v1954 = vand.u32 %v71, 4294901760
  %1955 = vmatpush1.msra.mxu0 %v1954
  %1956 = vmatprep.subr.mxu0 0.0
  %v1957 = vand.u32 %v72, 4294901760
  %1958 = vmatpush1.msra.mxu0 %v1957
  %1959 = vmatprep.subr.mxu0 0.0
  %v1960 = vand.u32 %v73, 4294901760
  %1961 = vmatpush1.msra.mxu0 %v1960
  %1962 = vmatprep.subr.mxu0 0.0
  %v1963 = vand.u32 %v74, 4294901760
  %1964 = vmatpush1.msra.mxu0 %v1963
  %1965 = vmatprep.subr.mxu0 0.0
  %v1966 = vand.u32 %v75, 4294901760
  %1967 = vmatpush1.msra.mxu0 %v1966
  %1968 = vmatprep.subr.mxu0 0.0
  %v1969 = vand.u32 %v76, 4294901760
  %1970 = vmatpush1.msra.mxu0 %v1969
  %1971 = vmatprep.subr.mxu0 0.0
  %v1972 = vand.u32 %v77, 4294901760
  %1973 = vmatpush1.msra.mxu0 %v1972
  %1974 = vmatprep.subr.mxu0 0.0
  %v1975 = vand.u32 %v78, 4294901760
  %1976 = vmatpush1.msra.mxu0 %v1975
  %1977 = vmatprep.subr.mxu0 0.0
  %v1978 = vand.u32 %v79, 4294901760
  %1979 = vmatpush1.msra.mxu0 %v1978
  %1980 = vmatprep.subr.mxu0 0.0
  %v1981 = vand.u32 %v80, 4294901760
  %1982 = vmatpush1.msra.mxu0 %v1981
  %1983 = vmatprep.subr.mxu0 0.0
  %v1984 = vand.u32 %v81, 4294901760
  %1985 = vmatpush1.msra.mxu0 %v1984
  %1986 = vmatprep.subr.mxu0 0.0
  %v1987 = vand.u32 %v82, 4294901760
  %1988 = vmatpush1.msra.mxu0 %v1987
  %1989 = vmatprep.subr.mxu0 0.0
  %v1990 = vand.u32 %v83, 4294901760
  %1991 = vmatpush1.msra.mxu0 %v1990
  %1992 = vmatprep.subr.mxu0 0.0
  %v1993 = vand.u32 %v84, 4294901760
  %1994 = vmatpush1.msra.mxu0 %v1993
  %1995 = vmatprep.subr.mxu0 0.0
  %v1996 = vand.u32 %v85, 4294901760
  %1997 = vmatpush1.msra.mxu0 %v1996
  %1998 = vmatprep.subr.mxu0 0.0
  %v1999 = vand.u32 %v86, 4294901760
  %2000 = vmatpush1.msra.mxu0 %v1999
  %2001 = vmatprep.subr.mxu0 0.0
  %v2002 = vand.u32 %v87, 4294901760
  %2003 = vmatpush1.msra.mxu0 %v2002
  %2004 = vmatprep.subr.mxu0 0.0
  %v2005 = vand.u32 %v88, 4294901760
  %2006 = vmatpush1.msra.mxu0 %v2005
  %2007 = vmatprep.subr.mxu0 0.0
  %v2008 = vand.u32 %v89, 4294901760
  %2009 = vmatpush1.msra.mxu0 %v2008
  %2010 = vmatprep.subr.mxu0 0.0
  %v2011 = vand.u32 %v90, 4294901760
  %2012 = vmatpush1.msra.mxu0 %v2011
  %2013 = vmatprep.subr.mxu0 0.0
  %v2014 = vand.u32 %v91, 4294901760
  %2015 = vmatpush1.msra.mxu0 %v2014
  %2016 = vmatprep.subr.mxu0 0.0
  %v2017 = vand.u32 %v92, 4294901760
  %2018 = vmatpush1.msra.mxu0 %v2017
  %v2019 = vand.u32 %v20, 4294901760
  %2020 = vmatprep.mubr.f32.mxu0 %v2019
  %v2021 = vand.u32 %v19, 4294901760
  %2022 = vmatmul.mubr.f32.gmra.mrb[0].mxu0 %v2021
  %v2023 = vpop.f32.mrb[0].mxu0
  %v2024 = vadd.f32 %v1906, %v2023
  %v2025 = vpop.f32.mrb[0].mxu0
  %v2026 = vand.u32 %v24, 4294901760
  %2027 = vmatprep.mubr.f32.mxu0 %v2026
  %v2028 = vand.u32 %v23, 4294901760
  %2029 = vmatmul.mubr.f32.gmra.mrb[0].mxu0 %v2028
  %v2030 = vpop.f32.mrb[0].mxu0
  %v2031 = vadd.f32 %v1913, %v2030
  %v2032 = vpop.f32.mrb[0].mxu0
  %v2033 = vand.u32 %v28, 4294901760
  %2034 = vmatprep.mubr.f32.mxu0 %v2033
  %v2035 = vand.u32 %v27, 4294901760
  %2036 = vmatmul.mubr.f32.gmra.mrb[0].mxu0 %v2035
  %v2037 = vpop.f32.mrb[0].mxu0
  %v2038 = vadd.f32 %v1920, %v2037
  %v2039 = vpop.f32.mrb[0].mxu0
  %2040 = vdwg.mxu0
  %v2041 = vld [vmem:[%s2] sm:$0x1]
  %v2043 = vlaneseq
  %v2044 = vshrl.u32 %v2043, 7
  %v2045 = vsub.s32 0, %v2044
  %v2046 = vrot.slane %v2041, %v2045
  %v2048 = vmul.f32 %v2024, %v2046
  %v2049 = vmul.f32 %v2031, %v2046
  %v2050 = vmul.f32 %v2038, %v2046
  %v2051 = vld [vmem:[%s3] sm:$0x1]
  %v2053 = vlaneseq
  %v2054 = vshrl.u32 %v2053, 7
  %v2055 = vsub.s32 0, %v2054
  %v2056 = vrot.slane %v2051, %v2055
  %v2058 = vadd.f32 %v2048, %v2056
  %v2059 = vadd.f32 %v2049, %v2056
  %v2060 = vadd.f32 %v2050, %v2056
  %vm2061 = vcmp.ge.f32.partialorder %v2058, 0.0
  %vm2062 = vcmp.ge.f32.partialorder %v2059, 0.0
  %vm2063 = vcmp.ge.f32.partialorder %v2060, 0.0
  %v2064 = vmul.f32 %v2058, 0.2
  %v2065 = vmul.f32 %v2059, 0.2
  %v2066 = vmul.f32 %v2060, 0.2
  %v2067 = vsel %vm2061, %v2058, %v2064
  %v2068 = vsel %vm2062, %v2059, %v2065
  %v2069 = vsel %vm2063, %v2060, %v2066
  %2070 = vst [vmem:[%s4] sm:$0xff] %v2067
  %2071 = vst [vmem:[%s4 + $0x8] sm:$0xff] %v2068
  %2072 = vst [vmem:[%s4 + $0x10] sm:$0xff] %v2069
  // Predicated region
  $region18: #{_lambda_.8} parent=0 // pred_check
    _
  $region19: #{_lambda_.8} parent=0 // pred_check_branch
    %2074 = sbr.rel (0) target = $region21
  $region20: #{_lambda_.8} parent=0 // pred_region
    _
  $region21: #{_lambda_.8} parent=0 // pred_fallthru
    _
  // Predicated region
  $region22: #{_lambda_.8} parent=0 // pred_check
    _
  $region23: #{_lambda_.8} parent=0 // pred_check_branch
    %2076 = sbr.rel (0) target = $region25
  $region24: #{_lambda_.8} parent=0 // pred_region
    _
  $region25: #{_lambda_.8} parent=0 // pred_fallthru
    _

// kernel: _lambda_.9
$region0: #{_lambda_.9}
  #allocation0 [shape = 'u32[]', space=smem, size = 0x4, offset = 0x4, fixed_abs, tag = 'smem constant byte address 0x4 - core index']
  #allocation1 [shape = 'u32[144,128]{1,0:T(1,128)}', space=vmem, size = 0x12000, scoped, tag = 'internal scratch']
  %s0 = inlined_call_operand.vmem [shape: f32[8,1024], index: 0, kind: input, shape index: {}]
  %s1 = inlined_call_operand.vmem [shape: f32[1024,128], index: 1, kind: input, shape index: {}]
  %s2 = inlined_call_operand.vmem [shape: f32[1,128], index: 2, kind: input, shape index: {}]
  %s3 = inlined_call_operand.vmem [shape: f32[1,128], index: 3, kind: input, shape index: {}]
  %s4 = inlined_call_operand.vmem [shape: f32[8,128], index: 4, kind: output, shape index: {}]
  %s5 = sld [smem:[#allocation0]]
  $region26: #{_lambda_.9} parent=0
    _
  %s7 = ssub.s32 1, %s5
  %s8 = scalar_select 0, %s7, %s5
  // Predicated region
  $region2: #{_lambda_.9} parent=0 // pred_check
    _
  $region3: #{_lambda_.9} parent=0 // pred_check_branch
    %10 = sbr.rel (0) target = $region5
  $region4: #{_lambda_.9} parent=0 // pred_region
    _
  $region5: #{_lambda_.9} parent=0 // pred_fallthru
    _
  // Predicated region
  $region6: #{_lambda_.9} parent=0 // pred_check
    _
  $region7: #{_lambda_.9} parent=0 // pred_check_branch
    %12 = sbr.rel (0) target = $region9
  $region8: #{_lambda_.9} parent=0 // pred_region
    _
  $region9: #{_lambda_.9} parent=0 // pred_fallthru
    _
  // Predicated region
  $region10: #{_lambda_.9} parent=0 // pred_check
    _
  $region11: #{_lambda_.9} parent=0 // pred_check_branch
    %14 = sbr.rel (0) target = $region13
  $region12: #{_lambda_.9} parent=0 // pred_region
    _
  $region13: #{_lambda_.9} parent=0 // pred_fallthru
    _
  // Predicated region
  $region14: #{_lambda_.9} parent=0 // pred_check
    _
  $region15: #{_lambda_.9} parent=0 // pred_check_branch
    %16 = sbr.rel (0) target = $region17
  $region16: #{_lambda_.9} parent=0 // pred_region
    _
  $region17: #{_lambda_.9} parent=0 // pred_fallthru
    _
  %v17 = vld [vmem:[%s0] sm:$0xff]
  %v18 = vld [vmem:[%s0 + $0x8] sm:$0xff]
  %v19 = vld [vmem:[%s0 + $0x10] sm:$0xff]
  %v20 = vld [vmem:[%s0 + $0x18] sm:$0xff]
  %v21 = vld [vmem:[%s0 + $0x20] sm:$0xff]
  %v22 = vld [vmem:[%s0 + $0x28] sm:$0xff]
  %v23 = vld [vmem:[%s0 + $0x30] sm:$0xff]
  %v24 = vld [vmem:[%s0 + $0x38] sm:$0xff]
  %v25 = vld [vmem:[%s1] sm:$0xff]
  %v26 = vld [vmem:[%s1 + $0x8] sm:$0xff]
  %v27 = vld [vmem:[%s1 + $0x10] sm:$0xff]
  %v28 = vld [vmem:[%s1 + $0x18] sm:$0xff]
  %v29 = vld [vmem:[%s1 + $0x20] sm:$0xff]
  %v30 = vld [vmem:[%s1 + $0x28] sm:$0xff]
  %v31 = vld [vmem:[%s1 + $0x30] sm:$0xff]
  %v32 = vld [vmem:[%s1 + $0x38] sm:$0xff]
  %v33 = vld [vmem:[%s1 + $0x40] sm:$0xff]
  %v34 = vld [vmem:[%s1 + $0x48] sm:$0xff]
  %v35 = vld [vmem:[%s1 + $0x50] sm:$0xff]
  %v36 = vld [vmem:[%s1 + $0x58] sm:$0xff]
  %v37 = vld [vmem:[%s1 + $0x60] sm:$0xff]
  %v38 = vld [vmem:[%s1 + $0x68] sm:$0xff]
  %v39 = vld [vmem:[%s1 + $0x70] sm:$0xff]
  %v40 = vld [vmem:[%s1 + $0x78] sm:$0xff]
  %v41 = vld [vmem:[%s1 + $0x80] sm:$0xff]
  %v42 = vld [vmem:[%s1 + $0x88] sm:$0xff]
  %v43 = vld [vmem:[%s1 + $0x90] sm:$0xff]
  %v44 = vld [vmem:[%s1 + $0x98] sm:$0xff]
  %v45 = vld [vmem:[%s1 + $0xa0] sm:$0xff]
  %v46 = vld [vmem:[%s1 + $0xa8] sm:$0xff]
  %v47 = vld [vmem:[%s1 + $0xb0] sm:$0xff]
  %v48 = vld [vmem:[%s1 + $0xb8] sm:$0xff]
  %v49 = vld [vmem:[%s1 + $0xc0] sm:$0xff]
  %v50 = vld [vmem:[%s1 + $0xc8] sm:$0xff]
  %v51 = vld [vmem:[%s1 + $0xd0] sm:$0xff]
  %v52 = vld [vmem:[%s1 + $0xd8] sm:$0xff]
  %v53 = vld [vmem:[%s1 + $0xe0] sm:$0xff]
  %v54 = vld [vmem:[%s1 + $0xe8] sm:$0xff]
  %v55 = vld [vmem:[%s1 + $0xf0] sm:$0xff]
  %v56 = vld [vmem:[%s1 + $0xf8] sm:$0xff]
  %v57 = vld [vmem:[%s1 + $0x100] sm:$0xff]
  %v58 = vld [vmem:[%s1 + $0x108] sm:$0xff]
  %v59 = vld [vmem:[%s1 + $0x110] sm:$0xff]
  %v60 = vld [vmem:[%s1 + $0x118] sm:$0xff]
  %v61 = vld [vmem:[%s1 + $0x120] sm:$0xff]
  %v62 = vld [vmem:[%s1 + $0x128] sm:$0xff]
  %v63 = vld [vmem:[%s1 + $0x130] sm:$0xff]
  %v64 = vld [vmem:[%s1 + $0x138] sm:$0xff]
  %v65 = vld [vmem:[%s1 + $0x140] sm:$0xff]
  %v66 = vld [vmem:[%s1 + $0x148] sm:$0xff]
  %v67 = vld [vmem:[%s1 + $0x150] sm:$0xff]
  %v68 = vld [vmem:[%s1 + $0x158] sm:$0xff]
  %v69 = vld [vmem:[%s1 + $0x160] sm:$0xff]
  %v70 = vld [vmem:[%s1 + $0x168] sm:$0xff]
  %v71 = vld [vmem:[%s1 + $0x170] sm:$0xff]
  %v72 = vld [vmem:[%s1 + $0x178] sm:$0xff]
  %v73 = vld [vmem:[%s1 + $0x180] sm:$0xff]
  %v74 = vld [vmem:[%s1 + $0x188] sm:$0xff]
  %v75 = vld [vmem:[%s1 + $0x190] sm:$0xff]
  %v76 = vld [vmem:[%s1 + $0x198] sm:$0xff]
  %v77 = vld [vmem:[%s1 + $0x1a0] sm:$0xff]
  %v78 = vld [vmem:[%s1 + $0x1a8] sm:$0xff]
  %v79 = vld [vmem:[%s1 + $0x1b0] sm:$0xff]
  %v80 = vld [vmem:[%s1 + $0x1b8] sm:$0xff]
  %v81 = vld [vmem:[%s1 + $0x1c0] sm:$0xff]
  %v82 = vld [vmem:[%s1 + $0x1c8] sm:$0xff]
  %v83 = vld [vmem:[%s1 + $0x1d0] sm:$0xff]
  %v84 = vld [vmem:[%s1 + $0x1d8] sm:$0xff]
  %v85 = vld [vmem:[%s1 + $0x1e0] sm:$0xff]
  %v86 = vld [vmem:[%s1 + $0x1e8] sm:$0xff]
  %v87 = vld [vmem:[%s1 + $0x1f0] sm:$0xff]
  %v88 = vld [vmem:[%s1 + $0x1f8] sm:$0xff]
  %v89 = vld [vmem:[%s1 + $0x200] sm:$0xff]
  %v90 = vld [vmem:[%s1 + $0x208] sm:$0xff]
  %v91 = vld [vmem:[%s1 + $0x210] sm:$0xff]
  %v92 = vld [vmem:[%s1 + $0x218] sm:$0xff]
  %v93 = vld [vmem:[%s1 + $0x220] sm:$0xff]
  %v94 = vld [vmem:[%s1 + $0x228] sm:$0xff]
  %v95 = vld [vmem:[%s1 + $0x230] sm:$0xff]
  %v96 = vld [vmem:[%s1 + $0x238] sm:$0xff]
  %v97 = vld [vmem:[%s1 + $0x240] sm:$0xff]
  %v98 = vld [vmem:[%s1 + $0x248] sm:$0xff]
  %v99 = vld [vmem:[%s1 + $0x250] sm:$0xff]
  %v100 = vld [vmem:[%s1 + $0x258] sm:$0xff]
  %v101 = vld [vmem:[%s1 + $0x260] sm:$0xff]
  %v102 = vld [vmem:[%s1 + $0x268] sm:$0xff]
  %v103 = vld [vmem:[%s1 + $0x270] sm:$0xff]
  %v104 = vld [vmem:[%s1 + $0x278] sm:$0xff]
  %v105 = vld [vmem:[%s1 + $0x280] sm:$0xff]
  %v106 = vld [vmem:[%s1 + $0x288] sm:$0xff]
  %v107 = vld [vmem:[%s1 + $0x290] sm:$0xff]
  %v108 = vld [vmem:[%s1 + $0x298] sm:$0xff]
  %v109 = vld [vmem:[%s1 + $0x2a0] sm:$0xff]
  %v110 = vld [vmem:[%s1 + $0x2a8] sm:$0xff]
  %v111 = vld [vmem:[%s1 + $0x2b0] sm:$0xff]
  %v112 = vld [vmem:[%s1 + $0x2b8] sm:$0xff]
  %v113 = vld [vmem:[%s1 + $0x2c0] sm:$0xff]
  %v114 = vld [vmem:[%s1 + $0x2c8] sm:$0xff]
  %v115 = vld [vmem:[%s1 + $0x2d0] sm:$0xff]
  %v116 = vld [vmem:[%s1 + $0x2d8] sm:$0xff]
  %v117 = vld [vmem:[%s1 + $0x2e0] sm:$0xff]
  %v118 = vld [vmem:[%s1 + $0x2e8] sm:$0xff]
  %v119 = vld [vmem:[%s1 + $0x2f0] sm:$0xff]
  %v120 = vld [vmem:[%s1 + $0x2f8] sm:$0xff]
  %v121 = vld [vmem:[%s1 + $0x300] sm:$0xff]
  %v122 = vld [vmem:[%s1 + $0x308] sm:$0xff]
  %v123 = vld [vmem:[%s1 + $0x310] sm:$0xff]
  %v124 = vld [vmem:[%s1 + $0x318] sm:$0xff]
  %v125 = vld [vmem:[%s1 + $0x320] sm:$0xff]
  %v126 = vld [vmem:[%s1 + $0x328] sm:$0xff]
  %v127 = vld [vmem:[%s1 + $0x330] sm:$0xff]
  %v128 = vld [vmem:[%s1 + $0x338] sm:$0xff]
  %v129 = vld [vmem:[%s1 + $0x340] sm:$0xff]
  %v130 = vld [vmem:[%s1 + $0x348] sm:$0xff]
  %v131 = vld [vmem:[%s1 + $0x350] sm:$0xff]
  %v132 = vld [vmem:[%s1 + $0x358] sm:$0xff]
  %v133 = vld [vmem:[%s1 + $0x360] sm:$0xff]
  %v134 = vld [vmem:[%s1 + $0x368] sm:$0xff]
  %v135 = vld [vmem:[%s1 + $0x370] sm:$0xff]
  %v136 = vld [vmem:[%s1 + $0x378] sm:$0xff]
  %v137 = vld [vmem:[%s1 + $0x380] sm:$0xff]
  %v138 = vld [vmem:[%s1 + $0x388] sm:$0xff]
  %v139 = vld [vmem:[%s1 + $0x390] sm:$0xff]
  %v140 = vld [vmem:[%s1 + $0x398] sm:$0xff]
  %v141 = vld [vmem:[%s1 + $0x3a0] sm:$0xff]
  %v142 = vld [vmem:[%s1 + $0x3a8] sm:$0xff]
  %v143 = vld [vmem:[%s1 + $0x3b0] sm:$0xff]
  %v144 = vld [vmem:[%s1 + $0x3b8] sm:$0xff]
  %v145 = vld [vmem:[%s1 + $0x3c0] sm:$0xff]
  %v146 = vld [vmem:[%s1 + $0x3c8] sm:$0xff]
  %v147 = vld [vmem:[%s1 + $0x3d0] sm:$0xff]
  %v148 = vld [vmem:[%s1 + $0x3d8] sm:$0xff]
  %v149 = vld [vmem:[%s1 + $0x3e0] sm:$0xff]
  %v150 = vld [vmem:[%s1 + $0x3e8] sm:$0xff]
  %v151 = vld [vmem:[%s1 + $0x3f0] sm:$0xff]
  %v152 = vld [vmem:[%s1 + $0x3f8] sm:$0xff]
  %153 = vmatprep.subr.mxu0 0.0
  %v154 = vand.u32 %v25, 4294901760
  %155 = vmatpush1.msra.mxu0 %v154
  %156 = vmatprep.subr.mxu0 0.0
  %v157 = vand.u32 %v26, 4294901760
  %158 = vmatpush1.msra.mxu0 %v157
  %159 = vmatprep.subr.mxu0 0.0
  %v160 = vand.u32 %v27, 4294901760
  %161 = vmatpush1.msra.mxu0 %v160
  %162 = vmatprep.subr.mxu0 0.0
  %v163 = vand.u32 %v28, 4294901760
  %164 = vmatpush1.msra.mxu0 %v163
  %165 = vmatprep.subr.mxu0 0.0
  %v166 = vand.u32 %v29, 4294901760
  %167 = vmatpush1.msra.mxu0 %v166
  %168 = vmatprep.subr.mxu0 0.0
  %v169 = vand.u32 %v30, 4294901760
  %170 = vmatpush1.msra.mxu0 %v169
  %171 = vmatprep.subr.mxu0 0.0
  %v172 = vand.u32 %v31, 4294901760
  %173 = vmatpush1.msra.mxu0 %v172
  %174 = vmatprep.subr.mxu0 0.0
  %v175 = vand.u32 %v32, 4294901760
  %176 = vmatpush1.msra.mxu0 %v175
  %177 = vmatprep.subr.mxu0 0.0
  %v178 = vand.u32 %v33, 4294901760
  %179 = vmatpush1.msra.mxu0 %v178
  %180 = vmatprep.subr.mxu0 0.0
  %v181 = vand.u32 %v34, 4294901760
  %182 = vmatpush1.msra.mxu0 %v181
  %183 = vmatprep.subr.mxu0 0.0
  %v184 = vand.u32 %v35, 4294901760
  %185 = vmatpush1.msra.mxu0 %v184
  %186 = vmatprep.subr.mxu0 0.0
  %v187 = vand.u32 %v36, 4294901760
  %188 = vmatpush1.msra.mxu0 %v187
  %189 = vmatprep.subr.mxu0 0.0
  %v190 = vand.u32 %v37, 4294901760
  %191 = vmatpush1.msra.mxu0 %v190
  %192 = vmatprep.subr.mxu0 0.0
  %v193 = vand.u32 %v38, 4294901760
  %194 = vmatpush1.msra.mxu0 %v193
  %195 = vmatprep.subr.mxu0 0.0
  %v196 = vand.u32 %v39, 4294901760
  %197 = vmatpush1.msra.mxu0 %v196
  %198 = vmatprep.subr.mxu0 0.0
  %v199 = vand.u32 %v40, 4294901760
  %200 = vmatpush1.msra.mxu0 %v199
  %201 = vmatprep.subr.mxu0 0.0
  %v202 = vand.u32 %v41, 4294901760
  %203 = vmatpush1.msra.mxu0 %v202
  %204 = vmatprep.subr.mxu0 0.0
  %v205 = vand.u32 %v42, 4294901760
  %206 = vmatpush1.msra.mxu0 %v205
  %207 = vmatprep.subr.mxu0 0.0
  %v208 = vand.u32 %v43, 4294901760
  %209 = vmatpush1.msra.mxu0 %v208
  %210 = vmatprep.subr.mxu0 0.0
  %v211 = vand.u32 %v44, 4294901760
  %212 = vmatpush1.msra.mxu0 %v211
  %213 = vmatprep.subr.mxu0 0.0
  %v214 = vand.u32 %v45, 4294901760
  %215 = vmatpush1.msra.mxu0 %v214
  %216 = vmatprep.subr.mxu0 0.0
  %v217 = vand.u32 %v46, 4294901760
  %218 = vmatpush1.msra.mxu0 %v217
  %219 = vmatprep.subr.mxu0 0.0
  %v220 = vand.u32 %v47, 4294901760
  %221 = vmatpush1.msra.mxu0 %v220
  %222 = vmatprep.subr.mxu0 0.0
  %v223 = vand.u32 %v48, 4294901760
  %224 = vmatpush1.msra.mxu0 %v223
  %225 = vmatprep.subr.mxu0 0.0
  %v226 = vand.u32 %v49, 4294901760
  %227 = vmatpush1.msra.mxu0 %v226
  %228 = vmatprep.subr.mxu0 0.0
  %v229 = vand.u32 %v50, 4294901760
  %230 = vmatpush1.msra.mxu0 %v229
  %231 = vmatprep.subr.mxu0 0.0
  %v232 = vand.u32 %v51, 4294901760
  %233 = vmatpush1.msra.mxu0 %v232
  %234 = vmatprep.subr.mxu0 0.0
  %v235 = vand.u32 %v52, 4294901760
  %236 = vmatpush1.msra.mxu0 %v235
  %237 = vmatprep.subr.mxu0 0.0
  %v238 = vand.u32 %v53, 4294901760
  %239 = vmatpush1.msra.mxu0 %v238
  %240 = vmatprep.subr.mxu0 0.0
  %v241 = vand.u32 %v54, 4294901760
  %242 = vmatpush1.msra.mxu0 %v241
  %243 = vmatprep.subr.mxu0 0.0
  %v244 = vand.u32 %v55, 4294901760
  %245 = vmatpush1.msra.mxu0 %v244
  %246 = vmatprep.subr.mxu0 0.0
  %v247 = vand.u32 %v56, 4294901760
  %248 = vmatpush1.msra.mxu0 %v247
  %v249 = vand.u32 %v18, 4294901760
  %v250 = vsub.f32 %v18, %v249
  %v251 = vand.u32 %v250, 4294901760
  %v252 = vsub.f32 %v250, %v251
  %v253 = vand.u32 %v252, 4294901760
  %254 = vmatprep.mubr.f32.mxu0 %v253
  %v255 = vand.u32 %v17, 4294901760
  %v256 = vsub.f32 %v17, %v255
  %v257 = vand.u32 %v256, 4294901760
  %v258 = vsub.f32 %v256, %v257
  %v259 = vand.u32 %v258, 4294901760
  %260 = vmatmul.mubr.f32.gmra.mrb[0].mxu0 %v259
  %v261 = vpop.f32.mrb[0].mxu0
  %v262 = vadd.f32 0.0, %v261
  %v263 = vpop.f32.mrb[0].mxu0
  %264 = vdwg.mxu0
  %265 = vmatprep.subr.mxu0 0.0
  %v266 = vand.u32 %v25, 4294901760
  %v267 = vsub.f32 %v25, %v266
  %v268 = vand.u32 %v267, 4294901760
  %v269 = vsub.f32 %v267, %v268
  %v270 = vand.u32 %v269, 4294901760
  %271 = vmatpush1.msra.mxu0 %v270
  %272 = vmatprep.subr.mxu0 0.0
  %v273 = vand.u32 %v26, 4294901760
  %v274 = vsub.f32 %v26, %v273
  %v275 = vand.u32 %v274, 4294901760
  %v276 = vsub.f32 %v274, %v275
  %v277 = vand.u32 %v276, 4294901760
  %278 = vmatpush1.msra.mxu0 %v277
  %279 = vmatprep.subr.mxu0 0.0
  %v280 = vand.u32 %v27, 4294901760
  %v281 = vsub.f32 %v27, %v280
  %v282 = vand.u32 %v281, 4294901760
  %v283 = vsub.f32 %v281, %v282
  %v284 = vand.u32 %v283, 4294901760
  %285 = vmatpush1.msra.mxu0 %v284
  %286 = vmatprep.subr.mxu0 0.0
  %v287 = vand.u32 %v28, 4294901760
  %v288 = vsub.f32 %v28, %v287
  %v289 = vand.u32 %v288, 4294901760
  %v290 = vsub.f32 %v288, %v289
  %v291 = vand.u32 %v290, 4294901760
  %292 = vmatpush1.msra.mxu0 %v291
  %293 = vmatprep.subr.mxu0 0.0
  %v294 = vand.u32 %v29, 4294901760
  %v295 = vsub.f32 %v29, %v294
  %v296 = vand.u32 %v295, 4294901760
  %v297 = vsub.f32 %v295, %v296
  %v298 = vand.u32 %v297, 4294901760
  %299 = vmatpush1.msra.mxu0 %v298
  %300 = vmatprep.subr.mxu0 0.0
  %v301 = vand.u32 %v30, 4294901760
  %v302 = vsub.f32 %v30, %v301
  %v303 = vand.u32 %v302, 4294901760
  %v304 = vsub.f32 %v302, %v303
  %v305 = vand.u32 %v304, 4294901760
  %306 = vmatpush1.msra.mxu0 %v305
  %307 = vmatprep.subr.mxu0 0.0
  %v308 = vand.u32 %v31, 4294901760
  %v309 = vsub.f32 %v31, %v308
  %v310 = vand.u32 %v309, 4294901760
  %v311 = vsub.f32 %v309, %v310
  %v312 = vand.u32 %v311, 4294901760
  %313 = vmatpush1.msra.mxu0 %v312
  %314 = vmatprep.subr.mxu0 0.0
  %v315 = vand.u32 %v32, 4294901760
  %v316 = vsub.f32 %v32, %v315
  %v317 = vand.u32 %v316, 4294901760
  %v318 = vsub.f32 %v316, %v317
  %v319 = vand.u32 %v318, 4294901760
  %320 = vmatpush1.msra.mxu0 %v319
  %321 = vmatprep.subr.mxu0 0.0
  %v322 = vand.u32 %v33, 4294901760
  %v323 = vsub.f32 %v33, %v322
  %v324 = vand.u32 %v323, 4294901760
  %v325 = vsub.f32 %v323, %v324
  %v326 = vand.u32 %v325, 4294901760
  %327 = vmatpush1.msra.mxu0 %v326
  %328 = vmatprep.subr.mxu0 0.0
  %v329 = vand.u32 %v34, 4294901760
  %v330 = vsub.f32 %v34, %v329
  %v331 = vand.u32 %v330, 4294901760
  %v332 = vsub.f32 %v330, %v331
  %v333 = vand.u32 %v332, 4294901760
  %334 = vmatpush1.msra.mxu0 %v333
  %335 = vmatprep.subr.mxu0 0.0
  %v336 = vand.u32 %v35, 4294901760
  %v337 = vsub.f32 %v35, %v336
  %v338 = vand.u32 %v337, 4294901760
  %v339 = vsub.f32 %v337, %v338
  %v340 = vand.u32 %v339, 4294901760
  %341 = vmatpush1.msra.mxu0 %v340
  %342 = vmatprep.subr.mxu0 0.0
  %v343 = vand.u32 %v36, 4294901760
  %v344 = vsub.f32 %v36, %v343
  %v345 = vand.u32 %v344, 4294901760
  %v346 = vsub.f32 %v344, %v345
  %v347 = vand.u32 %v346, 4294901760
  %348 = vmatpush1.msra.mxu0 %v347
  %349 = vmatprep.subr.mxu0 0.0
  %v350 = vand.u32 %v37, 4294901760
  %v351 = vsub.f32 %v37, %v350
  %v352 = vand.u32 %v351, 4294901760
  %v353 = vsub.f32 %v351, %v352
  %v354 = vand.u32 %v353, 4294901760
  %355 = vmatpush1.msra.mxu0 %v354
  %356 = vmatprep.subr.mxu0 0.0
  %v357 = vand.u32 %v38, 4294901760
  %v358 = vsub.f32 %v38, %v357
  %v359 = vand.u32 %v358, 4294901760
  %v360 = vsub.f32 %v358, %v359
  %v361 = vand.u32 %v360, 4294901760
  %362 = vmatpush1.msra.mxu0 %v361
  %363 = vmatprep.subr.mxu0 0.0
  %v364 = vand.u32 %v39, 4294901760
  %v365 = vsub.f32 %v39, %v364
  %v366 = vand.u32 %v365, 4294901760
  %v367 = vsub.f32 %v365, %v366
  %v368 = vand.u32 %v367, 4294901760
  %369 = vmatpush1.msra.mxu0 %v368
  %370 = vmatprep.subr.mxu0 0.0
  %v371 = vand.u32 %v40, 4294901760
  %v372 = vsub.f32 %v40, %v371
  %v373 = vand.u32 %v372, 4294901760
  %v374 = vsub.f32 %v372, %v373
  %v375 = vand.u32 %v374, 4294901760
  %376 = vmatpush1.msra.mxu0 %v375
  %377 = vmatprep.subr.mxu0 0.0
  %v378 = vand.u32 %v41, 4294901760
  %v379 = vsub.f32 %v41, %v378
  %v380 = vand.u32 %v379, 4294901760
  %v381 = vsub.f32 %v379, %v380
  %v382 = vand.u32 %v381, 4294901760
  %383 = vmatpush1.msra.mxu0 %v382
  %384 = vmatprep.subr.mxu0 0.0
  %v385 = vand.u32 %v42, 4294901760
  %v386 = vsub.f32 %v42, %v385
  %v387 = vand.u32 %v386, 4294901760
  %v388 = vsub.f32 %v386, %v387
  %v389 = vand.u32 %v388, 4294901760
  %390 = vmatpush1.msra.mxu0 %v389
  %391 = vmatprep.subr.mxu0 0.0
  %v392 = vand.u32 %v43, 4294901760
  %v393 = vsub.f32 %v43, %v392
  %v394 = vand.u32 %v393, 4294901760
  %v395 = vsub.f32 %v393, %v394
  %v396 = vand.u32 %v395, 4294901760
  %397 = vmatpush1.msra.mxu0 %v396
  %398 = vmatprep.subr.mxu0 0.0
  %v399 = vand.u32 %v44, 4294901760
  %v400 = vsub.f32 %v44, %v399
  %v401 = vand.u32 %v400, 4294901760
  %v402 = vsub.f32 %v400, %v401
  %v403 = vand.u32 %v402, 4294901760
  %404 = vmatpush1.msra.mxu0 %v403
  %405 = vmatprep.subr.mxu0 0.0
  %v406 = vand.u32 %v45, 4294901760
  %v407 = vsub.f32 %v45, %v406
  %v408 = vand.u32 %v407, 4294901760
  %v409 = vsub.f32 %v407, %v408
  %v410 = vand.u32 %v409, 4294901760
  %411 = vmatpush1.msra.mxu0 %v410
  %412 = vmatprep.subr.mxu0 0.0
  %v413 = vand.u32 %v46, 4294901760
  %v414 = vsub.f32 %v46, %v413
  %v415 = vand.u32 %v414, 4294901760
  %v416 = vsub.f32 %v414, %v415
  %v417 = vand.u32 %v416, 4294901760
  %418 = vmatpush1.msra.mxu0 %v417
  %419 = vmatprep.subr.mxu0 0.0
  %v420 = vand.u32 %v47, 4294901760
  %v421 = vsub.f32 %v47, %v420
  %v422 = vand.u32 %v421, 4294901760
  %v423 = vsub.f32 %v421, %v422
  %v424 = vand.u32 %v423, 4294901760
  %425 = vmatpush1.msra.mxu0 %v424
  %426 = vmatprep.subr.mxu0 0.0
  %v427 = vand.u32 %v48, 4294901760
  %v428 = vsub.f32 %v48, %v427
  %v429 = vand.u32 %v428, 4294901760
  %v430 = vsub.f32 %v428, %v429
  %v431 = vand.u32 %v430, 4294901760
  %432 = vmatpush1.msra.mxu0 %v431
  %433 = vmatprep.subr.mxu0 0.0
  %v434 = vand.u32 %v49, 4294901760
  %v435 = vsub.f32 %v49, %v434
  %v436 = vand.u32 %v435, 4294901760
  %v437 = vsub.f32 %v435, %v436
  %v438 = vand.u32 %v437, 4294901760
  %439 = vmatpush1.msra.mxu0 %v438
  %440 = vmatprep.subr.mxu0 0.0
  %v441 = vand.u32 %v50, 4294901760
  %v442 = vsub.f32 %v50, %v441
  %v443 = vand.u32 %v442, 4294901760
  %v444 = vsub.f32 %v442, %v443
  %v445 = vand.u32 %v444, 4294901760
  %446 = vmatpush1.msra.mxu0 %v445
  %447 = vmatprep.subr.mxu0 0.0
  %v448 = vand.u32 %v51, 4294901760
  %v449 = vsub.f32 %v51, %v448
  %v450 = vand.u32 %v449, 4294901760
  %v451 = vsub.f32 %v449, %v450
  %v452 = vand.u32 %v451, 4294901760
  %453 = vmatpush1.msra.mxu0 %v452
  %454 = vmatprep.subr.mxu0 0.0
  %v455 = vand.u32 %v52, 4294901760
  %v456 = vsub.f32 %v52, %v455
  %v457 = vand.u32 %v456, 4294901760
  %v458 = vsub.f32 %v456, %v457
  %v459 = vand.u32 %v458, 4294901760
  %460 = vmatpush1.msra.mxu0 %v459
  %461 = vmatprep.subr.mxu0 0.0
  %v462 = vand.u32 %v53, 4294901760
  %v463 = vsub.f32 %v53, %v462
  %v464 = vand.u32 %v463, 4294901760
  %v465 = vsub.f32 %v463, %v464
  %v466 = vand.u32 %v465, 4294901760
  %467 = vmatpush1.msra.mxu0 %v466
  %468 = vmatprep.subr.mxu0 0.0
  %v469 = vand.u32 %v54, 4294901760
  %v470 = vsub.f32 %v54, %v469
  %v471 = vand.u32 %v470, 4294901760
  %v472 = vsub.f32 %v470, %v471
  %v473 = vand.u32 %v472, 4294901760
  %474 = vmatpush1.msra.mxu0 %v473
  %475 = vmatprep.subr.mxu0 0.0
  %v476 = vand.u32 %v55, 4294901760
  %v477 = vsub.f32 %v55, %v476
  %v478 = vand.u32 %v477, 4294901760
  %v479 = vsub.f32 %v477, %v478
  %v480 = vand.u32 %v479, 4294901760
  %481 = vmatpush1.msra.mxu0 %v480
  %482 = vmatprep.subr.mxu0 0.0
  %v483 = vand.u32 %v56, 4294901760
  %v484 = vsub.f32 %v56, %v483
  %v485 = vand.u32 %v484, 4294901760
  %v486 = vsub.f32 %v484, %v485
  %v487 = vand.u32 %v486, 4294901760
  %488 = vmatpush1.msra.mxu0 %v487
  %v489 = vand.u32 %v18, 4294901760
  %490 = vmatprep.mubr.f32.mxu0 %v489
  %v491 = vand.u32 %v17, 4294901760
  %492 = vmatmul.mubr.f32.gmra.mrb[0].mxu0 %v491
  %v493 = vpop.f32.mrb[0].mxu0
  %v494 = vadd.f32 %v262, %v493
  %v495 = vpop.f32.mrb[0].mxu0
  %496 = vdwg.mxu0
  %497 = vmatprep.subr.mxu0 0.0
  %v498 = vand.u32 %v25, 4294901760
  %v499 = vsub.f32 %v25, %v498
  %500 = vmatpush1.msra.mxu0 %v499
  %501 = vmatprep.subr.mxu0 0.0
  %v502 = vand.u32 %v26, 4294901760
  %v503 = vsub.f32 %v26, %v502
  %504 = vmatpush1.msra.mxu0 %v503
  %505 = vmatprep.subr.mxu0 0.0
  %v506 = vand.u32 %v27, 4294901760
  %v507 = vsub.f32 %v27, %v506
  %508 = vmatpush1.msra.mxu0 %v507
  %509 = vmatprep.subr.mxu0 0.0
  %v510 = vand.u32 %v28, 4294901760
  %v511 = vsub.f32 %v28, %v510
  %512 = vmatpush1.msra.mxu0 %v511
  %513 = vmatprep.subr.mxu0 0.0
  %v514 = vand.u32 %v29, 4294901760
  %v515 = vsub.f32 %v29, %v514
  %516 = vmatpush1.msra.mxu0 %v515
  %517 = vmatprep.subr.mxu0 0.0
  %v518 = vand.u32 %v30, 4294901760
  %v519 = vsub.f32 %v30, %v518
  %520 = vmatpush1.msra.mxu0 %v519
  %521 = vmatprep.subr.mxu0 0.0
  %v522 = vand.u32 %v31, 4294901760
  %v523 = vsub.f32 %v31, %v522
  %524 = vmatpush1.msra.mxu0 %v523
  %525 = vmatprep.subr.mxu0 0.0
  %v526 = vand.u32 %v32, 4294901760
  %v527 = vsub.f32 %v32, %v526
  %528 = vmatpush1.msra.mxu0 %v527
  %529 = vmatprep.subr.mxu0 0.0
  %v530 = vand.u32 %v33, 4294901760
  %v531 = vsub.f32 %v33, %v530
  %532 = vmatpush1.msra.mxu0 %v531
  %533 = vmatprep.subr.mxu0 0.0
  %v534 = vand.u32 %v34, 4294901760
  %v535 = vsub.f32 %v34, %v534
  %536 = vmatpush1.msra.mxu0 %v535
  %537 = vmatprep.subr.mxu0 0.0
  %v538 = vand.u32 %v35, 4294901760
  %v539 = vsub.f32 %v35, %v538
  %540 = vmatpush1.msra.mxu0 %v539
  %541 = vmatprep.subr.mxu0 0.0
  %v542 = vand.u32 %v36, 4294901760
  %v543 = vsub.f32 %v36, %v542
  %544 = vmatpush1.msra.mxu0 %v543
  %545 = vmatprep.subr.mxu0 0.0
  %v546 = vand.u32 %v37, 4294901760
  %v547 = vsub.f32 %v37, %v546
  %548 = vmatpush1.msra.mxu0 %v547
  %549 = vmatprep.subr.mxu0 0.0
  %v550 = vand.u32 %v38, 4294901760
  %v551 = vsub.f32 %v38, %v550
  %552 = vmatpush1.msra.mxu0 %v551
  %553 = vmatprep.subr.mxu0 0.0
  %v554 = vand.u32 %v39, 4294901760
  %v555 = vsub.f32 %v39, %v554
  %556 = vmatpush1.msra.mxu0 %v555
  %557 = vmatprep.subr.mxu0 0.0
  %v558 = vand.u32 %v40, 4294901760
  %v559 = vsub.f32 %v40, %v558
  %560 = vmatpush1.msra.mxu0 %v559
  %561 = vmatprep.subr.mxu0 0.0
  %v562 = vand.u32 %v41, 4294901760
  %v563 = vsub.f32 %v41, %v562
  %564 = vmatpush1.msra.mxu0 %v563
  %565 = vmatprep.subr.mxu0 0.0
  %v566 = vand.u32 %v42, 4294901760
  %v567 = vsub.f32 %v42, %v566
  %568 = vmatpush1.msra.mxu0 %v567
  %569 = vmatprep.subr.mxu0 0.0
  %v570 = vand.u32 %v43, 4294901760
  %v571 = vsub.f32 %v43, %v570
  %572 = vmatpush1.msra.mxu0 %v571
  %573 = vmatprep.subr.mxu0 0.0
  %v574 = vand.u32 %v44, 4294901760
  %v575 = vsub.f32 %v44, %v574
  %576 = vmatpush1.msra.mxu0 %v575
  %577 = vmatprep.subr.mxu0 0.0
  %v578 = vand.u32 %v45, 4294901760
  %v579 = vsub.f32 %v45, %v578
  %580 = vmatpush1.msra.mxu0 %v579
  %581 = vmatprep.subr.mxu0 0.0
  %v582 = vand.u32 %v46, 4294901760
  %v583 = vsub.f32 %v46, %v582
  %584 = vmatpush1.msra.mxu0 %v583
  %585 = vmatprep.subr.mxu0 0.0
  %v586 = vand.u32 %v47, 4294901760
  %v587 = vsub.f32 %v47, %v586
  %588 = vmatpush1.msra.mxu0 %v587
  %589 = vmatprep.subr.mxu0 0.0
  %v590 = vand.u32 %v48, 4294901760
  %v591 = vsub.f32 %v48, %v590
  %592 = vmatpush1.msra.mxu0 %v591
  %593 = vmatprep.subr.mxu0 0.0
  %v594 = vand.u32 %v49, 4294901760
  %v595 = vsub.f32 %v49, %v594
  %596 = vmatpush1.msra.mxu0 %v595
  %597 = vmatprep.subr.mxu0 0.0
  %v598 = vand.u32 %v50, 4294901760
  %v599 = vsub.f32 %v50, %v598
  %600 = vmatpush1.msra.mxu0 %v599
  %601 = vmatprep.subr.mxu0 0.0
  %v602 = vand.u32 %v51, 4294901760
  %v603 = vsub.f32 %v51, %v602
  %604 = vmatpush1.msra.mxu0 %v603
  %605 = vmatprep.subr.mxu0 0.0
  %v606 = vand.u32 %v52, 4294901760
  %v607 = vsub.f32 %v52, %v606
  %608 = vmatpush1.msra.mxu0 %v607
  %609 = vmatprep.subr.mxu0 0.0
  %v610 = vand.u32 %v53, 4294901760
  %v611 = vsub.f32 %v53, %v610
  %612 = vmatpush1.msra.mxu0 %v611
  %613 = vmatprep.subr.mxu0 0.0
  %v614 = vand.u32 %v54, 4294901760
  %v615 = vsub.f32 %v54, %v614
  %616 = vmatpush1.msra.mxu0 %v615
  %617 = vmatprep.subr.mxu0 0.0
  %v618 = vand.u32 %v55, 4294901760
  %v619 = vsub.f32 %v55, %v618
  %620 = vmatpush1.msra.mxu0 %v619
  %621 = vmatprep.subr.mxu0 0.0
  %v622 = vand.u32 %v56, 4294901760
  %v623 = vsub.f32 %v56, %v622
  %624 = vmatpush1.msra.mxu0 %v623
  %v625 = vand.u32 %v18, 4294901760
  %v626 = vsub.f32 %v18, %v625
  %627 = vmatprep.mubr.f32.mxu0 %v626
  %v628 = vand.u32 %v17, 4294901760
  %v629 = vsub.f32 %v17, %v628
  %630 = vmatmul.mubr.f32.gmra.mrb[0].mxu0 %v629
  %v631 = vpop.f32.mrb[0].mxu0
  %v632 = vadd.f32 %v494, %v631
  %v633 = vpop.f32.mrb[0].mxu0
  %634 = vdwg.mxu0
  %635 = vmatprep.subr.mxu0 0.0
  %v636 = vand.u32 %v25, 4294901760
  %637 = vmatpush1.msra.mxu0 %v636
  %638 = vmatprep.subr.mxu0 0.0
  %v639 = vand.u32 %v26, 4294901760
  %640 = vmatpush1.msra.mxu0 %v639
  %641 = vmatprep.subr.mxu0 0.0
  %v642 = vand.u32 %v27, 4294901760
  %643 = vmatpush1.msra.mxu0 %v642
  %644 = vmatprep.subr.mxu0 0.0
  %v645 = vand.u32 %v28, 4294901760
  %646 = vmatpush1.msra.mxu0 %v645
  %647 = vmatprep.subr.mxu0 0.0
  %v648 = vand.u32 %v29, 4294901760
  %649 = vmatpush1.msra.mxu0 %v648
  %650 = vmatprep.subr.mxu0 0.0
  %v651 = vand.u32 %v30, 4294901760
  %652 = vmatpush1.msra.mxu0 %v651
  %653 = vmatprep.subr.mxu0 0.0
  %v654 = vand.u32 %v31, 4294901760
  %655 = vmatpush1.msra.mxu0 %v654
  %656 = vmatprep.subr.mxu0 0.0
  %v657 = vand.u32 %v32, 4294901760
  %658 = vmatpush1.msra.mxu0 %v657
  %659 = vmatprep.subr.mxu0 0.0
  %v660 = vand.u32 %v33, 4294901760
  %661 = vmatpush1.msra.mxu0 %v660
  %662 = vmatprep.subr.mxu0 0.0
  %v663 = vand.u32 %v34, 4294901760
  %664 = vmatpush1.msra.mxu0 %v663
  %665 = vmatprep.subr.mxu0 0.0
  %v666 = vand.u32 %v35, 4294901760
  %667 = vmatpush1.msra.mxu0 %v666
  %668 = vmatprep.subr.mxu0 0.0
  %v669 = vand.u32 %v36, 4294901760
  %670 = vmatpush1.msra.mxu0 %v669
  %671 = vmatprep.subr.mxu0 0.0
  %v672 = vand.u32 %v37, 4294901760
  %673 = vmatpush1.msra.mxu0 %v672
  %674 = vmatprep.subr.mxu0 0.0
  %v675 = vand.u32 %v38, 4294901760
  %676 = vmatpush1.msra.mxu0 %v675
  %677 = vmatprep.subr.mxu0 0.0
  %v678 = vand.u32 %v39, 4294901760
  %679 = vmatpush1.msra.mxu0 %v678
  %680 = vmatprep.subr.mxu0 0.0
  %v681 = vand.u32 %v40, 4294901760
  %682 = vmatpush1.msra.mxu0 %v681
  %683 = vmatprep.subr.mxu0 0.0
  %v684 = vand.u32 %v41, 4294901760
  %685 = vmatpush1.msra.mxu0 %v684
  %686 = vmatprep.subr.mxu0 0.0
  %v687 = vand.u32 %v42, 4294901760
  %688 = vmatpush1.msra.mxu0 %v687
  %689 = vmatprep.subr.mxu0 0.0
  %v690 = vand.u32 %v43, 4294901760
  %691 = vmatpush1.msra.mxu0 %v690
  %692 = vmatprep.subr.mxu0 0.0
  %v693 = vand.u32 %v44, 4294901760
  %694 = vmatpush1.msra.mxu0 %v693
  %695 = vmatprep.subr.mxu0 0.0
  %v696 = vand.u32 %v45, 4294901760
  %697 = vmatpush1.msra.mxu0 %v696
  %698 = vmatprep.subr.mxu0 0.0
  %v699 = vand.u32 %v46, 4294901760
  %700 = vmatpush1.msra.mxu0 %v699
  %701 = vmatprep.subr.mxu0 0.0
  %v702 = vand.u32 %v47, 4294901760
  %703 = vmatpush1.msra.mxu0 %v702
  %704 = vmatprep.subr.mxu0 0.0
  %v705 = vand.u32 %v48, 4294901760
  %706 = vmatpush1.msra.mxu0 %v705
  %707 = vmatprep.subr.mxu0 0.0
  %v708 = vand.u32 %v49, 4294901760
  %709 = vmatpush1.msra.mxu0 %v708
  %710 = vmatprep.subr.mxu0 0.0
  %v711 = vand.u32 %v50, 4294901760
  %712 = vmatpush1.msra.mxu0 %v711
  %713 = vmatprep.subr.mxu0 0.0
  %v714 = vand.u32 %v51, 4294901760
  %715 = vmatpush1.msra.mxu0 %v714
  %716 = vmatprep.subr.mxu0 0.0
  %v717 = vand.u32 %v52, 4294901760
  %718 = vmatpush1.msra.mxu0 %v717
  %719 = vmatprep.subr.mxu0 0.0
  %v720 = vand.u32 %v53, 4294901760
  %721 = vmatpush1.msra.mxu0 %v720
  %722 = vmatprep.subr.mxu0 0.0
  %v723 = vand.u32 %v54, 4294901760
  %724 = vmatpush1.msra.mxu0 %v723
  %725 = vmatprep.subr.mxu0 0.0
  %v726 = vand.u32 %v55, 4294901760
  %727 = vmatpush1.msra.mxu0 %v726
  %728 = vmatprep.subr.mxu0 0.0
  %v729 = vand.u32 %v56, 4294901760
  %730 = vmatpush1.msra.mxu0 %v729
  %v731 = vand.u32 %v18, 4294901760
  %v732 = vsub.f32 %v18, %v731
  %v733 = vand.u32 %v732, 4294901760
  %734 = vmatprep.mubr.f32.mxu0 %v733
  %v735 = vand.u32 %v17, 4294901760
  %v736 = vsub.f32 %v17, %v735
  %v737 = vand.u32 %v736, 4294901760
  %738 = vmatmul.mubr.f32.gmra.mrb[0].mxu0 %v737
  %v739 = vpop.f32.mrb[0].mxu0
  %v740 = vadd.f32 %v632, %v739
  %v741 = vpop.f32.mrb[0].mxu0
  %742 = vdwg.mxu0
  %743 = vmatprep.subr.mxu0 0.0
  %v744 = vand.u32 %v25, 4294901760
  %v745 = vsub.f32 %v25, %v744
  %v746 = vand.u32 %v745, 4294901760
  %747 = vmatpush1.msra.mxu0 %v746
  %748 = vmatprep.subr.mxu0 0.0
  %v749 = vand.u32 %v26, 4294901760
  %v750 = vsub.f32 %v26, %v749
  %v751 = vand.u32 %v750, 4294901760
  %752 = vmatpush1.msra.mxu0 %v751
  %753 = vmatprep.subr.mxu0 0.0
  %v754 = vand.u32 %v27, 4294901760
  %v755 = vsub.f32 %v27, %v754
  %v756 = vand.u32 %v755, 4294901760
  %757 = vmatpush1.msra.mxu0 %v756
  %758 = vmatprep.subr.mxu0 0.0
  %v759 = vand.u32 %v28, 4294901760
  %v760 = vsub.f32 %v28, %v759
  %v761 = vand.u32 %v760, 4294901760
  %762 = vmatpush1.msra.mxu0 %v761
  %763 = vmatprep.subr.mxu0 0.0
  %v764 = vand.u32 %v29, 4294901760
  %v765 = vsub.f32 %v29, %v764
  %v766 = vand.u32 %v765, 4294901760
  %767 = vmatpush1.msra.mxu0 %v766
  %768 = vmatprep.subr.mxu0 0.0
  %v769 = vand.u32 %v30, 4294901760
  %v770 = vsub.f32 %v30, %v769
  %v771 = vand.u32 %v770, 4294901760
  %772 = vmatpush1.msra.mxu0 %v771
  %773 = vmatprep.subr.mxu0 0.0
  %v774 = vand.u32 %v31, 4294901760
  %v775 = vsub.f32 %v31, %v774
  %v776 = vand.u32 %v775, 4294901760
  %777 = vmatpush1.msra.mxu0 %v776
  %778 = vmatprep.subr.mxu0 0.0
  %v779 = vand.u32 %v32, 4294901760
  %v780 = vsub.f32 %v32, %v779
  %v781 = vand.u32 %v780, 4294901760
  %782 = vmatpush1.msra.mxu0 %v781
  %783 = vmatprep.subr.mxu0 0.0
  %v784 = vand.u32 %v33, 4294901760
  %v785 = vsub.f32 %v33, %v784
  %v786 = vand.u32 %v785, 4294901760
  %787 = vmatpush1.msra.mxu0 %v786
  %788 = vmatprep.subr.mxu0 0.0
  %v789 = vand.u32 %v34, 4294901760
  %v790 = vsub.f32 %v34, %v789
  %v791 = vand.u32 %v790, 4294901760
  %792 = vmatpush1.msra.mxu0 %v791
  %793 = vmatprep.subr.mxu0 0.0
  %v794 = vand.u32 %v35, 4294901760
  %v795 = vsub.f32 %v35, %v794
  %v796 = vand.u32 %v795, 4294901760
  %797 = vmatpush1.msra.mxu0 %v796
  %798 = vmatprep.subr.mxu0 0.0
  %v799 = vand.u32 %v36, 4294901760
  %v800 = vsub.f32 %v36, %v799
  %v801 = vand.u32 %v800, 4294901760
  %802 = vmatpush1.msra.mxu0 %v801
  %803 = vmatprep.subr.mxu0 0.0
  %v804 = vand.u32 %v37, 4294901760
  %v805 = vsub.f32 %v37, %v804
  %v806 = vand.u32 %v805, 4294901760
  %807 = vmatpush1.msra.mxu0 %v806
  %808 = vmatprep.subr.mxu0 0.0
  %v809 = vand.u32 %v38, 4294901760
  %v810 = vsub.f32 %v38, %v809
  %v811 = vand.u32 %v810, 4294901760
  %812 = vmatpush1.msra.mxu0 %v811
  %813 = vmatprep.subr.mxu0 0.0
  %v814 = vand.u32 %v39, 4294901760
  %v815 = vsub.f32 %v39, %v814
  %v816 = vand.u32 %v815, 4294901760
  %817 = vmatpush1.msra.mxu0 %v816
  %818 = vmatprep.subr.mxu0 0.0
  %v819 = vand.u32 %v40, 4294901760
  %v820 = vsub.f32 %v40, %v819
  %v821 = vand.u32 %v820, 4294901760
  %822 = vmatpush1.msra.mxu0 %v821
  %823 = vmatprep.subr.mxu0 0.0
  %v824 = vand.u32 %v41, 4294901760
  %v825 = vsub.f32 %v41, %v824
  %v826 = vand.u32 %v825, 4294901760
  %827 = vmatpush1.msra.mxu0 %v826
  %828 = vmatprep.subr.mxu0 0.0
  %v829 = vand.u32 %v42, 4294901760
  %v830 = vsub.f32 %v42, %v829
  %v831 = vand.u32 %v830, 4294901760
  %832 = vmatpush1.msra.mxu0 %v831
  %833 = vmatprep.subr.mxu0 0.0
  %v834 = vand.u32 %v43, 4294901760
  %v835 = vsub.f32 %v43, %v834
  %v836 = vand.u32 %v835, 4294901760
  %837 = vmatpush1.msra.mxu0 %v836
  %838 = vmatprep.subr.mxu0 0.0
  %v839 = vand.u32 %v44, 4294901760
  %v840 = vsub.f32 %v44, %v839
  %v841 = vand.u32 %v840, 4294901760
  %842 = vmatpush1.msra.mxu0 %v841
  %843 = vmatprep.subr.mxu0 0.0
  %v844 = vand.u32 %v45, 4294901760
  %v845 = vsub.f32 %v45, %v844
  %v846 = vand.u32 %v845, 4294901760
  %847 = vmatpush1.msra.mxu0 %v846
  %848 = vmatprep.subr.mxu0 0.0
  %v849 = vand.u32 %v46, 4294901760
  %v850 = vsub.f32 %v46, %v849
  %v851 = vand.u32 %v850, 4294901760
  %852 = vmatpush1.msra.mxu0 %v851
  %853 = vmatprep.subr.mxu0 0.0
  %v854 = vand.u32 %v47, 4294901760
  %v855 = vsub.f32 %v47, %v854
  %v856 = vand.u32 %v855, 4294901760
  %857 = vmatpush1.msra.mxu0 %v856
  %858 = vmatprep.subr.mxu0 0.0
  %v859 = vand.u32 %v48, 4294901760
  %v860 = vsub.f32 %v48, %v859
  %v861 = vand.u32 %v860, 4294901760
  %862 = vmatpush1.msra.mxu0 %v861
  %863 = vmatprep.subr.mxu0 0.0
  %v864 = vand.u32 %v49, 4294901760
  %v865 = vsub.f32 %v49, %v864
  %v866 = vand.u32 %v865, 4294901760
  %867 = vmatpush1.msra.mxu0 %v866
  %868 = vmatprep.subr.mxu0 0.0
  %v869 = vand.u32 %v50, 4294901760
  %v870 = vsub.f32 %v50, %v869
  %v871 = vand.u32 %v870, 4294901760
  %872 = vmatpush1.msra.mxu0 %v871
  %873 = vmatprep.subr.mxu0 0.0
  %v874 = vand.u32 %v51, 4294901760
  %v875 = vsub.f32 %v51, %v874
  %v876 = vand.u32 %v875, 4294901760
  %877 = vmatpush1.msra.mxu0 %v876
  %878 = vmatprep.subr.mxu0 0.0
  %v879 = vand.u32 %v52, 4294901760
  %v880 = vsub.f32 %v52, %v879
  %v881 = vand.u32 %v880, 4294901760
  %882 = vmatpush1.msra.mxu0 %v881
  %883 = vmatprep.subr.mxu0 0.0
  %v884 = vand.u32 %v53, 4294901760
  %v885 = vsub.f32 %v53, %v884
  %v886 = vand.u32 %v885, 4294901760
  %887 = vmatpush1.msra.mxu0 %v886
  %888 = vmatprep.subr.mxu0 0.0
  %v889 = vand.u32 %v54, 4294901760
  %v890 = vsub.f32 %v54, %v889
  %v891 = vand.u32 %v890, 4294901760
  %892 = vmatpush1.msra.mxu0 %v891
  %893 = vmatprep.subr.mxu0 0.0
  %v894 = vand.u32 %v55, 4294901760
  %v895 = vsub.f32 %v55, %v894
  %v896 = vand.u32 %v895, 4294901760
  %897 = vmatpush1.msra.mxu0 %v896
  %898 = vmatprep.subr.mxu0 0.0
  %v899 = vand.u32 %v56, 4294901760
  %v900 = vsub.f32 %v56, %v899
  %v901 = vand.u32 %v900, 4294901760
  %902 = vmatpush1.msra.mxu0 %v901
  %v903 = vand.u32 %v18, 4294901760
  %904 = vmatprep.mubr.f32.mxu0 %v903
  %v905 = vand.u32 %v17, 4294901760
  %906 = vmatmul.mubr.f32.gmra.mrb[0].mxu0 %v905
  %v907 = vpop.f32.mrb[0].mxu0
  %v908 = vadd.f32 %v740, %v907
  %v909 = vpop.f32.mrb[0].mxu0
  %910 = vdwg.mxu0
  %911 = vmatprep.subr.mxu0 0.0
  %v912 = vand.u32 %v25, 4294901760
  %913 = vmatpush1.msra.mxu0 %v912
  %914 = vmatprep.subr.mxu0 0.0
  %v915 = vand.u32 %v26, 4294901760
  %916 = vmatpush1.msra.mxu0 %v915
  %917 = vmatprep.subr.mxu0 0.0
  %v918 = vand.u32 %v27, 4294901760
  %919 = vmatpush1.msra.mxu0 %v918
  %920 = vmatprep.subr.mxu0 0.0
  %v921 = vand.u32 %v28, 4294901760
  %922 = vmatpush1.msra.mxu0 %v921
  %923 = vmatprep.subr.mxu0 0.0
  %v924 = vand.u32 %v29, 4294901760
  %925 = vmatpush1.msra.mxu0 %v924
  %926 = vmatprep.subr.mxu0 0.0
  %v927 = vand.u32 %v30, 4294901760
  %928 = vmatpush1.msra.mxu0 %v927
  %929 = vmatprep.subr.mxu0 0.0
  %v930 = vand.u32 %v31, 4294901760
  %931 = vmatpush1.msra.mxu0 %v930
  %932 = vmatprep.subr.mxu0 0.0
  %v933 = vand.u32 %v32, 4294901760
  %934 = vmatpush1.msra.mxu0 %v933
  %935 = vmatprep.subr.mxu0 0.0
  %v936 = vand.u32 %v33, 4294901760
  %937 = vmatpush1.msra.mxu0 %v936
  %938 = vmatprep.subr.mxu0 0.0
  %v939 = vand.u32 %v34, 4294901760
  %940 = vmatpush1.msra.mxu0 %v939
  %941 = vmatprep.subr.mxu0 0.0
  %v942 = vand.u32 %v35, 4294901760
  %943 = vmatpush1.msra.mxu0 %v942
  %944 = vmatprep.subr.mxu0 0.0
  %v945 = vand.u32 %v36, 4294901760
  %946 = vmatpush1.msra.mxu0 %v945
  %947 = vmatprep.subr.mxu0 0.0
  %v948 = vand.u32 %v37, 4294901760
  %949 = vmatpush1.msra.mxu0 %v948
  %950 = vmatprep.subr.mxu0 0.0
  %v951 = vand.u32 %v38, 4294901760
  %952 = vmatpush1.msra.mxu0 %v951
  %953 = vmatprep.subr.mxu0 0.0
  %v954 = vand.u32 %v39, 4294901760
  %955 = vmatpush1.msra.mxu0 %v954
  %956 = vmatprep.subr.mxu0 0.0
  %v957 = vand.u32 %v40, 4294901760
  %958 = vmatpush1.msra.mxu0 %v957
  %959 = vmatprep.subr.mxu0 0.0
  %v960 = vand.u32 %v41, 4294901760
  %961 = vmatpush1.msra.mxu0 %v960
  %962 = vmatprep.subr.mxu0 0.0
  %v963 = vand.u32 %v42, 4294901760
  %964 = vmatpush1.msra.mxu0 %v963
  %965 = vmatprep.subr.mxu0 0.0
  %v966 = vand.u32 %v43, 4294901760
  %967 = vmatpush1.msra.mxu0 %v966
  %968 = vmatprep.subr.mxu0 0.0
  %v969 = vand.u32 %v44, 4294901760
  %970 = vmatpush1.msra.mxu0 %v969
  %971 = vmatprep.subr.mxu0 0.0
  %v972 = vand.u32 %v45, 4294901760
  %973 = vmatpush1.msra.mxu0 %v972
  %974 = vmatprep.subr.mxu0 0.0
  %v975 = vand.u32 %v46, 4294901760
  %976 = vmatpush1.msra.mxu0 %v975
  %977 = vmatprep.subr.mxu0 0.0
  %v978 = vand.u32 %v47, 4294901760
  %979 = vmatpush1.msra.mxu0 %v978
  %980 = vmatprep.subr.mxu0 0.0
  %v981 = vand.u32 %v48, 4294901760
  %982 = vmatpush1.msra.mxu0 %v981
  %983 = vmatprep.subr.mxu0 0.0
  %v984 = vand.u32 %v49, 4294901760
  %985 = vmatpush1.msra.mxu0 %v984
  %986 = vmatprep.subr.mxu0 0.0
  %v987 = vand.u32 %v50, 4294901760
  %988 = vmatpush1.msra.mxu0 %v987
  %989 = vmatprep.subr.mxu0 0.0
  %v990 = vand.u32 %v51, 4294901760
  %991 = vmatpush1.msra.mxu0 %v990
  %992 = vmatprep.subr.mxu0 0.0
  %v993 = vand.u32 %v52, 4294901760
  %994 = vmatpush1.msra.mxu0 %v993
  %995 = vmatprep.subr.mxu0 0.0
  %v996 = vand.u32 %v53, 4294901760
  %997 = vmatpush1.msra.mxu0 %v996
  %998 = vmatprep.subr.mxu0 0.0
  %v999 = vand.u32 %v54, 4294901760
  %1000 = vmatpush1.msra.mxu0 %v999
  %1001 = vmatprep.subr.mxu0 0.0
  %v1002 = vand.u32 %v55, 4294901760
  %1003 = vmatpush1.msra.mxu0 %v1002
  %1004 = vmatprep.subr.mxu0 0.0
  %v1005 = vand.u32 %v56, 4294901760
  %1006 = vmatpush1.msra.mxu0 %v1005
  %v1007 = vand.u32 %v18, 4294901760
  %1008 = vmatprep.mubr.f32.mxu0 %v1007
  %v1009 = vand.u32 %v17, 4294901760
  %1010 = vmatmul.mubr.f32.gmra.mrb[0].mxu0 %v1009
  %v1011 = vpop.f32.mrb[0].mxu0
  %v1012 = vadd.f32 %v908, %v1011
  %v1013 = vpop.f32.mrb[0].mxu0
  %1014 = vdwg.mxu0
  %1015 = vmatprep.subr.mxu0 0.0
  %v1016 = vand.u32 %v57, 4294901760
  %1017 = vmatpush1.msra.mxu0 %v1016
  %1018 = vmatprep.subr.mxu0 0.0
  %v1019 = vand.u32 %v58, 4294901760
  %1020 = vmatpush1.msra.mxu0 %v1019
  %1021 = vmatprep.subr.mxu0 0.0
  %v1022 = vand.u32 %v59, 4294901760
  %1023 = vmatpush1.msra.mxu0 %v1022
  %1024 = vmatprep.subr.mxu0 0.0
  %v1025 = vand.u32 %v60, 4294901760
  %1026 = vmatpush1.msra.mxu0 %v1025
  %1027 = vmatprep.subr.mxu0 0.0
  %v1028 = vand.u32 %v61, 4294901760
  %1029 = vmatpush1.msra.mxu0 %v1028
  %1030 = vmatprep.subr.mxu0 0.0
  %v1031 = vand.u32 %v62, 4294901760
  %1032 = vmatpush1.msra.mxu0 %v1031
  %1033 = vmatprep.subr.mxu0 0.0
  %v1034 = vand.u32 %v63, 4294901760
  %1035 = vmatpush1.msra.mxu0 %v1034
  %1036 = vmatprep.subr.mxu0 0.0
  %v1037 = vand.u32 %v64, 4294901760
  %1038 = vmatpush1.msra.mxu0 %v1037
  %1039 = vmatprep.subr.mxu0 0.0
  %v1040 = vand.u32 %v65, 4294901760
  %1041 = vmatpush1.msra.mxu0 %v1040
  %1042 = vmatprep.subr.mxu0 0.0
  %v1043 = vand.u32 %v66, 4294901760
  %1044 = vmatpush1.msra.mxu0 %v1043
  %1045 = vmatprep.subr.mxu0 0.0
  %v1046 = vand.u32 %v67, 4294901760
  %1047 = vmatpush1.msra.mxu0 %v1046
  %1048 = vmatprep.subr.mxu0 0.0
  %v1049 = vand.u32 %v68, 4294901760
  %1050 = vmatpush1.msra.mxu0 %v1049
  %1051 = vmatprep.subr.mxu0 0.0
  %v1052 = vand.u32 %v69, 4294901760
  %1053 = vmatpush1.msra.mxu0 %v1052
  %1054 = vmatprep.subr.mxu0 0.0
  %v1055 = vand.u32 %v70, 4294901760
  %1056 = vmatpush1.msra.mxu0 %v1055
  %1057 = vmatprep.subr.mxu0 0.0
  %v1058 = vand.u32 %v71, 4294901760
  %1059 = vmatpush1.msra.mxu0 %v1058
  %1060 = vmatprep.subr.mxu0 0.0
  %v1061 = vand.u32 %v72, 4294901760
  %1062 = vmatpush1.msra.mxu0 %v1061
  %1063 = vmatprep.subr.mxu0 0.0
  %v1064 = vand.u32 %v73, 4294901760
  %1065 = vmatpush1.msra.mxu0 %v1064
  %1066 = vmatprep.subr.mxu0 0.0
  %v1067 = vand.u32 %v74, 4294901760
  %1068 = vmatpush1.msra.mxu0 %v1067
  %1069 = vmatprep.subr.mxu0 0.0
  %v1070 = vand.u32 %v75, 4294901760
  %1071 = vmatpush1.msra.mxu0 %v1070
  %1072 = vmatprep.subr.mxu0 0.0
  %v1073 = vand.u32 %v76, 4294901760
  %1074 = vmatpush1.msra.mxu0 %v1073
  %1075 = vmatprep.subr.mxu0 0.0
  %v1076 = vand.u32 %v77, 4294901760
  %1077 = vmatpush1.msra.mxu0 %v1076
  %1078 = vmatprep.subr.mxu0 0.0
  %v1079 = vand.u32 %v78, 4294901760
  %1080 = vmatpush1.msra.mxu0 %v1079
  %1081 = vmatprep.subr.mxu0 0.0
  %v1082 = vand.u32 %v79, 4294901760
  %1083 = vmatpush1.msra.mxu0 %v1082
  %1084 = vmatprep.subr.mxu0 0.0
  %v1085 = vand.u32 %v80, 4294901760
  %1086 = vmatpush1.msra.mxu0 %v1085
  %1087 = vmatprep.subr.mxu0 0.0
  %v1088 = vand.u32 %v81, 4294901760
  %1089 = vmatpush1.msra.mxu0 %v1088
  %1090 = vmatprep.subr.mxu0 0.0
  %v1091 = vand.u32 %v82, 4294901760
  %1092 = vmatpush1.msra.mxu0 %v1091
  %1093 = vmatprep.subr.mxu0 0.0
  %v1094 = vand.u32 %v83, 4294901760
  %1095 = vmatpush1.msra.mxu0 %v1094
  %1096 = vmatprep.subr.mxu0 0.0
  %v1097 = vand.u32 %v84, 4294901760
  %1098 = vmatpush1.msra.mxu0 %v1097
  %1099 = vmatprep.subr.mxu0 0.0
  %v1100 = vand.u32 %v85, 4294901760
  %1101 = vmatpush1.msra.mxu0 %v1100
  %1102 = vmatprep.subr.mxu0 0.0
  %v1103 = vand.u32 %v86, 4294901760
  %1104 = vmatpush1.msra.mxu0 %v1103
  %1105 = vmatprep.subr.mxu0 0.0
  %v1106 = vand.u32 %v87, 4294901760
  %1107 = vmatpush1.msra.mxu0 %v1106
  %1108 = vmatprep.subr.mxu0 0.0
  %v1109 = vand.u32 %v88, 4294901760
  %1110 = vmatpush1.msra.mxu0 %v1109
  %v1111 = vand.u32 %v20, 4294901760
  %v1112 = vsub.f32 %v20, %v1111
  %v1113 = vand.u32 %v1112, 4294901760
  %v1114 = vsub.f32 %v1112, %v1113
  %v1115 = vand.u32 %v1114, 4294901760
  %1116 = vmatprep.mubr.f32.mxu0 %v1115
  %v1117 = vand.u32 %v19, 4294901760
  %v1118 = vsub.f32 %v19, %v1117
  %v1119 = vand.u32 %v1118, 4294901760
  %v1120 = vsub.f32 %v1118, %v1119
  %v1121 = vand.u32 %v1120, 4294901760
  %1122 = vmatmul.mubr.f32.gmra.mrb[0].mxu0 %v1121
  %v1123 = vpop.f32.mrb[0].mxu0
  %v1124 = vadd.f32 %v1012, %v1123
  %v1125 = vpop.f32.mrb[0].mxu0
  %1126 = vdwg.mxu0
  %1127 = vmatprep.subr.mxu0 0.0
  %v1128 = vand.u32 %v57, 4294901760
  %v1129 = vsub.f32 %v57, %v1128
  %v1130 = vand.u32 %v1129, 4294901760
  %v1131 = vsub.f32 %v1129, %v1130
  %v1132 = vand.u32 %v1131, 4294901760
  %1133 = vmatpush1.msra.mxu0 %v1132
  %1134 = vmatprep.subr.mxu0 0.0
  %v1135 = vand.u32 %v58, 4294901760
  %v1136 = vsub.f32 %v58, %v1135
  %v1137 = vand.u32 %v1136, 4294901760
  %v1138 = vsub.f32 %v1136, %v1137
  %v1139 = vand.u32 %v1138, 4294901760
  %1140 = vmatpush1.msra.mxu0 %v1139
  %1141 = vmatprep.subr.mxu0 0.0
  %v1142 = vand.u32 %v59, 4294901760
  %v1143 = vsub.f32 %v59, %v1142
  %v1144 = vand.u32 %v1143, 4294901760
  %v1145 = vsub.f32 %v1143, %v1144
  %v1146 = vand.u32 %v1145, 4294901760
  %1147 = vmatpush1.msra.mxu0 %v1146
  %1148 = vmatprep.subr.mxu0 0.0
  %v1149 = vand.u32 %v60, 4294901760
  %v1150 = vsub.f32 %v60, %v1149
  %v1151 = vand.u32 %v1150, 4294901760
  %v1152 = vsub.f32 %v1150, %v1151
  %v1153 = vand.u32 %v1152, 4294901760
  %1154 = vmatpush1.msra.mxu0 %v1153
  %1155 = vmatprep.subr.mxu0 0.0
  %v1156 = vand.u32 %v61, 4294901760
  %v1157 = vsub.f32 %v61, %v1156
  %v1158 = vand.u32 %v1157, 4294901760
  %v1159 = vsub.f32 %v1157, %v1158
  %v1160 = vand.u32 %v1159, 4294901760
  %1161 = vmatpush1.msra.mxu0 %v1160
  %1162 = vmatprep.subr.mxu0 0.0
  %v1163 = vand.u32 %v62, 4294901760
  %v1164 = vsub.f32 %v62, %v1163
  %v1165 = vand.u32 %v1164, 4294901760
  %v1166 = vsub.f32 %v1164, %v1165
  %v1167 = vand.u32 %v1166, 4294901760
  %1168 = vmatpush1.msra.mxu0 %v1167
  %1169 = vmatprep.subr.mxu0 0.0
  %v1170 = vand.u32 %v63, 4294901760
  %v1171 = vsub.f32 %v63, %v1170
  %v1172 = vand.u32 %v1171, 4294901760
  %v1173 = vsub.f32 %v1171, %v1172
  %v1174 = vand.u32 %v1173, 4294901760
  %1175 = vmatpush1.msra.mxu0 %v1174
  %1176 = vmatprep.subr.mxu0 0.0
  %v1177 = vand.u32 %v64, 4294901760
  %v1178 = vsub.f32 %v64, %v1177
  %v1179 = vand.u32 %v1178, 4294901760
  %v1180 = vsub.f32 %v1178, %v1179
  %v1181 = vand.u32 %v1180, 4294901760
  %1182 = vmatpush1.msra.mxu0 %v1181
  %1183 = vmatprep.subr.mxu0 0.0
  %v1184 = vand.u32 %v65, 4294901760
  %v1185 = vsub.f32 %v65, %v1184
  %v1186 = vand.u32 %v1185, 4294901760
  %v1187 = vsub.f32 %v1185, %v1186
  %v1188 = vand.u32 %v1187, 4294901760
  %1189 = vmatpush1.msra.mxu0 %v1188
  %1190 = vmatprep.subr.mxu0 0.0
  %v1191 = vand.u32 %v66, 4294901760
  %v1192 = vsub.f32 %v66, %v1191
  %v1193 = vand.u32 %v1192, 4294901760
  %v1194 = vsub.f32 %v1192, %v1193
  %v1195 = vand.u32 %v1194, 4294901760
  %1196 = vmatpush1.msra.mxu0 %v1195
  %1197 = vmatprep.subr.mxu0 0.0
  %v1198 = vand.u32 %v67, 4294901760
  %v1199 = vsub.f32 %v67, %v1198
  %v1200 = vand.u32 %v1199, 4294901760
  %v1201 = vsub.f32 %v1199, %v1200
  %v1202 = vand.u32 %v1201, 4294901760
  %1203 = vmatpush1.msra.mxu0 %v1202
  %1204 = vmatprep.subr.mxu0 0.0
  %v1205 = vand.u32 %v68, 4294901760
  %v1206 = vsub.f32 %v68, %v1205
  %v1207 = vand.u32 %v1206, 4294901760
  %v1208 = vsub.f32 %v1206, %v1207
  %v1209 = vand.u32 %v1208, 4294901760
  %1210 = vmatpush1.msra.mxu0 %v1209
  %1211 = vmatprep.subr.mxu0 0.0
  %v1212 = vand.u32 %v69, 4294901760
  %v1213 = vsub.f32 %v69, %v1212
  %v1214 = vand.u32 %v1213, 4294901760
  %v1215 = vsub.f32 %v1213, %v1214
  %v1216 = vand.u32 %v1215, 4294901760
  %1217 = vmatpush1.msra.mxu0 %v1216
  %1218 = vmatprep.subr.mxu0 0.0
  %v1219 = vand.u32 %v70, 4294901760
  %v1220 = vsub.f32 %v70, %v1219
  %v1221 = vand.u32 %v1220, 4294901760
  %v1222 = vsub.f32 %v1220, %v1221
  %v1223 = vand.u32 %v1222, 4294901760
  %1224 = vmatpush1.msra.mxu0 %v1223
  %1225 = vmatprep.subr.mxu0 0.0
  %v1226 = vand.u32 %v71, 4294901760
  %v1227 = vsub.f32 %v71, %v1226
  %v1228 = vand.u32 %v1227, 4294901760
  %v1229 = vsub.f32 %v1227, %v1228
  %v1230 = vand.u32 %v1229, 4294901760
  %1231 = vmatpush1.msra.mxu0 %v1230
  %1232 = vmatprep.subr.mxu0 0.0
  %v1233 = vand.u32 %v72, 4294901760
  %v1234 = vsub.f32 %v72, %v1233
  %v1235 = vand.u32 %v1234, 4294901760
  %v1236 = vsub.f32 %v1234, %v1235
  %v1237 = vand.u32 %v1236, 4294901760
  %1238 = vmatpush1.msra.mxu0 %v1237
  %1239 = vmatprep.subr.mxu0 0.0
  %v1240 = vand.u32 %v73, 4294901760
  %v1241 = vsub.f32 %v73, %v1240
  %v1242 = vand.u32 %v1241, 4294901760
  %v1243 = vsub.f32 %v1241, %v1242
  %v1244 = vand.u32 %v1243, 4294901760
  %1245 = vmatpush1.msra.mxu0 %v1244
  %1246 = vmatprep.subr.mxu0 0.0
  %v1247 = vand.u32 %v74, 4294901760
  %v1248 = vsub.f32 %v74, %v1247
  %v1249 = vand.u32 %v1248, 4294901760
  %v1250 = vsub.f32 %v1248, %v1249
  %v1251 = vand.u32 %v1250, 4294901760
  %1252 = vmatpush1.msra.mxu0 %v1251
  %1253 = vmatprep.subr.mxu0 0.0
  %v1254 = vand.u32 %v75, 4294901760
  %v1255 = vsub.f32 %v75, %v1254
  %v1256 = vand.u32 %v1255, 4294901760
  %v1257 = vsub.f32 %v1255, %v1256
  %v1258 = vand.u32 %v1257, 4294901760
  %1259 = vmatpush1.msra.mxu0 %v1258
  %1260 = vmatprep.subr.mxu0 0.0
  %v1261 = vand.u32 %v76, 4294901760
  %v1262 = vsub.f32 %v76, %v1261
  %v1263 = vand.u32 %v1262, 4294901760
  %v1264 = vsub.f32 %v1262, %v1263
  %v1265 = vand.u32 %v1264, 4294901760
  %1266 = vmatpush1.msra.mxu0 %v1265
  %1267 = vmatprep.subr.mxu0 0.0
  %v1268 = vand.u32 %v77, 4294901760
  %v1269 = vsub.f32 %v77, %v1268
  %v1270 = vand.u32 %v1269, 4294901760
  %v1271 = vsub.f32 %v1269, %v1270
  %v1272 = vand.u32 %v1271, 4294901760
  %1273 = vmatpush1.msra.mxu0 %v1272
  %1274 = vmatprep.subr.mxu0 0.0
  %v1275 = vand.u32 %v78, 4294901760
  %v1276 = vsub.f32 %v78, %v1275
  %v1277 = vand.u32 %v1276, 4294901760
  %v1278 = vsub.f32 %v1276, %v1277
  %v1279 = vand.u32 %v1278, 4294901760
  %1280 = vmatpush1.msra.mxu0 %v1279
  %1281 = vmatprep.subr.mxu0 0.0
  %v1282 = vand.u32 %v79, 4294901760
  %v1283 = vsub.f32 %v79, %v1282
  %v1284 = vand.u32 %v1283, 4294901760
  %v1285 = vsub.f32 %v1283, %v1284
  %v1286 = vand.u32 %v1285, 4294901760
  %1287 = vmatpush1.msra.mxu0 %v1286
  %1288 = vmatprep.subr.mxu0 0.0
  %v1289 = vand.u32 %v80, 4294901760
  %v1290 = vsub.f32 %v80, %v1289
  %v1291 = vand.u32 %v1290, 4294901760
  %v1292 = vsub.f32 %v1290, %v1291
  %v1293 = vand.u32 %v1292, 4294901760
  %1294 = vmatpush1.msra.mxu0 %v1293
  %1295 = vmatprep.subr.mxu0 0.0
  %v1296 = vand.u32 %v81, 4294901760
  %v1297 = vsub.f32 %v81, %v1296
  %v1298 = vand.u32 %v1297, 4294901760
  %v1299 = vsub.f32 %v1297, %v1298
  %v1300 = vand.u32 %v1299, 4294901760
  %1301 = vmatpush1.msra.mxu0 %v1300
  %1302 = vmatprep.subr.mxu0 0.0
  %v1303 = vand.u32 %v82, 4294901760
  %v1304 = vsub.f32 %v82, %v1303
  %v1305 = vand.u32 %v1304, 4294901760
  %v1306 = vsub.f32 %v1304, %v1305
  %v1307 = vand.u32 %v1306, 4294901760
  %1308 = vmatpush1.msra.mxu0 %v1307
  %1309 = vmatprep.subr.mxu0 0.0
  %v1310 = vand.u32 %v83, 4294901760
  %v1311 = vsub.f32 %v83, %v1310
  %v1312 = vand.u32 %v1311, 4294901760
  %v1313 = vsub.f32 %v1311, %v1312
  %v1314 = vand.u32 %v1313, 4294901760
  %1315 = vmatpush1.msra.mxu0 %v1314
  %1316 = vmatprep.subr.mxu0 0.0
  %v1317 = vand.u32 %v84, 4294901760
  %v1318 = vsub.f32 %v84, %v1317
  %v1319 = vand.u32 %v1318, 4294901760
  %v1320 = vsub.f32 %v1318, %v1319
  %v1321 = vand.u32 %v1320, 4294901760
  %1322 = vmatpush1.msra.mxu0 %v1321
  %1323 = vmatprep.subr.mxu0 0.0
  %v1324 = vand.u32 %v85, 4294901760
  %v1325 = vsub.f32 %v85, %v1324
  %v1326 = vand.u32 %v1325, 4294901760
  %v1327 = vsub.f32 %v1325, %v1326
  %v1328 = vand.u32 %v1327, 4294901760
  %1329 = vmatpush1.msra.mxu0 %v1328
  %1330 = vmatprep.subr.mxu0 0.0
  %v1331 = vand.u32 %v86, 4294901760
  %v1332 = vsub.f32 %v86, %v1331
  %v1333 = vand.u32 %v1332, 4294901760
  %v1334 = vsub.f32 %v1332, %v1333
  %v1335 = vand.u32 %v1334, 4294901760
  %1336 = vmatpush1.msra.mxu0 %v1335
  %1337 = vmatprep.subr.mxu0 0.0
  %v1338 = vand.u32 %v87, 4294901760
  %v1339 = vsub.f32 %v87, %v1338
  %v1340 = vand.u32 %v1339, 4294901760
  %v1341 = vsub.f32 %v1339, %v1340
  %v1342 = vand.u32 %v1341, 4294901760
  %1343 = vmatpush1.msra.mxu0 %v1342
  %1344 = vmatprep.subr.mxu0 0.0
  %v1345 = vand.u32 %v88, 4294901760
  %v1346 = vsub.f32 %v88, %v1345
  %v1347 = vand.u32 %v1346, 4294901760
  %v1348 = vsub.f32 %v1346, %v1347
  %v1349 = vand.u32 %v1348, 4294901760
  %1350 = vmatpush1.msra.mxu0 %v1349
  %v1351 = vand.u32 %v20, 4294901760
  %1352 = vmatprep.mubr.f32.mxu0 %v1351
  %v1353 = vand.u32 %v19, 4294901760
  %1354 = vmatmul.mubr.f32.gmra.mrb[0].mxu0 %v1353
  %v1355 = vpop.f32.mrb[0].mxu0
  %v1356 = vadd.f32 %v1124, %v1355
  %v1357 = vpop.f32.mrb[0].mxu0
  %1358 = vdwg.mxu0
  %1359 = vmatprep.subr.mxu0 0.0
  %v1360 = vand.u32 %v57, 4294901760
  %v1361 = vsub.f32 %v57, %v1360
  %1362 = vmatpush1.msra.mxu0 %v1361
  %1363 = vmatprep.subr.mxu0 0.0
  %v1364 = vand.u32 %v58, 4294901760
  %v1365 = vsub.f32 %v58, %v1364
  %1366 = vmatpush1.msra.mxu0 %v1365
  %1367 = vmatprep.subr.mxu0 0.0
  %v1368 = vand.u32 %v59, 4294901760
  %v1369 = vsub.f32 %v59, %v1368
  %1370 = vmatpush1.msra.mxu0 %v1369
  %1371 = vmatprep.subr.mxu0 0.0
  %v1372 = vand.u32 %v60, 4294901760
  %v1373 = vsub.f32 %v60, %v1372
  %1374 = vmatpush1.msra.mxu0 %v1373
  %1375 = vmatprep.subr.mxu0 0.0
  %v1376 = vand.u32 %v61, 4294901760
  %v1377 = vsub.f32 %v61, %v1376
  %1378 = vmatpush1.msra.mxu0 %v1377
  %1379 = vmatprep.subr.mxu0 0.0
  %v1380 = vand.u32 %v62, 4294901760
  %v1381 = vsub.f32 %v62, %v1380
  %1382 = vmatpush1.msra.mxu0 %v1381
  %1383 = vmatprep.subr.mxu0 0.0
  %v1384 = vand.u32 %v63, 4294901760
  %v1385 = vsub.f32 %v63, %v1384
  %1386 = vmatpush1.msra.mxu0 %v1385
  %1387 = vmatprep.subr.mxu0 0.0
  %v1388 = vand.u32 %v64, 4294901760
  %v1389 = vsub.f32 %v64, %v1388
  %1390 = vmatpush1.msra.mxu0 %v1389
  %1391 = vmatprep.subr.mxu0 0.0
  %v1392 = vand.u32 %v65, 4294901760
  %v1393 = vsub.f32 %v65, %v1392
  %1394 = vmatpush1.msra.mxu0 %v1393
  %1395 = vmatprep.subr.mxu0 0.0
  %v1396 = vand.u32 %v66, 4294901760
  %v1397 = vsub.f32 %v66, %v1396
  %1398 = vmatpush1.msra.mxu0 %v1397
  %1399 = vmatprep.subr.mxu0 0.0
  %v1400 = vand.u32 %v67, 4294901760
  %v1401 = vsub.f32 %v67, %v1400
  %1402 = vmatpush1.msra.mxu0 %v1401
  %1403 = vmatprep.subr.mxu0 0.0
  %v1404 = vand.u32 %v68, 4294901760
  %v1405 = vsub.f32 %v68, %v1404
  %1406 = vmatpush1.msra.mxu0 %v1405
  %1407 = vmatprep.subr.mxu0 0.0
  %v1408 = vand.u32 %v69, 4294901760
  %v1409 = vsub.f32 %v69, %v1408
  %1410 = vmatpush1.msra.mxu0 %v1409
  %1411 = vmatprep.subr.mxu0 0.0
  %v1412 = vand.u32 %v70, 4294901760
  %v1413 = vsub.f32 %v70, %v1412
  %1414 = vmatpush1.msra.mxu0 %v1413
  %1415 = vmatprep.subr.mxu0 0.0
  %v1416 = vand.u32 %v71, 4294901760
  %v1417 = vsub.f32 %v71, %v1416
  %1418 = vmatpush1.msra.mxu0 %v1417
  %1419 = vmatprep.subr.mxu0 0.0
  %v1420 = vand.u32 %v72, 4294901760
  %v1421 = vsub.f32 %v72, %v1420
  %1422 = vmatpush1.msra.mxu0 %v1421
  %1423 = vmatprep.subr.mxu0 0.0
  %v1424 = vand.u32 %v73, 4294901760
  %v1425 = vsub.f32 %v73, %v1424
  %1426 = vmatpush1.msra.mxu0 %v1425
  %1427 = vmatprep.subr.mxu0 0.0
  %v1428 = vand.u32 %v74, 4294901760
  %v1429 = vsub.f32 %v74, %v1428
  %1430 = vmatpush1.msra.mxu0 %v1429
  %1431 = vmatprep.subr.mxu0 0.0
  %v1432 = vand.u32 %v75, 4294901760
  %v1433 = vsub.f32 %v75, %v1432
  %1434 = vmatpush1.msra.mxu0 %v1433
  %1435 = vmatprep.subr.mxu0 0.0
  %v1436 = vand.u32 %v76, 4294901760
  %v1437 = vsub.f32 %v76, %v1436
  %1438 = vmatpush1.msra.mxu0 %v1437
  %1439 = vmatprep.subr.mxu0 0.0
  %v1440 = vand.u32 %v77, 4294901760
  %v1441 = vsub.f32 %v77, %v1440
  %1442 = vmatpush1.msra.mxu0 %v1441
  %1443 = vmatprep.subr.mxu0 0.0
  %v1444 = vand.u32 %v78, 4294901760
  %v1445 = vsub.f32 %v78, %v1444
  %1446 = vmatpush1.msra.mxu0 %v1445
  %1447 = vmatprep.subr.mxu0 0.0
  %v1448 = vand.u32 %v79, 4294901760
  %v1449 = vsub.f32 %v79, %v1448
  %1450 = vmatpush1.msra.mxu0 %v1449
  %1451 = vmatprep.subr.mxu0 0.0
  %v1452 = vand.u32 %v80, 4294901760
  %v1453 = vsub.f32 %v80, %v1452
  %1454 = vmatpush1.msra.mxu0 %v1453
  %1455 = vmatprep.subr.mxu0 0.0
  %v1456 = vand.u32 %v81, 4294901760
  %v1457 = vsub.f32 %v81, %v1456
  %1458 = vmatpush1.msra.mxu0 %v1457
  %1459 = vmatprep.subr.mxu0 0.0
  %v1460 = vand.u32 %v82, 4294901760
  %v1461 = vsub.f32 %v82, %v1460
  %1462 = vmatpush1.msra.mxu0 %v1461
  %1463 = vmatprep.subr.mxu0 0.0
  %v1464 = vand.u32 %v83, 4294901760
  %v1465 = vsub.f32 %v83, %v1464
  %1466 = vmatpush1.msra.mxu0 %v1465
  %1467 = vmatprep.subr.mxu0 0.0
  %v1468 = vand.u32 %v84, 4294901760
  %v1469 = vsub.f32 %v84, %v1468
  %1470 = vmatpush1.msra.mxu0 %v1469
  %1471 = vmatprep.subr.mxu0 0.0
  %v1472 = vand.u32 %v85, 4294901760
  %v1473 = vsub.f32 %v85, %v1472
  %1474 = vmatpush1.msra.mxu0 %v1473
  %1475 = vmatprep.subr.mxu0 0.0
  %v1476 = vand.u32 %v86, 4294901760
  %v1477 = vsub.f32 %v86, %v1476
  %1478 = vmatpush1.msra.mxu0 %v1477
  %1479 = vmatprep.subr.mxu0 0.0
  %v1480 = vand.u32 %v87, 4294901760
  %v1481 = vsub.f32 %v87, %v1480
  %1482 = vmatpush1.msra.mxu0 %v1481
  %1483 = vmatprep.subr.mxu0 0.0
  %v1484 = vand.u32 %v88, 4294901760
  %v1485 = vsub.f32 %v88, %v1484
  %1486 = vmatpush1.msra.mxu0 %v1485
  %v1487 = vand.u32 %v20, 4294901760
  %v1488 = vsub.f32 %v20, %v1487
  %1489 = vmatprep.mubr.f32.mxu0 %v1488
  %v1490 = vand.u32 %v19, 4294901760
  %v1491 = vsub.f32 %v19, %v1490
  %1492 = vmatmul.mubr.f32.gmra.mrb[0].mxu0 %v1491
  %v1493 = vpop.f32.mrb[0].mxu0
  %v1494 = vadd.f32 %v1356, %v1493
  %v1495 = vpop.f32.mrb[0].mxu0
  %1496 = vdwg.mxu0
  %1497 = vmatprep.subr.mxu0 0.0
  %v1498 = vand.u32 %v57, 4294901760
  %1499 = vmatpush1.msra.mxu0 %v1498
  %1500 = vmatprep.subr.mxu0 0.0
  %v1501 = vand.u32 %v58, 4294901760
  %1502 = vmatpush1.msra.mxu0 %v1501
  %1503 = vmatprep.subr.mxu0 0.0
  %v1504 = vand.u32 %v59, 4294901760
  %1505 = vmatpush1.msra.mxu0 %v1504
  %1506 = vmatprep.subr.mxu0 0.0
  %v1507 = vand.u32 %v60, 4294901760
  %1508 = vmatpush1.msra.mxu0 %v1507
  %1509 = vmatprep.subr.mxu0 0.0
  %v1510 = vand.u32 %v61, 4294901760
  %1511 = vmatpush1.msra.mxu0 %v1510
  %1512 = vmatprep.subr.mxu0 0.0
  %v1513 = vand.u32 %v62, 4294901760
  %1514 = vmatpush1.msra.mxu0 %v1513
  %1515 = vmatprep.subr.mxu0 0.0
  %v1516 = vand.u32 %v63, 4294901760
  %1517 = vmatpush1.msra.mxu0 %v1516
  %1518 = vmatprep.subr.mxu0 0.0
  %v1519 = vand.u32 %v64, 4294901760
  %1520 = vmatpush1.msra.mxu0 %v1519
  %1521 = vmatprep.subr.mxu0 0.0
  %v1522 = vand.u32 %v65, 4294901760
  %1523 = vmatpush1.msra.mxu0 %v1522
  %1524 = vmatprep.subr.mxu0 0.0
  %v1525 = vand.u32 %v66, 4294901760
  %1526 = vmatpush1.msra.mxu0 %v1525
  %1527 = vmatprep.subr.mxu0 0.0
  %v1528 = vand.u32 %v67, 4294901760
  %1529 = vmatpush1.msra.mxu0 %v1528
  %1530 = vmatprep.subr.mxu0 0.0
  %v1531 = vand.u32 %v68, 4294901760
  %1532 = vmatpush1.msra.mxu0 %v1531
  %1533 = vmatprep.subr.mxu0 0.0
  %v1534 = vand.u32 %v69, 4294901760
  %1535 = vmatpush1.msra.mxu0 %v1534
  %1536 = vmatprep.subr.mxu0 0.0
  %v1537 = vand.u32 %v70, 4294901760
  %1538 = vmatpush1.msra.mxu0 %v1537
  %1539 = vmatprep.subr.mxu0 0.0
  %v1540 = vand.u32 %v71, 4294901760
  %1541 = vmatpush1.msra.mxu0 %v1540
  %1542 = vmatprep.subr.mxu0 0.0
  %v1543 = vand.u32 %v72, 4294901760
  %1544 = vmatpush1.msra.mxu0 %v1543
  %1545 = vmatprep.subr.mxu0 0.0
  %v1546 = vand.u32 %v73, 4294901760
  %1547 = vmatpush1.msra.mxu0 %v1546
  %1548 = vmatprep.subr.mxu0 0.0
  %v1549 = vand.u32 %v74, 4294901760
  %1550 = vmatpush1.msra.mxu0 %v1549
  %1551 = vmatprep.subr.mxu0 0.0
  %v1552 = vand.u32 %v75, 4294901760
  %1553 = vmatpush1.msra.mxu0 %v1552
  %1554 = vmatprep.subr.mxu0 0.0
  %v1555 = vand.u32 %v76, 4294901760
  %1556 = vmatpush1.msra.mxu0 %v1555
  %1557 = vmatprep.subr.mxu0 0.0
  %v1558 = vand.u32 %v77, 4294901760
  %1559 = vmatpush1.msra.mxu0 %v1558
  %1560 = vmatprep.subr.mxu0 0.0
  %v1561 = vand.u32 %v78, 4294901760
  %1562 = vmatpush1.msra.mxu0 %v1561
  %1563 = vmatprep.subr.mxu0 0.0
  %v1564 = vand.u32 %v79, 4294901760
  %1565 = vmatpush1.msra.mxu0 %v1564
  %1566 = vmatprep.subr.mxu0 0.0
  %v1567 = vand.u32 %v80, 4294901760
  %1568 = vmatpush1.msra.mxu0 %v1567
  %1569 = vmatprep.subr.mxu0 0.0
  %v1570 = vand.u32 %v81, 4294901760
  %1571 = vmatpush1.msra.mxu0 %v1570
  %1572 = vmatprep.subr.mxu0 0.0
  %v1573 = vand.u32 %v82, 4294901760
  %1574 = vmatpush1.msra.mxu0 %v1573
  %1575 = vmatprep.subr.mxu0 0.0
  %v1576 = vand.u32 %v83, 4294901760
  %1577 = vmatpush1.msra.mxu0 %v1576
  %1578 = vmatprep.subr.mxu0 0.0
  %v1579 = vand.u32 %v84, 4294901760
  %1580 = vmatpush1.msra.mxu0 %v1579
  %1581 = vmatprep.subr.mxu0 0.0
  %v1582 = vand.u32 %v85, 4294901760
  %1583 = vmatpush1.msra.mxu0 %v1582
  %1584 = vmatprep.subr.mxu0 0.0
  %v1585 = vand.u32 %v86, 4294901760
  %1586 = vmatpush1.msra.mxu0 %v1585
  %1587 = vmatprep.subr.mxu0 0.0
  %v1588 = vand.u32 %v87, 4294901760
  %1589 = vmatpush1.msra.mxu0 %v1588
  %1590 = vmatprep.subr.mxu0 0.0
  %v1591 = vand.u32 %v88, 4294901760
  %1592 = vmatpush1.msra.mxu0 %v1591
  %v1593 = vand.u32 %v20, 4294901760
  %v1594 = vsub.f32 %v20, %v1593
  %v1595 = vand.u32 %v1594, 4294901760
  %1596 = vmatprep.mubr.f32.mxu0 %v1595
  %v1597 = vand.u32 %v19, 4294901760
  %v1598 = vsub.f32 %v19, %v1597
  %v1599 = vand.u32 %v1598, 4294901760
  %1600 = vmatmul.mubr.f32.gmra.mrb[0].mxu0 %v1599
  %v1601 = vpop.f32.mrb[0].mxu0
  %v1602 = vadd.f32 %v1494, %v1601
  %v1603 = vpop.f32.mrb[0].mxu0
  %1604 = vdwg.mxu0
  %1605 = vmatprep.subr.mxu0 0.0
  %v1606 = vand.u32 %v57, 4294901760
  %v1607 = vsub.f32 %v57, %v1606
  %v1608 = vand.u32 %v1607, 4294901760
  %1609 = vmatpush1.msra.mxu0 %v1608
  %1610 = vmatprep.subr.mxu0 0.0
  %v1611 = vand.u32 %v58, 4294901760
  %v1612 = vsub.f32 %v58, %v1611
  %v1613 = vand.u32 %v1612, 4294901760
  %1614 = vmatpush1.msra.mxu0 %v1613
  %1615 = vmatprep.subr.mxu0 0.0
  %v1616 = vand.u32 %v59, 4294901760
  %v1617 = vsub.f32 %v59, %v1616
  %v1618 = vand.u32 %v1617, 4294901760
  %1619 = vmatpush1.msra.mxu0 %v1618
  %1620 = vmatprep.subr.mxu0 0.0
  %v1621 = vand.u32 %v60, 4294901760
  %v1622 = vsub.f32 %v60, %v1621
  %v1623 = vand.u32 %v1622, 4294901760
  %1624 = vmatpush1.msra.mxu0 %v1623
  %1625 = vmatprep.subr.mxu0 0.0
  %v1626 = vand.u32 %v61, 4294901760
  %v1627 = vsub.f32 %v61, %v1626
  %v1628 = vand.u32 %v1627, 4294901760
  %1629 = vmatpush1.msra.mxu0 %v1628
  %1630 = vmatprep.subr.mxu0 0.0
  %v1631 = vand.u32 %v62, 4294901760
  %v1632 = vsub.f32 %v62, %v1631
  %v1633 = vand.u32 %v1632, 4294901760
  %1634 = vmatpush1.msra.mxu0 %v1633
  %1635 = vmatprep.subr.mxu0 0.0
  %v1636 = vand.u32 %v63, 4294901760
  %v1637 = vsub.f32 %v63, %v1636
  %v1638 = vand.u32 %v1637, 4294901760
  %1639 = vmatpush1.msra.mxu0 %v1638
  %1640 = vmatprep.subr.mxu0 0.0
  %v1641 = vand.u32 %v64, 4294901760
  %v1642 = vsub.f32 %v64, %v1641
  %v1643 = vand.u32 %v1642, 4294901760
  %1644 = vmatpush1.msra.mxu0 %v1643
  %1645 = vmatprep.subr.mxu0 0.0
  %v1646 = vand.u32 %v65, 4294901760
  %v1647 = vsub.f32 %v65, %v1646
  %v1648 = vand.u32 %v1647, 4294901760
  %1649 = vmatpush1.msra.mxu0 %v1648
  %1650 = vmatprep.subr.mxu0 0.0
  %v1651 = vand.u32 %v66, 4294901760
  %v1652 = vsub.f32 %v66, %v1651
  %v1653 = vand.u32 %v1652, 4294901760
  %1654 = vmatpush1.msra.mxu0 %v1653
  %1655 = vmatprep.subr.mxu0 0.0
  %v1656 = vand.u32 %v67, 4294901760
  %v1657 = vsub.f32 %v67, %v1656
  %v1658 = vand.u32 %v1657, 4294901760
  %1659 = vmatpush1.msra.mxu0 %v1658
  %1660 = vmatprep.subr.mxu0 0.0
  %v1661 = vand.u32 %v68, 4294901760
  %v1662 = vsub.f32 %v68, %v1661
  %v1663 = vand.u32 %v1662, 4294901760
  %1664 = vmatpush1.msra.mxu0 %v1663
  %1665 = vmatprep.subr.mxu0 0.0
  %v1666 = vand.u32 %v69, 4294901760
  %v1667 = vsub.f32 %v69, %v1666
  %v1668 = vand.u32 %v1667, 4294901760
  %1669 = vmatpush1.msra.mxu0 %v1668
  %1670 = vmatprep.subr.mxu0 0.0
  %v1671 = vand.u32 %v70, 4294901760
  %v1672 = vsub.f32 %v70, %v1671
  %v1673 = vand.u32 %v1672, 4294901760
  %1674 = vmatpush1.msra.mxu0 %v1673
  %1675 = vmatprep.subr.mxu0 0.0
  %v1676 = vand.u32 %v71, 4294901760
  %v1677 = vsub.f32 %v71, %v1676
  %v1678 = vand.u32 %v1677, 4294901760
  %1679 = vmatpush1.msra.mxu0 %v1678
  %1680 = vmatprep.subr.mxu0 0.0
  %v1681 = vand.u32 %v72, 4294901760
  %v1682 = vsub.f32 %v72, %v1681
  %v1683 = vand.u32 %v1682, 4294901760
  %1684 = vmatpush1.msra.mxu0 %v1683
  %1685 = vmatprep.subr.mxu0 0.0
  %v1686 = vand.u32 %v73, 4294901760
  %v1687 = vsub.f32 %v73, %v1686
  %v1688 = vand.u32 %v1687, 4294901760
  %1689 = vmatpush1.msra.mxu0 %v1688
  %1690 = vmatprep.subr.mxu0 0.0
  %v1691 = vand.u32 %v74, 4294901760
  %v1692 = vsub.f32 %v74, %v1691
  %v1693 = vand.u32 %v1692, 4294901760
  %1694 = vmatpush1.msra.mxu0 %v1693
  %1695 = vmatprep.subr.mxu0 0.0
  %v1696 = vand.u32 %v75, 4294901760
  %v1697 = vsub.f32 %v75, %v1696
  %v1698 = vand.u32 %v1697, 4294901760
  %1699 = vmatpush1.msra.mxu0 %v1698
  %1700 = vmatprep.subr.mxu0 0.0
  %v1701 = vand.u32 %v76, 4294901760
  %v1702 = vsub.f32 %v76, %v1701
  %v1703 = vand.u32 %v1702, 4294901760
  %1704 = vmatpush1.msra.mxu0 %v1703
  %1705 = vmatprep.subr.mxu0 0.0
  %v1706 = vand.u32 %v77, 4294901760
  %v1707 = vsub.f32 %v77, %v1706
  %v1708 = vand.u32 %v1707, 4294901760
  %1709 = vmatpush1.msra.mxu0 %v1708
  %1710 = vmatprep.subr.mxu0 0.0
  %v1711 = vand.u32 %v78, 4294901760
  %v1712 = vsub.f32 %v78, %v1711
  %v1713 = vand.u32 %v1712, 4294901760
  %1714 = vmatpush1.msra.mxu0 %v1713
  %1715 = vmatprep.subr.mxu0 0.0
  %v1716 = vand.u32 %v79, 4294901760
  %v1717 = vsub.f32 %v79, %v1716
  %v1718 = vand.u32 %v1717, 4294901760
  %1719 = vmatpush1.msra.mxu0 %v1718
  %1720 = vmatprep.subr.mxu0 0.0
  %v1721 = vand.u32 %v80, 4294901760
  %v1722 = vsub.f32 %v80, %v1721
  %v1723 = vand.u32 %v1722, 4294901760
  %1724 = vmatpush1.msra.mxu0 %v1723
  %1725 = vmatprep.subr.mxu0 0.0
  %v1726 = vand.u32 %v81, 4294901760
  %v1727 = vsub.f32 %v81, %v1726
  %v1728 = vand.u32 %v1727, 4294901760
  %1729 = vmatpush1.msra.mxu0 %v1728
  %1730 = vmatprep.subr.mxu0 0.0
  %v1731 = vand.u32 %v82, 4294901760
  %v1732 = vsub.f32 %v82, %v1731
  %v1733 = vand.u32 %v1732, 4294901760
  %1734 = vmatpush1.msra.mxu0 %v1733
  %1735 = vmatprep.subr.mxu0 0.0
  %v1736 = vand.u32 %v83, 4294901760
  %v1737 = vsub.f32 %v83, %v1736
  %v1738 = vand.u32 %v1737, 4294901760
  %1739 = vmatpush1.msra.mxu0 %v1738
  %1740 = vmatprep.subr.mxu0 0.0
  %v1741 = vand.u32 %v84, 4294901760
  %v1742 = vsub.f32 %v84, %v1741
  %v1743 = vand.u32 %v1742, 4294901760
  %1744 = vmatpush1.msra.mxu0 %v1743
  %1745 = vmatprep.subr.mxu0 0.0
  %v1746 = vand.u32 %v85, 4294901760
  %v1747 = vsub.f32 %v85, %v1746
  %v1748 = vand.u32 %v1747, 4294901760
  %1749 = vmatpush1.msra.mxu0 %v1748
  %1750 = vmatprep.subr.mxu0 0.0
  %v1751 = vand.u32 %v86, 4294901760
  %v1752 = vsub.f32 %v86, %v1751
  %v1753 = vand.u32 %v1752, 4294901760
  %1754 = vmatpush1.msra.mxu0 %v1753
  %1755 = vmatprep.subr.mxu0 0.0
  %v1756 = vand.u32 %v87, 4294901760
  %v1757 = vsub.f32 %v87, %v1756
  %v1758 = vand.u32 %v1757, 4294901760
  %1759 = vmatpush1.msra.mxu0 %v1758
  %1760 = vmatprep.subr.mxu0 0.0
  %v1761 = vand.u32 %v88, 4294901760
  %v1762 = vsub.f32 %v88, %v1761
  %v1763 = vand.u32 %v1762, 4294901760
  %1764 = vmatpush1.msra.mxu0 %v1763
  %v1765 = vand.u32 %v20, 4294901760
  %1766 = vmatprep.mubr.f32.mxu0 %v1765
  %v1767 = vand.u32 %v19, 4294901760
  %1768 = vmatmul.mubr.f32.gmra.mrb[0].mxu0 %v1767
  %v1769 = vpop.f32.mrb[0].mxu0
  %v1770 = vadd.f32 %v1602, %v1769
  %v1771 = vpop.f32.mrb[0].mxu0
  %1772 = vdwg.mxu0
  %1773 = vmatprep.subr.mxu0 0.0
  %v1774 = vand.u32 %v57, 4294901760
  %1775 = vmatpush1.msra.mxu0 %v1774
  %1776 = vmatprep.subr.mxu0 0.0
  %v1777 = vand.u32 %v58, 4294901760
  %1778 = vmatpush1.msra.mxu0 %v1777
  %1779 = vmatprep.subr.mxu0 0.0
  %v1780 = vand.u32 %v59, 4294901760
  %1781 = vmatpush1.msra.mxu0 %v1780
  %1782 = vmatprep.subr.mxu0 0.0
  %v1783 = vand.u32 %v60, 4294901760
  %1784 = vmatpush1.msra.mxu0 %v1783
  %1785 = vmatprep.subr.mxu0 0.0
  %v1786 = vand.u32 %v61, 4294901760
  %1787 = vmatpush1.msra.mxu0 %v1786
  %1788 = vmatprep.subr.mxu0 0.0
  %v1789 = vand.u32 %v62, 4294901760
  %1790 = vmatpush1.msra.mxu0 %v1789
  %1791 = vmatprep.subr.mxu0 0.0
  %v1792 = vand.u32 %v63, 4294901760
  %1793 = vmatpush1.msra.mxu0 %v1792
  %1794 = vmatprep.subr.mxu0 0.0
  %v1795 = vand.u32 %v64, 4294901760
  %1796 = vmatpush1.msra.mxu0 %v1795
  %1797 = vmatprep.subr.mxu0 0.0
  %v1798 = vand.u32 %v65, 4294901760
  %1799 = vmatpush1.msra.mxu0 %v1798
  %1800 = vmatprep.subr.mxu0 0.0
  %v1801 = vand.u32 %v66, 4294901760
  %1802 = vmatpush1.msra.mxu0 %v1801
  %1803 = vmatprep.subr.mxu0 0.0
  %v1804 = vand.u32 %v67, 4294901760
  %1805 = vmatpush1.msra.mxu0 %v1804
  %1806 = vmatprep.subr.mxu0 0.0
  %v1807 = vand.u32 %v68, 4294901760
  %1808 = vmatpush1.msra.mxu0 %v1807
  %1809 = vmatprep.subr.mxu0 0.0
  %v1810 = vand.u32 %v69, 4294901760
  %1811 = vmatpush1.msra.mxu0 %v1810
  %1812 = vmatprep.subr.mxu0 0.0
  %v1813 = vand.u32 %v70, 4294901760
  %1814 = vmatpush1.msra.mxu0 %v1813
  %1815 = vmatprep.subr.mxu0 0.0
  %v1816 = vand.u32 %v71, 4294901760
  %1817 = vmatpush1.msra.mxu0 %v1816
  %1818 = vmatprep.subr.mxu0 0.0
  %v1819 = vand.u32 %v72, 4294901760
  %1820 = vmatpush1.msra.mxu0 %v1819
  %1821 = vmatprep.subr.mxu0 0.0
  %v1822 = vand.u32 %v73, 4294901760
  %1823 = vmatpush1.msra.mxu0 %v1822
  %1824 = vmatprep.subr.mxu0 0.0
  %v1825 = vand.u32 %v74, 4294901760
  %1826 = vmatpush1.msra.mxu0 %v1825
  %1827 = vmatprep.subr.mxu0 0.0
  %v1828 = vand.u32 %v75, 4294901760
  %1829 = vmatpush1.msra.mxu0 %v1828
  %1830 = vmatprep.subr.mxu0 0.0
  %v1831 = vand.u32 %v76, 4294901760
  %1832 = vmatpush1.msra.mxu0 %v1831
  %1833 = vmatprep.subr.mxu0 0.0
  %v1834 = vand.u32 %v77, 4294901760
  %1835 = vmatpush1.msra.mxu0 %v1834
  %1836 = vmatprep.subr.mxu0 0.0
  %v1837 = vand.u32 %v78, 4294901760
  %1838 = vmatpush1.msra.mxu0 %v1837
  %1839 = vmatprep.subr.mxu0 0.0
  %v1840 = vand.u32 %v79, 4294901760
  %1841 = vmatpush1.msra.mxu0 %v1840
  %1842 = vmatprep.subr.mxu0 0.0
  %v1843 = vand.u32 %v80, 4294901760
  %1844 = vmatpush1.msra.mxu0 %v1843
  %1845 = vmatprep.subr.mxu0 0.0
  %v1846 = vand.u32 %v81, 4294901760
  %1847 = vmatpush1.msra.mxu0 %v1846
  %1848 = vmatprep.subr.mxu0 0.0
  %v1849 = vand.u32 %v82, 4294901760
  %1850 = vmatpush1.msra.mxu0 %v1849
  %1851 = vmatprep.subr.mxu0 0.0
  %v1852 = vand.u32 %v83, 4294901760
  %1853 = vmatpush1.msra.mxu0 %v1852
  %1854 = vmatprep.subr.mxu0 0.0
  %v1855 = vand.u32 %v84, 4294901760
  %1856 = vmatpush1.msra.mxu0 %v1855
  %1857 = vmatprep.subr.mxu0 0.0
  %v1858 = vand.u32 %v85, 4294901760
  %1859 = vmatpush1.msra.mxu0 %v1858
  %1860 = vmatprep.subr.mxu0 0.0
  %v1861 = vand.u32 %v86, 4294901760
  %1862 = vmatpush1.msra.mxu0 %v1861
  %1863 = vmatprep.subr.mxu0 0.0
  %v1864 = vand.u32 %v87, 4294901760
  %1865 = vmatpush1.msra.mxu0 %v1864
  %1866 = vmatprep.subr.mxu0 0.0
  %v1867 = vand.u32 %v88, 4294901760
  %1868 = vmatpush1.msra.mxu0 %v1867
  %v1869 = vand.u32 %v20, 4294901760
  %1870 = vmatprep.mubr.f32.mxu0 %v1869
  %v1871 = vand.u32 %v19, 4294901760
  %1872 = vmatmul.mubr.f32.gmra.mrb[0].mxu0 %v1871
  %v1873 = vpop.f32.mrb[0].mxu0
  %v1874 = vadd.f32 %v1770, %v1873
  %v1875 = vpop.f32.mrb[0].mxu0
  %1876 = vdwg.mxu0
  %1877 = vmatprep.subr.mxu0 0.0
  %v1878 = vand.u32 %v89, 4294901760
  %1879 = vmatpush1.msra.mxu0 %v1878
  %1880 = vmatprep.subr.mxu0 0.0
  %v1881 = vand.u32 %v90, 4294901760
  %1882 = vmatpush1.msra.mxu0 %v1881
  %1883 = vmatprep.subr.mxu0 0.0
  %v1884 = vand.u32 %v91, 4294901760
  %1885 = vmatpush1.msra.mxu0 %v1884
  %1886 = vmatprep.subr.mxu0 0.0
  %v1887 = vand.u32 %v92, 4294901760
  %1888 = vmatpush1.msra.mxu0 %v1887
  %1889 = vmatprep.subr.mxu0 0.0
  %v1890 = vand.u32 %v93, 4294901760
  %1891 = vmatpush1.msra.mxu0 %v1890
  %1892 = vmatprep.subr.mxu0 0.0
  %v1893 = vand.u32 %v94, 4294901760
  %1894 = vmatpush1.msra.mxu0 %v1893
  %1895 = vmatprep.subr.mxu0 0.0
  %v1896 = vand.u32 %v95, 4294901760
  %1897 = vmatpush1.msra.mxu0 %v1896
  %1898 = vmatprep.subr.mxu0 0.0
  %v1899 = vand.u32 %v96, 4294901760
  %1900 = vmatpush1.msra.mxu0 %v1899
  %1901 = vmatprep.subr.mxu0 0.0
  %v1902 = vand.u32 %v97, 4294901760
  %1903 = vmatpush1.msra.mxu0 %v1902
  %1904 = vmatprep.subr.mxu0 0.0
  %v1905 = vand.u32 %v98, 4294901760
  %1906 = vmatpush1.msra.mxu0 %v1905
  %1907 = vmatprep.subr.mxu0 0.0
  %v1908 = vand.u32 %v99, 4294901760
  %1909 = vmatpush1.msra.mxu0 %v1908
  %1910 = vmatprep.subr.mxu0 0.0
  %v1911 = vand.u32 %v100, 4294901760
  %1912 = vmatpush1.msra.mxu0 %v1911
  %1913 = vmatprep.subr.mxu0 0.0
  %v1914 = vand.u32 %v101, 4294901760
  %1915 = vmatpush1.msra.mxu0 %v1914
  %1916 = vmatprep.subr.mxu0 0.0
  %v1917 = vand.u32 %v102, 4294901760
  %1918 = vmatpush1.msra.mxu0 %v1917
  %1919 = vmatprep.subr.mxu0 0.0
  %v1920 = vand.u32 %v103, 4294901760
  %1921 = vmatpush1.msra.mxu0 %v1920
  %1922 = vmatprep.subr.mxu0 0.0
  %v1923 = vand.u32 %v104, 4294901760
  %1924 = vmatpush1.msra.mxu0 %v1923
  %1925 = vmatprep.subr.mxu0 0.0
  %v1926 = vand.u32 %v105, 4294901760
  %1927 = vmatpush1.msra.mxu0 %v1926
  %1928 = vmatprep.subr.mxu0 0.0
  %v1929 = vand.u32 %v106, 4294901760
  %1930 = vmatpush1.msra.mxu0 %v1929
  %1931 = vmatprep.subr.mxu0 0.0
  %v1932 = vand.u32 %v107, 4294901760
  %1933 = vmatpush1.msra.mxu0 %v1932
  %1934 = vmatprep.subr.mxu0 0.0
  %v1935 = vand.u32 %v108, 4294901760
  %1936 = vmatpush1.msra.mxu0 %v1935
  %1937 = vmatprep.subr.mxu0 0.0
  %v1938 = vand.u32 %v109, 4294901760
  %1939 = vmatpush1.msra.mxu0 %v1938
  %1940 = vmatprep.subr.mxu0 0.0
  %v1941 = vand.u32 %v110, 4294901760
  %1942 = vmatpush1.msra.mxu0 %v1941
  %1943 = vmatprep.subr.mxu0 0.0
  %v1944 = vand.u32 %v111, 4294901760
  %1945 = vmatpush1.msra.mxu0 %v1944
  %1946 = vmatprep.subr.mxu0 0.0
  %v1947 = vand.u32 %v112, 4294901760
  %1948 = vmatpush1.msra.mxu0 %v1947
  %1949 = vmatprep.subr.mxu0 0.0
  %v1950 = vand.u32 %v113, 4294901760
  %1951 = vmatpush1.msra.mxu0 %v1950
  %1952 = vmatprep.subr.mxu0 0.0
  %v1953 = vand.u32 %v114, 4294901760
  %1954 = vmatpush1.msra.mxu0 %v1953
  %1955 = vmatprep.subr.mxu0 0.0
  %v1956 = vand.u32 %v115, 4294901760
  %1957 = vmatpush1.msra.mxu0 %v1956
  %1958 = vmatprep.subr.mxu0 0.0
  %v1959 = vand.u32 %v116, 4294901760
  %1960 = vmatpush1.msra.mxu0 %v1959
  %1961 = vmatprep.subr.mxu0 0.0
  %v1962 = vand.u32 %v117, 4294901760
  %1963 = vmatpush1.msra.mxu0 %v1962
  %1964 = vmatprep.subr.mxu0 0.0
  %v1965 = vand.u32 %v118, 4294901760
  %1966 = vmatpush1.msra.mxu0 %v1965
  %1967 = vmatprep.subr.mxu0 0.0
  %v1968 = vand.u32 %v119, 4294901760
  %1969 = vmatpush1.msra.mxu0 %v1968
  %1970 = vmatprep.subr.mxu0 0.0
  %v1971 = vand.u32 %v120, 4294901760
  %1972 = vmatpush1.msra.mxu0 %v1971
  %v1973 = vand.u32 %v22, 4294901760
  %v1974 = vsub.f32 %v22, %v1973
  %v1975 = vand.u32 %v1974, 4294901760
  %v1976 = vsub.f32 %v1974, %v1975
  %v1977 = vand.u32 %v1976, 4294901760
  %1978 = vmatprep.mubr.f32.mxu0 %v1977
  %v1979 = vand.u32 %v21, 4294901760
  %v1980 = vsub.f32 %v21, %v1979
  %v1981 = vand.u32 %v1980, 4294901760
  %v1982 = vsub.f32 %v1980, %v1981
  %v1983 = vand.u32 %v1982, 4294901760
  %1984 = vmatmul.mubr.f32.gmra.mrb[0].mxu0 %v1983
  %v1985 = vpop.f32.mrb[0].mxu0
  %v1986 = vadd.f32 %v1874, %v1985
  %v1987 = vpop.f32.mrb[0].mxu0
  %1988 = vdwg.mxu0
  %1989 = vmatprep.subr.mxu0 0.0
  %v1990 = vand.u32 %v89, 4294901760
  %v1991 = vsub.f32 %v89, %v1990
  %v1992 = vand.u32 %v1991, 4294901760
  %v1993 = vsub.f32 %v1991, %v1992
  %v1994 = vand.u32 %v1993, 4294901760
  %1995 = vmatpush1.msra.mxu0 %v1994
  %1996 = vmatprep.subr.mxu0 0.0
  %v1997 = vand.u32 %v90, 4294901760
  %v1998 = vsub.f32 %v90, %v1997
  %v1999 = vand.u32 %v1998, 4294901760
  %v2000 = vsub.f32 %v1998, %v1999
  %v2001 = vand.u32 %v2000, 4294901760
  %2002 = vmatpush1.msra.mxu0 %v2001
  %2003 = vmatprep.subr.mxu0 0.0
  %v2004 = vand.u32 %v91, 4294901760
  %v2005 = vsub.f32 %v91, %v2004
  %v2006 = vand.u32 %v2005, 4294901760
  %v2007 = vsub.f32 %v2005, %v2006
  %v2008 = vand.u32 %v2007, 4294901760
  %2009 = vmatpush1.msra.mxu0 %v2008
  %2010 = vmatprep.subr.mxu0 0.0
  %v2011 = vand.u32 %v92, 4294901760
  %v2012 = vsub.f32 %v92, %v2011
  %v2013 = vand.u32 %v2012, 4294901760
  %v2014 = vsub.f32 %v2012, %v2013
  %v2015 = vand.u32 %v2014, 4294901760
  %2016 = vmatpush1.msra.mxu0 %v2015
  %2017 = vmatprep.subr.mxu0 0.0
  %v2018 = vand.u32 %v93, 4294901760
  %v2019 = vsub.f32 %v93, %v2018
  %v2020 = vand.u32 %v2019, 4294901760
  %v2021 = vsub.f32 %v2019, %v2020
  %v2022 = vand.u32 %v2021, 4294901760
  %2023 = vmatpush1.msra.mxu0 %v2022
  %2024 = vmatprep.subr.mxu0 0.0
  %v2025 = vand.u32 %v94, 4294901760
  %v2026 = vsub.f32 %v94, %v2025
  %v2027 = vand.u32 %v2026, 4294901760
  %v2028 = vsub.f32 %v2026, %v2027
  %v2029 = vand.u32 %v2028, 4294901760
  %2030 = vmatpush1.msra.mxu0 %v2029
  %2031 = vmatprep.subr.mxu0 0.0
  %v2032 = vand.u32 %v95, 4294901760
  %v2033 = vsub.f32 %v95, %v2032
  %v2034 = vand.u32 %v2033, 4294901760
  %v2035 = vsub.f32 %v2033, %v2034
  %v2036 = vand.u32 %v2035, 4294901760
  %2037 = vmatpush1.msra.mxu0 %v2036
  %2038 = vmatprep.subr.mxu0 0.0
  %v2039 = vand.u32 %v96, 4294901760
  %v2040 = vsub.f32 %v96, %v2039
  %v2041 = vand.u32 %v2040, 4294901760
  %v2042 = vsub.f32 %v2040, %v2041
  %v2043 = vand.u32 %v2042, 4294901760
  %2044 = vmatpush1.msra.mxu0 %v2043
  %2045 = vmatprep.subr.mxu0 0.0
  %v2046 = vand.u32 %v97, 4294901760
  %v2047 = vsub.f32 %v97, %v2046
  %v2048 = vand.u32 %v2047, 4294901760
  %v2049 = vsub.f32 %v2047, %v2048
  %v2050 = vand.u32 %v2049, 4294901760
  %2051 = vmatpush1.msra.mxu0 %v2050
  %2052 = vmatprep.subr.mxu0 0.0
  %v2053 = vand.u32 %v98, 4294901760
  %v2054 = vsub.f32 %v98, %v2053
  %v2055 = vand.u32 %v2054, 4294901760
  %v2056 = vsub.f32 %v2054, %v2055
  %v2057 = vand.u32 %v2056, 4294901760
  %2058 = vmatpush1.msra.mxu0 %v2057
  %2059 = vmatprep.subr.mxu0 0.0
  %v2060 = vand.u32 %v99, 4294901760
  %v2061 = vsub.f32 %v99, %v2060
  %v2062 = vand.u32 %v2061, 4294901760
  %v2063 = vsub.f32 %v2061, %v2062
  %v2064 = vand.u32 %v2063, 4294901760
  %2065 = vmatpush1.msra.mxu0 %v2064
  %2066 = vmatprep.subr.mxu0 0.0
  %v2067 = vand.u32 %v100, 4294901760
  %v2068 = vsub.f32 %v100, %v2067
  %v2069 = vand.u32 %v2068, 4294901760
  %v2070 = vsub.f32 %v2068, %v2069
  %v2071 = vand.u32 %v2070, 4294901760
  %2072 = vmatpush1.msra.mxu0 %v2071
  %2073 = vmatprep.subr.mxu0 0.0
  %v2074 = vand.u32 %v101, 4294901760
  %v2075 = vsub.f32 %v101, %v2074
  %v2076 = vand.u32 %v2075, 4294901760
  %v2077 = vsub.f32 %v2075, %v2076
  %v2078 = vand.u32 %v2077, 4294901760
  %2079 = vmatpush1.msra.mxu0 %v2078
  %2080 = vmatprep.subr.mxu0 0.0
  %v2081 = vand.u32 %v102, 4294901760
  %v2082 = vsub.f32 %v102, %v2081
  %v2083 = vand.u32 %v2082, 4294901760
  %v2084 = vsub.f32 %v2082, %v2083
  %v2085 = vand.u32 %v2084, 4294901760
  %2086 = vmatpush1.msra.mxu0 %v2085
  %2087 = vmatprep.subr.mxu0 0.0
  %v2088 = vand.u32 %v103, 4294901760
  %v2089 = vsub.f32 %v103, %v2088
  %v2090 = vand.u32 %v2089, 4294901760
  %v2091 = vsub.f32 %v2089, %v2090
  %v2092 = vand.u32 %v2091, 4294901760
  %2093 = vmatpush1.msra.mxu0 %v2092
  %2094 = vmatprep.subr.mxu0 0.0
  %v2095 = vand.u32 %v104, 4294901760
  %v2096 = vsub.f32 %v104, %v2095
  %v2097 = vand.u32 %v2096, 4294901760
  %v2098 = vsub.f32 %v2096, %v2097
  %v2099 = vand.u32 %v2098, 4294901760
  %2100 = vmatpush1.msra.mxu0 %v2099
  %2101 = vmatprep.subr.mxu0 0.0
  %v2102 = vand.u32 %v105, 4294901760
  %v2103 = vsub.f32 %v105, %v2102
  %v2104 = vand.u32 %v2103, 4294901760
  %v2105 = vsub.f32 %v2103, %v2104
  %v2106 = vand.u32 %v2105, 4294901760
  %2107 = vmatpush1.msra.mxu0 %v2106
  %2108 = vmatprep.subr.mxu0 0.0
  %v2109 = vand.u32 %v106, 4294901760
  %v2110 = vsub.f32 %v106, %v2109
  %v2111 = vand.u32 %v2110, 4294901760
  %v2112 = vsub.f32 %v2110, %v2111
  %v2113 = vand.u32 %v2112, 4294901760
  %2114 = vmatpush1.msra.mxu0 %v2113
  %2115 = vmatprep.subr.mxu0 0.0
  %v2116 = vand.u32 %v107, 4294901760
  %v2117 = vsub.f32 %v107, %v2116
  %v2118 = vand.u32 %v2117, 4294901760
  %v2119 = vsub.f32 %v2117, %v2118
  %v2120 = vand.u32 %v2119, 4294901760
  %2121 = vmatpush1.msra.mxu0 %v2120
  %2122 = vmatprep.subr.mxu0 0.0
  %v2123 = vand.u32 %v108, 4294901760
  %v2124 = vsub.f32 %v108, %v2123
  %v2125 = vand.u32 %v2124, 4294901760
  %v2126 = vsub.f32 %v2124, %v2125
  %v2127 = vand.u32 %v2126, 4294901760
  %2128 = vmatpush1.msra.mxu0 %v2127
  %2129 = vmatprep.subr.mxu0 0.0
  %v2130 = vand.u32 %v109, 4294901760
  %v2131 = vsub.f32 %v109, %v2130
  %v2132 = vand.u32 %v2131, 4294901760
  %v2133 = vsub.f32 %v2131, %v2132
  %v2134 = vand.u32 %v2133, 4294901760
  %2135 = vmatpush1.msra.mxu0 %v2134
  %2136 = vmatprep.subr.mxu0 0.0
  %v2137 = vand.u32 %v110, 4294901760
  %v2138 = vsub.f32 %v110, %v2137
  %v2139 = vand.u32 %v2138, 4294901760
  %v2140 = vsub.f32 %v2138, %v2139
  %v2141 = vand.u32 %v2140, 4294901760
  %2142 = vmatpush1.msra.mxu0 %v2141
  %2143 = vmatprep.subr.mxu0 0.0
  %v2144 = vand.u32 %v111, 4294901760
  %v2145 = vsub.f32 %v111, %v2144
  %v2146 = vand.u32 %v2145, 4294901760
  %v2147 = vsub.f32 %v2145, %v2146
  %v2148 = vand.u32 %v2147, 4294901760
  %2149 = vmatpush1.msra.mxu0 %v2148
  %2150 = vmatprep.subr.mxu0 0.0
  %v2151 = vand.u32 %v112, 4294901760
  %v2152 = vsub.f32 %v112, %v2151
  %v2153 = vand.u32 %v2152, 4294901760
  %v2154 = vsub.f32 %v2152, %v2153
  %v2155 = vand.u32 %v2154, 4294901760
  %2156 = vmatpush1.msra.mxu0 %v2155
  %2157 = vmatprep.subr.mxu0 0.0
  %v2158 = vand.u32 %v113, 4294901760
  %v2159 = vsub.f32 %v113, %v2158
  %v2160 = vand.u32 %v2159, 4294901760
  %v2161 = vsub.f32 %v2159, %v2160
  %v2162 = vand.u32 %v2161, 4294901760
  %2163 = vmatpush1.msra.mxu0 %v2162
  %2164 = vmatprep.subr.mxu0 0.0
  %v2165 = vand.u32 %v114, 4294901760
  %v2166 = vsub.f32 %v114, %v2165
  %v2167 = vand.u32 %v2166, 4294901760
  %v2168 = vsub.f32 %v2166, %v2167
  %v2169 = vand.u32 %v2168, 4294901760
  %2170 = vmatpush1.msra.mxu0 %v2169
  %2171 = vmatprep.subr.mxu0 0.0
  %v2172 = vand.u32 %v115, 4294901760
  %v2173 = vsub.f32 %v115, %v2172
  %v2174 = vand.u32 %v2173, 4294901760
  %v2175 = vsub.f32 %v2173, %v2174
  %v2176 = vand.u32 %v2175, 4294901760
  %2177 = vmatpush1.msra.mxu0 %v2176
  %2178 = vmatprep.subr.mxu0 0.0
  %v2179 = vand.u32 %v116, 4294901760
  %v2180 = vsub.f32 %v116, %v2179
  %v2181 = vand.u32 %v2180, 4294901760
  %v2182 = vsub.f32 %v2180, %v2181
  %v2183 = vand.u32 %v2182, 4294901760
  %2184 = vmatpush1.msra.mxu0 %v2183
  %2185 = vmatprep.subr.mxu0 0.0
  %v2186 = vand.u32 %v117, 4294901760
  %v2187 = vsub.f32 %v117, %v2186
  %v2188 = vand.u32 %v2187, 4294901760
  %v2189 = vsub.f32 %v2187, %v2188
  %v2190 = vand.u32 %v2189, 4294901760
  %2191 = vmatpush1.msra.mxu0 %v2190
  %2192 = vmatprep.subr.mxu0 0.0
  %v2193 = vand.u32 %v118, 4294901760
  %v2194 = vsub.f32 %v118, %v2193
  %v2195 = vand.u32 %v2194, 4294901760
  %v2196 = vsub.f32 %v2194, %v2195
  %v2197 = vand.u32 %v2196, 4294901760
  %2198 = vmatpush1.msra.mxu0 %v2197
  %2199 = vmatprep.subr.mxu0 0.0
  %v2200 = vand.u32 %v119, 4294901760
  %v2201 = vsub.f32 %v119, %v2200
  %v2202 = vand.u32 %v2201, 4294901760
  %v2203 = vsub.f32 %v2201, %v2202
  %v2204 = vand.u32 %v2203, 4294901760
  %2205 = vmatpush1.msra.mxu0 %v2204
  %2206 = vmatprep.subr.mxu0 0.0
  %v2207 = vand.u32 %v120, 4294901760
  %v2208 = vsub.f32 %v120, %v2207
  %v2209 = vand.u32 %v2208, 4294901760
  %v2210 = vsub.f32 %v2208, %v2209
  %v2211 = vand.u32 %v2210, 4294901760
  %2212 = vmatpush1.msra.mxu0 %v2211
  %v2213 = vand.u32 %v22, 4294901760
  %2214 = vmatprep.mubr.f32.mxu0 %v2213
  %v2215 = vand.u32 %v21, 4294901760
  %2216 = vmatmul.mubr.f32.gmra.mrb[0].mxu0 %v2215
  %v2217 = vpop.f32.mrb[0].mxu0
  %v2218 = vadd.f32 %v1986, %v2217
  %v2219 = vpop.f32.mrb[0].mxu0
  %2220 = vdwg.mxu0
  %2221 = vmatprep.subr.mxu0 0.0
  %v2222 = vand.u32 %v89, 4294901760
  %v2223 = vsub.f32 %v89, %v2222
  %2224 = vmatpush1.msra.mxu0 %v2223
  %2225 = vmatprep.subr.mxu0 0.0
  %v2226 = vand.u32 %v90, 4294901760
  %v2227 = vsub.f32 %v90, %v2226
  %2228 = vmatpush1.msra.mxu0 %v2227
  %2229 = vmatprep.subr.mxu0 0.0
  %v2230 = vand.u32 %v91, 4294901760
  %v2231 = vsub.f32 %v91, %v2230
  %2232 = vmatpush1.msra.mxu0 %v2231
  %2233 = vmatprep.subr.mxu0 0.0
  %v2234 = vand.u32 %v92, 4294901760
  %v2235 = vsub.f32 %v92, %v2234
  %2236 = vmatpush1.msra.mxu0 %v2235
  %2237 = vmatprep.subr.mxu0 0.0
  %v2238 = vand.u32 %v93, 4294901760
  %v2239 = vsub.f32 %v93, %v2238
  %2240 = vmatpush1.msra.mxu0 %v2239
  %2241 = vmatprep.subr.mxu0 0.0
  %v2242 = vand.u32 %v94, 4294901760
  %v2243 = vsub.f32 %v94, %v2242
  %2244 = vmatpush1.msra.mxu0 %v2243
  %2245 = vmatprep.subr.mxu0 0.0
  %v2246 = vand.u32 %v95, 4294901760
  %v2247 = vsub.f32 %v95, %v2246
  %2248 = vmatpush1.msra.mxu0 %v2247
  %2249 = vmatprep.subr.mxu0 0.0
  %v2250 = vand.u32 %v96, 4294901760
  %v2251 = vsub.f32 %v96, %v2250
  %2252 = vmatpush1.msra.mxu0 %v2251
  %2253 = vmatprep.subr.mxu0 0.0
  %v2254 = vand.u32 %v97, 4294901760
  %v2255 = vsub.f32 %v97, %v2254
  %2256 = vmatpush1.msra.mxu0 %v2255
  %2257 = vmatprep.subr.mxu0 0.0
  %v2258 = vand.u32 %v98, 4294901760
  %v2259 = vsub.f32 %v98, %v2258
  %2260 = vmatpush1.msra.mxu0 %v2259
  %2261 = vmatprep.subr.mxu0 0.0
  %v2262 = vand.u32 %v99, 4294901760
  %v2263 = vsub.f32 %v99, %v2262
  %2264 = vmatpush1.msra.mxu0 %v2263
  %2265 = vmatprep.subr.mxu0 0.0
  %v2266 = vand.u32 %v100, 4294901760
  %v2267 = vsub.f32 %v100, %v2266
  %2268 = vmatpush1.msra.mxu0 %v2267
  %2269 = vmatprep.subr.mxu0 0.0
  %v2270 = vand.u32 %v101, 4294901760
  %v2271 = vsub.f32 %v101, %v2270
  %2272 = vmatpush1.msra.mxu0 %v2271
  %2273 = vmatprep.subr.mxu0 0.0
  %v2274 = vand.u32 %v102, 4294901760
  %v2275 = vsub.f32 %v102, %v2274
  %2276 = vmatpush1.msra.mxu0 %v2275
  %2277 = vmatprep.subr.mxu0 0.0
  %v2278 = vand.u32 %v103, 4294901760
  %v2279 = vsub.f32 %v103, %v2278
  %2280 = vmatpush1.msra.mxu0 %v2279
  %2281 = vmatprep.subr.mxu0 0.0
  %v2282 = vand.u32 %v104, 4294901760
  %v2283 = vsub.f32 %v104, %v2282
  %2284 = vmatpush1.msra.mxu0 %v2283
  %2285 = vmatprep.subr.mxu0 0.0
  %v2286 = vand.u32 %v105, 4294901760
  %v2287 = vsub.f32 %v105, %v2286
  %2288 = vmatpush1.msra.mxu0 %v2287
  %2289 = vmatprep.subr.mxu0 0.0
  %v2290 = vand.u32 %v106, 4294901760
  %v2291 = vsub.f32 %v106, %v2290
  %2292 = vmatpush1.msra.mxu0 %v2291
  %2293 = vmatprep.subr.mxu0 0.0
  %v2294 = vand.u32 %v107, 4294901760
  %v2295 = vsub.f32 %v107, %v2294
  %2296 = vmatpush1.msra.mxu0 %v2295
  %2297 = vmatprep.subr.mxu0 0.0
  %v2298 = vand.u32 %v108, 4294901760
  %v2299 = vsub.f32 %v108, %v2298
  %2300 = vmatpush1.msra.mxu0 %v2299
  %2301 = vmatprep.subr.mxu0 0.0
  %v2302 = vand.u32 %v109, 4294901760
  %v2303 = vsub.f32 %v109, %v2302
  %2304 = vmatpush1.msra.mxu0 %v2303
  %2305 = vmatprep.subr.mxu0 0.0
  %v2306 = vand.u32 %v110, 4294901760
  %v2307 = vsub.f32 %v110, %v2306
  %2308 = vmatpush1.msra.mxu0 %v2307
  %2309 = vmatprep.subr.mxu0 0.0
  %v2310 = vand.u32 %v111, 4294901760
  %v2311 = vsub.f32 %v111, %v2310
  %2312 = vmatpush1.msra.mxu0 %v2311
  %2313 = vmatprep.subr.mxu0 0.0
  %v2314 = vand.u32 %v112, 4294901760
  %v2315 = vsub.f32 %v112, %v2314
  %2316 = vmatpush1.msra.mxu0 %v2315
  %2317 = vmatprep.subr.mxu0 0.0
  %v2318 = vand.u32 %v113, 4294901760
  %v2319 = vsub.f32 %v113, %v2318
  %2320 = vmatpush1.msra.mxu0 %v2319
  %2321 = vmatprep.subr.mxu0 0.0
  %v2322 = vand.u32 %v114, 4294901760
  %v2323 = vsub.f32 %v114, %v2322
  %2324 = vmatpush1.msra.mxu0 %v2323
  %2325 = vmatprep.subr.mxu0 0.0
  %v2326 = vand.u32 %v115, 4294901760
  %v2327 = vsub.f32 %v115, %v2326
  %2328 = vmatpush1.msra.mxu0 %v2327
  %2329 = vmatprep.subr.mxu0 0.0
  %v2330 = vand.u32 %v116, 4294901760
  %v2331 = vsub.f32 %v116, %v2330
  %2332 = vmatpush1.msra.mxu0 %v2331
  %2333 = vmatprep.subr.mxu0 0.0
  %v2334 = vand.u32 %v117, 4294901760
  %v2335 = vsub.f32 %v117, %v2334
  %2336 = vmatpush1.msra.mxu0 %v2335
  %2337 = vmatprep.subr.mxu0 0.0
  %v2338 = vand.u32 %v118, 4294901760
  %v2339 = vsub.f32 %v118, %v2338
  %2340 = vmatpush1.msra.mxu0 %v2339
  %2341 = vmatprep.subr.mxu0 0.0
  %v2342 = vand.u32 %v119, 4294901760
  %v2343 = vsub.f32 %v119, %v2342
  %2344 = vmatpush1.msra.mxu0 %v2343
  %2345 = vmatprep.subr.mxu0 0.0
  %v2346 = vand.u32 %v120, 4294901760
  %v2347 = vsub.f32 %v120, %v2346
  %2348 = vmatpush1.msra.mxu0 %v2347
  %v2349 = vand.u32 %v22, 4294901760
  %v2350 = vsub.f32 %v22, %v2349
  %2351 = vmatprep.mubr.f32.mxu0 %v2350
  %v2352 = vand.u32 %v21, 4294901760
  %v2353 = vsub.f32 %v21, %v2352
  %2354 = vmatmul.mubr.f32.gmra.mrb[0].mxu0 %v2353
  %v2355 = vpop.f32.mrb[0].mxu0
  %v2356 = vadd.f32 %v2218, %v2355
  %v2357 = vpop.f32.mrb[0].mxu0
  %2358 = vdwg.mxu0
  %2359 = vmatprep.subr.mxu0 0.0
  %v2360 = vand.u32 %v89, 4294901760
  %2361 = vmatpush1.msra.mxu0 %v2360
  %2362 = vmatprep.subr.mxu0 0.0
  %v2363 = vand.u32 %v90, 4294901760
  %2364 = vmatpush1.msra.mxu0 %v2363
  %2365 = vmatprep.subr.mxu0 0.0
  %v2366 = vand.u32 %v91, 4294901760
  %2367 = vmatpush1.msra.mxu0 %v2366
  %2368 = vmatprep.subr.mxu0 0.0
  %v2369 = vand.u32 %v92, 4294901760
  %2370 = vmatpush1.msra.mxu0 %v2369
  %2371 = vmatprep.subr.mxu0 0.0
  %v2372 = vand.u32 %v93, 4294901760
  %2373 = vmatpush1.msra.mxu0 %v2372
  %2374 = vmatprep.subr.mxu0 0.0
  %v2375 = vand.u32 %v94, 4294901760
  %2376 = vmatpush1.msra.mxu0 %v2375
  %2377 = vmatprep.subr.mxu0 0.0
  %v2378 = vand.u32 %v95, 4294901760
  %2379 = vmatpush1.msra.mxu0 %v2378
  %2380 = vmatprep.subr.mxu0 0.0
  %v2381 = vand.u32 %v96, 4294901760
  %2382 = vmatpush1.msra.mxu0 %v2381
  %2383 = vmatprep.subr.mxu0 0.0
  %v2384 = vand.u32 %v97, 4294901760
  %2385 = vmatpush1.msra.mxu0 %v2384
  %2386 = vmatprep.subr.mxu0 0.0
  %v2387 = vand.u32 %v98, 4294901760
  %2388 = vmatpush1.msra.mxu0 %v2387
  %2389 = vmatprep.subr.mxu0 0.0
  %v2390 = vand.u32 %v99, 4294901760
  %2391 = vmatpush1.msra.mxu0 %v2390
  %2392 = vmatprep.subr.mxu0 0.0
  %v2393 = vand.u32 %v100, 4294901760
  %2394 = vmatpush1.msra.mxu0 %v2393
  %2395 = vmatprep.subr.mxu0 0.0
  %v2396 = vand.u32 %v101, 4294901760
  %2397 = vmatpush1.msra.mxu0 %v2396
  %2398 = vmatprep.subr.mxu0 0.0
  %v2399 = vand.u32 %v102, 4294901760
  %2400 = vmatpush1.msra.mxu0 %v2399
  %2401 = vmatprep.subr.mxu0 0.0
  %v2402 = vand.u32 %v103, 4294901760
  %2403 = vmatpush1.msra.mxu0 %v2402
  %2404 = vmatprep.subr.mxu0 0.0
  %v2405 = vand.u32 %v104, 4294901760
  %2406 = vmatpush1.msra.mxu0 %v2405
  %2407 = vmatprep.subr.mxu0 0.0
  %v2408 = vand.u32 %v105, 4294901760
  %2409 = vmatpush1.msra.mxu0 %v2408
  %2410 = vmatprep.subr.mxu0 0.0
  %v2411 = vand.u32 %v106, 4294901760
  %2412 = vmatpush1.msra.mxu0 %v2411
  %2413 = vmatprep.subr.mxu0 0.0
  %v2414 = vand.u32 %v107, 4294901760
  %2415 = vmatpush1.msra.mxu0 %v2414
  %2416 = vmatprep.subr.mxu0 0.0
  %v2417 = vand.u32 %v108, 4294901760
  %2418 = vmatpush1.msra.mxu0 %v2417
  %2419 = vmatprep.subr.mxu0 0.0
  %v2420 = vand.u32 %v109, 4294901760
  %2421 = vmatpush1.msra.mxu0 %v2420
  %2422 = vmatprep.subr.mxu0 0.0
  %v2423 = vand.u32 %v110, 4294901760
  %2424 = vmatpush1.msra.mxu0 %v2423
  %2425 = vmatprep.subr.mxu0 0.0
  %v2426 = vand.u32 %v111, 4294901760
  %2427 = vmatpush1.msra.mxu0 %v2426
  %2428 = vmatprep.subr.mxu0 0.0
  %v2429 = vand.u32 %v112, 4294901760
  %2430 = vmatpush1.msra.mxu0 %v2429
  %2431 = vmatprep.subr.mxu0 0.0
  %v2432 = vand.u32 %v113, 4294901760
  %2433 = vmatpush1.msra.mxu0 %v2432
  %2434 = vmatprep.subr.mxu0 0.0
  %v2435 = vand.u32 %v114, 4294901760
  %2436 = vmatpush1.msra.mxu0 %v2435
  %2437 = vmatprep.subr.mxu0 0.0
  %v2438 = vand.u32 %v115, 4294901760
  %2439 = vmatpush1.msra.mxu0 %v2438
  %2440 = vmatprep.subr.mxu0 0.0
  %v2441 = vand.u32 %v116, 4294901760
  %2442 = vmatpush1.msra.mxu0 %v2441
  %2443 = vmatprep.subr.mxu0 0.0
  %v2444 = vand.u32 %v117, 4294901760
  %2445 = vmatpush1.msra.mxu0 %v2444
  %2446 = vmatprep.subr.mxu0 0.0
  %v2447 = vand.u32 %v118, 4294901760
  %2448 = vmatpush1.msra.mxu0 %v2447
  %2449 = vmatprep.subr.mxu0 0.0
  %v2450 = vand.u32 %v119, 4294901760
  %2451 = vmatpush1.msra.mxu0 %v2450
  %2452 = vmatprep.subr.mxu0 0.0
  %v2453 = vand.u32 %v120, 4294901760
  %2454 = vmatpush1.msra.mxu0 %v2453
  %v2455 = vand.u32 %v22, 4294901760
  %v2456 = vsub.f32 %v22, %v2455
  %v2457 = vand.u32 %v2456, 4294901760
  %2458 = vmatprep.mubr.f32.mxu0 %v2457
  %v2459 = vand.u32 %v21, 4294901760
  %v2460 = vsub.f32 %v21, %v2459
  %v2461 = vand.u32 %v2460, 4294901760
  %2462 = vmatmul.mubr.f32.gmra.mrb[0].mxu0 %v2461
  %v2463 = vpop.f32.mrb[0].mxu0
  %v2464 = vadd.f32 %v2356, %v2463
  %v2465 = vpop.f32.mrb[0].mxu0
  %2466 = vdwg.mxu0
  %2467 = vmatprep.subr.mxu0 0.0
  %v2468 = vand.u32 %v89, 4294901760
  %v2469 = vsub.f32 %v89, %v2468
  %v2470 = vand.u32 %v2469, 4294901760
  %2471 = vmatpush1.msra.mxu0 %v2470
  %2472 = vmatprep.subr.mxu0 0.0
  %v2473 = vand.u32 %v90, 4294901760
  %v2474 = vsub.f32 %v90, %v2473
  %v2475 = vand.u32 %v2474, 4294901760
  %2476 = vmatpush1.msra.mxu0 %v2475
  %2477 = vmatprep.subr.mxu0 0.0
  %v2478 = vand.u32 %v91, 4294901760
  %v2479 = vsub.f32 %v91, %v2478
  %v2480 = vand.u32 %v2479, 4294901760
  %2481 = vmatpush1.msra.mxu0 %v2480
  %2482 = vmatprep.subr.mxu0 0.0
  %v2483 = vand.u32 %v92, 4294901760
  %v2484 = vsub.f32 %v92, %v2483
  %v2485 = vand.u32 %v2484, 4294901760
  %2486 = vmatpush1.msra.mxu0 %v2485
  %2487 = vmatprep.subr.mxu0 0.0
  %v2488 = vand.u32 %v93, 4294901760
  %v2489 = vsub.f32 %v93, %v2488
  %v2490 = vand.u32 %v2489, 4294901760
  %2491 = vmatpush1.msra.mxu0 %v2490
  %2492 = vmatprep.subr.mxu0 0.0
  %v2493 = vand.u32 %v94, 4294901760
  %v2494 = vsub.f32 %v94, %v2493
  %v2495 = vand.u32 %v2494, 4294901760
  %2496 = vmatpush1.msra.mxu0 %v2495
  %2497 = vmatprep.subr.mxu0 0.0
  %v2498 = vand.u32 %v95, 4294901760
  %v2499 = vsub.f32 %v95, %v2498
  %v2500 = vand.u32 %v2499, 4294901760
  %2501 = vmatpush1.msra.mxu0 %v2500
  %2502 = vmatprep.subr.mxu0 0.0
  %v2503 = vand.u32 %v96, 4294901760
  %v2504 = vsub.f32 %v96, %v2503
  %v2505 = vand.u32 %v2504, 4294901760
  %2506 = vmatpush1.msra.mxu0 %v2505
  %2507 = vmatprep.subr.mxu0 0.0
  %v2508 = vand.u32 %v97, 4294901760
  %v2509 = vsub.f32 %v97, %v2508
  %v2510 = vand.u32 %v2509, 4294901760
  %2511 = vmatpush1.msra.mxu0 %v2510
  %2512 = vmatprep.subr.mxu0 0.0
  %v2513 = vand.u32 %v98, 4294901760
  %v2514 = vsub.f32 %v98, %v2513
  %v2515 = vand.u32 %v2514, 4294901760
  %2516 = vmatpush1.msra.mxu0 %v2515
  %2517 = vmatprep.subr.mxu0 0.0
  %v2518 = vand.u32 %v99, 4294901760
  %v2519 = vsub.f32 %v99, %v2518
  %v2520 = vand.u32 %v2519, 4294901760
  %2521 = vmatpush1.msra.mxu0 %v2520
  %2522 = vmatprep.subr.mxu0 0.0
  %v2523 = vand.u32 %v100, 4294901760
  %v2524 = vsub.f32 %v100, %v2523
  %v2525 = vand.u32 %v2524, 4294901760
  %2526 = vmatpush1.msra.mxu0 %v2525
  %2527 = vmatprep.subr.mxu0 0.0
  %v2528 = vand.u32 %v101, 4294901760
  %v2529 = vsub.f32 %v101, %v2528
  %v2530 = vand.u32 %v2529, 4294901760
  %2531 = vmatpush1.msra.mxu0 %v2530
  %2532 = vmatprep.subr.mxu0 0.0
  %v2533 = vand.u32 %v102, 4294901760
  %v2534 = vsub.f32 %v102, %v2533
  %v2535 = vand.u32 %v2534, 4294901760
  %2536 = vmatpush1.msra.mxu0 %v2535
  %2537 = vmatprep.subr.mxu0 0.0
  %v2538 = vand.u32 %v103, 4294901760
  %v2539 = vsub.f32 %v103, %v2538
  %v2540 = vand.u32 %v2539, 4294901760
  %2541 = vmatpush1.msra.mxu0 %v2540
  %2542 = vmatprep.subr.mxu0 0.0
  %v2543 = vand.u32 %v104, 4294901760
  %v2544 = vsub.f32 %v104, %v2543
  %v2545 = vand.u32 %v2544, 4294901760
  %2546 = vmatpush1.msra.mxu0 %v2545
  %2547 = vmatprep.subr.mxu0 0.0
  %v2548 = vand.u32 %v105, 4294901760
  %v2549 = vsub.f32 %v105, %v2548
  %v2550 = vand.u32 %v2549, 4294901760
  %2551 = vmatpush1.msra.mxu0 %v2550
  %2552 = vmatprep.subr.mxu0 0.0
  %v2553 = vand.u32 %v106, 4294901760
  %v2554 = vsub.f32 %v106, %v2553
  %v2555 = vand.u32 %v2554, 4294901760
  %2556 = vmatpush1.msra.mxu0 %v2555
  %2557 = vmatprep.subr.mxu0 0.0
  %v2558 = vand.u32 %v107, 4294901760
  %v2559 = vsub.f32 %v107, %v2558
  %v2560 = vand.u32 %v2559, 4294901760
  %2561 = vmatpush1.msra.mxu0 %v2560
  %2562 = vmatprep.subr.mxu0 0.0
  %v2563 = vand.u32 %v108, 4294901760
  %v2564 = vsub.f32 %v108, %v2563
  %v2565 = vand.u32 %v2564, 4294901760
  %2566 = vmatpush1.msra.mxu0 %v2565
  %2567 = vmatprep.subr.mxu0 0.0
  %v2568 = vand.u32 %v109, 4294901760
  %v2569 = vsub.f32 %v109, %v2568
  %v2570 = vand.u32 %v2569, 4294901760
  %2571 = vmatpush1.msra.mxu0 %v2570
  %2572 = vmatprep.subr.mxu0 0.0
  %v2573 = vand.u32 %v110, 4294901760
  %v2574 = vsub.f32 %v110, %v2573
  %v2575 = vand.u32 %v2574, 4294901760
  %2576 = vmatpush1.msra.mxu0 %v2575
  %2577 = vmatprep.subr.mxu0 0.0
  %v2578 = vand.u32 %v111, 4294901760
  %v2579 = vsub.f32 %v111, %v2578
  %v2580 = vand.u32 %v2579, 4294901760
  %2581 = vmatpush1.msra.mxu0 %v2580
  %2582 = vmatprep.subr.mxu0 0.0
  %v2583 = vand.u32 %v112, 4294901760
  %v2584 = vsub.f32 %v112, %v2583
  %v2585 = vand.u32 %v2584, 4294901760
  %2586 = vmatpush1.msra.mxu0 %v2585
  %2587 = vmatprep.subr.mxu0 0.0
  %v2588 = vand.u32 %v113, 4294901760
  %v2589 = vsub.f32 %v113, %v2588
  %v2590 = vand.u32 %v2589, 4294901760
  %2591 = vmatpush1.msra.mxu0 %v2590
  %2592 = vmatprep.subr.mxu0 0.0
  %v2593 = vand.u32 %v114, 4294901760
  %v2594 = vsub.f32 %v114, %v2593
  %v2595 = vand.u32 %v2594, 4294901760
  %2596 = vmatpush1.msra.mxu0 %v2595
  %2597 = vmatprep.subr.mxu0 0.0
  %v2598 = vand.u32 %v115, 4294901760
  %v2599 = vsub.f32 %v115, %v2598
  %v2600 = vand.u32 %v2599, 4294901760
  %2601 = vmatpush1.msra.mxu0 %v2600
  %2602 = vmatprep.subr.mxu0 0.0
  %v2603 = vand.u32 %v116, 4294901760
  %v2604 = vsub.f32 %v116, %v2603
  %v2605 = vand.u32 %v2604, 4294901760
  %2606 = vmatpush1.msra.mxu0 %v2605
  %2607 = vmatprep.subr.mxu0 0.0
  %v2608 = vand.u32 %v117, 4294901760
  %v2609 = vsub.f32 %v117, %v2608
  %v2610 = vand.u32 %v2609, 4294901760
  %2611 = vmatpush1.msra.mxu0 %v2610
  %2612 = vmatprep.subr.mxu0 0.0
  %v2613 = vand.u32 %v118, 4294901760
  %v2614 = vsub.f32 %v118, %v2613
  %v2615 = vand.u32 %v2614, 4294901760
  %2616 = vmatpush1.msra.mxu0 %v2615
  %2617 = vmatprep.subr.mxu0 0.0
  %v2618 = vand.u32 %v119, 4294901760
  %v2619 = vsub.f32 %v119, %v2618
  %v2620 = vand.u32 %v2619, 4294901760
  %2621 = vmatpush1.msra.mxu0 %v2620
  %2622 = vmatprep.subr.mxu0 0.0
  %v2623 = vand.u32 %v120, 4294901760
  %v2624 = vsub.f32 %v120, %v2623
  %v2625 = vand.u32 %v2624, 4294901760
  %2626 = vmatpush1.msra.mxu0 %v2625
  %v2627 = vand.u32 %v22, 4294901760
  %2628 = vmatprep.mubr.f32.mxu0 %v2627
  %v2629 = vand.u32 %v21, 4294901760
  %2630 = vmatmul.mubr.f32.gmra.mrb[0].mxu0 %v2629
  %v2631 = vpop.f32.mrb[0].mxu0
  %v2632 = vadd.f32 %v2464, %v2631
  %v2633 = vpop.f32.mrb[0].mxu0
  %2634 = vdwg.mxu0
  %2635 = vmatprep.subr.mxu0 0.0
  %v2636 = vand.u32 %v89, 4294901760
  %2637 = vmatpush1.msra.mxu0 %v2636
  %2638 = vmatprep.subr.mxu0 0.0
  %v2639 = vand.u32 %v90, 4294901760
  %2640 = vmatpush1.msra.mxu0 %v2639
  %2641 = vmatprep.subr.mxu0 0.0
  %v2642 = vand.u32 %v91, 4294901760
  %2643 = vmatpush1.msra.mxu0 %v2642
  %2644 = vmatprep.subr.mxu0 0.0
  %v2645 = vand.u32 %v92, 4294901760
  %2646 = vmatpush1.msra.mxu0 %v2645
  %2647 = vmatprep.subr.mxu0 0.0
  %v2648 = vand.u32 %v93, 4294901760
  %2649 = vmatpush1.msra.mxu0 %v2648
  %2650 = vmatprep.subr.mxu0 0.0
  %v2651 = vand.u32 %v94, 4294901760
  %2652 = vmatpush1.msra.mxu0 %v2651
  %2653 = vmatprep.subr.mxu0 0.0
  %v2654 = vand.u32 %v95, 4294901760
  %2655 = vmatpush1.msra.mxu0 %v2654
  %2656 = vmatprep.subr.mxu0 0.0
  %v2657 = vand.u32 %v96, 4294901760
  %2658 = vmatpush1.msra.mxu0 %v2657
  %2659 = vmatprep.subr.mxu0 0.0
  %v2660 = vand.u32 %v97, 4294901760
  %2661 = vmatpush1.msra.mxu0 %v2660
  %2662 = vmatprep.subr.mxu0 0.0
  %v2663 = vand.u32 %v98, 4294901760
  %2664 = vmatpush1.msra.mxu0 %v2663
  %2665 = vmatprep.subr.mxu0 0.0
  %v2666 = vand.u32 %v99, 4294901760
  %2667 = vmatpush1.msra.mxu0 %v2666
  %2668 = vmatprep.subr.mxu0 0.0
  %v2669 = vand.u32 %v100, 4294901760
  %2670 = vmatpush1.msra.mxu0 %v2669
  %2671 = vmatprep.subr.mxu0 0.0
  %v2672 = vand.u32 %v101, 4294901760
  %2673 = vmatpush1.msra.mxu0 %v2672
  %2674 = vmatprep.subr.mxu0 0.0
  %v2675 = vand.u32 %v102, 4294901760
  %2676 = vmatpush1.msra.mxu0 %v2675
  %2677 = vmatprep.subr.mxu0 0.0
  %v2678 = vand.u32 %v103, 4294901760
  %2679 = vmatpush1.msra.mxu0 %v2678
  %2680 = vmatprep.subr.mxu0 0.0
  %v2681 = vand.u32 %v104, 4294901760
  %2682 = vmatpush1.msra.mxu0 %v2681
  %2683 = vmatprep.subr.mxu0 0.0
  %v2684 = vand.u32 %v105, 4294901760
  %2685 = vmatpush1.msra.mxu0 %v2684
  %2686 = vmatprep.subr.mxu0 0.0
  %v2687 = vand.u32 %v106, 4294901760
  %2688 = vmatpush1.msra.mxu0 %v2687
  %2689 = vmatprep.subr.mxu0 0.0
  %v2690 = vand.u32 %v107, 4294901760
  %2691 = vmatpush1.msra.mxu0 %v2690
  %2692 = vmatprep.subr.mxu0 0.0
  %v2693 = vand.u32 %v108, 4294901760
  %2694 = vmatpush1.msra.mxu0 %v2693
  %2695 = vmatprep.subr.mxu0 0.0
  %v2696 = vand.u32 %v109, 4294901760
  %2697 = vmatpush1.msra.mxu0 %v2696
  %2698 = vmatprep.subr.mxu0 0.0
  %v2699 = vand.u32 %v110, 4294901760
  %2700 = vmatpush1.msra.mxu0 %v2699
  %2701 = vmatprep.subr.mxu0 0.0
  %v2702 = vand.u32 %v111, 4294901760
  %2703 = vmatpush1.msra.mxu0 %v2702
  %2704 = vmatprep.subr.mxu0 0.0
  %v2705 = vand.u32 %v112, 4294901760
  %2706 = vmatpush1.msra.mxu0 %v2705
  %2707 = vmatprep.subr.mxu0 0.0
  %v2708 = vand.u32 %v113, 4294901760
  %2709 = vmatpush1.msra.mxu0 %v2708
  %2710 = vmatprep.subr.mxu0 0.0
  %v2711 = vand.u32 %v114, 4294901760
  %2712 = vmatpush1.msra.mxu0 %v2711
  %2713 = vmatprep.subr.mxu0 0.0
  %v2714 = vand.u32 %v115, 4294901760
  %2715 = vmatpush1.msra.mxu0 %v2714
  %2716 = vmatprep.subr.mxu0 0.0
  %v2717 = vand.u32 %v116, 4294901760
  %2718 = vmatpush1.msra.mxu0 %v2717
  %2719 = vmatprep.subr.mxu0 0.0
  %v2720 = vand.u32 %v117, 4294901760
  %2721 = vmatpush1.msra.mxu0 %v2720
  %2722 = vmatprep.subr.mxu0 0.0
  %v2723 = vand.u32 %v118, 4294901760
  %2724 = vmatpush1.msra.mxu0 %v2723
  %2725 = vmatprep.subr.mxu0 0.0
  %v2726 = vand.u32 %v119, 4294901760
  %2727 = vmatpush1.msra.mxu0 %v2726
  %2728 = vmatprep.subr.mxu0 0.0
  %v2729 = vand.u32 %v120, 4294901760
  %2730 = vmatpush1.msra.mxu0 %v2729
  %v2731 = vand.u32 %v22, 4294901760
  %2732 = vmatprep.mubr.f32.mxu0 %v2731
  %v2733 = vand.u32 %v21, 4294901760
  %2734 = vmatmul.mubr.f32.gmra.mrb[0].mxu0 %v2733
  %v2735 = vpop.f32.mrb[0].mxu0
  %v2736 = vadd.f32 %v2632, %v2735
  %v2737 = vpop.f32.mrb[0].mxu0
  %2738 = vdwg.mxu0
  %2739 = vmatprep.subr.mxu0 0.0
  %v2740 = vand.u32 %v121, 4294901760
  %2741 = vmatpush1.msra.mxu0 %v2740
  %2742 = vmatprep.subr.mxu0 0.0
  %v2743 = vand.u32 %v122, 4294901760
  %2744 = vmatpush1.msra.mxu0 %v2743
  %2745 = vmatprep.subr.mxu0 0.0
  %v2746 = vand.u32 %v123, 4294901760
  %2747 = vmatpush1.msra.mxu0 %v2746
  %2748 = vmatprep.subr.mxu0 0.0
  %v2749 = vand.u32 %v124, 4294901760
  %2750 = vmatpush1.msra.mxu0 %v2749
  %2751 = vmatprep.subr.mxu0 0.0
  %v2752 = vand.u32 %v125, 4294901760
  %2753 = vmatpush1.msra.mxu0 %v2752
  %2754 = vmatprep.subr.mxu0 0.0
  %v2755 = vand.u32 %v126, 4294901760
  %2756 = vmatpush1.msra.mxu0 %v2755
  %2757 = vmatprep.subr.mxu0 0.0
  %v2758 = vand.u32 %v127, 4294901760
  %2759 = vmatpush1.msra.mxu0 %v2758
  %2760 = vmatprep.subr.mxu0 0.0
  %v2761 = vand.u32 %v128, 4294901760
  %2762 = vmatpush1.msra.mxu0 %v2761
  %2763 = vmatprep.subr.mxu0 0.0
  %v2764 = vand.u32 %v129, 4294901760
  %2765 = vmatpush1.msra.mxu0 %v2764
  %2766 = vmatprep.subr.mxu0 0.0
  %v2767 = vand.u32 %v130, 4294901760
  %2768 = vmatpush1.msra.mxu0 %v2767
  %2769 = vmatprep.subr.mxu0 0.0
  %v2770 = vand.u32 %v131, 4294901760
  %2771 = vmatpush1.msra.mxu0 %v2770
  %2772 = vmatprep.subr.mxu0 0.0
  %v2773 = vand.u32 %v132, 4294901760
  %2774 = vmatpush1.msra.mxu0 %v2773
  %2775 = vmatprep.subr.mxu0 0.0
  %v2776 = vand.u32 %v133, 4294901760
  %2777 = vmatpush1.msra.mxu0 %v2776
  %2778 = vmatprep.subr.mxu0 0.0
  %v2779 = vand.u32 %v134, 4294901760
  %2780 = vmatpush1.msra.mxu0 %v2779
  %2781 = vmatprep.subr.mxu0 0.0
  %v2782 = vand.u32 %v135, 4294901760
  %2783 = vmatpush1.msra.mxu0 %v2782
  %2784 = vmatprep.subr.mxu0 0.0
  %v2785 = vand.u32 %v136, 4294901760
  %2786 = vmatpush1.msra.mxu0 %v2785
  %2787 = vmatprep.subr.mxu0 0.0
  %v2788 = vand.u32 %v137, 4294901760
  %2789 = vmatpush1.msra.mxu0 %v2788
  %2790 = vmatprep.subr.mxu0 0.0
  %v2791 = vand.u32 %v138, 4294901760
  %2792 = vmatpush1.msra.mxu0 %v2791
  %2793 = vmatprep.subr.mxu0 0.0
  %v2794 = vand.u32 %v139, 4294901760
  %2795 = vmatpush1.msra.mxu0 %v2794
  %2796 = vmatprep.subr.mxu0 0.0
  %v2797 = vand.u32 %v140, 4294901760
  %2798 = vmatpush1.msra.mxu0 %v2797
  %2799 = vmatprep.subr.mxu0 0.0
  %v2800 = vand.u32 %v141, 4294901760
  %2801 = vmatpush1.msra.mxu0 %v2800
  %2802 = vmatprep.subr.mxu0 0.0
  %v2803 = vand.u32 %v142, 4294901760
  %2804 = vmatpush1.msra.mxu0 %v2803
  %2805 = vmatprep.subr.mxu0 0.0
  %v2806 = vand.u32 %v143, 4294901760
  %2807 = vmatpush1.msra.mxu0 %v2806
  %2808 = vmatprep.subr.mxu0 0.0
  %v2809 = vand.u32 %v144, 4294901760
  %2810 = vmatpush1.msra.mxu0 %v2809
  %2811 = vmatprep.subr.mxu0 0.0
  %v2812 = vand.u32 %v145, 4294901760
  %2813 = vmatpush1.msra.mxu0 %v2812
  %2814 = vmatprep.subr.mxu0 0.0
  %v2815 = vand.u32 %v146, 4294901760
  %2816 = vmatpush1.msra.mxu0 %v2815
  %2817 = vmatprep.subr.mxu0 0.0
  %v2818 = vand.u32 %v147, 4294901760
  %2819 = vmatpush1.msra.mxu0 %v2818
  %2820 = vmatprep.subr.mxu0 0.0
  %v2821 = vand.u32 %v148, 4294901760
  %2822 = vmatpush1.msra.mxu0 %v2821
  %2823 = vmatprep.subr.mxu0 0.0
  %v2824 = vand.u32 %v149, 4294901760
  %2825 = vmatpush1.msra.mxu0 %v2824
  %2826 = vmatprep.subr.mxu0 0.0
  %v2827 = vand.u32 %v150, 4294901760
  %2828 = vmatpush1.msra.mxu0 %v2827
  %2829 = vmatprep.subr.mxu0 0.0
  %v2830 = vand.u32 %v151, 4294901760
  %2831 = vmatpush1.msra.mxu0 %v2830
  %2832 = vmatprep.subr.mxu0 0.0
  %v2833 = vand.u32 %v152, 4294901760
  %2834 = vmatpush1.msra.mxu0 %v2833
  %v2835 = vand.u32 %v24, 4294901760
  %v2836 = vsub.f32 %v24, %v2835
  %v2837 = vand.u32 %v2836, 4294901760
  %v2838 = vsub.f32 %v2836, %v2837
  %v2839 = vand.u32 %v2838, 4294901760
  %2840 = vmatprep.mubr.f32.mxu0 %v2839
  %v2841 = vand.u32 %v23, 4294901760
  %v2842 = vsub.f32 %v23, %v2841
  %v2843 = vand.u32 %v2842, 4294901760
  %v2844 = vsub.f32 %v2842, %v2843
  %v2845 = vand.u32 %v2844, 4294901760
  %2846 = vmatmul.mubr.f32.gmra.mrb[0].mxu0 %v2845
  %v2847 = vpop.f32.mrb[0].mxu0
  %v2848 = vadd.f32 %v2736, %v2847
  %v2849 = vpop.f32.mrb[0].mxu0
  %2850 = vdwg.mxu0
  %2851 = vmatprep.subr.mxu0 0.0
  %v2852 = vand.u32 %v121, 4294901760
  %v2853 = vsub.f32 %v121, %v2852
  %v2854 = vand.u32 %v2853, 4294901760
  %v2855 = vsub.f32 %v2853, %v2854
  %v2856 = vand.u32 %v2855, 4294901760
  %2857 = vmatpush1.msra.mxu0 %v2856
  %2858 = vmatprep.subr.mxu0 0.0
  %v2859 = vand.u32 %v122, 4294901760
  %v2860 = vsub.f32 %v122, %v2859
  %v2861 = vand.u32 %v2860, 4294901760
  %v2862 = vsub.f32 %v2860, %v2861
  %v2863 = vand.u32 %v2862, 4294901760
  %2864 = vmatpush1.msra.mxu0 %v2863
  %2865 = vmatprep.subr.mxu0 0.0
  %v2866 = vand.u32 %v123, 4294901760
  %v2867 = vsub.f32 %v123, %v2866
  %v2868 = vand.u32 %v2867, 4294901760
  %v2869 = vsub.f32 %v2867, %v2868
  %v2870 = vand.u32 %v2869, 4294901760
  %2871 = vmatpush1.msra.mxu0 %v2870
  %2872 = vmatprep.subr.mxu0 0.0
  %v2873 = vand.u32 %v124, 4294901760
  %v2874 = vsub.f32 %v124, %v2873
  %v2875 = vand.u32 %v2874, 4294901760
  %v2876 = vsub.f32 %v2874, %v2875
  %v2877 = vand.u32 %v2876, 4294901760
  %2878 = vmatpush1.msra.mxu0 %v2877
  %2879 = vmatprep.subr.mxu0 0.0
  %v2880 = vand.u32 %v125, 4294901760
  %v2881 = vsub.f32 %v125, %v2880
  %v2882 = vand.u32 %v2881, 4294901760
  %v2883 = vsub.f32 %v2881, %v2882
  %v2884 = vand.u32 %v2883, 4294901760
  %2885 = vmatpush1.msra.mxu0 %v2884
  %2886 = vmatprep.subr.mxu0 0.0
  %v2887 = vand.u32 %v126, 4294901760
  %v2888 = vsub.f32 %v126, %v2887
  %v2889 = vand.u32 %v2888, 4294901760
  %v2890 = vsub.f32 %v2888, %v2889
  %v2891 = vand.u32 %v2890, 4294901760
  %2892 = vmatpush1.msra.mxu0 %v2891
  %2893 = vmatprep.subr.mxu0 0.0
  %v2894 = vand.u32 %v127, 4294901760
  %v2895 = vsub.f32 %v127, %v2894
  %v2896 = vand.u32 %v2895, 4294901760
  %v2897 = vsub.f32 %v2895, %v2896
  %v2898 = vand.u32 %v2897, 4294901760
  %2899 = vmatpush1.msra.mxu0 %v2898
  %2900 = vmatprep.subr.mxu0 0.0
  %v2901 = vand.u32 %v128, 4294901760
  %v2902 = vsub.f32 %v128, %v2901
  %v2903 = vand.u32 %v2902, 4294901760
  %v2904 = vsub.f32 %v2902, %v2903
  %v2905 = vand.u32 %v2904, 4294901760
  %2906 = vmatpush1.msra.mxu0 %v2905
  %2907 = vmatprep.subr.mxu0 0.0
  %v2908 = vand.u32 %v129, 4294901760
  %v2909 = vsub.f32 %v129, %v2908
  %v2910 = vand.u32 %v2909, 4294901760
  %v2911 = vsub.f32 %v2909, %v2910
  %v2912 = vand.u32 %v2911, 4294901760
  %2913 = vmatpush1.msra.mxu0 %v2912
  %2914 = vmatprep.subr.mxu0 0.0
  %v2915 = vand.u32 %v130, 4294901760
  %v2916 = vsub.f32 %v130, %v2915
  %v2917 = vand.u32 %v2916, 4294901760
  %v2918 = vsub.f32 %v2916, %v2917
  %v2919 = vand.u32 %v2918, 4294901760
  %2920 = vmatpush1.msra.mxu0 %v2919
  %2921 = vmatprep.subr.mxu0 0.0
  %v2922 = vand.u32 %v131, 4294901760
  %v2923 = vsub.f32 %v131, %v2922
  %v2924 = vand.u32 %v2923, 4294901760
  %v2925 = vsub.f32 %v2923, %v2924
  %v2926 = vand.u32 %v2925, 4294901760
  %2927 = vmatpush1.msra.mxu0 %v2926
  %2928 = vmatprep.subr.mxu0 0.0
  %v2929 = vand.u32 %v132, 4294901760
  %v2930 = vsub.f32 %v132, %v2929
  %v2931 = vand.u32 %v2930, 4294901760
  %v2932 = vsub.f32 %v2930, %v2931
  %v2933 = vand.u32 %v2932, 4294901760
  %2934 = vmatpush1.msra.mxu0 %v2933
  %2935 = vmatprep.subr.mxu0 0.0
  %v2936 = vand.u32 %v133, 4294901760
  %v2937 = vsub.f32 %v133, %v2936
  %v2938 = vand.u32 %v2937, 4294901760
  %v2939 = vsub.f32 %v2937, %v2938
  %v2940 = vand.u32 %v2939, 4294901760
  %2941 = vmatpush1.msra.mxu0 %v2940
  %2942 = vmatprep.subr.mxu0 0.0
  %v2943 = vand.u32 %v134, 4294901760
  %v2944 = vsub.f32 %v134, %v2943
  %v2945 = vand.u32 %v2944, 4294901760
  %v2946 = vsub.f32 %v2944, %v2945
  %v2947 = vand.u32 %v2946, 4294901760
  %2948 = vmatpush1.msra.mxu0 %v2947
  %2949 = vmatprep.subr.mxu0 0.0
  %v2950 = vand.u32 %v135, 4294901760
  %v2951 = vsub.f32 %v135, %v2950
  %v2952 = vand.u32 %v2951, 4294901760
  %v2953 = vsub.f32 %v2951, %v2952
  %v2954 = vand.u32 %v2953, 4294901760
  %2955 = vmatpush1.msra.mxu0 %v2954
  %2956 = vmatprep.subr.mxu0 0.0
  %v2957 = vand.u32 %v136, 4294901760
  %v2958 = vsub.f32 %v136, %v2957
  %v2959 = vand.u32 %v2958, 4294901760
  %v2960 = vsub.f32 %v2958, %v2959
  %v2961 = vand.u32 %v2960, 4294901760
  %2962 = vmatpush1.msra.mxu0 %v2961
  %2963 = vmatprep.subr.mxu0 0.0
  %v2964 = vand.u32 %v137, 4294901760
  %v2965 = vsub.f32 %v137, %v2964
  %v2966 = vand.u32 %v2965, 4294901760
  %v2967 = vsub.f32 %v2965, %v2966
  %v2968 = vand.u32 %v2967, 4294901760
  %2969 = vmatpush1.msra.mxu0 %v2968
  %2970 = vmatprep.subr.mxu0 0.0
  %v2971 = vand.u32 %v138, 4294901760
  %v2972 = vsub.f32 %v138, %v2971
  %v2973 = vand.u32 %v2972, 4294901760
  %v2974 = vsub.f32 %v2972, %v2973
  %v2975 = vand.u32 %v2974, 4294901760
  %2976 = vmatpush1.msra.mxu0 %v2975
  %2977 = vmatprep.subr.mxu0 0.0
  %v2978 = vand.u32 %v139, 4294901760
  %v2979 = vsub.f32 %v139, %v2978
  %v2980 = vand.u32 %v2979, 4294901760
  %v2981 = vsub.f32 %v2979, %v2980
  %v2982 = vand.u32 %v2981, 4294901760
  %2983 = vmatpush1.msra.mxu0 %v2982
  %2984 = vmatprep.subr.mxu0 0.0
  %v2985 = vand.u32 %v140, 4294901760
  %v2986 = vsub.f32 %v140, %v2985
  %v2987 = vand.u32 %v2986, 4294901760
  %v2988 = vsub.f32 %v2986, %v2987
  %v2989 = vand.u32 %v2988, 4294901760
  %2990 = vmatpush1.msra.mxu0 %v2989
  %2991 = vmatprep.subr.mxu0 0.0
  %v2992 = vand.u32 %v141, 4294901760
  %v2993 = vsub.f32 %v141, %v2992
  %v2994 = vand.u32 %v2993, 4294901760
  %v2995 = vsub.f32 %v2993, %v2994
  %v2996 = vand.u32 %v2995, 4294901760
  %2997 = vmatpush1.msra.mxu0 %v2996
  %2998 = vmatprep.subr.mxu0 0.0
  %v2999 = vand.u32 %v142, 4294901760
  %v3000 = vsub.f32 %v142, %v2999
  %v3001 = vand.u32 %v3000, 4294901760
  %v3002 = vsub.f32 %v3000, %v3001
  %v3003 = vand.u32 %v3002, 4294901760
  %3004 = vmatpush1.msra.mxu0 %v3003
  %3005 = vmatprep.subr.mxu0 0.0
  %v3006 = vand.u32 %v143, 4294901760
  %v3007 = vsub.f32 %v143, %v3006
  %v3008 = vand.u32 %v3007, 4294901760
  %v3009 = vsub.f32 %v3007, %v3008
  %v3010 = vand.u32 %v3009, 4294901760
  %3011 = vmatpush1.msra.mxu0 %v3010
  %3012 = vmatprep.subr.mxu0 0.0
  %v3013 = vand.u32 %v144, 4294901760
  %v3014 = vsub.f32 %v144, %v3013
  %v3015 = vand.u32 %v3014, 4294901760
  %v3016 = vsub.f32 %v3014, %v3015
  %v3017 = vand.u32 %v3016, 4294901760
  %3018 = vmatpush1.msra.mxu0 %v3017
  %3019 = vmatprep.subr.mxu0 0.0
  %v3020 = vand.u32 %v145, 4294901760
  %v3021 = vsub.f32 %v145, %v3020
  %v3022 = vand.u32 %v3021, 4294901760
  %v3023 = vsub.f32 %v3021, %v3022
  %v3024 = vand.u32 %v3023, 4294901760
  %3025 = vmatpush1.msra.mxu0 %v3024
  %3026 = vmatprep.subr.mxu0 0.0
  %v3027 = vand.u32 %v146, 4294901760
  %v3028 = vsub.f32 %v146, %v3027
  %v3029 = vand.u32 %v3028, 4294901760
  %v3030 = vsub.f32 %v3028, %v3029
  %v3031 = vand.u32 %v3030, 4294901760
  %3032 = vmatpush1.msra.mxu0 %v3031
  %3033 = vmatprep.subr.mxu0 0.0
  %v3034 = vand.u32 %v147, 4294901760
  %v3035 = vsub.f32 %v147, %v3034
  %v3036 = vand.u32 %v3035, 4294901760
  %v3037 = vsub.f32 %v3035, %v3036
  %v3038 = vand.u32 %v3037, 4294901760
  %3039 = vmatpush1.msra.mxu0 %v3038
  %3040 = vmatprep.subr.mxu0 0.0
  %v3041 = vand.u32 %v148, 4294901760
  %v3042 = vsub.f32 %v148, %v3041
  %v3043 = vand.u32 %v3042, 4294901760
  %v3044 = vsub.f32 %v3042, %v3043
  %v3045 = vand.u32 %v3044, 4294901760
  %3046 = vmatpush1.msra.mxu0 %v3045
  %3047 = vmatprep.subr.mxu0 0.0
  %v3048 = vand.u32 %v149, 4294901760
  %v3049 = vsub.f32 %v149, %v3048
  %v3050 = vand.u32 %v3049, 4294901760
  %v3051 = vsub.f32 %v3049, %v3050
  %v3052 = vand.u32 %v3051, 4294901760
  %3053 = vmatpush1.msra.mxu0 %v3052
  %3054 = vmatprep.subr.mxu0 0.0
  %v3055 = vand.u32 %v150, 4294901760
  %v3056 = vsub.f32 %v150, %v3055
  %v3057 = vand.u32 %v3056, 4294901760
  %v3058 = vsub.f32 %v3056, %v3057
  %v3059 = vand.u32 %v3058, 4294901760
  %3060 = vmatpush1.msra.mxu0 %v3059
  %3061 = vmatprep.subr.mxu0 0.0
  %v3062 = vand.u32 %v151, 4294901760
  %v3063 = vsub.f32 %v151, %v3062
  %v3064 = vand.u32 %v3063, 4294901760
  %v3065 = vsub.f32 %v3063, %v3064
  %v3066 = vand.u32 %v3065, 4294901760
  %3067 = vmatpush1.msra.mxu0 %v3066
  %3068 = vmatprep.subr.mxu0 0.0
  %v3069 = vand.u32 %v152, 4294901760
  %v3070 = vsub.f32 %v152, %v3069
  %v3071 = vand.u32 %v3070, 4294901760
  %v3072 = vsub.f32 %v3070, %v3071
  %v3073 = vand.u32 %v3072, 4294901760
  %3074 = vmatpush1.msra.mxu0 %v3073
  %v3075 = vand.u32 %v24, 4294901760
  %3076 = vmatprep.mubr.f32.mxu0 %v3075
  %v3077 = vand.u32 %v23, 4294901760
  %3078 = vmatmul.mubr.f32.gmra.mrb[0].mxu0 %v3077
  %v3079 = vpop.f32.mrb[0].mxu0
  %v3080 = vadd.f32 %v2848, %v3079
  %v3081 = vpop.f32.mrb[0].mxu0
  %3082 = vdwg.mxu0
  %3083 = vmatprep.subr.mxu0 0.0
  %v3084 = vand.u32 %v121, 4294901760
  %v3085 = vsub.f32 %v121, %v3084
  %3086 = vmatpush1.msra.mxu0 %v3085
  %3087 = vmatprep.subr.mxu0 0.0
  %v3088 = vand.u32 %v122, 4294901760
  %v3089 = vsub.f32 %v122, %v3088
  %3090 = vmatpush1.msra.mxu0 %v3089
  %3091 = vmatprep.subr.mxu0 0.0
  %v3092 = vand.u32 %v123, 4294901760
  %v3093 = vsub.f32 %v123, %v3092
  %3094 = vmatpush1.msra.mxu0 %v3093
  %3095 = vmatprep.subr.mxu0 0.0
  %v3096 = vand.u32 %v124, 4294901760
  %v3097 = vsub.f32 %v124, %v3096
  %3098 = vmatpush1.msra.mxu0 %v3097
  %3099 = vmatprep.subr.mxu0 0.0
  %v3100 = vand.u32 %v125, 4294901760
  %v3101 = vsub.f32 %v125, %v3100
  %3102 = vmatpush1.msra.mxu0 %v3101
  %3103 = vmatprep.subr.mxu0 0.0
  %v3104 = vand.u32 %v126, 4294901760
  %v3105 = vsub.f32 %v126, %v3104
  %3106 = vmatpush1.msra.mxu0 %v3105
  %3107 = vmatprep.subr.mxu0 0.0
  %v3108 = vand.u32 %v127, 4294901760
  %v3109 = vsub.f32 %v127, %v3108
  %3110 = vmatpush1.msra.mxu0 %v3109
  %3111 = vmatprep.subr.mxu0 0.0
  %v3112 = vand.u32 %v128, 4294901760
  %v3113 = vsub.f32 %v128, %v3112
  %3114 = vmatpush1.msra.mxu0 %v3113
  %3115 = vmatprep.subr.mxu0 0.0
  %v3116 = vand.u32 %v129, 4294901760
  %v3117 = vsub.f32 %v129, %v3116
  %3118 = vmatpush1.msra.mxu0 %v3117
  %3119 = vmatprep.subr.mxu0 0.0
  %v3120 = vand.u32 %v130, 4294901760
  %v3121 = vsub.f32 %v130, %v3120
  %3122 = vmatpush1.msra.mxu0 %v3121
  %3123 = vmatprep.subr.mxu0 0.0
  %v3124 = vand.u32 %v131, 4294901760
  %v3125 = vsub.f32 %v131, %v3124
  %3126 = vmatpush1.msra.mxu0 %v3125
  %3127 = vmatprep.subr.mxu0 0.0
  %v3128 = vand.u32 %v132, 4294901760
  %v3129 = vsub.f32 %v132, %v3128
  %3130 = vmatpush1.msra.mxu0 %v3129
  %3131 = vmatprep.subr.mxu0 0.0
  %v3132 = vand.u32 %v133, 4294901760
  %v3133 = vsub.f32 %v133, %v3132
  %3134 = vmatpush1.msra.mxu0 %v3133
  %3135 = vmatprep.subr.mxu0 0.0
  %v3136 = vand.u32 %v134, 4294901760
  %v3137 = vsub.f32 %v134, %v3136
  %3138 = vmatpush1.msra.mxu0 %v3137
  %3139 = vmatprep.subr.mxu0 0.0
  %v3140 = vand.u32 %v135, 4294901760
  %v3141 = vsub.f32 %v135, %v3140
  %3142 = vmatpush1.msra.mxu0 %v3141
  %3143 = vmatprep.subr.mxu0 0.0
  %v3144 = vand.u32 %v136, 4294901760
  %v3145 = vsub.f32 %v136, %v3144
  %3146 = vmatpush1.msra.mxu0 %v3145
  %3147 = vmatprep.subr.mxu0 0.0
  %v3148 = vand.u32 %v137, 4294901760
  %v3149 = vsub.f32 %v137, %v3148
  %3150 = vmatpush1.msra.mxu0 %v3149
  %3151 = vmatprep.subr.mxu0 0.0
  %v3152 = vand.u32 %v138, 4294901760
  %v3153 = vsub.f32 %v138, %v3152
  %3154 = vmatpush1.msra.mxu0 %v3153
  %3155 = vmatprep.subr.mxu0 0.0
  %v3156 = vand.u32 %v139, 4294901760
  %v3157 = vsub.f32 %v139, %v3156
  %3158 = vmatpush1.msra.mxu0 %v3157
  %3159 = vmatprep.subr.mxu0 0.0
  %v3160 = vand.u32 %v140, 4294901760
  %v3161 = vsub.f32 %v140, %v3160
  %3162 = vmatpush1.msra.mxu0 %v3161
  %3163 = vmatprep.subr.mxu0 0.0
  %v3164 = vand.u32 %v141, 4294901760
  %v3165 = vsub.f32 %v141, %v3164
  %3166 = vmatpush1.msra.mxu0 %v3165
  %3167 = vmatprep.subr.mxu0 0.0
  %v3168 = vand.u32 %v142, 4294901760
  %v3169 = vsub.f32 %v142, %v3168
  %3170 = vmatpush1.msra.mxu0 %v3169
  %3171 = vmatprep.subr.mxu0 0.0
  %v3172 = vand.u32 %v143, 4294901760
  %v3173 = vsub.f32 %v143, %v3172
  %3174 = vmatpush1.msra.mxu0 %v3173
  %3175 = vmatprep.subr.mxu0 0.0
  %v3176 = vand.u32 %v144, 4294901760
  %v3177 = vsub.f32 %v144, %v3176
  %3178 = vmatpush1.msra.mxu0 %v3177
  %3179 = vmatprep.subr.mxu0 0.0
  %v3180 = vand.u32 %v145, 4294901760
  %v3181 = vsub.f32 %v145, %v3180
  %3182 = vmatpush1.msra.mxu0 %v3181
  %3183 = vmatprep.subr.mxu0 0.0
  %v3184 = vand.u32 %v146, 4294901760
  %v3185 = vsub.f32 %v146, %v3184
  %3186 = vmatpush1.msra.mxu0 %v3185
  %3187 = vmatprep.subr.mxu0 0.0
  %v3188 = vand.u32 %v147, 4294901760
  %v3189 = vsub.f32 %v147, %v3188
  %3190 = vmatpush1.msra.mxu0 %v3189
  %3191 = vmatprep.subr.mxu0 0.0
  %v3192 = vand.u32 %v148, 4294901760
  %v3193 = vsub.f32 %v148, %v3192
  %3194 = vmatpush1.msra.mxu0 %v3193
  %3195 = vmatprep.subr.mxu0 0.0
  %v3196 = vand.u32 %v149, 4294901760
  %v3197 = vsub.f32 %v149, %v3196
  %3198 = vmatpush1.msra.mxu0 %v3197
  %3199 = vmatprep.subr.mxu0 0.0
  %v3200 = vand.u32 %v150, 4294901760
  %v3201 = vsub.f32 %v150, %v3200
  %3202 = vmatpush1.msra.mxu0 %v3201
  %3203 = vmatprep.subr.mxu0 0.0
  %v3204 = vand.u32 %v151, 4294901760
  %v3205 = vsub.f32 %v151, %v3204
  %3206 = vmatpush1.msra.mxu0 %v3205
  %3207 = vmatprep.subr.mxu0 0.0
  %v3208 = vand.u32 %v152, 4294901760
  %v3209 = vsub.f32 %v152, %v3208
  %3210 = vmatpush1.msra.mxu0 %v3209
  %v3211 = vand.u32 %v24, 4294901760
  %v3212 = vsub.f32 %v24, %v3211
  %3213 = vmatprep.mubr.f32.mxu0 %v3212
  %v3214 = vand.u32 %v23, 4294901760
  %v3215 = vsub.f32 %v23, %v3214
  %3216 = vmatmul.mubr.f32.gmra.mrb[0].mxu0 %v3215
  %v3217 = vpop.f32.mrb[0].mxu0
  %v3218 = vadd.f32 %v3080, %v3217
  %v3219 = vpop.f32.mrb[0].mxu0
  %3220 = vdwg.mxu0
  %3221 = vmatprep.subr.mxu0 0.0
  %v3222 = vand.u32 %v121, 4294901760
  %3223 = vmatpush1.msra.mxu0 %v3222
  %3224 = vmatprep.subr.mxu0 0.0
  %v3225 = vand.u32 %v122, 4294901760
  %3226 = vmatpush1.msra.mxu0 %v3225
  %3227 = vmatprep.subr.mxu0 0.0
  %v3228 = vand.u32 %v123, 4294901760
  %3229 = vmatpush1.msra.mxu0 %v3228
  %3230 = vmatprep.subr.mxu0 0.0
  %v3231 = vand.u32 %v124, 4294901760
  %3232 = vmatpush1.msra.mxu0 %v3231
  %3233 = vmatprep.subr.mxu0 0.0
  %v3234 = vand.u32 %v125, 4294901760
  %3235 = vmatpush1.msra.mxu0 %v3234
  %3236 = vmatprep.subr.mxu0 0.0
  %v3237 = vand.u32 %v126, 4294901760
  %3238 = vmatpush1.msra.mxu0 %v3237
  %3239 = vmatprep.subr.mxu0 0.0
  %v3240 = vand.u32 %v127, 4294901760
  %3241 = vmatpush1.msra.mxu0 %v3240
  %3242 = vmatprep.subr.mxu0 0.0
  %v3243 = vand.u32 %v128, 4294901760
  %3244 = vmatpush1.msra.mxu0 %v3243
  %3245 = vmatprep.subr.mxu0 0.0
  %v3246 = vand.u32 %v129, 4294901760
  %3247 = vmatpush1.msra.mxu0 %v3246
  %3248 = vmatprep.subr.mxu0 0.0
  %v3249 = vand.u32 %v130, 4294901760
  %3250 = vmatpush1.msra.mxu0 %v3249
  %3251 = vmatprep.subr.mxu0 0.0
  %v3252 = vand.u32 %v131, 4294901760
  %3253 = vmatpush1.msra.mxu0 %v3252
  %3254 = vmatprep.subr.mxu0 0.0
  %v3255 = vand.u32 %v132, 4294901760
  %3256 = vmatpush1.msra.mxu0 %v3255
  %3257 = vmatprep.subr.mxu0 0.0
  %v3258 = vand.u32 %v133, 4294901760
  %3259 = vmatpush1.msra.mxu0 %v3258
  %3260 = vmatprep.subr.mxu0 0.0
  %v3261 = vand.u32 %v134, 4294901760
  %3262 = vmatpush1.msra.mxu0 %v3261
  %3263 = vmatprep.subr.mxu0 0.0
  %v3264 = vand.u32 %v135, 4294901760
  %3265 = vmatpush1.msra.mxu0 %v3264
  %3266 = vmatprep.subr.mxu0 0.0
  %v3267 = vand.u32 %v136, 4294901760
  %3268 = vmatpush1.msra.mxu0 %v3267
  %3269 = vmatprep.subr.mxu0 0.0
  %v3270 = vand.u32 %v137, 4294901760
  %3271 = vmatpush1.msra.mxu0 %v3270
  %3272 = vmatprep.subr.mxu0 0.0
  %v3273 = vand.u32 %v138, 4294901760
  %3274 = vmatpush1.msra.mxu0 %v3273
  %3275 = vmatprep.subr.mxu0 0.0
  %v3276 = vand.u32 %v139, 4294901760
  %3277 = vmatpush1.msra.mxu0 %v3276
  %3278 = vmatprep.subr.mxu0 0.0
  %v3279 = vand.u32 %v140, 4294901760
  %3280 = vmatpush1.msra.mxu0 %v3279
  %3281 = vmatprep.subr.mxu0 0.0
  %v3282 = vand.u32 %v141, 4294901760
  %3283 = vmatpush1.msra.mxu0 %v3282
  %3284 = vmatprep.subr.mxu0 0.0
  %v3285 = vand.u32 %v142, 4294901760
  %3286 = vmatpush1.msra.mxu0 %v3285
  %3287 = vmatprep.subr.mxu0 0.0
  %v3288 = vand.u32 %v143, 4294901760
  %3289 = vmatpush1.msra.mxu0 %v3288
  %3290 = vmatprep.subr.mxu0 0.0
  %v3291 = vand.u32 %v144, 4294901760
  %3292 = vmatpush1.msra.mxu0 %v3291
  %3293 = vmatprep.subr.mxu0 0.0
  %v3294 = vand.u32 %v145, 4294901760
  %3295 = vmatpush1.msra.mxu0 %v3294
  %3296 = vmatprep.subr.mxu0 0.0
  %v3297 = vand.u32 %v146, 4294901760
  %3298 = vmatpush1.msra.mxu0 %v3297
  %3299 = vmatprep.subr.mxu0 0.0
  %v3300 = vand.u32 %v147, 4294901760
  %3301 = vmatpush1.msra.mxu0 %v3300
  %3302 = vmatprep.subr.mxu0 0.0
  %v3303 = vand.u32 %v148, 4294901760
  %3304 = vmatpush1.msra.mxu0 %v3303
  %3305 = vmatprep.subr.mxu0 0.0
  %v3306 = vand.u32 %v149, 4294901760
  %3307 = vmatpush1.msra.mxu0 %v3306
  %3308 = vmatprep.subr.mxu0 0.0
  %v3309 = vand.u32 %v150, 4294901760
  %3310 = vmatpush1.msra.mxu0 %v3309
  %3311 = vmatprep.subr.mxu0 0.0
  %v3312 = vand.u32 %v151, 4294901760
  %3313 = vmatpush1.msra.mxu0 %v3312
  %3314 = vmatprep.subr.mxu0 0.0
  %v3315 = vand.u32 %v152, 4294901760
  %3316 = vmatpush1.msra.mxu0 %v3315
  %v3317 = vand.u32 %v24, 4294901760
  %v3318 = vsub.f32 %v24, %v3317
  %v3319 = vand.u32 %v3318, 4294901760
  %3320 = vmatprep.mubr.f32.mxu0 %v3319
  %v3321 = vand.u32 %v23, 4294901760
  %v3322 = vsub.f32 %v23, %v3321
  %v3323 = vand.u32 %v3322, 4294901760
  %3324 = vmatmul.mubr.f32.gmra.mrb[0].mxu0 %v3323
  %v3325 = vpop.f32.mrb[0].mxu0
  %v3326 = vadd.f32 %v3218, %v3325
  %v3327 = vpop.f32.mrb[0].mxu0
  %3328 = vdwg.mxu0
  %3329 = vmatprep.subr.mxu0 0.0
  %v3330 = vand.u32 %v121, 4294901760
  %v3331 = vsub.f32 %v121, %v3330
  %v3332 = vand.u32 %v3331, 4294901760
  %3333 = vmatpush1.msra.mxu0 %v3332
  %3334 = vmatprep.subr.mxu0 0.0
  %v3335 = vand.u32 %v122, 4294901760
  %v3336 = vsub.f32 %v122, %v3335
  %v3337 = vand.u32 %v3336, 4294901760
  %3338 = vmatpush1.msra.mxu0 %v3337
  %3339 = vmatprep.subr.mxu0 0.0
  %v3340 = vand.u32 %v123, 4294901760
  %v3341 = vsub.f32 %v123, %v3340
  %v3342 = vand.u32 %v3341, 4294901760
  %3343 = vmatpush1.msra.mxu0 %v3342
  %3344 = vmatprep.subr.mxu0 0.0
  %v3345 = vand.u32 %v124, 4294901760
  %v3346 = vsub.f32 %v124, %v3345
  %v3347 = vand.u32 %v3346, 4294901760
  %3348 = vmatpush1.msra.mxu0 %v3347
  %3349 = vmatprep.subr.mxu0 0.0
  %v3350 = vand.u32 %v125, 4294901760
  %v3351 = vsub.f32 %v125, %v3350
  %v3352 = vand.u32 %v3351, 4294901760
  %3353 = vmatpush1.msra.mxu0 %v3352
  %3354 = vmatprep.subr.mxu0 0.0
  %v3355 = vand.u32 %v126, 4294901760
  %v3356 = vsub.f32 %v126, %v3355
  %v3357 = vand.u32 %v3356, 4294901760
  %3358 = vmatpush1.msra.mxu0 %v3357
  %3359 = vmatprep.subr.mxu0 0.0
  %v3360 = vand.u32 %v127, 4294901760
  %v3361 = vsub.f32 %v127, %v3360
  %v3362 = vand.u32 %v3361, 4294901760
  %3363 = vmatpush1.msra.mxu0 %v3362
  %3364 = vmatprep.subr.mxu0 0.0
  %v3365 = vand.u32 %v128, 4294901760
  %v3366 = vsub.f32 %v128, %v3365
  %v3367 = vand.u32 %v3366, 4294901760
  %3368 = vmatpush1.msra.mxu0 %v3367
  %3369 = vmatprep.subr.mxu0 0.0
  %v3370 = vand.u32 %v129, 4294901760
  %v3371 = vsub.f32 %v129, %v3370
  %v3372 = vand.u32 %v3371, 4294901760
  %3373 = vmatpush1.msra.mxu0 %v3372
  %3374 = vmatprep.subr.mxu0 0.0
  %v3375 = vand.u32 %v130, 4294901760
  %v3376 = vsub.f32 %v130, %v3375
  %v3377 = vand.u32 %v3376, 4294901760
  %3378 = vmatpush1.msra.mxu0 %v3377
  %3379 = vmatprep.subr.mxu0 0.0
  %v3380 = vand.u32 %v131, 4294901760
  %v3381 = vsub.f32 %v131, %v3380
  %v3382 = vand.u32 %v3381, 4294901760
  %3383 = vmatpush1.msra.mxu0 %v3382
  %3384 = vmatprep.subr.mxu0 0.0
  %v3385 = vand.u32 %v132, 4294901760
  %v3386 = vsub.f32 %v132, %v3385
  %v3387 = vand.u32 %v3386, 4294901760
  %3388 = vmatpush1.msra.mxu0 %v3387
  %3389 = vmatprep.subr.mxu0 0.0
  %v3390 = vand.u32 %v133, 4294901760
  %v3391 = vsub.f32 %v133, %v3390
  %v3392 = vand.u32 %v3391, 4294901760
  %3393 = vmatpush1.msra.mxu0 %v3392
  %3394 = vmatprep.subr.mxu0 0.0
  %v3395 = vand.u32 %v134, 4294901760
  %v3396 = vsub.f32 %v134, %v3395
  %v3397 = vand.u32 %v3396, 4294901760
  %3398 = vmatpush1.msra.mxu0 %v3397
  %3399 = vmatprep.subr.mxu0 0.0
  %v3400 = vand.u32 %v135, 4294901760
  %v3401 = vsub.f32 %v135, %v3400
  %v3402 = vand.u32 %v3401, 4294901760
  %3403 = vmatpush1.msra.mxu0 %v3402
  %3404 = vmatprep.subr.mxu0 0.0
  %v3405 = vand.u32 %v136, 4294901760
  %v3406 = vsub.f32 %v136, %v3405
  %v3407 = vand.u32 %v3406, 4294901760
  %3408 = vmatpush1.msra.mxu0 %v3407
  %3409 = vmatprep.subr.mxu0 0.0
  %v3410 = vand.u32 %v137, 4294901760
  %v3411 = vsub.f32 %v137, %v3410
  %v3412 = vand.u32 %v3411, 4294901760
  %3413 = vmatpush1.msra.mxu0 %v3412
  %3414 = vmatprep.subr.mxu0 0.0
  %v3415 = vand.u32 %v138, 4294901760
  %v3416 = vsub.f32 %v138, %v3415
  %v3417 = vand.u32 %v3416, 4294901760
  %3418 = vmatpush1.msra.mxu0 %v3417
  %3419 = vmatprep.subr.mxu0 0.0
  %v3420 = vand.u32 %v139, 4294901760
  %v3421 = vsub.f32 %v139, %v3420
  %v3422 = vand.u32 %v3421, 4294901760
  %3423 = vmatpush1.msra.mxu0 %v3422
  %3424 = vmatprep.subr.mxu0 0.0
  %v3425 = vand.u32 %v140, 4294901760
  %v3426 = vsub.f32 %v140, %v3425
  %v3427 = vand.u32 %v3426, 4294901760
  %3428 = vmatpush1.msra.mxu0 %v3427
  %3429 = vmatprep.subr.mxu0 0.0
  %v3430 = vand.u32 %v141, 4294901760
  %v3431 = vsub.f32 %v141, %v3430
  %v3432 = vand.u32 %v3431, 4294901760
  %3433 = vmatpush1.msra.mxu0 %v3432
  %3434 = vmatprep.subr.mxu0 0.0
  %v3435 = vand.u32 %v142, 4294901760
  %v3436 = vsub.f32 %v142, %v3435
  %v3437 = vand.u32 %v3436, 4294901760
  %3438 = vmatpush1.msra.mxu0 %v3437
  %3439 = vmatprep.subr.mxu0 0.0
  %v3440 = vand.u32 %v143, 4294901760
  %v3441 = vsub.f32 %v143, %v3440
  %v3442 = vand.u32 %v3441, 4294901760
  %3443 = vmatpush1.msra.mxu0 %v3442
  %3444 = vmatprep.subr.mxu0 0.0
  %v3445 = vand.u32 %v144, 4294901760
  %v3446 = vsub.f32 %v144, %v3445
  %v3447 = vand.u32 %v3446, 4294901760
  %3448 = vmatpush1.msra.mxu0 %v3447
  %3449 = vmatprep.subr.mxu0 0.0
  %v3450 = vand.u32 %v145, 4294901760
  %v3451 = vsub.f32 %v145, %v3450
  %v3452 = vand.u32 %v3451, 4294901760
  %3453 = vmatpush1.msra.mxu0 %v3452
  %3454 = vmatprep.subr.mxu0 0.0
  %v3455 = vand.u32 %v146, 4294901760
  %v3456 = vsub.f32 %v146, %v3455
  %v3457 = vand.u32 %v3456, 4294901760
  %3458 = vmatpush1.msra.mxu0 %v3457
  %3459 = vmatprep.subr.mxu0 0.0
  %v3460 = vand.u32 %v147, 4294901760
  %v3461 = vsub.f32 %v147, %v3460
  %v3462 = vand.u32 %v3461, 4294901760
  %3463 = vmatpush1.msra.mxu0 %v3462
  %3464 = vmatprep.subr.mxu0 0.0
  %v3465 = vand.u32 %v148, 4294901760
  %v3466 = vsub.f32 %v148, %v3465
  %v3467 = vand.u32 %v3466, 4294901760
  %3468 = vmatpush1.msra.mxu0 %v3467
  %3469 = vmatprep.subr.mxu0 0.0
  %v3470 = vand.u32 %v149, 4294901760
  %v3471 = vsub.f32 %v149, %v3470
  %v3472 = vand.u32 %v3471, 4294901760
  %3473 = vmatpush1.msra.mxu0 %v3472
  %3474 = vmatprep.subr.mxu0 0.0
  %v3475 = vand.u32 %v150, 4294901760
  %v3476 = vsub.f32 %v150, %v3475
  %v3477 = vand.u32 %v3476, 4294901760
  %3478 = vmatpush1.msra.mxu0 %v3477
  %3479 = vmatprep.subr.mxu0 0.0
  %v3480 = vand.u32 %v151, 4294901760
  %v3481 = vsub.f32 %v151, %v3480
  %v3482 = vand.u32 %v3481, 4294901760
  %3483 = vmatpush1.msra.mxu0 %v3482
  %3484 = vmatprep.subr.mxu0 0.0
  %v3485 = vand.u32 %v152, 4294901760
  %v3486 = vsub.f32 %v152, %v3485
  %v3487 = vand.u32 %v3486, 4294901760
  %3488 = vmatpush1.msra.mxu0 %v3487
  %v3489 = vand.u32 %v24, 4294901760
  %3490 = vmatprep.mubr.f32.mxu0 %v3489
  %v3491 = vand.u32 %v23, 4294901760
  %3492 = vmatmul.mubr.f32.gmra.mrb[0].mxu0 %v3491
  %v3493 = vpop.f32.mrb[0].mxu0
  %v3494 = vadd.f32 %v3326, %v3493
  %v3495 = vpop.f32.mrb[0].mxu0
  %3496 = vdwg.mxu0
  %3497 = vmatprep.subr.mxu0 0.0
  %v3498 = vand.u32 %v121, 4294901760
  %3499 = vmatpush1.msra.mxu0 %v3498
  %3500 = vmatprep.subr.mxu0 0.0
  %v3501 = vand.u32 %v122, 4294901760
  %3502 = vmatpush1.msra.mxu0 %v3501
  %3503 = vmatprep.subr.mxu0 0.0
  %v3504 = vand.u32 %v123, 4294901760
  %3505 = vmatpush1.msra.mxu0 %v3504
  %3506 = vmatprep.subr.mxu0 0.0
  %v3507 = vand.u32 %v124, 4294901760
  %3508 = vmatpush1.msra.mxu0 %v3507
  %3509 = vmatprep.subr.mxu0 0.0
  %v3510 = vand.u32 %v125, 4294901760
  %3511 = vmatpush1.msra.mxu0 %v3510
  %3512 = vmatprep.subr.mxu0 0.0
  %v3513 = vand.u32 %v126, 4294901760
  %3514 = vmatpush1.msra.mxu0 %v3513
  %3515 = vmatprep.subr.mxu0 0.0
  %v3516 = vand.u32 %v127, 4294901760
  %3517 = vmatpush1.msra.mxu0 %v3516
  %3518 = vmatprep.subr.mxu0 0.0
  %v3519 = vand.u32 %v128, 4294901760
  %3520 = vmatpush1.msra.mxu0 %v3519
  %3521 = vmatprep.subr.mxu0 0.0
  %v3522 = vand.u32 %v129, 4294901760
  %3523 = vmatpush1.msra.mxu0 %v3522
  %3524 = vmatprep.subr.mxu0 0.0
  %v3525 = vand.u32 %v130, 4294901760
  %3526 = vmatpush1.msra.mxu0 %v3525
  %3527 = vmatprep.subr.mxu0 0.0
  %v3528 = vand.u32 %v131, 4294901760
  %3529 = vmatpush1.msra.mxu0 %v3528
  %3530 = vmatprep.subr.mxu0 0.0
  %v3531 = vand.u32 %v132, 4294901760
  %3532 = vmatpush1.msra.mxu0 %v3531
  %3533 = vmatprep.subr.mxu0 0.0
  %v3534 = vand.u32 %v133, 4294901760
  %3535 = vmatpush1.msra.mxu0 %v3534
  %3536 = vmatprep.subr.mxu0 0.0
  %v3537 = vand.u32 %v134, 4294901760
  %3538 = vmatpush1.msra.mxu0 %v3537
  %3539 = vmatprep.subr.mxu0 0.0
  %v3540 = vand.u32 %v135, 4294901760
  %3541 = vmatpush1.msra.mxu0 %v3540
  %3542 = vmatprep.subr.mxu0 0.0
  %v3543 = vand.u32 %v136, 4294901760
  %3544 = vmatpush1.msra.mxu0 %v3543
  %3545 = vmatprep.subr.mxu0 0.0
  %v3546 = vand.u32 %v137, 4294901760
  %3547 = vmatpush1.msra.mxu0 %v3546
  %3548 = vmatprep.subr.mxu0 0.0
  %v3549 = vand.u32 %v138, 4294901760
  %3550 = vmatpush1.msra.mxu0 %v3549
  %3551 = vmatprep.subr.mxu0 0.0
  %v3552 = vand.u32 %v139, 4294901760
  %3553 = vmatpush1.msra.mxu0 %v3552
  %3554 = vmatprep.subr.mxu0 0.0
  %v3555 = vand.u32 %v140, 4294901760
  %3556 = vmatpush1.msra.mxu0 %v3555
  %3557 = vmatprep.subr.mxu0 0.0
  %v3558 = vand.u32 %v141, 4294901760
  %3559 = vmatpush1.msra.mxu0 %v3558
  %3560 = vmatprep.subr.mxu0 0.0
  %v3561 = vand.u32 %v142, 4294901760
  %3562 = vmatpush1.msra.mxu0 %v3561
  %3563 = vmatprep.subr.mxu0 0.0
  %v3564 = vand.u32 %v143, 4294901760
  %3565 = vmatpush1.msra.mxu0 %v3564
  %3566 = vmatprep.subr.mxu0 0.0
  %v3567 = vand.u32 %v144, 4294901760
  %3568 = vmatpush1.msra.mxu0 %v3567
  %3569 = vmatprep.subr.mxu0 0.0
  %v3570 = vand.u32 %v145, 4294901760
  %3571 = vmatpush1.msra.mxu0 %v3570
  %3572 = vmatprep.subr.mxu0 0.0
  %v3573 = vand.u32 %v146, 4294901760
  %3574 = vmatpush1.msra.mxu0 %v3573
  %3575 = vmatprep.subr.mxu0 0.0
  %v3576 = vand.u32 %v147, 4294901760
  %3577 = vmatpush1.msra.mxu0 %v3576
  %3578 = vmatprep.subr.mxu0 0.0
  %v3579 = vand.u32 %v148, 4294901760
  %3580 = vmatpush1.msra.mxu0 %v3579
  %3581 = vmatprep.subr.mxu0 0.0
  %v3582 = vand.u32 %v149, 4294901760
  %3583 = vmatpush1.msra.mxu0 %v3582
  %3584 = vmatprep.subr.mxu0 0.0
  %v3585 = vand.u32 %v150, 4294901760
  %3586 = vmatpush1.msra.mxu0 %v3585
  %3587 = vmatprep.subr.mxu0 0.0
  %v3588 = vand.u32 %v151, 4294901760
  %3589 = vmatpush1.msra.mxu0 %v3588
  %3590 = vmatprep.subr.mxu0 0.0
  %v3591 = vand.u32 %v152, 4294901760
  %3592 = vmatpush1.msra.mxu0 %v3591
  %v3593 = vand.u32 %v24, 4294901760
  %3594 = vmatprep.mubr.f32.mxu0 %v3593
  %v3595 = vand.u32 %v23, 4294901760
  %3596 = vmatmul.mubr.f32.gmra.mrb[0].mxu0 %v3595
  %v3597 = vpop.f32.mrb[0].mxu0
  %v3598 = vadd.f32 %v3494, %v3597
  %v3599 = vpop.f32.mrb[0].mxu0
  %3600 = vdwg.mxu0
  %v3601 = vld [vmem:[%s2] sm:$0x1]
  %v3603 = vlaneseq
  %v3604 = vshrl.u32 %v3603, 7
  %v3605 = vsub.s32 0, %v3604
  %v3606 = vrot.slane %v3601, %v3605
  %v3608 = vmul.f32 %v3598, %v3606
  %v3609 = vld [vmem:[%s3] sm:$0x1]
  %v3611 = vlaneseq
  %v3612 = vshrl.u32 %v3611, 7
  %v3613 = vsub.s32 0, %v3612
  %v3614 = vrot.slane %v3609, %v3613
  %v3616 = vadd.f32 %v3608, %v3614
  %3617 = vst [vmem:[%s4] sm:$0xff] %v3616
  // Predicated region
  $region18: #{_lambda_.9} parent=0 // pred_check
    _
  $region19: #{_lambda_.9} parent=0 // pred_check_branch
    %3619 = sbr.rel (0) target = $region21
  $region20: #{_lambda_.9} parent=0 // pred_region
    _
  $region21: #{_lambda_.9} parent=0 // pred_fallthru
    _
  // Predicated region
  $region22: #{_lambda_.9} parent=0 // pred_check
    _
  $region23: #{_lambda_.9} parent=0 // pred_check_branch
    %3621 = sbr.rel (0) target = $region25
  $region24: #{_lambda_.9} parent=0 // pred_region
    _
  $region25: #{_lambda_.9} parent=0 // pred_fallthru
    _

</llo_original>
